<compile_context>
chip_gen: v5e
topology: v5e:2x2
jax: 0.10.0
libtpu: 0.0.40
codegen_flags: <defaults>
</compile_context>

<pallas_src>
import math

import jax
import jax.numpy as jnp
from jax.experimental import pallas as pl
from jax.experimental.pallas import tpu as pltpu


def _round_up(n, m):
    return ((n + m - 1) // m) * m


_SQRT_HALF = 0.7071067811865476


def _erf(z):
    # Abramowitz & Stegun 7.1.26 rational approximation, |err| <= 1.5e-7
    # (plus ~5e-4 from the approx reciprocal, well inside the bf16 output
    # rounding).  Built only from abs/mul/add/recip/exp/where so it lowers
    # cleanly in Mosaic and matches torch.nn.GELU's exact (erf) form.
    a1, a2, a3, a4, a5 = 0.254829592, -0.284496736, 1.421413741, -1.453152027, 1.061405429
    p = 0.3275911
    za = jnp.abs(z)
    t = pl.reciprocal(1.0 + p * za, approx=True)   # EUP slot (exp already there)
    poly = t * (a1 + t * (a2 + t * (a3 + t * (a4 + t * a5))))
    erf_abs = 1.0 - poly * jnp.exp(-za * za)
    return jnp.where(z < 0, -erf_abs, erf_abs)


def _gelu_exact(h):
    # Exact GELU: 0.5 * h * (1 + erf(h / sqrt(2)))  (PyTorch nn.GELU default).
    return 0.5 * h * (1.0 + _erf(h * _SQRT_HALF))


def _vmem_capacity_bytes():
    try:
        return int(pltpu.get_tpu_info().vmem_capacity_bytes)
    except Exception:
        return 64 * 1024 * 1024   # conservative (v7x per-TC) fallback


def feed_forward(x, w1, b1, w2, b2, *, tm_max=512):
    """FeedForward.forward(x): Linear(D->H) -> GELU(exact) -> Linear(H->D).

    x: (..., D); w1: (D, H), b1: (H,), w2: (H, D), b2: (D,).
    Dropout(p=0.0) is the identity and is elided.
    """
    *lead, D = x.shape
    H = w1.shape[1]
    assert w1.shape == (D, H) and b1.shape == (H,)
    assert w2.shape == (H, D) and b2.shape == (D,)

    M = int(math.prod(lead)) if lead else 1
    if M == 0:
        return jnp.zeros(x.shape, x.dtype)

    x2 = x.reshape(M, D)
    b1_2 = b1.reshape(1, H)
    b2_2 = b2.reshape(1, D)

    x_isz = x2.dtype.itemsize
    w_isz = w1.dtype.itemsize

    # Generation-aware VMEM budget (v5e/v6e: 128 MiB/TC -> ~112; v7x: 64 -> ~56).
    cap = (_vmem_capacity_bytes() * 7) // 8
    budget = (cap * 9) // 10

    # ---- token tiling (no whole-tensor pad; ragged last tile is fine since
    # each output row depends only on its own input row) --------------------
    n_m = pl.cdiv(M, tm_max)
    if n_m == 1 and M > 16:
        n_m = 2                       # keep both v7x TensorCores busy
    if n_m > 1 and n_m % 2:
        n_m += 1                      # even tile count balances the 2 TCs
    tm = min(tm_max, max(8, _round_up(pl.cdiv(M, n_m), 8)))

    # ---- hidden (H) split: keep W1/W2 fully resident when they fit, else
    # chunk H so huge widths still compile and weight DMA overlaps compute ---
    th, nh = H, 1
    while th > 128:
        wbuf = 1 if nh == 1 else 2
        if wbuf * 2 * D * th * w_isz <= budget // 2:
            break
        nh = max(2, nh * 2)
        th = min(H, _round_up(pl.cdiv(H, nh), 128))
    nh = pl.cdiv(H, th)
    resident = nh == 1

    def _vmem_est(tm_):
        wbuf = 1 if resident else 2
        return (
            4 * tm_ * D * x_isz                            # x + out tiles (2-buf)
            + wbuf * (2 * D * th + 8 * (th + D)) * w_isz   # W1/W2 chunks + biases
            + tm_ * D * 4                                  # f32 accumulator scratch
            + 3 * tm_ * th * 4                             # f32 hidden + GELU temps
        )

    while tm > 8 and _vmem_est(tm) > budget:
        tm = max(8, _round_up(tm // 2, 8))
    n_m = pl.cdiv(M, tm)
    vmem_limit = int(min(cap, max(32 * 1024 * 1024, 2 * _vmem_est(tm))))

    need_mask = (H % th) != 0   # ragged H chunk -> zero padded cols/rows

    def kernel(x_ref, w1_ref, b1_ref, w2_ref, b2_ref, o_ref, acc_ref):
        j = pl.program_id(1)

        @pl.when(j == 0)
        def _init():
            acc_ref[...] = jnp.zeros_like(acc_ref)

        h = jnp.dot(x_ref[...], w1_ref[...], preferred_element_type=jnp.float32)
        h = h + b1_ref[...].astype(jnp.float32)
        h = _gelu_exact(h)
        w2c = w2_ref[...]
        if need_mask:
            # Zero out the out-of-range hidden columns/rows of the last chunk so
            # padded garbage cannot pollute the accumulator.
            col = jax.lax.broadcasted_iota(jnp.int32, h.shape, 1) + j * th
            h = jnp.where(col < H, h, 0.0)
            row = jax.lax.broadcasted_iota(jnp.int32, w2c.shape, 0) + j * th
            w2c = jnp.where(row < H, w2c, jnp.zeros_like(w2c))
        # TODO(synk): training-mode Dropout (p > 0) omitted (identity at p=0.0 /
        # eval); it would need pltpu.prng_seed + pltpu.prng_random_bits masks.
        acc_ref[...] += jnp.dot(h.astype(w2c.dtype), w2c,
                                preferred_element_type=jnp.float32)

        @pl.when(j == pl.num_programs(1) - 1)
        def _finalize():
            o_ref[...] = (acc_ref[...] + b2_ref[...].astype(jnp.float32)
                          ).astype(o_ref.dtype)

    def run(single_buffer_consts):
        def cspec(shape, imap, constant):
            # Constant-index operands never need a second pipeline buffer.
            if single_buffer_consts and constant:
                return pl.BlockSpec(shape, imap, pipeline_mode=pl.Buffered(1))
            return pl.BlockSpec(shape, imap)

        return pl.pallas_call(
            kernel,
            out_shape=jax.ShapeDtypeStruct((M, D), x.dtype),
            grid_spec=pltpu.PrefetchScalarGridSpec(
                num_scalar_prefetch=0,
                grid=(n_m, nh),
                in_specs=[
                    pl.BlockSpec((tm, D), lambda i, j: (i, 0)),       # x tile
                    cspec((D, th), lambda i, j: (0, j), resident),    # W1 chunk
                    cspec((1, th), lambda i, j: (0, j), resident),    # b1 chunk
                    cspec((th, D), lambda i, j: (j, 0), resident),    # W2 chunk
                    cspec((1, D), lambda i, j: (0, 0), True),         # b2
                ],
                out_specs=pl.BlockSpec((tm, D), lambda i, j: (i, 0)),
                scratch_shapes=[pltpu.VMEM((tm, D), jnp.float32)],
            ),
            compiler_params=pltpu.CompilerParams(
                dimension_semantics=("parallel", "arbitrary"),
                vmem_limit_bytes=vmem_limit,
            ),
        )(x2, w1, b1_2, w2, b2_2)

    try:
        out2 = run(True)     # single-buffered constant-index operands
    except Exception:
        out2 = run(False)    # fall back if pipeline_mode=Buffered(1) is rejected

    return out2.reshape(*lead, D)


def _reference(x, w1, b1, w2, b2):
    # Pure-JAX mirror of the kernel's precision recipe: native-dtype (bf16)
    # matmul inputs, f32 accumulation, exact-erf GELU (PyTorch nn.GELU default).
    *lead, D = x.shape
    x2 = x.reshape(-1, D)
    h = jnp.dot(x2, w1, preferred_element_type=jnp.float32) + b1.astype(jnp.float32)
    h = jax.nn.gelu(h, approximate=False)
    y = jnp.dot(h.astype(w2.dtype), w2, preferred_element_type=jnp.float32)
    y = y + b2.astype(jnp.float32)
    return y.astype(x.dtype).reshape(*lead, D)


if __name__ == "__main__":
    # Small, lane-dense shapes (D, H multiples of 128; D >= 256 fills the
    # 256-wide v6e/v7x MXU).  B*S = 300 is deliberately not a multiple of the
    # token tile so the ragged-last-tile (no whole-tensor pad) path runs, and
    # the adaptive tiling yields a 2-tile grid for the v7x megacore.
    B, S, D, H = 3, 100, 256, 512

    key = jax.random.PRNGKey(0)
    kx, k1, k2, k3, k4 = jax.random.split(key, 5)

    # bf16 activations / weights -> full-rate MXU path; accumulation stays f32.
    x = jax.random.normal(kx, (B, S, D), dtype=jnp.float32).astype(jnp.bfloat16)
    w1 = (jax.random.normal(k1, (D, H), dtype=jnp.float32) / jnp.sqrt(D)).astype(jnp.bfloat16)
    b1 = (jax.random.normal(k2, (H,), dtype=jnp.float32) * 0.01).astype(jnp.bfloat16)
    w2 = (jax.random.normal(k3, (H, D), dtype=jnp.float32) / jnp.sqrt(H)).astype(jnp.bfloat16)
    b2 = (jax.random.normal(k4, (D,), dtype=jnp.float32) * 0.01).astype(jnp.bfloat16)

    out = feed_forward(x, w1, b1, w2, b2)
    out = jax.block_until_ready(out)

    ref = _reference(x, w1, b1, w2, b2)
    assert out.shape == x.shape and out.dtype == x.dtype
    assert jnp.allclose(out.astype(jnp.float32), ref.astype(jnp.float32),
                        atol=3e-2, rtol=3e-2), "mismatch vs reference"

    print("KERNEL_OK")
</pallas_src>

<mosaic_0001>
module attributes {stable_mosaic.version = 11 : i64} {
  func.func @kernel(%arg0: i32, %arg1: i32, %arg2: memref<152x256xbf16, #tpu.memory_space<vmem>>, %arg3: memref<256x512xbf16, #tpu.memory_space<vmem>>, %arg4: memref<1x512xbf16, #tpu.memory_space<vmem>>, %arg5: memref<512x256xbf16, #tpu.memory_space<vmem>>, %arg6: memref<1x256xbf16, #tpu.memory_space<vmem>>, %arg7: memref<152x256xbf16, #tpu.memory_space<vmem>>, %arg8: memref<152x256xf32, #tpu.memory_space<vmem>>) attributes {dimension_semantics = [#tpu.dimension_semantics<parallel>, #tpu.dimension_semantics<arbitrary>], iteration_bounds = array<i64: 2, 1>, scalar_prefetch = 0 : i64, scratch_operands = 1 : i64, tpu.core_type = #tpu.core_type<tc>, window_params = [{transform_indices = @transform_0, window_bounds = array<i64: 152, 256>}, {pipeline_mode = #tpu.pipeline_mode<synchronous>, transform_indices = @transform_1, window_bounds = array<i64: 256, 512>}, {pipeline_mode = #tpu.pipeline_mode<synchronous>, transform_indices = @transform_2, window_bounds = array<i64: 1, 512>}, {pipeline_mode = #tpu.pipeline_mode<synchronous>, transform_indices = @transform_3, window_bounds = array<i64: 512, 256>}, {pipeline_mode = #tpu.pipeline_mode<synchronous>, transform_indices = @transform_4, window_bounds = array<i64: 1, 256>}, {transform_indices = @transform_5, window_bounds = array<i64: 152, 256>}]} {
    %c0_i32 = arith.constant 0 : i32
    %0 = arith.cmpi eq, %arg1, %c0_i32 : i32
    %1 = arith.extui %0 : i1 to i32
    %c0_i32_0 = arith.constant 0 : i32
    %2 = arith.cmpi ne, %1, %c0_i32_0 : i32
    scf.if %2 {
      %cst_29 = arith.constant 0.000000e+00 : f32
      %58 = vector.broadcast %cst_29 : f32 to vector<152x256xf32>
      %c0_30 = arith.constant 0 : index
      %c0_31 = arith.constant 0 : index
      %59 = vector.load %arg8[%c0_30, %c0_31] : memref<152x256xf32, #tpu.memory_space<vmem>>, vector<152x256xf32>
      tpu.vector_store %arg8[%c0_30, %c0_31], %58 {strides = array<i32>} : memref<152x256xf32, #tpu.memory_space<vmem>>, vector<152x256xf32>,
    } else {
    }
    %c0 = arith.constant 0 : index
    %c0_1 = arith.constant 0 : index
    %3 = vector.load %arg2[%c0, %c0_1] : memref<152x256xbf16, #tpu.memory_space<vmem>>, vector<152x256xbf16>
    %c0_2 = arith.constant 0 : index
    %c0_3 = arith.constant 0 : index
    %4 = vector.load %arg3[%c0_2, %c0_3] : memref<256x512xbf16, #tpu.memory_space<vmem>>, vector<256x512xbf16>
    %cst = arith.constant dense<0.000000e+00> : vector<152x512xf32>
    %5 = tpu.matmul %3, %4, %cst {dimension_numbers = #tpu.dot_dimension_numbers<[1], [0], [0], [1], [0, 0, 1, 1], [], []>} : vector<152x256xbf16>, vector<256x512xbf16>, vector<152x512xf32> -> vector<152x512xf32>
    %c0_4 = arith.constant 0 : index
    %c0_5 = arith.constant 0 : index
    %6 = vector.load %arg4[%c0_4, %c0_5] : memref<1x512xbf16, #tpu.memory_space<vmem>>, vector<1x512xbf16>
    %7 = arith.extf %6 : vector<1x512xbf16> to vector<1x512xf32>
    %8 = vector.broadcast %7 : vector<1x512xf32> to vector<152x512xf32>
    %9 = arith.addf %5, %8 : vector<152x512xf32>
    %cst_6 = arith.constant 5.000000e-01 : f32
    %10 = vector.broadcast %cst_6 : f32 to vector<152x512xf32>
    %11 = arith.mulf %10, %9 : vector<152x512xf32>
    %cst_7 = arith.constant 0.707106769 : f32
    %12 = vector.broadcast %cst_7 : f32 to vector<152x512xf32>
    %13 = arith.mulf %9, %12 : vector<152x512xf32>
    %14 = math.absf %13 : vector<152x512xf32>
    %cst_8 = arith.constant 0.327591091 : f32
    %15 = vector.broadcast %cst_8 : f32 to vector<152x512xf32>
    %16 = arith.mulf %15, %14 : vector<152x512xf32>
    %cst_9 = arith.constant 1.000000e+00 : f32
    %17 = vector.broadcast %cst_9 : f32 to vector<152x512xf32>
    %18 = arith.addf %17, %16 : vector<152x512xf32>
    %19 = tpu.reciprocal %18 {approx = true} : vector<152x512xf32> -> vector<152x512xf32>
    %cst_10 = arith.constant 1.06140542 : f32
    %20 = vector.broadcast %cst_10 : f32 to vector<152x512xf32>
    %21 = arith.mulf %19, %20 : vector<152x512xf32>
    %cst_11 = arith.constant -1.45315206 : f32
    %22 = vector.broadcast %cst_11 : f32 to vector<152x512xf32>
    %23 = arith.addf %22, %21 : vector<152x512xf32>
    %24 = arith.mulf %19, %23 : vector<152x512xf32>
    %cst_12 = arith.constant 1.42141378 : f32
    %25 = vector.broadcast %cst_12 : f32 to vector<152x512xf32>
    %26 = arith.addf %25, %24 : vector<152x512xf32>
    %27 = arith.mulf %19, %26 : vector<152x512xf32>
    %cst_13 = arith.constant -0.284496725 : f32
    %28 = vector.broadcast %cst_13 : f32 to vector<152x512xf32>
    %29 = arith.addf %28, %27 : vector<152x512xf32>
    %30 = arith.mulf %19, %29 : vector<152x512xf32>
    %cst_14 = arith.constant 0.254829586 : f32
    %31 = vector.broadcast %cst_14 : f32 to vector<152x512xf32>
    %32 = arith.addf %31, %30 : vector<152x512xf32>
    %33 = arith.mulf %19, %32 : vector<152x512xf32>
    %cst_15 = arith.constant 0.000000e+00 : f32
    %34 = vector.broadcast %cst_15 : f32 to vector<152x512xf32>
    %35 = arith.subf %34, %14 : vector<152x512xf32>
    %36 = arith.mulf %35, %14 : vector<152x512xf32>
    %37 = math.exp %36 : vector<152x512xf32>
    %38 = arith.mulf %33, %37 : vector<152x512xf32>
    %cst_16 = arith.constant 1.000000e+00 : f32
    %39 = vector.broadcast %cst_16 : f32 to vector<152x512xf32>
    %40 = arith.subf %39, %38 : vector<152x512xf32>
    %cst_17 = arith.constant 0.000000e+00 : f32
    %41 = vector.broadcast %cst_17 : f32 to vector<152x512xf32>
    %42 = arith.cmpf olt, %13, %41 : vector<152x512xf32>
    %cst_18 = arith.constant 0.000000e+00 : f32
    %43 = vector.broadcast %cst_18 : f32 to vector<152x512xf32>
    %44 = arith.subf %43, %40 : vector<152x512xf32>
    %45 = arith.select %42, %44, %40 : vector<152x512xi1>, vector<152x512xf32>
    %cst_19 = arith.constant 1.000000e+00 : f32
    %46 = vector.broadcast %cst_19 : f32 to vector<152x512xf32>
    %47 = arith.addf %46, %45 : vector<152x512xf32>
    %48 = arith.mulf %11, %47 : vector<152x512xf32>
    %c0_20 = arith.constant 0 : index
    %c0_21 = arith.constant 0 : index
    %49 = vector.load %arg5[%c0_20, %c0_21] : memref<512x256xbf16, #tpu.memory_space<vmem>>, vector<512x256xbf16>
    %c0_22 = arith.constant 0 : index
    %c0_23 = arith.constant 0 : index
    %50 = vector.load %arg8[%c0_22, %c0_23] : memref<152x256xf32, #tpu.memory_space<vmem>>, vector<152x256xf32>
    %51 = arith.truncf %48 : vector<152x512xf32> to vector<152x512xbf16>
    %cst_24 = arith.constant dense<0.000000e+00> : vector<152x256xf32>
    %52 = tpu.matmul %51, %49, %cst_24 {dimension_numbers = #tpu.dot_dimension_numbers<[1], [0], [0], [1], [0, 0, 1, 1], [], []>} : vector<152x512xbf16>, vector<512x256xbf16>, vector<152x256xf32> -> vector<152x256xf32>
    %53 = arith.addf %50, %52 : vector<152x256xf32>
    %c0_25 = arith.constant 0 : index
    %c0_26 = arith.constant 0 : index
    %54 = vector.load %arg8[%c0_25, %c0_26] : memref<152x256xf32, #tpu.memory_space<vmem>>, vector<152x256xf32>
    tpu.vector_store %arg8[%c0_25, %c0_26], %53 {strides = array<i32>} : memref<152x256xf32, #tpu.memory_space<vmem>>, vector<152x256xf32>,
    %c0_i32_27 = arith.constant 0 : i32
    %55 = arith.cmpi eq, %arg1, %c0_i32_27 : i32
    %56 = arith.extui %55 : i1 to i32
    %c0_i32_28 = arith.constant 0 : i32
    %57 = arith.cmpi ne, %56, %c0_i32_28 : i32
    scf.if %57 {
      %c0_29 = arith.constant 0 : index
      %c0_30 = arith.constant 0 : index
      %58 = vector.load %arg8[%c0_29, %c0_30] : memref<152x256xf32, #tpu.memory_space<vmem>>, vector<152x256xf32>
      %c0_31 = arith.constant 0 : index
      %c0_32 = arith.constant 0 : index
      %59 = vector.load %arg6[%c0_31, %c0_32] : memref<1x256xbf16, #tpu.memory_space<vmem>>, vector<1x256xbf16>
      %60 = arith.extf %59 : vector<1x256xbf16> to vector<1x256xf32>
      %61 = vector.broadcast %60 : vector<1x256xf32> to vector<152x256xf32>
      %62 = arith.addf %58, %61 : vector<152x256xf32>
      %63 = arith.truncf %62 : vector<152x256xf32> to vector<152x256xbf16>
      %c0_33 = arith.constant 0 : index
      %c0_34 = arith.constant 0 : index
      %64 = vector.load %arg7[%c0_33, %c0_34] : memref<152x256xbf16, #tpu.memory_space<vmem>>, vector<152x256xbf16>
      tpu.vector_store %arg7[%c0_33, %c0_34], %63 {strides = array<i32>} : memref<152x256xbf16, #tpu.memory_space<vmem>>, vector<152x256xbf16>,
    } else {
    }
    return
  }
  func.func @transform_0(%arg0: i32, %arg1: i32) -> (i32, i32) {
    %c0_i32 = arith.constant 0 : i32
    %c0_i32_0 = arith.constant 0 : i32
    return %arg0, %c0_i32 : i32, i32
  }
  func.func @transform_1(%arg0: i32, %arg1: i32) -> (i32, i32) {
    %c0_i32 = arith.constant 0 : i32
    %c0_i32_0 = arith.constant 0 : i32
    return %c0_i32, %arg1 : i32, i32
  }
  func.func @transform_2(%arg0: i32, %arg1: i32) -> (i32, i32) {
    %c0_i32 = arith.constant 0 : i32
    %c0_i32_0 = arith.constant 0 : i32
    return %c0_i32, %arg1 : i32, i32
  }
  func.func @transform_3(%arg0: i32, %arg1: i32) -> (i32, i32) {
    %c0_i32 = arith.constant 0 : i32
    %c0_i32_0 = arith.constant 0 : i32
    return %arg1, %c0_i32 : i32, i32
  }
  func.func @transform_4(%arg0: i32, %arg1: i32) -> (i32, i32) {
    %c0_i32 = arith.constant 0 : i32
    %c0_i32_0 = arith.constant 0 : i32
    %c0_i32_1 = arith.constant 0 : i32
    return %c0_i32, %c0_i32_0 : i32, i32
  }
  func.func @transform_5(%arg0: i32, %arg1: i32) -> (i32, i32) {
    %c0_i32 = arith.constant 0 : i32
    %c0_i32_0 = arith.constant 0 : i32
    return %arg0, %c0_i32 : i32, i32
  }
}

module attributes {stable_mosaic.version = 11 : i64} {
  func.func @kernel(%arg0: i32, %arg1: i32, %arg2: memref<152x256xbf16, #tpu.memory_space<vmem>>, %arg3: memref<256x512xbf16, #tpu.memory_space<vmem>>, %arg4: memref<1x512xbf16, #tpu.memory_space<vmem>>, %arg5: memref<512x256xbf16, #tpu.memory_space<vmem>>, %arg6: memref<1x256xbf16, #tpu.memory_space<vmem>>, %arg7: memref<152x256xbf16, #tpu.memory_space<vmem>>, %arg8: memref<152x256xf32, #tpu.memory_space<vmem>>) attributes {dimension_semantics = [#tpu.dimension_semantics<parallel>, #tpu.dimension_semantics<arbitrary>], iteration_bounds = array<i64: 2, 1>, scalar_prefetch = 0 : i64, scratch_operands = 1 : i64, tpu.core_type = #tpu.core_type<tc>, window_params = [{transform_indices = @transform_0, window_bounds = array<i64: 152, 256>}, {transform_indices = @transform_1, window_bounds = array<i64: 256, 512>}, {transform_indices = @transform_2, window_bounds = array<i64: 1, 512>}, {transform_indices = @transform_3, window_bounds = array<i64: 512, 256>}, {pipeline_mode = #tpu.pipeline_mode<synchronous>, transform_indices = @transform_4, window_bounds = array<i64: 1, 256>}, {transform_indices = @transform_5, window_bounds = array<i64: 152, 256>}]} {
    %c0_i32 = arith.constant 0 : i32
    %0 = arith.cmpi eq, %arg1, %c0_i32 : i32
    %1 = arith.extui %0 : i1 to i32
    %c0_i32_0 = arith.constant 0 : i32
    %2 = arith.cmpi ne, %1, %c0_i32_0 : i32
    scf.if %2 {
      %cst_29 = arith.constant 0.000000e+00 : f32
      %58 = vector.broadcast %cst_29 : f32 to vector<152x256xf32>
      %c0_30 = arith.constant 0 : index
      %c0_31 = arith.constant 0 : index
      %59 = vector.load %arg8[%c0_30, %c0_31] : memref<152x256xf32, #tpu.memory_space<vmem>>, vector<152x256xf32>
      tpu.vector_store %arg8[%c0_30, %c0_31], %58 {strides = array<i32>} : memref<152x256xf32, #tpu.memory_space<vmem>>, vector<152x256xf32>,
    } else {
    }
    %c0 = arith.constant 0 : index
    %c0_1 = arith.constant 0 : index
    %3 = vector.load %arg2[%c0, %c0_1] : memref<152x256xbf16, #tpu.memory_space<vmem>>, vector<152x256xbf16>
    %c0_2 = arith.constant 0 : index
    %c0_3 = arith.constant 0 : index
    %4 = vector.load %arg3[%c0_2, %c0_3] : memref<256x512xbf16, #tpu.memory_space<vmem>>, vector<256x512xbf16>
    %cst = arith.constant dense<0.000000e+00> : vector<152x512xf32>
    %5 = tpu.matmul %3, %4, %cst {dimension_numbers = #tpu.dot_dimension_numbers<[1], [0], [0], [1], [0, 0, 1, 1], [], []>} : vector<152x256xbf16>, vector<256x512xbf16>, vector<152x512xf32> -> vector<152x512xf32>
    %c0_4 = arith.constant 0 : index
    %c0_5 = arith.constant 0 : index
    %6 = vector.load %arg4[%c0_4, %c0_5] : memref<1x512xbf16, #tpu.memory_space<vmem>>, vector<1x512xbf16>
    %7 = arith.extf %6 : vector<1x512xbf16> to vector<1x512xf32>
    %8 = vector.broadcast %7 : vector<1x512xf32> to vector<152x512xf32>
    %9 = arith.addf %5, %8 : vector<152x512xf32>
    %cst_6 = arith.constant 5.000000e-01 : f32
    %10 = vector.broadcast %cst_6 : f32 to vector<152x512xf32>
    %11 = arith.mulf %10, %9 : vector<152x512xf32>
    %cst_7 = arith.constant 0.707106769 : f32
    %12 = vector.broadcast %cst_7 : f32 to vector<152x512xf32>
    %13 = arith.mulf %9, %12 : vector<152x512xf32>
    %14 = math.absf %13 : vector<152x512xf32>
    %cst_8 = arith.constant 0.327591091 : f32
    %15 = vector.broadcast %cst_8 : f32 to vector<152x512xf32>
    %16 = arith.mulf %15, %14 : vector<152x512xf32>
    %cst_9 = arith.constant 1.000000e+00 : f32
    %17 = vector.broadcast %cst_9 : f32 to vector<152x512xf32>
    %18 = arith.addf %17, %16 : vector<152x512xf32>
    %19 = tpu.reciprocal %18 {approx = true} : vector<152x512xf32> -> vector<152x512xf32>
    %cst_10 = arith.constant 1.06140542 : f32
    %20 = vector.broadcast %cst_10 : f32 to vector<152x512xf32>
    %21 = arith.mulf %19, %20 : vector<152x512xf32>
    %cst_11 = arith.constant -1.45315206 : f32
    %22 = vector.broadcast %cst_11 : f32 to vector<152x512xf32>
    %23 = arith.addf %22, %21 : vector<152x512xf32>
    %24 = arith.mulf %19, %23 : vector<152x512xf32>
    %cst_12 = arith.constant 1.42141378 : f32
    %25 = vector.broadcast %cst_12 : f32 to vector<152x512xf32>
    %26 = arith.addf %25, %24 : vector<152x512xf32>
    %27 = arith.mulf %19, %26 : vector<152x512xf32>
    %cst_13 = arith.constant -0.284496725 : f32
    %28 = vector.broadcast %cst_13 : f32 to vector<152x512xf32>
    %29 = arith.addf %28, %27 : vector<152x512xf32>
    %30 = arith.mulf %19, %29 : vector<152x512xf32>
    %cst_14 = arith.constant 0.254829586 : f32
    %31 = vector.broadcast %cst_14 : f32 to vector<152x512xf32>
    %32 = arith.addf %31, %30 : vector<152x512xf32>
    %33 = arith.mulf %19, %32 : vector<152x512xf32>
    %cst_15 = arith.constant 0.000000e+00 : f32
    %34 = vector.broadcast %cst_15 : f32 to vector<152x512xf32>
    %35 = arith.subf %34, %14 : vector<152x512xf32>
    %36 = arith.mulf %35, %14 : vector<152x512xf32>
    %37 = math.exp %36 : vector<152x512xf32>
    %38 = arith.mulf %33, %37 : vector<152x512xf32>
    %cst_16 = arith.constant 1.000000e+00 : f32
    %39 = vector.broadcast %cst_16 : f32 to vector<152x512xf32>
    %40 = arith.subf %39, %38 : vector<152x512xf32>
    %cst_17 = arith.constant 0.000000e+00 : f32
    %41 = vector.broadcast %cst_17 : f32 to vector<152x512xf32>
    %42 = arith.cmpf olt, %13, %41 : vector<152x512xf32>
    %cst_18 = arith.constant 0.000000e+00 : f32
    %43 = vector.broadcast %cst_18 : f32 to vector<152x512xf32>
    %44 = arith.subf %43, %40 : vector<152x512xf32>
    %45 = arith.select %42, %44, %40 : vector<152x512xi1>, vector<152x512xf32>
    %cst_19 = arith.constant 1.000000e+00 : f32
    %46 = vector.broadcast %cst_19 : f32 to vector<152x512xf32>
    %47 = arith.addf %46, %45 : vector<152x512xf32>
    %48 = arith.mulf %11, %47 : vector<152x512xf32>
    %c0_20 = arith.constant 0 : index
    %c0_21 = arith.constant 0 : index
    %49 = vector.load %arg5[%c0_20, %c0_21] : memref<512x256xbf16, #tpu.memory_space<vmem>>, vector<512x256xbf16>
    %c0_22 = arith.constant 0 : index
    %c0_23 = arith.constant 0 : index
    %50 = vector.load %arg8[%c0_22, %c0_23] : memref<152x256xf32, #tpu.memory_space<vmem>>, vector<152x256xf32>
    %51 = arith.truncf %48 : vector<152x512xf32> to vector<152x512xbf16>
    %cst_24 = arith.constant dense<0.000000e+00> : vector<152x256xf32>
    %52 = tpu.matmul %51, %49, %cst_24 {dimension_numbers = #tpu.dot_dimension_numbers<[1], [0], [0], [1], [0, 0, 1, 1], [], []>} : vector<152x512xbf16>, vector<512x256xbf16>, vector<152x256xf32> -> vector<152x256xf32>
    %53 = arith.addf %50, %52 : vector<152x256xf32>
    %c0_25 = arith.constant 0 : index
    %c0_26 = arith.constant 0 : index
    %54 = vector.load %arg8[%c0_25, %c0_26] : memref<152x256xf32, #tpu.memory_space<vmem>>, vector<152x256xf32>
    tpu.vector_store %arg8[%c0_25, %c0_26], %53 {strides = array<i32>} : memref<152x256xf32, #tpu.memory_space<vmem>>, vector<152x256xf32>,
    %c0_i32_27 = arith.constant 0 : i32
    %55 = arith.cmpi eq, %arg1, %c0_i32_27 : i32
    %56 = arith.extui %55 : i1 to i32
    %c0_i32_28 = arith.constant 0 : i32
    %57 = arith.cmpi ne, %56, %c0_i32_28 : i32
    scf.if %57 {
      %c0_29 = arith.constant 0 : index
      %c0_30 = arith.constant 0 : index
      %58 = vector.load %arg8[%c0_29, %c0_30] : memref<152x256xf32, #tpu.memory_space<vmem>>, vector<152x256xf32>
      %c0_31 = arith.constant 0 : index
      %c0_32 = arith.constant 0 : index
      %59 = vector.load %arg6[%c0_31, %c0_32] : memref<1x256xbf16, #tpu.memory_space<vmem>>, vector<1x256xbf16>
      %60 = arith.extf %59 : vector<1x256xbf16> to vector<1x256xf32>
      %61 = vector.broadcast %60 : vector<1x256xf32> to vector<152x256xf32>
      %62 = arith.addf %58, %61 : vector<152x256xf32>
      %63 = arith.truncf %62 : vector<152x256xf32> to vector<152x256xbf16>
      %c0_33 = arith.constant 0 : index
      %c0_34 = arith.constant 0 : index
      %64 = vector.load %arg7[%c0_33, %c0_34] : memref<152x256xbf16, #tpu.memory_space<vmem>>, vector<152x256xbf16>
      tpu.vector_store %arg7[%c0_33, %c0_34], %63 {strides = array<i32>} : memref<152x256xbf16, #tpu.memory_space<vmem>>, vector<152x256xbf16>,
    } else {
    }
    return
  }
  func.func @transform_0(%arg0: i32, %arg1: i32) -> (i32, i32) {
    %c0_i32 = arith.constant 0 : i32
    %c0_i32_0 = arith.constant 0 : i32
    return %arg0, %c0_i32 : i32, i32
  }
  func.func @transform_1(%arg0: i32, %arg1: i32) -> (i32, i32) {
    %c0_i32 = arith.constant 0 : i32
    %c0_i32_0 = arith.constant 0 : i32
    return %c0_i32, %arg1 : i32, i32
  }
  func.func @transform_2(%arg0: i32, %arg1: i32) -> (i32, i32) {
    %c0_i32 = arith.constant 0 : i32
    %c0_i32_0 = arith.constant 0 : i32
    return %c0_i32, %arg1 : i32, i32
  }
  func.func @transform_3(%arg0: i32, %arg1: i32) -> (i32, i32) {
    %c0_i32 = arith.constant 0 : i32
    %c0_i32_0 = arith.constant 0 : i32
    return %arg1, %c0_i32 : i32, i32
  }
  func.func @transform_4(%arg0: i32, %arg1: i32) -> (i32, i32) {
    %c0_i32 = arith.constant 0 : i32
    %c0_i32_0 = arith.constant 0 : i32
    %c0_i32_1 = arith.constant 0 : i32
    return %c0_i32, %c0_i32_0 : i32, i32
  }
  func.func @transform_5(%arg0: i32, %arg1: i32) -> (i32, i32) {
    %c0_i32 = arith.constant 0 : i32
    %c0_i32_0 = arith.constant 0 : i32
    return %arg0, %c0_i32 : i32, i32
  }
}

</mosaic_0001>

<llo_original>
// kernel: tpu_custom_call.1
$region0: #{tpu_custom_call.1}
  #allocation0 [shape = 'u32[]', space=smem, size = 0x4, offset = 0x4, fixed_abs, tag = 'smem constant byte address 0x4 - core index']
  #allocation1 [shape = 'u32[72,128]{1,0:T(1,128)}', space=vmem, size = 0x9000, scoped, tag = 'internal scratch']
  #allocation2 [shape = 'f32[152,256]{1,0:T(8,128)}', space=vmem, size = 0x26000, scoped, tag = 'scratch operand']
  %s0 = inlined_call_operand.hbm [shape: bf16[300,256], index: 0, kind: input, shape index: {}]
  %s1 = inlined_call_operand.hbm [shape: bf16[256,512], index: 1, kind: input, shape index: {}]
  %s2 = inlined_call_operand.hbm [shape: bf16[1,512], index: 2, kind: input, shape index: {}]
  %s3 = inlined_call_operand.hbm [shape: bf16[512,256], index: 3, kind: input, shape index: {}]
  %s4 = inlined_call_operand.vmem [shape: bf16[1,256], index: 4, kind: input, shape index: {}]
  %s5 = inlined_call_operand.hbm [shape: bf16[300,256], index: 5, kind: output, shape index: {}]
  %s6 = sld [smem:[#allocation0]]
  $region77: #{tpu_custom_call.1} parent=0
    _
  %s8 = ssub.s32 1, %s6
  %s9 = scalar_select 0, %s8, %s6
  $region1: #{tpu_custom_call.1} parent=0
    #allocation3 [shape = 'u8[155648]{0}', space=vmem, size = 0x26000, scoped, tag = 'input window, operand 0']
    #allocation4 [shape = 's32[2]{0}', space=sflag, size = 0x8, scoped, tag = 'scoped memory for tpu_custom_call.1']
    #allocation5 [shape = 's32[2]{0}', space=sflag, size = 0x8, scoped, tag = 'scoped memory for tpu_custom_call.1']
    #allocation6 [shape = 'u8[262144]{0}', space=vmem, size = 0x40000, scoped, tag = 'input window, operand 1, single buffered']
    #allocation7 [shape = 's32[1]{0}', space=sflag, size = 0x4, scoped, tag = 'scoped memory for tpu_custom_call.1']
    #allocation8 [shape = 'u8[2048]{0}', space=vmem, size = 0x800, scoped, tag = 'input window, operand 2, single buffered']
    #allocation9 [shape = 'u8[262144]{0}', space=vmem, size = 0x40000, scoped, tag = 'input window, operand 3, single buffered']
    #allocation10 [shape = 's32[1]{0}', space=sflag, size = 0x4, scoped, tag = 'scoped memory for tpu_custom_call.1']
    #allocation11 [shape = 'u8[155648]{0}', space=vmem, size = 0x26000, scoped, tag = 'output window, operand 0']
    %10 = vsyncpa [#allocation4], 0
    %s11 = scalar_lea.sflag [#allocation4], 1
    %12 = vsyncpa %s11, 0
    %13 = vsyncpa [#allocation7], 0
    %14 = vsyncpa [#allocation10], 0
    %15 = vsyncpa [#allocation5], 0
    %s16 = scalar_lea.sflag [#allocation5], 1
    %17 = vsyncpa %s16, 0
    loop: start=0, step=1, limit=4
    $region2: #{tpu_custom_call.1} parent=1 // loop_pre_header
      _
    $region3: #{tpu_custom_call.1} parent=1 // loop_header
      %s19 = sphi 0, %s23
      %p20 = scmp.ge.s32.totalorder %s19, 4
      %s26 = sphi 0, %s38
      %s27 = sphi 0, %s34
      %s28 = sphi 0, %s26
      %s29 = sphi 0, %s27
      %s30 = sphi 0, %s28
      %s31 = sphi 0, %s29
      %s41 = sphi 0, %s43
      %s44 = sphi 0, %s41
      %s45 = sphi 0, %s44
      %s61 = sphi 0, %s45
      %s67 = sphi 0, %s69
      %s70 = sphi 0, %s67
      %s71 = sphi 0, %s70
      %s87 = sphi 0, %s71
      %s93 = sphi 0, %s95
      %s96 = sphi 0, %s93
      %s97 = sphi 0, %s96
      %s113 = sphi 0, %s97
      %s119 = sphi 0, %s121
      %s122 = sphi 0, %s119
      %s123 = sphi 0, %s122
      %s139 = sphi 0, %s123
      %s143 = sphi 0, %s143
      %s145 = sphi 0, %s143
      %s146 = sphi 0, %s145
      %s160 = sphi 0, %s146
      %s166 = sphi 0, %s168
      %s169 = sphi 0, %s166
      %s170 = sphi 0, %s169
      %s186 = sphi 0, %s170
    $region4: #{tpu_custom_call.1} parent=1 // loop_header_branch
      %22 = sbr.rel (%p20) target = $region8
    $region5: #{tpu_custom_call.1} parent=1 // loop_body
      %s24 = ssub.s32 %s19, 1
      %s25 = ssub.s32 %s19, 2
      %s32 = sadd.s32 1, %s27
      %p33 = scmp.ge.s32.totalorder %s32, 1
      %s34 = scalar_select %p33, 0, %s32
      %s35 = sadd.s32 1, %s26
      %s36 = scalar_select %p33, %s35, %s26
      %p37 = scmp.ge.s32.totalorder %s36, 2
      %s38 = scalar_select %p37, 0, %s36
      %s39 = ssub.s32 %s26, %s38
      %p40 = scmp.eq.s32.totalorder %s39, 0
      %s42 = sadd.s32 %s41, 1
      %s43 = scalar_select %p40, %s41, %s42
      %p46 = pneg %p40
      %p47 = scmp.eq.s32.totalorder %s19, 1
      %p48 = por %p46, %p47
      %p49 = scmp.ne.s32.totalorder %s41, %s44
      %p50 = scmp.eq.s32.totalorder %s19, 0
      %p51 = por %p49, %p50
      %p52 = scmp.ne.s32.totalorder %s41, %s44
      %p53 = scmp.eq.s32.totalorder %s24, 1
      %p54 = por %p52, %p53
      %p55 = scmp.ne.s32.totalorder %s44, %s45
      %p56 = scmp.eq.s32.totalorder %s24, 0
      %p57 = por %p55, %p56
      %p58 = scmp.ne.s32.totalorder %s44, %s45
      %p59 = scmp.eq.s32.totalorder %s25, 1
      %p60 = por %p58, %p59
      %p62 = scmp.ne.s32.totalorder %s45, %s61
      %p63 = scmp.eq.s32.totalorder %s25, 0
      %p64 = por %p62, %p63
      %s65 = ssub.s32 %s27, %s34
      %p66 = scmp.eq.s32.totalorder %s65, 0
      %s68 = sadd.s32 %s67, 1
      %s69 = scalar_select %p66, %s67, %s68
      %p72 = pneg %p66
      %p73 = scmp.eq.s32.totalorder %s19, 1
      %p74 = por %p72, %p73
      %p75 = scmp.ne.s32.totalorder %s67, %s70
      %p76 = scmp.eq.s32.totalorder %s19, 0
      %p77 = por %p75, %p76
      %p78 = scmp.ne.s32.totalorder %s67, %s70
      %p79 = scmp.eq.s32.totalorder %s24, 1
      %p80 = por %p78, %p79
      %p81 = scmp.ne.s32.totalorder %s70, %s71
      %p82 = scmp.eq.s32.totalorder %s24, 0
      %p83 = por %p81, %p82
      %p84 = scmp.ne.s32.totalorder %s70, %s71
      %p85 = scmp.eq.s32.totalorder %s25, 1
      %p86 = por %p84, %p85
      %p88 = scmp.ne.s32.totalorder %s71, %s87
      %p89 = scmp.eq.s32.totalorder %s25, 0
      %p90 = por %p88, %p89
      %s91 = ssub.s32 %s27, %s34
      %p92 = scmp.eq.s32.totalorder %s91, 0
      %s94 = sadd.s32 %s93, 1
      %s95 = scalar_select %p92, %s93, %s94
      %p98 = pneg %p92
      %p99 = scmp.eq.s32.totalorder %s19, 1
      %p100 = por %p98, %p99
      %p101 = scmp.ne.s32.totalorder %s93, %s96
      %p102 = scmp.eq.s32.totalorder %s19, 0
      %p103 = por %p101, %p102
      %p104 = scmp.ne.s32.totalorder %s93, %s96
      %p105 = scmp.eq.s32.totalorder %s24, 1
      %p106 = por %p104, %p105
      %p107 = scmp.ne.s32.totalorder %s96, %s97
      %p108 = scmp.eq.s32.totalorder %s24, 0
      %p109 = por %p107, %p108
      %p110 = scmp.ne.s32.totalorder %s96, %s97
      %p111 = scmp.eq.s32.totalorder %s25, 1
      %p112 = por %p110, %p111
      %p114 = scmp.ne.s32.totalorder %s97, %s113
      %p115 = scmp.eq.s32.totalorder %s25, 0
      %p116 = por %p114, %p115
      %s117 = ssub.s32 %s27, %s34
      %p118 = scmp.eq.s32.totalorder %s117, 0
      %s120 = sadd.s32 %s119, 1
      %s121 = scalar_select %p118, %s119, %s120
      %p124 = pneg %p118
      %p125 = scmp.eq.s32.totalorder %s19, 1
      %p126 = por %p124, %p125
      %p127 = scmp.ne.s32.totalorder %s119, %s122
      %p128 = scmp.eq.s32.totalorder %s19, 0
      %p129 = por %p127, %p128
      %p130 = scmp.ne.s32.totalorder %s119, %s122
      %p131 = scmp.eq.s32.totalorder %s24, 1
      %p132 = por %p130, %p131
      %p133 = scmp.ne.s32.totalorder %s122, %s123
      %p134 = scmp.eq.s32.totalorder %s24, 0
      %p135 = por %p133, %p134
      %p136 = scmp.ne.s32.totalorder %s122, %s123
      %p137 = scmp.eq.s32.totalorder %s25, 1
      %p138 = por %p136, %p137
      %p140 = scmp.ne.s32.totalorder %s123, %s139
      %p141 = scmp.eq.s32.totalorder %s25, 0
      %p142 = por %p140, %p141
      %s144 = sadd.s32 %s143, 1
      %p147 = scmp.eq.s32.totalorder %s19, 1
      %p148 = scmp.ne.s32.totalorder %s143, %s145
      %p149 = scmp.eq.s32.totalorder %s19, 0
      %p150 = por %p148, %p149
      %p151 = scmp.ne.s32.totalorder %s143, %s145
      %p152 = scmp.eq.s32.totalorder %s24, 1
      %p153 = por %p151, %p152
      %p154 = scmp.ne.s32.totalorder %s145, %s146
      %p155 = scmp.eq.s32.totalorder %s24, 0
      %p156 = por %p154, %p155
      %p157 = scmp.ne.s32.totalorder %s145, %s146
      %p158 = scmp.eq.s32.totalorder %s25, 1
      %p159 = por %p157, %p158
      %p161 = scmp.ne.s32.totalorder %s146, %s160
      %p162 = scmp.eq.s32.totalorder %s25, 0
      %p163 = por %p161, %p162
      %s164 = ssub.s32 %s26, %s38
      %p165 = scmp.eq.s32.totalorder %s164, 0
      %s167 = sadd.s32 %s166, 1
      %s168 = scalar_select %p165, %s166, %s167
      %p171 = pneg %p165
      %p172 = scmp.eq.s32.totalorder %s19, 1
      %p173 = por %p171, %p172
      %p174 = scmp.ne.s32.totalorder %s166, %s169
      %p175 = scmp.eq.s32.totalorder %s19, 0
      %p176 = por %p174, %p175
      %p177 = scmp.ne.s32.totalorder %s166, %s169
      %p178 = scmp.eq.s32.totalorder %s24, 1
      %p179 = por %p177, %p178
      %p180 = scmp.ne.s32.totalorder %s169, %s170
      %p181 = scmp.eq.s32.totalorder %s24, 0
      %p182 = por %p180, %p181
      %p183 = scmp.ne.s32.totalorder %s169, %s170
      %p184 = scmp.eq.s32.totalorder %s25, 1
      %p185 = por %p183, %p184
      %p187 = scmp.ne.s32.totalorder %s170, %s186
      %p188 = scmp.eq.s32.totalorder %s25, 0
      %p189 = por %p187, %p188
      %p190 = scmp.le.s32.totalorder 1, %s19
      %p191 = scmp.lt.s32.totalorder %s19, 3
      %p192 = pnand %p190, %p191
      %p193 = pneg %p192
      // Predicated region
      $region9: #{tpu_custom_call.1} parent=5 // pred_check
        _
      $region10: #{tpu_custom_call.1} parent=5 // pred_check_branch
        %195 = sbr.rel (%p192) target = $region12
      $region11: #{tpu_custom_call.1} parent=5 // pred_region
        %s196 = ssub.s32 %s19, 1
        // Predicated region
        $region13: #{tpu_custom_call.1} parent=11 // pred_check
          %p197 = pneg %p83
        $region14: #{tpu_custom_call.1} parent=11 // pred_check_branch
          %199 = sbr.rel (%p197) target = $region16
        $region15: #{tpu_custom_call.1} parent=11 // pred_region
          %s200 = smul.u32 4, %s29
          %202 = vsyncadd [#allocation7], 0
          %s203 = smul.addr %s200, 4
          %s204 = scalar_lea.hbm %s1, %s203
          %s205 = sshll.u32 %s204, 4
          %s206 = int_to_ptr.hbm [resolvable:$true] %s205
          %s207 = sshll.u32 [#allocation6], 4
          %s208 = int_to_ptr.vmem [resolvable:$true] %s207
          %213 = dma.hbm_to_vmem [thread:$0]  %s206, 8192, %s208, [#allocation7], 256, 256, 16
        $region16: #{tpu_custom_call.1} parent=11 // pred_fallthru
          _
        // Predicated region
        $region17: #{tpu_custom_call.1} parent=11 // pred_check
          %p214 = pneg %p109
        $region18: #{tpu_custom_call.1} parent=11 // pred_check_branch
          %216 = sbr.rel (%p214) target = $region20
        $region19: #{tpu_custom_call.1} parent=11 // pred_region
          %s217 = smul.u32 4, %s29
          %219 = vsyncadd [#allocation7], 0
          %s220 = scalar_lea.hbm %s2, %s217
          %s222 = sshll.u32 %s220, 4
          %s223 = int_to_ptr.hbm [resolvable:$true] %s222
          %s224 = sshll.u32 [#allocation8], 4
          %s225 = int_to_ptr.vmem [resolvable:$true] %s224
          %227 = dma.hbm_to_vmem [thread:$0]  %s223, 64, %s225, [#allocation7]
        $region20: #{tpu_custom_call.1} parent=11 // pred_fallthru
          _
        // Predicated region
        $region21: #{tpu_custom_call.1} parent=11 // pred_check
          %p228 = pneg %p135
        $region22: #{tpu_custom_call.1} parent=11 // pred_check_branch
          %230 = sbr.rel (%p228) target = $region24
        $region23: #{tpu_custom_call.1} parent=11 // pred_region
          %s231 = smul.u32 64, %s29
          %233 = vsyncadd [#allocation10], 0
          %s234 = smul.addr %s231, 2
          %s235 = smul.addr %s234, 4
          %s236 = scalar_lea.hbm %s3, %s235
          %s237 = sshll.u32 %s236, 4
          %s238 = int_to_ptr.hbm [resolvable:$true] %s237
          %s239 = sshll.u32 [#allocation9], 4
          %s240 = int_to_ptr.vmem [resolvable:$true] %s239
          %245 = dma.hbm_to_vmem [thread:$0]  %s238, 8192, %s240, [#allocation10], 128, 128, 8
        $region24: #{tpu_custom_call.1} parent=11 // pred_fallthru
          _
        // Predicated region
        $region25: #{tpu_custom_call.1} parent=11 // pred_check
          %p246 = pneg %p156
        $region26: #{tpu_custom_call.1} parent=11 // pred_check_branch
          %248 = sbr.rel (%p246) target = $region28
        $region27: #{tpu_custom_call.1} parent=11 // pred_region
          _
        $region28: #{tpu_custom_call.1} parent=11 // pred_fallthru
          _
      $region12: #{tpu_custom_call.1} parent=5 // pred_fallthru
        _
      %p249 = scmp.lt.s32.totalorder %s19, 2
      // Predicated region
      $region29: #{tpu_custom_call.1} parent=5 // pred_check
        %p250 = pneg %p249
      $region30: #{tpu_custom_call.1} parent=5 // pred_check_branch
        %252 = sbr.rel (%p250) target = $region32
      $region31: #{tpu_custom_call.1} parent=5 // pred_region
        // Predicated region
        $region33: #{tpu_custom_call.1} parent=31 // pred_check
          %p253 = pneg %p51
        $region34: #{tpu_custom_call.1} parent=31 // pred_check_branch
          %255 = sbr.rel (%p253) target = $region36
        $region35: #{tpu_custom_call.1} parent=31 // pred_region
          %s256 = sand.u32 %s41, 1
          %s257 = scalar_lea.sflag [#allocation4], %s256
          %s258 = sand.u32 %s41, 1
          %s259 = smul.addr %s258, 152
          %s260 = scalar_lea.vmem [#allocation3], %s259
          %s261 = smul.u32 19, %s26
          %263 = vsyncadd %s257, 0
          %s264 = smul.addr %s261, 2
          %s265 = smul.addr %s264, 4
          %s266 = scalar_lea.hbm %s0, %s265
          %s267 = sshll.u32 %s266, 4
          %s268 = int_to_ptr.hbm [resolvable:$true] %s267
          %s269 = sshll.u32 %s260, 4
          %s270 = int_to_ptr.vmem [resolvable:$true] %s269
          %275 = dma.hbm_to_vmem [thread:$0]  %s268, 2432, %s270, %s257, 128, 128, 8
        $region36: #{tpu_custom_call.1} parent=31 // pred_fallthru
          _
      $region32: #{tpu_custom_call.1} parent=5 // pred_fallthru
        _
      %p276 = scmp.le.s32.totalorder 1, %s19
      %p277 = scmp.lt.s32.totalorder %s19, 3
      %p278 = pnand %p276, %p277
      %p279 = pneg %p278
      // Predicated region
      $region37: #{tpu_custom_call.1} parent=5 // pred_check
        _
      $region38: #{tpu_custom_call.1} parent=5 // pred_check_branch
        %281 = sbr.rel (%p278) target = $region40
      $region39: #{tpu_custom_call.1} parent=5 // pred_region
        %s282 = ssub.s32 %s19, 1
        %s283 = sand.u32 %s44, 1
        %s284 = scalar_lea.sflag [#allocation4], %s283
        %s285 = sand.u32 %s44, 1
        %s286 = smul.addr %s285, 152
        %s287 = scalar_lea.vmem [#allocation3], %s286
        // Predicated region
        $region41: #{tpu_custom_call.1} parent=39 // pred_check
          %p288 = pneg %p57
        $region42: #{tpu_custom_call.1} parent=39 // pred_check_branch
          %290 = sbr.rel (%p288) target = $region44
        $region43: #{tpu_custom_call.1} parent=39 // pred_region
          %292 = dma.done %s284, 2432
        $region44: #{tpu_custom_call.1} parent=39 // pred_fallthru
          _
        // Predicated region
        $region45: #{tpu_custom_call.1} parent=39 // pred_check
          %p293 = pneg %p83
        $region46: #{tpu_custom_call.1} parent=39 // pred_check_branch
          %295 = sbr.rel (%p293) target = $region48
        $region47: #{tpu_custom_call.1} parent=39 // pred_region
          %297 = dma.done [#allocation7], 8192
        $region48: #{tpu_custom_call.1} parent=39 // pred_fallthru
          _
        // Predicated region
        $region49: #{tpu_custom_call.1} parent=39 // pred_check
          %p298 = pneg %p109
        $region50: #{tpu_custom_call.1} parent=39 // pred_check_branch
          %300 = sbr.rel (%p298) target = $region52
        $region51: #{tpu_custom_call.1} parent=39 // pred_region
          %302 = dma.done [#allocation7], 64
        $region52: #{tpu_custom_call.1} parent=39 // pred_fallthru
          _
        // Predicated region
        $region53: #{tpu_custom_call.1} parent=39 // pred_check
          %p303 = pneg %p135
        $region54: #{tpu_custom_call.1} parent=39 // pred_check_branch
          %305 = sbr.rel (%p303) target = $region56
        $region55: #{tpu_custom_call.1} parent=39 // pred_region
          %307 = dma.done [#allocation10], 8192
        $region56: #{tpu_custom_call.1} parent=39 // pred_fallthru
          _
        %s308 = sand.u32 %s44, 1
        %s309 = scalar_lea.sflag [#allocation4], %s308
        %s310 = sand.u32 %s44, 1
        %s311 = smul.addr %s310, 152
        %s312 = scalar_lea.vmem [#allocation3], %s311
        %p313 = pneg %p57
        %p314 = pneg %p54
        %p315 = pneg %p83
        %p316 = pneg %p80
        %p317 = pneg %p109
        %p318 = pneg %p106
        %p319 = pneg %p135
        %p320 = pneg %p132
        %p321 = pneg %p156
        %p322 = pneg %p153
        %p323 = pneg %p182
        %p324 = pneg %p179
        %s325 = sand.u32 %s169, 1
        %s326 = scalar_lea.sflag [#allocation5], %s325
        %s327 = sand.u32 %s169, 1
        %s328 = smul.addr %s327, 152
        %s329 = scalar_lea.vmem [#allocation11], %s328
        %s330 = smul.u32 19, %s28
        %s331 = smul.u32 4, %s29
        %s332 = smul.u32 4, %s29
        %s333 = smul.u32 64, %s29
        %s334 = smul.u32 19, %s28
        %p335 = scmp.eq.s32.totalorder %s29, 0
        // Predicated region
        $region57: #{tpu_custom_call.1} parent=39 // pred_check
          %p336 = pneg %p335
        $region58: #{tpu_custom_call.1} parent=39 // pred_check_branch
          %338 = sbr.rel (%p336) target = $region60
        $region59: #{tpu_custom_call.1} parent=39 // pred_region
          %339 = vst [vmem:[#allocation2] sm:$0xff] 0.0
          %340 = vst [vmem:[#allocation2 + $0x8] sm:$0xff] 0.0
          %341 = vst [vmem:[#allocation2 + $0x10] sm:$0xff] 0.0
          %342 = vst [vmem:[#allocation2 + $0x18] sm:$0xff] 0.0
          %343 = vst [vmem:[#allocation2 + $0x20] sm:$0xff] 0.0
          %344 = vst [vmem:[#allocation2 + $0x28] sm:$0xff] 0.0
          %345 = vst [vmem:[#allocation2 + $0x30] sm:$0xff] 0.0
          %346 = vst [vmem:[#allocation2 + $0x38] sm:$0xff] 0.0
          %347 = vst [vmem:[#allocation2 + $0x40] sm:$0xff] 0.0
          %348 = vst [vmem:[#allocation2 + $0x48] sm:$0xff] 0.0
          %349 = vst [vmem:[#allocation2 + $0x50] sm:$0xff] 0.0
          %350 = vst [vmem:[#allocation2 + $0x58] sm:$0xff] 0.0
          %351 = vst [vmem:[#allocation2 + $0x60] sm:$0xff] 0.0
          %352 = vst [vmem:[#allocation2 + $0x68] sm:$0xff] 0.0
          %353 = vst [vmem:[#allocation2 + $0x70] sm:$0xff] 0.0
          %354 = vst [vmem:[#allocation2 + $0x78] sm:$0xff] 0.0
          %355 = vst [vmem:[#allocation2 + $0x80] sm:$0xff] 0.0
          %356 = vst [vmem:[#allocation2 + $0x88] sm:$0xff] 0.0
          %357 = vst [vmem:[#allocation2 + $0x90] sm:$0xff] 0.0
          %358 = vst [vmem:[#allocation2 + $0x98] sm:$0xff] 0.0
          %359 = vst [vmem:[#allocation2 + $0xa0] sm:$0xff] 0.0
          %360 = vst [vmem:[#allocation2 + $0xa8] sm:$0xff] 0.0
          %361 = vst [vmem:[#allocation2 + $0xb0] sm:$0xff] 0.0
          %362 = vst [vmem:[#allocation2 + $0xb8] sm:$0xff] 0.0
          %363 = vst [vmem:[#allocation2 + $0xc0] sm:$0xff] 0.0
          %364 = vst [vmem:[#allocation2 + $0xc8] sm:$0xff] 0.0
          %365 = vst [vmem:[#allocation2 + $0xd0] sm:$0xff] 0.0
          %366 = vst [vmem:[#allocation2 + $0xd8] sm:$0xff] 0.0
          %367 = vst [vmem:[#allocation2 + $0xe0] sm:$0xff] 0.0
          %368 = vst [vmem:[#allocation2 + $0xe8] sm:$0xff] 0.0
          %369 = vst [vmem:[#allocation2 + $0xf0] sm:$0xff] 0.0
          %370 = vst [vmem:[#allocation2 + $0xf8] sm:$0xff] 0.0
          %371 = vst [vmem:[#allocation2 + $0x100] sm:$0xff] 0.0
          %372 = vst [vmem:[#allocation2 + $0x108] sm:$0xff] 0.0
          %373 = vst [vmem:[#allocation2 + $0x110] sm:$0xff] 0.0
          %374 = vst [vmem:[#allocation2 + $0x118] sm:$0xff] 0.0
          %375 = vst [vmem:[#allocation2 + $0x120] sm:$0xff] 0.0
          %376 = vst [vmem:[#allocation2 + $0x128] sm:$0xff] 0.0
        $region60: #{tpu_custom_call.1} parent=39 // pred_fallthru
          _
        %v377 = vld [vmem:[%s287] sm:$0xff]
        %v378 = vld [vmem:[%s287 + $0x8] sm:$0xff]
        %v379 = vld [vmem:[%s287 + $0x10] sm:$0xff]
        %v380 = vld [vmem:[%s287 + $0x18] sm:$0xff]
        %v381 = vld [vmem:[%s287 + $0x20] sm:$0xff]
        %v382 = vld [vmem:[%s287 + $0x28] sm:$0xff]
        %v383 = vld [vmem:[%s287 + $0x30] sm:$0xff]
        %v384 = vld [vmem:[%s287 + $0x38] sm:$0xff]
        %v385 = vld [vmem:[%s287 + $0x40] sm:$0xff]
        %v386 = vld [vmem:[%s287 + $0x48] sm:$0xff]
        %v387 = vld [vmem:[%s287 + $0x50] sm:$0xff]
        %v388 = vld [vmem:[%s287 + $0x58] sm:$0xff]
        %v389 = vld [vmem:[%s287 + $0x60] sm:$0xff]
        %v390 = vld [vmem:[%s287 + $0x68] sm:$0xff]
        %v391 = vld [vmem:[%s287 + $0x70] sm:$0xff]
        %v392 = vld [vmem:[%s287 + $0x78] sm:$0xff]
        %v393 = vld [vmem:[%s287 + $0x80] sm:$0xff]
        %v394 = vld [vmem:[%s287 + $0x88] sm:$0xff]
        %v395 = vld [vmem:[%s287 + $0x90] sm:$0xff]
        %v396 = vld [vmem:[#allocation6] sm:$0xff]
        %v397 = vld [vmem:[#allocation6 + $0x8] sm:$0xff]
        %v398 = vld [vmem:[#allocation6 + $0x10] sm:$0xff]
        %v399 = vld [vmem:[#allocation6 + $0x18] sm:$0xff]
        %v400 = vld [vmem:[#allocation6 + $0x20] sm:$0xff]
        %v401 = vld [vmem:[#allocation6 + $0x28] sm:$0xff]
        %v402 = vld [vmem:[#allocation6 + $0x30] sm:$0xff]
        %v403 = vld [vmem:[#allocation6 + $0x38] sm:$0xff]
        %v404 = vld [vmem:[#allocation6 + $0x40] sm:$0xff]
        %v405 = vld [vmem:[#allocation6 + $0x48] sm:$0xff]
        %v406 = vld [vmem:[#allocation6 + $0x50] sm:$0xff]
        %v407 = vld [vmem:[#allocation6 + $0x58] sm:$0xff]
        %v408 = vld [vmem:[#allocation6 + $0x60] sm:$0xff]
        %v409 = vld [vmem:[#allocation6 + $0x68] sm:$0xff]
        %v410 = vld [vmem:[#allocation6 + $0x70] sm:$0xff]
        %v411 = vld [vmem:[#allocation6 + $0x78] sm:$0xff]
        %v412 = vld [vmem:[#allocation6 + $0x80] sm:$0xff]
        %v413 = vld [vmem:[#allocation6 + $0x88] sm:$0xff]
        %v414 = vld [vmem:[#allocation6 + $0x90] sm:$0xff]
        %v415 = vld [vmem:[#allocation6 + $0x98] sm:$0xff]
        %v416 = vld [vmem:[#allocation6 + $0xa0] sm:$0xff]
        %v417 = vld [vmem:[#allocation6 + $0xa8] sm:$0xff]
        %v418 = vld [vmem:[#allocation6 + $0xb0] sm:$0xff]
        %v419 = vld [vmem:[#allocation6 + $0xb8] sm:$0xff]
        %v420 = vld [vmem:[#allocation6 + $0xc0] sm:$0xff]
        %v421 = vld [vmem:[#allocation6 + $0xc8] sm:$0xff]
        %v422 = vld [vmem:[#allocation6 + $0xd0] sm:$0xff]
        %v423 = vld [vmem:[#allocation6 + $0xd8] sm:$0xff]
        %v424 = vld [vmem:[#allocation6 + $0xe0] sm:$0xff]
        %v425 = vld [vmem:[#allocation6 + $0xe8] sm:$0xff]
        %v426 = vld [vmem:[#allocation6 + $0xf0] sm:$0xff]
        %v427 = vld [vmem:[#allocation6 + $0xf8] sm:$0xff]
        %v428 = vld [vmem:[#allocation6 + $0x100] sm:$0xff]
        %v429 = vld [vmem:[#allocation6 + $0x108] sm:$0xff]
        %v430 = vld [vmem:[#allocation6 + $0x110] sm:$0xff]
        %v431 = vld [vmem:[#allocation6 + $0x118] sm:$0xff]
        %v432 = vld [vmem:[#allocation6 + $0x120] sm:$0xff]
        %v433 = vld [vmem:[#allocation6 + $0x128] sm:$0xff]
        %v434 = vld [vmem:[#allocation6 + $0x130] sm:$0xff]
        %v435 = vld [vmem:[#allocation6 + $0x138] sm:$0xff]
        %v436 = vld [vmem:[#allocation6 + $0x140] sm:$0xff]
        %v437 = vld [vmem:[#allocation6 + $0x148] sm:$0xff]
        %v438 = vld [vmem:[#allocation6 + $0x150] sm:$0xff]
        %v439 = vld [vmem:[#allocation6 + $0x158] sm:$0xff]
        %v440 = vld [vmem:[#allocation6 + $0x160] sm:$0xff]
        %v441 = vld [vmem:[#allocation6 + $0x168] sm:$0xff]
        %v442 = vld [vmem:[#allocation6 + $0x170] sm:$0xff]
        %v443 = vld [vmem:[#allocation6 + $0x178] sm:$0xff]
        %v444 = vld [vmem:[#allocation6 + $0x180] sm:$0xff]
        %v445 = vld [vmem:[#allocation6 + $0x188] sm:$0xff]
        %v446 = vld [vmem:[#allocation6 + $0x190] sm:$0xff]
        %v447 = vld [vmem:[#allocation6 + $0x198] sm:$0xff]
        %v448 = vld [vmem:[#allocation6 + $0x1a0] sm:$0xff]
        %v449 = vld [vmem:[#allocation6 + $0x1a8] sm:$0xff]
        %v450 = vld [vmem:[#allocation6 + $0x1b0] sm:$0xff]
        %v451 = vld [vmem:[#allocation6 + $0x1b8] sm:$0xff]
        %v452 = vld [vmem:[#allocation6 + $0x1c0] sm:$0xff]
        %v453 = vld [vmem:[#allocation6 + $0x1c8] sm:$0xff]
        %v454 = vld [vmem:[#allocation6 + $0x1d0] sm:$0xff]
        %v455 = vld [vmem:[#allocation6 + $0x1d8] sm:$0xff]
        %v456 = vld [vmem:[#allocation6 + $0x1e0] sm:$0xff]
        %v457 = vld [vmem:[#allocation6 + $0x1e8] sm:$0xff]
        %v458 = vld [vmem:[#allocation6 + $0x1f0] sm:$0xff]
        %v459 = vld [vmem:[#allocation6 + $0x1f8] sm:$0xff]
        %v460 = vld [vmem:[#allocation8] sm:$0xf]
        %v461 = vunpack.c.l.bf16 %v460
        %v463 = vperm.slane %v461, 0
        %v464 = vperm.slane %v461, 2
        %v465 = vperm.slane %v461, 4
        %v466 = vperm.slane %v461, 6
        %v471 = vperm.slane %v463, 0
        %v472 = vperm.slane %v464, 0
        %v473 = vperm.slane %v465, 0
        %v474 = vperm.slane %v466, 0
        %v494 = vunpack.c.l.b16 %v377
        %v495 = vunpack.c.h.b16 %v377
        %v496 = vunpack.c.l.b16 %v378
        %v497 = vunpack.c.h.b16 %v378
        %v498 = vunpack.c.l.b16 %v379
        %v499 = vunpack.c.h.b16 %v379
        %v500 = vunpack.c.l.b16 %v380
        %v501 = vunpack.c.h.b16 %v380
        %v502 = vunpack.c.l.b16 %v381
        %v503 = vunpack.c.h.b16 %v381
        %v504 = vunpack.c.l.b16 %v382
        %v505 = vunpack.c.h.b16 %v382
        %v506 = vunpack.c.l.b16 %v383
        %v507 = vunpack.c.h.b16 %v383
        %v508 = vunpack.c.l.b16 %v384
        %v509 = vunpack.c.h.b16 %v384
        %v510 = vunpack.c.l.b16 %v385
        %v511 = vunpack.c.h.b16 %v385
        %v512 = vunpack.c.l.b16 %v386
        %v513 = vunpack.c.h.b16 %v386
        %v514 = vunpack.c.l.b16 %v387
        %v515 = vunpack.c.h.b16 %v387
        %v516 = vunpack.c.l.b16 %v388
        %v517 = vunpack.c.h.b16 %v388
        %v518 = vunpack.c.l.b16 %v389
        %v519 = vunpack.c.h.b16 %v389
        %v520 = vunpack.c.l.b16 %v390
        %v521 = vunpack.c.h.b16 %v390
        %v522 = vunpack.c.l.b16 %v391
        %v523 = vunpack.c.h.b16 %v391
        %v524 = vunpack.c.l.b16 %v392
        %v525 = vunpack.c.h.b16 %v392
        %v526 = vunpack.c.l.b16 %v393
        %v527 = vunpack.c.h.b16 %v393
        %v528 = vunpack.c.l.b16 %v394
        %v529 = vunpack.c.h.b16 %v394
        %v530 = vunpack.c.l.b16 %v395
        %v531 = vunpack.c.h.b16 %v395
        %v532 = vpack.c.b16 %v496, %v494
        %v533 = vpack.c.b16 %v497, %v495
        %v534 = vpack.c.b16 %v500, %v498
        %v535 = vpack.c.b16 %v501, %v499
        %v536 = vpack.c.b16 %v504, %v502
        %v537 = vpack.c.b16 %v505, %v503
        %v538 = vpack.c.b16 %v508, %v506
        %v539 = vpack.c.b16 %v509, %v507
        %v540 = vpack.c.b16 %v512, %v510
        %v541 = vpack.c.b16 %v513, %v511
        %v542 = vpack.c.b16 %v516, %v514
        %v543 = vpack.c.b16 %v517, %v515
        %v544 = vpack.c.b16 %v520, %v518
        %v545 = vpack.c.b16 %v521, %v519
        %v546 = vpack.c.b16 %v524, %v522
        %v547 = vpack.c.b16 %v525, %v523
        %v548 = vpack.c.b16 %v528, %v526
        %v549 = vpack.c.b16 %v529, %v527
        %v550 = vpack.c.b16 %v530, %v530
        %v551 = vpack.c.b16 %v531, %v531
        %v636 = vunpack.c.l.b16 %v396
        %v637 = vunpack.c.h.b16 %v396
        %v638 = vunpack.c.l.b16 %v397
        %v639 = vunpack.c.h.b16 %v397
        %v640 = vunpack.c.l.b16 %v398
        %v641 = vunpack.c.h.b16 %v398
        %v642 = vunpack.c.l.b16 %v399
        %v643 = vunpack.c.h.b16 %v399
        %v644 = vunpack.c.l.b16 %v400
        %v645 = vunpack.c.h.b16 %v400
        %v646 = vunpack.c.l.b16 %v401
        %v647 = vunpack.c.h.b16 %v401
        %v648 = vunpack.c.l.b16 %v402
        %v649 = vunpack.c.h.b16 %v402
        %v650 = vunpack.c.l.b16 %v403
        %v651 = vunpack.c.h.b16 %v403
        %v652 = vunpack.c.l.b16 %v404
        %v653 = vunpack.c.h.b16 %v404
        %v654 = vunpack.c.l.b16 %v405
        %v655 = vunpack.c.h.b16 %v405
        %v656 = vunpack.c.l.b16 %v406
        %v657 = vunpack.c.h.b16 %v406
        %v658 = vunpack.c.l.b16 %v407
        %v659 = vunpack.c.h.b16 %v407
        %v660 = vunpack.c.l.b16 %v408
        %v661 = vunpack.c.h.b16 %v408
        %v662 = vunpack.c.l.b16 %v409
        %v663 = vunpack.c.h.b16 %v409
        %v664 = vunpack.c.l.b16 %v410
        %v665 = vunpack.c.h.b16 %v410
        %v666 = vunpack.c.l.b16 %v411
        %v667 = vunpack.c.h.b16 %v411
        %v668 = vunpack.c.l.b16 %v412
        %v669 = vunpack.c.h.b16 %v412
        %v670 = vunpack.c.l.b16 %v413
        %v671 = vunpack.c.h.b16 %v413
        %v672 = vunpack.c.l.b16 %v414
        %v673 = vunpack.c.h.b16 %v414
        %v674 = vunpack.c.l.b16 %v415
        %v675 = vunpack.c.h.b16 %v415
        %v676 = vunpack.c.l.b16 %v416
        %v677 = vunpack.c.h.b16 %v416
        %v678 = vunpack.c.l.b16 %v417
        %v679 = vunpack.c.h.b16 %v417
        %v680 = vunpack.c.l.b16 %v418
        %v681 = vunpack.c.h.b16 %v418
        %v682 = vunpack.c.l.b16 %v419
        %v683 = vunpack.c.h.b16 %v419
        %v684 = vunpack.c.l.b16 %v420
        %v685 = vunpack.c.h.b16 %v420
        %v686 = vunpack.c.l.b16 %v421
        %v687 = vunpack.c.h.b16 %v421
        %v688 = vunpack.c.l.b16 %v422
        %v689 = vunpack.c.h.b16 %v422
        %v690 = vunpack.c.l.b16 %v423
        %v691 = vunpack.c.h.b16 %v423
        %v692 = vunpack.c.l.b16 %v424
        %v693 = vunpack.c.h.b16 %v424
        %v694 = vunpack.c.l.b16 %v425
        %v695 = vunpack.c.h.b16 %v425
        %v696 = vunpack.c.l.b16 %v426
        %v697 = vunpack.c.h.b16 %v426
        %v698 = vunpack.c.l.b16 %v427
        %v699 = vunpack.c.h.b16 %v427
        %v700 = vunpack.c.l.b16 %v428
        %v701 = vunpack.c.h.b16 %v428
        %v702 = vunpack.c.l.b16 %v429
        %v703 = vunpack.c.h.b16 %v429
        %v704 = vunpack.c.l.b16 %v430
        %v705 = vunpack.c.h.b16 %v430
        %v706 = vunpack.c.l.b16 %v431
        %v707 = vunpack.c.h.b16 %v431
        %v708 = vunpack.c.l.b16 %v432
        %v709 = vunpack.c.h.b16 %v432
        %v710 = vunpack.c.l.b16 %v433
        %v711 = vunpack.c.h.b16 %v433
        %v712 = vunpack.c.l.b16 %v434
        %v713 = vunpack.c.h.b16 %v434
        %v714 = vunpack.c.l.b16 %v435
        %v715 = vunpack.c.h.b16 %v435
        %v716 = vunpack.c.l.b16 %v436
        %v717 = vunpack.c.h.b16 %v436
        %v718 = vunpack.c.l.b16 %v437
        %v719 = vunpack.c.h.b16 %v437
        %v720 = vunpack.c.l.b16 %v438
        %v721 = vunpack.c.h.b16 %v438
        %v722 = vunpack.c.l.b16 %v439
        %v723 = vunpack.c.h.b16 %v439
        %v724 = vunpack.c.l.b16 %v440
        %v725 = vunpack.c.h.b16 %v440
        %v726 = vunpack.c.l.b16 %v441
        %v727 = vunpack.c.h.b16 %v441
        %v728 = vunpack.c.l.b16 %v442
        %v729 = vunpack.c.h.b16 %v442
        %v730 = vunpack.c.l.b16 %v443
        %v731 = vunpack.c.h.b16 %v443
        %v732 = vunpack.c.l.b16 %v444
        %v733 = vunpack.c.h.b16 %v444
        %v734 = vunpack.c.l.b16 %v445
        %v735 = vunpack.c.h.b16 %v445
        %v736 = vunpack.c.l.b16 %v446
        %v737 = vunpack.c.h.b16 %v446
        %v738 = vunpack.c.l.b16 %v447
        %v739 = vunpack.c.h.b16 %v447
        %v740 = vunpack.c.l.b16 %v448
        %v741 = vunpack.c.h.b16 %v448
        %v742 = vunpack.c.l.b16 %v449
        %v743 = vunpack.c.h.b16 %v449
        %v744 = vunpack.c.l.b16 %v450
        %v745 = vunpack.c.h.b16 %v450
        %v746 = vunpack.c.l.b16 %v451
        %v747 = vunpack.c.h.b16 %v451
        %v748 = vunpack.c.l.b16 %v452
        %v749 = vunpack.c.h.b16 %v452
        %v750 = vunpack.c.l.b16 %v453
        %v751 = vunpack.c.h.b16 %v453
        %v752 = vunpack.c.l.b16 %v454
        %v753 = vunpack.c.h.b16 %v454
        %v754 = vunpack.c.l.b16 %v455
        %v755 = vunpack.c.h.b16 %v455
        %v756 = vunpack.c.l.b16 %v456
        %v757 = vunpack.c.h.b16 %v456
        %v758 = vunpack.c.l.b16 %v457
        %v759 = vunpack.c.h.b16 %v457
        %v760 = vunpack.c.l.b16 %v458
        %v761 = vunpack.c.h.b16 %v458
        %v762 = vunpack.c.l.b16 %v459
        %v763 = vunpack.c.h.b16 %v459
        %v764 = vpack.c.b16 %v640, %v636
        %v765 = vpack.c.b16 %v641, %v637
        %v766 = vpack.c.b16 %v642, %v638
        %v767 = vpack.c.b16 %v643, %v639
        %v768 = vpack.c.b16 %v648, %v644
        %v769 = vpack.c.b16 %v649, %v645
        %v770 = vpack.c.b16 %v650, %v646
        %v771 = vpack.c.b16 %v651, %v647
        %v772 = vpack.c.b16 %v656, %v652
        %v773 = vpack.c.b16 %v657, %v653
        %v774 = vpack.c.b16 %v658, %v654
        %v775 = vpack.c.b16 %v659, %v655
        %v776 = vpack.c.b16 %v664, %v660
        %v777 = vpack.c.b16 %v665, %v661
        %v778 = vpack.c.b16 %v666, %v662
        %v779 = vpack.c.b16 %v667, %v663
        %v780 = vpack.c.b16 %v672, %v668
        %v781 = vpack.c.b16 %v673, %v669
        %v782 = vpack.c.b16 %v674, %v670
        %v783 = vpack.c.b16 %v675, %v671
        %v784 = vpack.c.b16 %v680, %v676
        %v785 = vpack.c.b16 %v681, %v677
        %v786 = vpack.c.b16 %v682, %v678
        %v787 = vpack.c.b16 %v683, %v679
        %v788 = vpack.c.b16 %v688, %v684
        %v789 = vpack.c.b16 %v689, %v685
        %v790 = vpack.c.b16 %v690, %v686
        %v791 = vpack.c.b16 %v691, %v687
        %v792 = vpack.c.b16 %v696, %v692
        %v793 = vpack.c.b16 %v697, %v693
        %v794 = vpack.c.b16 %v698, %v694
        %v795 = vpack.c.b16 %v699, %v695
        %v796 = vpack.c.b16 %v704, %v700
        %v797 = vpack.c.b16 %v705, %v701
        %v798 = vpack.c.b16 %v706, %v702
        %v799 = vpack.c.b16 %v707, %v703
        %v800 = vpack.c.b16 %v712, %v708
        %v801 = vpack.c.b16 %v713, %v709
        %v802 = vpack.c.b16 %v714, %v710
        %v803 = vpack.c.b16 %v715, %v711
        %v804 = vpack.c.b16 %v720, %v716
        %v805 = vpack.c.b16 %v721, %v717
        %v806 = vpack.c.b16 %v722, %v718
        %v807 = vpack.c.b16 %v723, %v719
        %v808 = vpack.c.b16 %v728, %v724
        %v809 = vpack.c.b16 %v729, %v725
        %v810 = vpack.c.b16 %v730, %v726
        %v811 = vpack.c.b16 %v731, %v727
        %v812 = vpack.c.b16 %v736, %v732
        %v813 = vpack.c.b16 %v737, %v733
        %v814 = vpack.c.b16 %v738, %v734
        %v815 = vpack.c.b16 %v739, %v735
        %v816 = vpack.c.b16 %v744, %v740
        %v817 = vpack.c.b16 %v745, %v741
        %v818 = vpack.c.b16 %v746, %v742
        %v819 = vpack.c.b16 %v747, %v743
        %v820 = vpack.c.b16 %v752, %v748
        %v821 = vpack.c.b16 %v753, %v749
        %v822 = vpack.c.b16 %v754, %v750
        %v823 = vpack.c.b16 %v755, %v751
        %v824 = vpack.c.b16 %v760, %v756
        %v825 = vpack.c.b16 %v761, %v757
        %v826 = vpack.c.b16 %v762, %v758
        %v827 = vpack.c.b16 %v763, %v759
        %892 = vmatpush.bf16.msra.mxu0 %v792
        %893 = vmatpush.bf16.msra.mxu0 %v788
        %894 = vmatpush.bf16.msra.mxu0 %v784
        %895 = vmatpush.bf16.msra.mxu0 %v780
        %896 = vmatpush.bf16.msra.mxu0 %v776
        %897 = vmatpush.bf16.msra.mxu0 %v772
        %898 = vmatpush.bf16.msra.mxu0 %v768
        %899 = vmatpush.bf16.msra.mxu0 %v764
        %900 = vmatmul.bf16.gmra.mxu0 %v532
        %v901 = vpop.f32.mrf.mxu0
        %v902 = vadd.f32 %v471, %v901
        %v903 = vpop.f32.mrf.mxu0
        %v904 = vadd.f32 %v471, %v903
        %905 = vmatmul.bf16.gmra.mxu0 %v534
        %v906 = vpop.f32.mrf.mxu0
        %v907 = vadd.f32 %v471, %v906
        %v908 = vpop.f32.mrf.mxu0
        %v909 = vadd.f32 %v471, %v908
        %910 = vmatmul.bf16.gmra.mxu0 %v536
        %v911 = vpop.f32.mrf.mxu0
        %v912 = vadd.f32 %v471, %v911
        %v913 = vpop.f32.mrf.mxu0
        %v914 = vadd.f32 %v471, %v913
        %915 = vmatmul.bf16.gmra.mxu0 %v538
        %v916 = vpop.f32.mrf.mxu0
        %v917 = vadd.f32 %v471, %v916
        %v918 = vpop.f32.mrf.mxu0
        %v919 = vadd.f32 %v471, %v918
        %920 = vmatmul.bf16.gmra.mxu0 %v540
        %v921 = vpop.f32.mrf.mxu0
        %v922 = vadd.f32 %v471, %v921
        %v923 = vpop.f32.mrf.mxu0
        %v924 = vadd.f32 %v471, %v923
        %925 = vmatmul.bf16.gmra.mxu0 %v542
        %v926 = vpop.f32.mrf.mxu0
        %v927 = vadd.f32 %v471, %v926
        %v928 = vpop.f32.mrf.mxu0
        %v929 = vadd.f32 %v471, %v928
        %930 = vmatmul.bf16.gmra.mxu0 %v544
        %v931 = vpop.f32.mrf.mxu0
        %v932 = vadd.f32 %v471, %v931
        %v933 = vpop.f32.mrf.mxu0
        %v934 = vadd.f32 %v471, %v933
        %935 = vmatmul.bf16.gmra.mxu0 %v546
        %v936 = vpop.f32.mrf.mxu0
        %v937 = vadd.f32 %v471, %v936
        %v938 = vpop.f32.mrf.mxu0
        %v939 = vadd.f32 %v471, %v938
        %940 = vmatmul.bf16.gmra.mxu0 %v548
        %v941 = vpop.f32.mrf.mxu0
        %v942 = vadd.f32 %v471, %v941
        %v943 = vpop.f32.mrf.mxu0
        %v944 = vadd.f32 %v471, %v943
        %945 = vmatmul.bf16.gmra.mxu0 %v550
        %v946 = vpop.f32.mrf.mxu0
        %v947 = vadd.f32 %v471, %v946
        %v948 = vpop.f32.mrf.mxu0
        %949 = vdwg.mxu0
        %950 = vmatpush.bf16.msra.mxu0 %v824
        %951 = vmatpush.bf16.msra.mxu0 %v820
        %952 = vmatpush.bf16.msra.mxu0 %v816
        %953 = vmatpush.bf16.msra.mxu0 %v812
        %954 = vmatpush.bf16.msra.mxu0 %v808
        %955 = vmatpush.bf16.msra.mxu0 %v804
        %956 = vmatpush.bf16.msra.mxu0 %v800
        %957 = vmatpush.bf16.msra.mxu0 %v796
        %958 = vmatmul.bf16.gmra.mxu0 %v533
        %v959 = vpop.f32.mrf.mxu0
        %v960 = vadd.f32 %v902, %v959
        %v961 = vpop.f32.mrf.mxu0
        %v962 = vadd.f32 %v904, %v961
        %963 = vmatmul.bf16.gmra.mxu0 %v535
        %v964 = vpop.f32.mrf.mxu0
        %v965 = vadd.f32 %v907, %v964
        %v966 = vpop.f32.mrf.mxu0
        %v967 = vadd.f32 %v909, %v966
        %968 = vmatmul.bf16.gmra.mxu0 %v537
        %v969 = vpop.f32.mrf.mxu0
        %v970 = vadd.f32 %v912, %v969
        %v971 = vpop.f32.mrf.mxu0
        %v972 = vadd.f32 %v914, %v971
        %973 = vmatmul.bf16.gmra.mxu0 %v539
        %v974 = vpop.f32.mrf.mxu0
        %v975 = vadd.f32 %v917, %v974
        %v976 = vpop.f32.mrf.mxu0
        %v977 = vadd.f32 %v919, %v976
        %978 = vmatmul.bf16.gmra.mxu0 %v541
        %v979 = vpop.f32.mrf.mxu0
        %v980 = vadd.f32 %v922, %v979
        %v981 = vpop.f32.mrf.mxu0
        %v982 = vadd.f32 %v924, %v981
        %983 = vmatmul.bf16.gmra.mxu0 %v543
        %v984 = vpop.f32.mrf.mxu0
        %v985 = vadd.f32 %v927, %v984
        %v986 = vpop.f32.mrf.mxu0
        %v987 = vadd.f32 %v929, %v986
        %988 = vmatmul.bf16.gmra.mxu0 %v545
        %v989 = vpop.f32.mrf.mxu0
        %v990 = vadd.f32 %v932, %v989
        %v991 = vpop.f32.mrf.mxu0
        %v992 = vadd.f32 %v934, %v991
        %993 = vmatmul.bf16.gmra.mxu0 %v547
        %v994 = vpop.f32.mrf.mxu0
        %v995 = vadd.f32 %v937, %v994
        %v996 = vpop.f32.mrf.mxu0
        %v997 = vadd.f32 %v939, %v996
        %998 = vmatmul.bf16.gmra.mxu0 %v549
        %v999 = vpop.f32.mrf.mxu0
        %v1000 = vadd.f32 %v942, %v999
        %v1001 = vpop.f32.mrf.mxu0
        %v1002 = vadd.f32 %v944, %v1001
        %1003 = vmatmul.bf16.gmra.mxu0 %v551
        %v1004 = vpop.f32.mrf.mxu0
        %v1005 = vadd.f32 %v947, %v1004
        %v1006 = vpop.f32.mrf.mxu0
        %1007 = vdwg.mxu0
        %1008 = vmatpush.bf16.msra.mxu0 %v793
        %1009 = vmatpush.bf16.msra.mxu0 %v789
        %1010 = vmatpush.bf16.msra.mxu0 %v785
        %1011 = vmatpush.bf16.msra.mxu0 %v781
        %1012 = vmatpush.bf16.msra.mxu0 %v777
        %1013 = vmatpush.bf16.msra.mxu0 %v773
        %1014 = vmatpush.bf16.msra.mxu0 %v769
        %1015 = vmatpush.bf16.msra.mxu0 %v765
        %1016 = vmatmul.bf16.gmra.mxu0 %v532
        %v1017 = vpop.f32.mrf.mxu0
        %v1018 = vadd.f32 %v472, %v1017
        %v1019 = vpop.f32.mrf.mxu0
        %v1020 = vadd.f32 %v472, %v1019
        %1021 = vmatmul.bf16.gmra.mxu0 %v534
        %v1022 = vpop.f32.mrf.mxu0
        %v1023 = vadd.f32 %v472, %v1022
        %v1024 = vpop.f32.mrf.mxu0
        %v1025 = vadd.f32 %v472, %v1024
        %1026 = vmatmul.bf16.gmra.mxu0 %v536
        %v1027 = vpop.f32.mrf.mxu0
        %v1028 = vadd.f32 %v472, %v1027
        %v1029 = vpop.f32.mrf.mxu0
        %v1030 = vadd.f32 %v472, %v1029
        %1031 = vmatmul.bf16.gmra.mxu0 %v538
        %v1032 = vpop.f32.mrf.mxu0
        %v1033 = vadd.f32 %v472, %v1032
        %v1034 = vpop.f32.mrf.mxu0
        %v1035 = vadd.f32 %v472, %v1034
        %1036 = vmatmul.bf16.gmra.mxu0 %v540
        %v1037 = vpop.f32.mrf.mxu0
        %v1038 = vadd.f32 %v472, %v1037
        %v1039 = vpop.f32.mrf.mxu0
        %v1040 = vadd.f32 %v472, %v1039
        %1041 = vmatmul.bf16.gmra.mxu0 %v542
        %v1042 = vpop.f32.mrf.mxu0
        %v1043 = vadd.f32 %v472, %v1042
        %v1044 = vpop.f32.mrf.mxu0
        %v1045 = vadd.f32 %v472, %v1044
        %1046 = vmatmul.bf16.gmra.mxu0 %v544
        %v1047 = vpop.f32.mrf.mxu0
        %v1048 = vadd.f32 %v472, %v1047
        %v1049 = vpop.f32.mrf.mxu0
        %v1050 = vadd.f32 %v472, %v1049
        %1051 = vmatmul.bf16.gmra.mxu0 %v546
        %v1052 = vpop.f32.mrf.mxu0
        %v1053 = vadd.f32 %v472, %v1052
        %v1054 = vpop.f32.mrf.mxu0
        %v1055 = vadd.f32 %v472, %v1054
        %1056 = vmatmul.bf16.gmra.mxu0 %v548
        %v1057 = vpop.f32.mrf.mxu0
        %v1058 = vadd.f32 %v472, %v1057
        %v1059 = vpop.f32.mrf.mxu0
        %v1060 = vadd.f32 %v472, %v1059
        %1061 = vmatmul.bf16.gmra.mxu0 %v550
        %v1062 = vpop.f32.mrf.mxu0
        %v1063 = vadd.f32 %v472, %v1062
        %v1064 = vpop.f32.mrf.mxu0
        %1065 = vdwg.mxu0
        %1066 = vmatpush.bf16.msra.mxu0 %v825
        %1067 = vmatpush.bf16.msra.mxu0 %v821
        %1068 = vmatpush.bf16.msra.mxu0 %v817
        %1069 = vmatpush.bf16.msra.mxu0 %v813
        %1070 = vmatpush.bf16.msra.mxu0 %v809
        %1071 = vmatpush.bf16.msra.mxu0 %v805
        %1072 = vmatpush.bf16.msra.mxu0 %v801
        %1073 = vmatpush.bf16.msra.mxu0 %v797
        %1074 = vmatmul.bf16.gmra.mxu0 %v533
        %v1075 = vpop.f32.mrf.mxu0
        %v1076 = vadd.f32 %v1018, %v1075
        %v1077 = vpop.f32.mrf.mxu0
        %v1078 = vadd.f32 %v1020, %v1077
        %1079 = vmatmul.bf16.gmra.mxu0 %v535
        %v1080 = vpop.f32.mrf.mxu0
        %v1081 = vadd.f32 %v1023, %v1080
        %v1082 = vpop.f32.mrf.mxu0
        %v1083 = vadd.f32 %v1025, %v1082
        %1084 = vmatmul.bf16.gmra.mxu0 %v537
        %v1085 = vpop.f32.mrf.mxu0
        %v1086 = vadd.f32 %v1028, %v1085
        %v1087 = vpop.f32.mrf.mxu0
        %v1088 = vadd.f32 %v1030, %v1087
        %1089 = vmatmul.bf16.gmra.mxu0 %v539
        %v1090 = vpop.f32.mrf.mxu0
        %v1091 = vadd.f32 %v1033, %v1090
        %v1092 = vpop.f32.mrf.mxu0
        %v1093 = vadd.f32 %v1035, %v1092
        %1094 = vmatmul.bf16.gmra.mxu0 %v541
        %v1095 = vpop.f32.mrf.mxu0
        %v1096 = vadd.f32 %v1038, %v1095
        %v1097 = vpop.f32.mrf.mxu0
        %v1098 = vadd.f32 %v1040, %v1097
        %1099 = vmatmul.bf16.gmra.mxu0 %v543
        %v1100 = vpop.f32.mrf.mxu0
        %v1101 = vadd.f32 %v1043, %v1100
        %v1102 = vpop.f32.mrf.mxu0
        %v1103 = vadd.f32 %v1045, %v1102
        %1104 = vmatmul.bf16.gmra.mxu0 %v545
        %v1105 = vpop.f32.mrf.mxu0
        %v1106 = vadd.f32 %v1048, %v1105
        %v1107 = vpop.f32.mrf.mxu0
        %v1108 = vadd.f32 %v1050, %v1107
        %1109 = vmatmul.bf16.gmra.mxu0 %v547
        %v1110 = vpop.f32.mrf.mxu0
        %v1111 = vadd.f32 %v1053, %v1110
        %v1112 = vpop.f32.mrf.mxu0
        %v1113 = vadd.f32 %v1055, %v1112
        %1114 = vmatmul.bf16.gmra.mxu0 %v549
        %v1115 = vpop.f32.mrf.mxu0
        %v1116 = vadd.f32 %v1058, %v1115
        %v1117 = vpop.f32.mrf.mxu0
        %v1118 = vadd.f32 %v1060, %v1117
        %1119 = vmatmul.bf16.gmra.mxu0 %v551
        %v1120 = vpop.f32.mrf.mxu0
        %v1121 = vadd.f32 %v1063, %v1120
        %v1122 = vpop.f32.mrf.mxu0
        %1123 = vdwg.mxu0
        %1124 = vmatpush.bf16.msra.mxu0 %v794
        %1125 = vmatpush.bf16.msra.mxu0 %v790
        %1126 = vmatpush.bf16.msra.mxu0 %v786
        %1127 = vmatpush.bf16.msra.mxu0 %v782
        %1128 = vmatpush.bf16.msra.mxu0 %v778
        %1129 = vmatpush.bf16.msra.mxu0 %v774
        %1130 = vmatpush.bf16.msra.mxu0 %v770
        %1131 = vmatpush.bf16.msra.mxu0 %v766
        %1132 = vmatmul.bf16.gmra.mxu0 %v532
        %v1133 = vpop.f32.mrf.mxu0
        %v1134 = vadd.f32 %v473, %v1133
        %v1135 = vpop.f32.mrf.mxu0
        %v1136 = vadd.f32 %v473, %v1135
        %1137 = vmatmul.bf16.gmra.mxu0 %v534
        %v1138 = vpop.f32.mrf.mxu0
        %v1139 = vadd.f32 %v473, %v1138
        %v1140 = vpop.f32.mrf.mxu0
        %v1141 = vadd.f32 %v473, %v1140
        %1142 = vmatmul.bf16.gmra.mxu0 %v536
        %v1143 = vpop.f32.mrf.mxu0
        %v1144 = vadd.f32 %v473, %v1143
        %v1145 = vpop.f32.mrf.mxu0
        %v1146 = vadd.f32 %v473, %v1145
        %1147 = vmatmul.bf16.gmra.mxu0 %v538
        %v1148 = vpop.f32.mrf.mxu0
        %v1149 = vadd.f32 %v473, %v1148
        %v1150 = vpop.f32.mrf.mxu0
        %v1151 = vadd.f32 %v473, %v1150
        %1152 = vmatmul.bf16.gmra.mxu0 %v540
        %v1153 = vpop.f32.mrf.mxu0
        %v1154 = vadd.f32 %v473, %v1153
        %v1155 = vpop.f32.mrf.mxu0
        %v1156 = vadd.f32 %v473, %v1155
        %1157 = vmatmul.bf16.gmra.mxu0 %v542
        %v1158 = vpop.f32.mrf.mxu0
        %v1159 = vadd.f32 %v473, %v1158
        %v1160 = vpop.f32.mrf.mxu0
        %v1161 = vadd.f32 %v473, %v1160
        %1162 = vmatmul.bf16.gmra.mxu0 %v544
        %v1163 = vpop.f32.mrf.mxu0
        %v1164 = vadd.f32 %v473, %v1163
        %v1165 = vpop.f32.mrf.mxu0
        %v1166 = vadd.f32 %v473, %v1165
        %1167 = vmatmul.bf16.gmra.mxu0 %v546
        %v1168 = vpop.f32.mrf.mxu0
        %v1169 = vadd.f32 %v473, %v1168
        %v1170 = vpop.f32.mrf.mxu0
        %v1171 = vadd.f32 %v473, %v1170
        %1172 = vmatmul.bf16.gmra.mxu0 %v548
        %v1173 = vpop.f32.mrf.mxu0
        %v1174 = vadd.f32 %v473, %v1173
        %v1175 = vpop.f32.mrf.mxu0
        %v1176 = vadd.f32 %v473, %v1175
        %1177 = vmatmul.bf16.gmra.mxu0 %v550
        %v1178 = vpop.f32.mrf.mxu0
        %v1179 = vadd.f32 %v473, %v1178
        %v1180 = vpop.f32.mrf.mxu0
        %1181 = vdwg.mxu0
        %1182 = vmatpush.bf16.msra.mxu0 %v826
        %1183 = vmatpush.bf16.msra.mxu0 %v822
        %1184 = vmatpush.bf16.msra.mxu0 %v818
        %1185 = vmatpush.bf16.msra.mxu0 %v814
        %1186 = vmatpush.bf16.msra.mxu0 %v810
        %1187 = vmatpush.bf16.msra.mxu0 %v806
        %1188 = vmatpush.bf16.msra.mxu0 %v802
        %1189 = vmatpush.bf16.msra.mxu0 %v798
        %1190 = vmatmul.bf16.gmra.mxu0 %v533
        %v1191 = vpop.f32.mrf.mxu0
        %v1192 = vadd.f32 %v1134, %v1191
        %v1193 = vpop.f32.mrf.mxu0
        %v1194 = vadd.f32 %v1136, %v1193
        %1195 = vmatmul.bf16.gmra.mxu0 %v535
        %v1196 = vpop.f32.mrf.mxu0
        %v1197 = vadd.f32 %v1139, %v1196
        %v1198 = vpop.f32.mrf.mxu0
        %v1199 = vadd.f32 %v1141, %v1198
        %1200 = vmatmul.bf16.gmra.mxu0 %v537
        %v1201 = vpop.f32.mrf.mxu0
        %v1202 = vadd.f32 %v1144, %v1201
        %v1203 = vpop.f32.mrf.mxu0
        %v1204 = vadd.f32 %v1146, %v1203
        %1205 = vmatmul.bf16.gmra.mxu0 %v539
        %v1206 = vpop.f32.mrf.mxu0
        %v1207 = vadd.f32 %v1149, %v1206
        %v1208 = vpop.f32.mrf.mxu0
        %v1209 = vadd.f32 %v1151, %v1208
        %1210 = vmatmul.bf16.gmra.mxu0 %v541
        %v1211 = vpop.f32.mrf.mxu0
        %v1212 = vadd.f32 %v1154, %v1211
        %v1213 = vpop.f32.mrf.mxu0
        %v1214 = vadd.f32 %v1156, %v1213
        %1215 = vmatmul.bf16.gmra.mxu0 %v543
        %v1216 = vpop.f32.mrf.mxu0
        %v1217 = vadd.f32 %v1159, %v1216
        %v1218 = vpop.f32.mrf.mxu0
        %v1219 = vadd.f32 %v1161, %v1218
        %1220 = vmatmul.bf16.gmra.mxu0 %v545
        %v1221 = vpop.f32.mrf.mxu0
        %v1222 = vadd.f32 %v1164, %v1221
        %v1223 = vpop.f32.mrf.mxu0
        %v1224 = vadd.f32 %v1166, %v1223
        %1225 = vmatmul.bf16.gmra.mxu0 %v547
        %v1226 = vpop.f32.mrf.mxu0
        %v1227 = vadd.f32 %v1169, %v1226
        %v1228 = vpop.f32.mrf.mxu0
        %v1229 = vadd.f32 %v1171, %v1228
        %1230 = vmatmul.bf16.gmra.mxu0 %v549
        %v1231 = vpop.f32.mrf.mxu0
        %v1232 = vadd.f32 %v1174, %v1231
        %v1233 = vpop.f32.mrf.mxu0
        %v1234 = vadd.f32 %v1176, %v1233
        %1235 = vmatmul.bf16.gmra.mxu0 %v551
        %v1236 = vpop.f32.mrf.mxu0
        %v1237 = vadd.f32 %v1179, %v1236
        %v1238 = vpop.f32.mrf.mxu0
        %1239 = vdwg.mxu0
        %1240 = vmatpush.bf16.msra.mxu0 %v795
        %1241 = vmatpush.bf16.msra.mxu0 %v791
        %1242 = vmatpush.bf16.msra.mxu0 %v787
        %1243 = vmatpush.bf16.msra.mxu0 %v783
        %1244 = vmatpush.bf16.msra.mxu0 %v779
        %1245 = vmatpush.bf16.msra.mxu0 %v775
        %1246 = vmatpush.bf16.msra.mxu0 %v771
        %1247 = vmatpush.bf16.msra.mxu0 %v767
        %1248 = vmatmul.bf16.gmra.mxu0 %v532
        %v1249 = vpop.f32.mrf.mxu0
        %v1250 = vadd.f32 %v474, %v1249
        %v1251 = vpop.f32.mrf.mxu0
        %v1252 = vadd.f32 %v474, %v1251
        %1253 = vmatmul.bf16.gmra.mxu0 %v534
        %v1254 = vpop.f32.mrf.mxu0
        %v1255 = vadd.f32 %v474, %v1254
        %v1256 = vpop.f32.mrf.mxu0
        %v1257 = vadd.f32 %v474, %v1256
        %1258 = vmatmul.bf16.gmra.mxu0 %v536
        %v1259 = vpop.f32.mrf.mxu0
        %v1260 = vadd.f32 %v474, %v1259
        %v1261 = vpop.f32.mrf.mxu0
        %v1262 = vadd.f32 %v474, %v1261
        %1263 = vmatmul.bf16.gmra.mxu0 %v538
        %v1264 = vpop.f32.mrf.mxu0
        %v1265 = vadd.f32 %v474, %v1264
        %v1266 = vpop.f32.mrf.mxu0
        %v1267 = vadd.f32 %v474, %v1266
        %1268 = vmatmul.bf16.gmra.mxu0 %v540
        %v1269 = vpop.f32.mrf.mxu0
        %v1270 = vadd.f32 %v474, %v1269
        %v1271 = vpop.f32.mrf.mxu0
        %v1272 = vadd.f32 %v474, %v1271
        %1273 = vmatmul.bf16.gmra.mxu0 %v542
        %v1274 = vpop.f32.mrf.mxu0
        %v1275 = vadd.f32 %v474, %v1274
        %v1276 = vpop.f32.mrf.mxu0
        %v1277 = vadd.f32 %v474, %v1276
        %1278 = vmatmul.bf16.gmra.mxu0 %v544
        %v1279 = vpop.f32.mrf.mxu0
        %v1280 = vadd.f32 %v474, %v1279
        %v1281 = vpop.f32.mrf.mxu0
        %v1282 = vadd.f32 %v474, %v1281
        %1283 = vmatmul.bf16.gmra.mxu0 %v546
        %v1284 = vpop.f32.mrf.mxu0
        %v1285 = vadd.f32 %v474, %v1284
        %v1286 = vpop.f32.mrf.mxu0
        %v1287 = vadd.f32 %v474, %v1286
        %1288 = vmatmul.bf16.gmra.mxu0 %v548
        %v1289 = vpop.f32.mrf.mxu0
        %v1290 = vadd.f32 %v474, %v1289
        %v1291 = vpop.f32.mrf.mxu0
        %v1292 = vadd.f32 %v474, %v1291
        %1293 = vmatmul.bf16.gmra.mxu0 %v550
        %v1294 = vpop.f32.mrf.mxu0
        %v1295 = vadd.f32 %v474, %v1294
        %v1296 = vpop.f32.mrf.mxu0
        %1297 = vdwg.mxu0
        %1298 = vmatpush.bf16.msra.mxu0 %v827
        %1299 = vmatpush.bf16.msra.mxu0 %v823
        %1300 = vmatpush.bf16.msra.mxu0 %v819
        %1301 = vmatpush.bf16.msra.mxu0 %v815
        %1302 = vmatpush.bf16.msra.mxu0 %v811
        %1303 = vmatpush.bf16.msra.mxu0 %v807
        %1304 = vmatpush.bf16.msra.mxu0 %v803
        %1305 = vmatpush.bf16.msra.mxu0 %v799
        %1306 = vmatmul.bf16.gmra.mxu0 %v533
        %v1307 = vpop.f32.mrf.mxu0
        %v1308 = vadd.f32 %v1250, %v1307
        %v1309 = vpop.f32.mrf.mxu0
        %v1310 = vadd.f32 %v1252, %v1309
        %1311 = vmatmul.bf16.gmra.mxu0 %v535
        %v1312 = vpop.f32.mrf.mxu0
        %v1313 = vadd.f32 %v1255, %v1312
        %v1314 = vpop.f32.mrf.mxu0
        %v1315 = vadd.f32 %v1257, %v1314
        %1316 = vmatmul.bf16.gmra.mxu0 %v537
        %v1317 = vpop.f32.mrf.mxu0
        %v1318 = vadd.f32 %v1260, %v1317
        %v1319 = vpop.f32.mrf.mxu0
        %v1320 = vadd.f32 %v1262, %v1319
        %1321 = vmatmul.bf16.gmra.mxu0 %v539
        %v1322 = vpop.f32.mrf.mxu0
        %v1323 = vadd.f32 %v1265, %v1322
        %v1324 = vpop.f32.mrf.mxu0
        %v1325 = vadd.f32 %v1267, %v1324
        %1326 = vmatmul.bf16.gmra.mxu0 %v541
        %v1327 = vpop.f32.mrf.mxu0
        %v1328 = vadd.f32 %v1270, %v1327
        %v1329 = vpop.f32.mrf.mxu0
        %v1330 = vadd.f32 %v1272, %v1329
        %1331 = vmatmul.bf16.gmra.mxu0 %v543
        %v1332 = vpop.f32.mrf.mxu0
        %v1333 = vadd.f32 %v1275, %v1332
        %v1334 = vpop.f32.mrf.mxu0
        %v1335 = vadd.f32 %v1277, %v1334
        %1336 = vmatmul.bf16.gmra.mxu0 %v545
        %v1337 = vpop.f32.mrf.mxu0
        %v1338 = vadd.f32 %v1280, %v1337
        %v1339 = vpop.f32.mrf.mxu0
        %v1340 = vadd.f32 %v1282, %v1339
        %1341 = vmatmul.bf16.gmra.mxu0 %v547
        %v1342 = vpop.f32.mrf.mxu0
        %v1343 = vadd.f32 %v1285, %v1342
        %v1344 = vpop.f32.mrf.mxu0
        %v1345 = vadd.f32 %v1287, %v1344
        %1346 = vmatmul.bf16.gmra.mxu0 %v549
        %v1347 = vpop.f32.mrf.mxu0
        %v1348 = vadd.f32 %v1290, %v1347
        %v1349 = vpop.f32.mrf.mxu0
        %v1350 = vadd.f32 %v1292, %v1349
        %1351 = vmatmul.bf16.gmra.mxu0 %v551
        %v1352 = vpop.f32.mrf.mxu0
        %v1353 = vadd.f32 %v1295, %v1352
        %v1354 = vpop.f32.mrf.mxu0
        %1355 = vdwg.mxu0
        %v1356 = vmul.f32 %v960, 0.5
        %v1357 = vmul.f32 %v1076, 0.5
        %v1358 = vmul.f32 %v1192, 0.5
        %v1359 = vmul.f32 %v1308, 0.5
        %v1360 = vmul.f32 %v962, 0.5
        %v1361 = vmul.f32 %v1078, 0.5
        %v1362 = vmul.f32 %v1194, 0.5
        %v1363 = vmul.f32 %v1310, 0.5
        %v1364 = vmul.f32 %v965, 0.5
        %v1365 = vmul.f32 %v1081, 0.5
        %v1366 = vmul.f32 %v1197, 0.5
        %v1367 = vmul.f32 %v1313, 0.5
        %v1368 = vmul.f32 %v967, 0.5
        %v1369 = vmul.f32 %v1083, 0.5
        %v1370 = vmul.f32 %v1199, 0.5
        %v1371 = vmul.f32 %v1315, 0.5
        %v1372 = vmul.f32 %v970, 0.5
        %v1373 = vmul.f32 %v1086, 0.5
        %v1374 = vmul.f32 %v1202, 0.5
        %v1375 = vmul.f32 %v1318, 0.5
        %v1376 = vmul.f32 %v972, 0.5
        %v1377 = vmul.f32 %v1088, 0.5
        %v1378 = vmul.f32 %v1204, 0.5
        %v1379 = vmul.f32 %v1320, 0.5
        %v1380 = vmul.f32 %v975, 0.5
        %v1381 = vmul.f32 %v1091, 0.5
        %v1382 = vmul.f32 %v1207, 0.5
        %v1383 = vmul.f32 %v1323, 0.5
        %v1384 = vmul.f32 %v977, 0.5
        %v1385 = vmul.f32 %v1093, 0.5
        %v1386 = vmul.f32 %v1209, 0.5
        %v1387 = vmul.f32 %v1325, 0.5
        %v1388 = vmul.f32 %v980, 0.5
        %v1389 = vmul.f32 %v1096, 0.5
        %v1390 = vmul.f32 %v1212, 0.5
        %v1391 = vmul.f32 %v1328, 0.5
        %v1392 = vmul.f32 %v982, 0.5
        %v1393 = vmul.f32 %v1098, 0.5
        %v1394 = vmul.f32 %v1214, 0.5
        %v1395 = vmul.f32 %v1330, 0.5
        %v1396 = vmul.f32 %v985, 0.5
        %v1397 = vmul.f32 %v1101, 0.5
        %v1398 = vmul.f32 %v1217, 0.5
        %v1399 = vmul.f32 %v1333, 0.5
        %v1400 = vmul.f32 %v987, 0.5
        %v1401 = vmul.f32 %v1103, 0.5
        %v1402 = vmul.f32 %v1219, 0.5
        %v1403 = vmul.f32 %v1335, 0.5
        %v1404 = vmul.f32 %v990, 0.5
        %v1405 = vmul.f32 %v1106, 0.5
        %v1406 = vmul.f32 %v1222, 0.5
        %v1407 = vmul.f32 %v1338, 0.5
        %v1408 = vmul.f32 %v992, 0.5
        %v1409 = vmul.f32 %v1108, 0.5
        %v1410 = vmul.f32 %v1224, 0.5
        %v1411 = vmul.f32 %v1340, 0.5
        %v1412 = vmul.f32 %v995, 0.5
        %v1413 = vmul.f32 %v1111, 0.5
        %v1414 = vmul.f32 %v1227, 0.5
        %v1415 = vmul.f32 %v1343, 0.5
        %v1416 = vmul.f32 %v997, 0.5
        %v1417 = vmul.f32 %v1113, 0.5
        %v1418 = vmul.f32 %v1229, 0.5
        %v1419 = vmul.f32 %v1345, 0.5
        %v1420 = vmul.f32 %v1000, 0.5
        %v1421 = vmul.f32 %v1116, 0.5
        %v1422 = vmul.f32 %v1232, 0.5
        %v1423 = vmul.f32 %v1348, 0.5
        %v1424 = vmul.f32 %v1002, 0.5
        %v1425 = vmul.f32 %v1118, 0.5
        %v1426 = vmul.f32 %v1234, 0.5
        %v1427 = vmul.f32 %v1350, 0.5
        %v1428 = vmul.f32 %v1005, 0.5
        %v1429 = vmul.f32 %v1121, 0.5
        %v1430 = vmul.f32 %v1237, 0.5
        %v1431 = vmul.f32 %v1353, 0.5
        %v1432 = vmul.f32 %v960, 0.70710677
        %v1433 = vmul.f32 %v1076, 0.70710677
        %v1434 = vmul.f32 %v1192, 0.70710677
        %v1435 = vmul.f32 %v1308, 0.70710677
        %v1436 = vmul.f32 %v962, 0.70710677
        %v1437 = vmul.f32 %v1078, 0.70710677
        %v1438 = vmul.f32 %v1194, 0.70710677
        %v1439 = vmul.f32 %v1310, 0.70710677
        %v1440 = vmul.f32 %v965, 0.70710677
        %v1441 = vmul.f32 %v1081, 0.70710677
        %v1442 = vmul.f32 %v1197, 0.70710677
        %v1443 = vmul.f32 %v1313, 0.70710677
        %v1444 = vmul.f32 %v967, 0.70710677
        %v1445 = vmul.f32 %v1083, 0.70710677
        %v1446 = vmul.f32 %v1199, 0.70710677
        %v1447 = vmul.f32 %v1315, 0.70710677
        %v1448 = vmul.f32 %v970, 0.70710677
        %v1449 = vmul.f32 %v1086, 0.70710677
        %v1450 = vmul.f32 %v1202, 0.70710677
        %v1451 = vmul.f32 %v1318, 0.70710677
        %v1452 = vmul.f32 %v972, 0.70710677
        %v1453 = vmul.f32 %v1088, 0.70710677
        %v1454 = vmul.f32 %v1204, 0.70710677
        %v1455 = vmul.f32 %v1320, 0.70710677
        %v1456 = vmul.f32 %v975, 0.70710677
        %v1457 = vmul.f32 %v1091, 0.70710677
        %v1458 = vmul.f32 %v1207, 0.70710677
        %v1459 = vmul.f32 %v1323, 0.70710677
        %v1460 = vmul.f32 %v977, 0.70710677
        %v1461 = vmul.f32 %v1093, 0.70710677
        %v1462 = vmul.f32 %v1209, 0.70710677
        %v1463 = vmul.f32 %v1325, 0.70710677
        %v1464 = vmul.f32 %v980, 0.70710677
        %v1465 = vmul.f32 %v1096, 0.70710677
        %v1466 = vmul.f32 %v1212, 0.70710677
        %v1467 = vmul.f32 %v1328, 0.70710677
        %v1468 = vmul.f32 %v982, 0.70710677
        %v1469 = vmul.f32 %v1098, 0.70710677
        %v1470 = vmul.f32 %v1214, 0.70710677
        %v1471 = vmul.f32 %v1330, 0.70710677
        %v1472 = vmul.f32 %v985, 0.70710677
        %v1473 = vmul.f32 %v1101, 0.70710677
        %v1474 = vmul.f32 %v1217, 0.70710677
        %v1475 = vmul.f32 %v1333, 0.70710677
        %v1476 = vmul.f32 %v987, 0.70710677
        %v1477 = vmul.f32 %v1103, 0.70710677
        %v1478 = vmul.f32 %v1219, 0.70710677
        %v1479 = vmul.f32 %v1335, 0.70710677
        %v1480 = vmul.f32 %v990, 0.70710677
        %v1481 = vmul.f32 %v1106, 0.70710677
        %v1482 = vmul.f32 %v1222, 0.70710677
        %v1483 = vmul.f32 %v1338, 0.70710677
        %v1484 = vmul.f32 %v992, 0.70710677
        %v1485 = vmul.f32 %v1108, 0.70710677
        %v1486 = vmul.f32 %v1224, 0.70710677
        %v1487 = vmul.f32 %v1340, 0.70710677
        %v1488 = vmul.f32 %v995, 0.70710677
        %v1489 = vmul.f32 %v1111, 0.70710677
        %v1490 = vmul.f32 %v1227, 0.70710677
        %v1491 = vmul.f32 %v1343, 0.70710677
        %v1492 = vmul.f32 %v997, 0.70710677
        %v1493 = vmul.f32 %v1113, 0.70710677
        %v1494 = vmul.f32 %v1229, 0.70710677
        %v1495 = vmul.f32 %v1345, 0.70710677
        %v1496 = vmul.f32 %v1000, 0.70710677
        %v1497 = vmul.f32 %v1116, 0.70710677
        %v1498 = vmul.f32 %v1232, 0.70710677
        %v1499 = vmul.f32 %v1348, 0.70710677
        %v1500 = vmul.f32 %v1002, 0.70710677
        %v1501 = vmul.f32 %v1118, 0.70710677
        %v1502 = vmul.f32 %v1234, 0.70710677
        %v1503 = vmul.f32 %v1350, 0.70710677
        %v1504 = vmul.f32 %v1005, 0.70710677
        %v1505 = vmul.f32 %v1121, 0.70710677
        %v1506 = vmul.f32 %v1237, 0.70710677
        %v1507 = vmul.f32 %v1353, 0.70710677
        %v1508 = vand.u32 2147483647, %v1432
        %v1509 = vand.u32 2147483647, %v1433
        %v1510 = vand.u32 2147483647, %v1434
        %v1511 = vand.u32 2147483647, %v1435
        %v1512 = vand.u32 2147483647, %v1436
        %v1513 = vand.u32 2147483647, %v1437
        %v1514 = vand.u32 2147483647, %v1438
        %v1515 = vand.u32 2147483647, %v1439
        %v1516 = vand.u32 2147483647, %v1440
        %v1517 = vand.u32 2147483647, %v1441
        %v1518 = vand.u32 2147483647, %v1442
        %v1519 = vand.u32 2147483647, %v1443
        %v1520 = vand.u32 2147483647, %v1444
        %v1521 = vand.u32 2147483647, %v1445
        %v1522 = vand.u32 2147483647, %v1446
        %v1523 = vand.u32 2147483647, %v1447
        %v1524 = vand.u32 2147483647, %v1448
        %v1525 = vand.u32 2147483647, %v1449
        %v1526 = vand.u32 2147483647, %v1450
        %v1527 = vand.u32 2147483647, %v1451
        %v1528 = vand.u32 2147483647, %v1452
        %v1529 = vand.u32 2147483647, %v1453
        %v1530 = vand.u32 2147483647, %v1454
        %v1531 = vand.u32 2147483647, %v1455
        %v1532 = vand.u32 2147483647, %v1456
        %v1533 = vand.u32 2147483647, %v1457
        %v1534 = vand.u32 2147483647, %v1458
        %v1535 = vand.u32 2147483647, %v1459
        %v1536 = vand.u32 2147483647, %v1460
        %v1537 = vand.u32 2147483647, %v1461
        %v1538 = vand.u32 2147483647, %v1462
        %v1539 = vand.u32 2147483647, %v1463
        %v1540 = vand.u32 2147483647, %v1464
        %v1541 = vand.u32 2147483647, %v1465
        %v1542 = vand.u32 2147483647, %v1466
        %v1543 = vand.u32 2147483647, %v1467
        %v1544 = vand.u32 2147483647, %v1468
        %v1545 = vand.u32 2147483647, %v1469
        %v1546 = vand.u32 2147483647, %v1470
        %v1547 = vand.u32 2147483647, %v1471
        %v1548 = vand.u32 2147483647, %v1472
        %v1549 = vand.u32 2147483647, %v1473
        %v1550 = vand.u32 2147483647, %v1474
        %v1551 = vand.u32 2147483647, %v1475
        %v1552 = vand.u32 2147483647, %v1476
        %v1553 = vand.u32 2147483647, %v1477
        %v1554 = vand.u32 2147483647, %v1478
        %v1555 = vand.u32 2147483647, %v1479
        %v1556 = vand.u32 2147483647, %v1480
        %v1557 = vand.u32 2147483647, %v1481
        %v1558 = vand.u32 2147483647, %v1482
        %v1559 = vand.u32 2147483647, %v1483
        %v1560 = vand.u32 2147483647, %v1484
        %v1561 = vand.u32 2147483647, %v1485
        %v1562 = vand.u32 2147483647, %v1486
        %v1563 = vand.u32 2147483647, %v1487
        %v1564 = vand.u32 2147483647, %v1488
        %v1565 = vand.u32 2147483647, %v1489
        %v1566 = vand.u32 2147483647, %v1490
        %v1567 = vand.u32 2147483647, %v1491
        %v1568 = vand.u32 2147483647, %v1492
        %v1569 = vand.u32 2147483647, %v1493
        %v1570 = vand.u32 2147483647, %v1494
        %v1571 = vand.u32 2147483647, %v1495
        %v1572 = vand.u32 2147483647, %v1496
        %v1573 = vand.u32 2147483647, %v1497
        %v1574 = vand.u32 2147483647, %v1498
        %v1575 = vand.u32 2147483647, %v1499
        %v1576 = vand.u32 2147483647, %v1500
        %v1577 = vand.u32 2147483647, %v1501
        %v1578 = vand.u32 2147483647, %v1502
        %v1579 = vand.u32 2147483647, %v1503
        %v1580 = vand.u32 2147483647, %v1504
        %v1581 = vand.u32 2147483647, %v1505
        %v1582 = vand.u32 2147483647, %v1506
        %v1583 = vand.u32 2147483647, %v1507
        %v1584 = vmul.f32 %v1508, 0.3275911
        %v1585 = vmul.f32 %v1509, 0.3275911
        %v1586 = vmul.f32 %v1510, 0.3275911
        %v1587 = vmul.f32 %v1511, 0.3275911
        %v1588 = vmul.f32 %v1512, 0.3275911
        %v1589 = vmul.f32 %v1513, 0.3275911
        %v1590 = vmul.f32 %v1514, 0.3275911
        %v1591 = vmul.f32 %v1515, 0.3275911
        %v1592 = vmul.f32 %v1516, 0.3275911
        %v1593 = vmul.f32 %v1517, 0.3275911
        %v1594 = vmul.f32 %v1518, 0.3275911
        %v1595 = vmul.f32 %v1519, 0.3275911
        %v1596 = vmul.f32 %v1520, 0.3275911
        %v1597 = vmul.f32 %v1521, 0.3275911
        %v1598 = vmul.f32 %v1522, 0.3275911
        %v1599 = vmul.f32 %v1523, 0.3275911
        %v1600 = vmul.f32 %v1524, 0.3275911
        %v1601 = vmul.f32 %v1525, 0.3275911
        %v1602 = vmul.f32 %v1526, 0.3275911
        %v1603 = vmul.f32 %v1527, 0.3275911
        %v1604 = vmul.f32 %v1528, 0.3275911
        %v1605 = vmul.f32 %v1529, 0.3275911
        %v1606 = vmul.f32 %v1530, 0.3275911
        %v1607 = vmul.f32 %v1531, 0.3275911
        %v1608 = vmul.f32 %v1532, 0.3275911
        %v1609 = vmul.f32 %v1533, 0.3275911
        %v1610 = vmul.f32 %v1534, 0.3275911
        %v1611 = vmul.f32 %v1535, 0.3275911
        %v1612 = vmul.f32 %v1536, 0.3275911
        %v1613 = vmul.f32 %v1537, 0.3275911
        %v1614 = vmul.f32 %v1538, 0.3275911
        %v1615 = vmul.f32 %v1539, 0.3275911
        %v1616 = vmul.f32 %v1540, 0.3275911
        %v1617 = vmul.f32 %v1541, 0.3275911
        %v1618 = vmul.f32 %v1542, 0.3275911
        %v1619 = vmul.f32 %v1543, 0.3275911
        %v1620 = vmul.f32 %v1544, 0.3275911
        %v1621 = vmul.f32 %v1545, 0.3275911
        %v1622 = vmul.f32 %v1546, 0.3275911
        %v1623 = vmul.f32 %v1547, 0.3275911
        %v1624 = vmul.f32 %v1548, 0.3275911
        %v1625 = vmul.f32 %v1549, 0.3275911
        %v1626 = vmul.f32 %v1550, 0.3275911
        %v1627 = vmul.f32 %v1551, 0.3275911
        %v1628 = vmul.f32 %v1552, 0.3275911
        %v1629 = vmul.f32 %v1553, 0.3275911
        %v1630 = vmul.f32 %v1554, 0.3275911
        %v1631 = vmul.f32 %v1555, 0.3275911
        %v1632 = vmul.f32 %v1556, 0.3275911
        %v1633 = vmul.f32 %v1557, 0.3275911
        %v1634 = vmul.f32 %v1558, 0.3275911
        %v1635 = vmul.f32 %v1559, 0.3275911
        %v1636 = vmul.f32 %v1560, 0.3275911
        %v1637 = vmul.f32 %v1561, 0.3275911
        %v1638 = vmul.f32 %v1562, 0.3275911
        %v1639 = vmul.f32 %v1563, 0.3275911
        %v1640 = vmul.f32 %v1564, 0.3275911
        %v1641 = vmul.f32 %v1565, 0.3275911
        %v1642 = vmul.f32 %v1566, 0.3275911
        %v1643 = vmul.f32 %v1567, 0.3275911
        %v1644 = vmul.f32 %v1568, 0.3275911
        %v1645 = vmul.f32 %v1569, 0.3275911
        %v1646 = vmul.f32 %v1570, 0.3275911
        %v1647 = vmul.f32 %v1571, 0.3275911
        %v1648 = vmul.f32 %v1572, 0.3275911
        %v1649 = vmul.f32 %v1573, 0.3275911
        %v1650 = vmul.f32 %v1574, 0.3275911
        %v1651 = vmul.f32 %v1575, 0.3275911
        %v1652 = vmul.f32 %v1576, 0.3275911
        %v1653 = vmul.f32 %v1577, 0.3275911
        %v1654 = vmul.f32 %v1578, 0.3275911
        %v1655 = vmul.f32 %v1579, 0.3275911
        %v1656 = vmul.f32 %v1580, 0.3275911
        %v1657 = vmul.f32 %v1581, 0.3275911
        %v1658 = vmul.f32 %v1582, 0.3275911
        %v1659 = vmul.f32 %v1583, 0.3275911
        %v1660 = vadd.f32 %v1584, 1.0
        %v1661 = vadd.f32 %v1585, 1.0
        %v1662 = vadd.f32 %v1586, 1.0
        %v1663 = vadd.f32 %v1587, 1.0
        %v1664 = vadd.f32 %v1588, 1.0
        %v1665 = vadd.f32 %v1589, 1.0
        %v1666 = vadd.f32 %v1590, 1.0
        %v1667 = vadd.f32 %v1591, 1.0
        %v1668 = vadd.f32 %v1592, 1.0
        %v1669 = vadd.f32 %v1593, 1.0
        %v1670 = vadd.f32 %v1594, 1.0
        %v1671 = vadd.f32 %v1595, 1.0
        %v1672 = vadd.f32 %v1596, 1.0
        %v1673 = vadd.f32 %v1597, 1.0
        %v1674 = vadd.f32 %v1598, 1.0
        %v1675 = vadd.f32 %v1599, 1.0
        %v1676 = vadd.f32 %v1600, 1.0
        %v1677 = vadd.f32 %v1601, 1.0
        %v1678 = vadd.f32 %v1602, 1.0
        %v1679 = vadd.f32 %v1603, 1.0
        %v1680 = vadd.f32 %v1604, 1.0
        %v1681 = vadd.f32 %v1605, 1.0
        %v1682 = vadd.f32 %v1606, 1.0
        %v1683 = vadd.f32 %v1607, 1.0
        %v1684 = vadd.f32 %v1608, 1.0
        %v1685 = vadd.f32 %v1609, 1.0
        %v1686 = vadd.f32 %v1610, 1.0
        %v1687 = vadd.f32 %v1611, 1.0
        %v1688 = vadd.f32 %v1612, 1.0
        %v1689 = vadd.f32 %v1613, 1.0
        %v1690 = vadd.f32 %v1614, 1.0
        %v1691 = vadd.f32 %v1615, 1.0
        %v1692 = vadd.f32 %v1616, 1.0
        %v1693 = vadd.f32 %v1617, 1.0
        %v1694 = vadd.f32 %v1618, 1.0
        %v1695 = vadd.f32 %v1619, 1.0
        %v1696 = vadd.f32 %v1620, 1.0
        %v1697 = vadd.f32 %v1621, 1.0
        %v1698 = vadd.f32 %v1622, 1.0
        %v1699 = vadd.f32 %v1623, 1.0
        %v1700 = vadd.f32 %v1624, 1.0
        %v1701 = vadd.f32 %v1625, 1.0
        %v1702 = vadd.f32 %v1626, 1.0
        %v1703 = vadd.f32 %v1627, 1.0
        %v1704 = vadd.f32 %v1628, 1.0
        %v1705 = vadd.f32 %v1629, 1.0
        %v1706 = vadd.f32 %v1630, 1.0
        %v1707 = vadd.f32 %v1631, 1.0
        %v1708 = vadd.f32 %v1632, 1.0
        %v1709 = vadd.f32 %v1633, 1.0
        %v1710 = vadd.f32 %v1634, 1.0
        %v1711 = vadd.f32 %v1635, 1.0
        %v1712 = vadd.f32 %v1636, 1.0
        %v1713 = vadd.f32 %v1637, 1.0
        %v1714 = vadd.f32 %v1638, 1.0
        %v1715 = vadd.f32 %v1639, 1.0
        %v1716 = vadd.f32 %v1640, 1.0
        %v1717 = vadd.f32 %v1641, 1.0
        %v1718 = vadd.f32 %v1642, 1.0
        %v1719 = vadd.f32 %v1643, 1.0
        %v1720 = vadd.f32 %v1644, 1.0
        %v1721 = vadd.f32 %v1645, 1.0
        %v1722 = vadd.f32 %v1646, 1.0
        %v1723 = vadd.f32 %v1647, 1.0
        %v1724 = vadd.f32 %v1648, 1.0
        %v1725 = vadd.f32 %v1649, 1.0
        %v1726 = vadd.f32 %v1650, 1.0
        %v1727 = vadd.f32 %v1651, 1.0
        %v1728 = vadd.f32 %v1652, 1.0
        %v1729 = vadd.f32 %v1653, 1.0
        %v1730 = vadd.f32 %v1654, 1.0
        %v1731 = vadd.f32 %v1655, 1.0
        %v1732 = vadd.f32 %v1656, 1.0
        %v1733 = vadd.f32 %v1657, 1.0
        %v1734 = vadd.f32 %v1658, 1.0
        %v1735 = vadd.f32 %v1659, 1.0
        %v1736 = vrcp.pop %v1660
        %v1737 = vrcp.pop %v1661
        %v1738 = vrcp.pop %v1662
        %v1739 = vrcp.pop %v1663
        %v1740 = vrcp.pop %v1664
        %v1741 = vrcp.pop %v1665
        %v1742 = vrcp.pop %v1666
        %v1743 = vrcp.pop %v1667
        %v1744 = vrcp.pop %v1668
        %v1745 = vrcp.pop %v1669
        %v1746 = vrcp.pop %v1670
        %v1747 = vrcp.pop %v1671
        %v1748 = vrcp.pop %v1672
        %v1749 = vrcp.pop %v1673
        %v1750 = vrcp.pop %v1674
        %v1751 = vrcp.pop %v1675
        %v1752 = vrcp.pop %v1676
        %v1753 = vrcp.pop %v1677
        %v1754 = vrcp.pop %v1678
        %v1755 = vrcp.pop %v1679
        %v1756 = vrcp.pop %v1680
        %v1757 = vrcp.pop %v1681
        %v1758 = vrcp.pop %v1682
        %v1759 = vrcp.pop %v1683
        %v1760 = vrcp.pop %v1684
        %v1761 = vrcp.pop %v1685
        %v1762 = vrcp.pop %v1686
        %v1763 = vrcp.pop %v1687
        %v1764 = vrcp.pop %v1688
        %v1765 = vrcp.pop %v1689
        %v1766 = vrcp.pop %v1690
        %v1767 = vrcp.pop %v1691
        %v1768 = vrcp.pop %v1692
        %v1769 = vrcp.pop %v1693
        %v1770 = vrcp.pop %v1694
        %v1771 = vrcp.pop %v1695
        %v1772 = vrcp.pop %v1696
        %v1773 = vrcp.pop %v1697
        %v1774 = vrcp.pop %v1698
        %v1775 = vrcp.pop %v1699
        %v1776 = vrcp.pop %v1700
        %v1777 = vrcp.pop %v1701
        %v1778 = vrcp.pop %v1702
        %v1779 = vrcp.pop %v1703
        %v1780 = vrcp.pop %v1704
        %v1781 = vrcp.pop %v1705
        %v1782 = vrcp.pop %v1706
        %v1783 = vrcp.pop %v1707
        %v1784 = vrcp.pop %v1708
        %v1785 = vrcp.pop %v1709
        %v1786 = vrcp.pop %v1710
        %v1787 = vrcp.pop %v1711
        %v1788 = vrcp.pop %v1712
        %v1789 = vrcp.pop %v1713
        %v1790 = vrcp.pop %v1714
        %v1791 = vrcp.pop %v1715
        %v1792 = vrcp.pop %v1716
        %v1793 = vrcp.pop %v1717
        %v1794 = vrcp.pop %v1718
        %v1795 = vrcp.pop %v1719
        %v1796 = vrcp.pop %v1720
        %v1797 = vrcp.pop %v1721
        %v1798 = vrcp.pop %v1722
        %v1799 = vrcp.pop %v1723
        %v1800 = vrcp.pop %v1724
        %v1801 = vrcp.pop %v1725
        %v1802 = vrcp.pop %v1726
        %v1803 = vrcp.pop %v1727
        %v1804 = vrcp.pop %v1728
        %v1805 = vrcp.pop %v1729
        %v1806 = vrcp.pop %v1730
        %v1807 = vrcp.pop %v1731
        %v1808 = vrcp.pop %v1732
        %v1809 = vrcp.pop %v1733
        %v1810 = vrcp.pop %v1734
        %v1811 = vrcp.pop %v1735
        %v1812 = vmul.f32 %v1736, 1.0614054
        %v1813 = vmul.f32 %v1737, 1.0614054
        %v1814 = vmul.f32 %v1738, 1.0614054
        %v1815 = vmul.f32 %v1739, 1.0614054
        %v1816 = vmul.f32 %v1740, 1.0614054
        %v1817 = vmul.f32 %v1741, 1.0614054
        %v1818 = vmul.f32 %v1742, 1.0614054
        %v1819 = vmul.f32 %v1743, 1.0614054
        %v1820 = vmul.f32 %v1744, 1.0614054
        %v1821 = vmul.f32 %v1745, 1.0614054
        %v1822 = vmul.f32 %v1746, 1.0614054
        %v1823 = vmul.f32 %v1747, 1.0614054
        %v1824 = vmul.f32 %v1748, 1.0614054
        %v1825 = vmul.f32 %v1749, 1.0614054
        %v1826 = vmul.f32 %v1750, 1.0614054
        %v1827 = vmul.f32 %v1751, 1.0614054
        %v1828 = vmul.f32 %v1752, 1.0614054
        %v1829 = vmul.f32 %v1753, 1.0614054
        %v1830 = vmul.f32 %v1754, 1.0614054
        %v1831 = vmul.f32 %v1755, 1.0614054
        %v1832 = vmul.f32 %v1756, 1.0614054
        %v1833 = vmul.f32 %v1757, 1.0614054
        %v1834 = vmul.f32 %v1758, 1.0614054
        %v1835 = vmul.f32 %v1759, 1.0614054
        %v1836 = vmul.f32 %v1760, 1.0614054
        %v1837 = vmul.f32 %v1761, 1.0614054
        %v1838 = vmul.f32 %v1762, 1.0614054
        %v1839 = vmul.f32 %v1763, 1.0614054
        %v1840 = vmul.f32 %v1764, 1.0614054
        %v1841 = vmul.f32 %v1765, 1.0614054
        %v1842 = vmul.f32 %v1766, 1.0614054
        %v1843 = vmul.f32 %v1767, 1.0614054
        %v1844 = vmul.f32 %v1768, 1.0614054
        %v1845 = vmul.f32 %v1769, 1.0614054
        %v1846 = vmul.f32 %v1770, 1.0614054
        %v1847 = vmul.f32 %v1771, 1.0614054
        %v1848 = vmul.f32 %v1772, 1.0614054
        %v1849 = vmul.f32 %v1773, 1.0614054
        %v1850 = vmul.f32 %v1774, 1.0614054
        %v1851 = vmul.f32 %v1775, 1.0614054
        %v1852 = vmul.f32 %v1776, 1.0614054
        %v1853 = vmul.f32 %v1777, 1.0614054
        %v1854 = vmul.f32 %v1778, 1.0614054
        %v1855 = vmul.f32 %v1779, 1.0614054
        %v1856 = vmul.f32 %v1780, 1.0614054
        %v1857 = vmul.f32 %v1781, 1.0614054
        %v1858 = vmul.f32 %v1782, 1.0614054
        %v1859 = vmul.f32 %v1783, 1.0614054
        %v1860 = vmul.f32 %v1784, 1.0614054
        %v1861 = vmul.f32 %v1785, 1.0614054
        %v1862 = vmul.f32 %v1786, 1.0614054
        %v1863 = vmul.f32 %v1787, 1.0614054
        %v1864 = vmul.f32 %v1788, 1.0614054
        %v1865 = vmul.f32 %v1789, 1.0614054
        %v1866 = vmul.f32 %v1790, 1.0614054
        %v1867 = vmul.f32 %v1791, 1.0614054
        %v1868 = vmul.f32 %v1792, 1.0614054
        %v1869 = vmul.f32 %v1793, 1.0614054
        %v1870 = vmul.f32 %v1794, 1.0614054
        %v1871 = vmul.f32 %v1795, 1.0614054
        %v1872 = vmul.f32 %v1796, 1.0614054
        %v1873 = vmul.f32 %v1797, 1.0614054
        %v1874 = vmul.f32 %v1798, 1.0614054
        %v1875 = vmul.f32 %v1799, 1.0614054
        %v1876 = vmul.f32 %v1800, 1.0614054
        %v1877 = vmul.f32 %v1801, 1.0614054
        %v1878 = vmul.f32 %v1802, 1.0614054
        %v1879 = vmul.f32 %v1803, 1.0614054
        %v1880 = vmul.f32 %v1804, 1.0614054
        %v1881 = vmul.f32 %v1805, 1.0614054
        %v1882 = vmul.f32 %v1806, 1.0614054
        %v1883 = vmul.f32 %v1807, 1.0614054
        %v1884 = vmul.f32 %v1808, 1.0614054
        %v1885 = vmul.f32 %v1809, 1.0614054
        %v1886 = vmul.f32 %v1810, 1.0614054
        %v1887 = vmul.f32 %v1811, 1.0614054
        %v1888 = vadd.f32 %v1812, -1.4531521
        %v1889 = vadd.f32 %v1813, -1.4531521
        %v1890 = vadd.f32 %v1814, -1.4531521
        %v1891 = vadd.f32 %v1815, -1.4531521
        %v1892 = vadd.f32 %v1816, -1.4531521
        %v1893 = vadd.f32 %v1817, -1.4531521
        %v1894 = vadd.f32 %v1818, -1.4531521
        %v1895 = vadd.f32 %v1819, -1.4531521
        %v1896 = vadd.f32 %v1820, -1.4531521
        %v1897 = vadd.f32 %v1821, -1.4531521
        %v1898 = vadd.f32 %v1822, -1.4531521
        %v1899 = vadd.f32 %v1823, -1.4531521
        %v1900 = vadd.f32 %v1824, -1.4531521
        %v1901 = vadd.f32 %v1825, -1.4531521
        %v1902 = vadd.f32 %v1826, -1.4531521
        %v1903 = vadd.f32 %v1827, -1.4531521
        %v1904 = vadd.f32 %v1828, -1.4531521
        %v1905 = vadd.f32 %v1829, -1.4531521
        %v1906 = vadd.f32 %v1830, -1.4531521
        %v1907 = vadd.f32 %v1831, -1.4531521
        %v1908 = vadd.f32 %v1832, -1.4531521
        %v1909 = vadd.f32 %v1833, -1.4531521
        %v1910 = vadd.f32 %v1834, -1.4531521
        %v1911 = vadd.f32 %v1835, -1.4531521
        %v1912 = vadd.f32 %v1836, -1.4531521
        %v1913 = vadd.f32 %v1837, -1.4531521
        %v1914 = vadd.f32 %v1838, -1.4531521
        %v1915 = vadd.f32 %v1839, -1.4531521
        %v1916 = vadd.f32 %v1840, -1.4531521
        %v1917 = vadd.f32 %v1841, -1.4531521
        %v1918 = vadd.f32 %v1842, -1.4531521
        %v1919 = vadd.f32 %v1843, -1.4531521
        %v1920 = vadd.f32 %v1844, -1.4531521
        %v1921 = vadd.f32 %v1845, -1.4531521
        %v1922 = vadd.f32 %v1846, -1.4531521
        %v1923 = vadd.f32 %v1847, -1.4531521
        %v1924 = vadd.f32 %v1848, -1.4531521
        %v1925 = vadd.f32 %v1849, -1.4531521
        %v1926 = vadd.f32 %v1850, -1.4531521
        %v1927 = vadd.f32 %v1851, -1.4531521
        %v1928 = vadd.f32 %v1852, -1.4531521
        %v1929 = vadd.f32 %v1853, -1.4531521
        %v1930 = vadd.f32 %v1854, -1.4531521
        %v1931 = vadd.f32 %v1855, -1.4531521
        %v1932 = vadd.f32 %v1856, -1.4531521
        %v1933 = vadd.f32 %v1857, -1.4531521
        %v1934 = vadd.f32 %v1858, -1.4531521
        %v1935 = vadd.f32 %v1859, -1.4531521
        %v1936 = vadd.f32 %v1860, -1.4531521
        %v1937 = vadd.f32 %v1861, -1.4531521
        %v1938 = vadd.f32 %v1862, -1.4531521
        %v1939 = vadd.f32 %v1863, -1.4531521
        %v1940 = vadd.f32 %v1864, -1.4531521
        %v1941 = vadd.f32 %v1865, -1.4531521
        %v1942 = vadd.f32 %v1866, -1.4531521
        %v1943 = vadd.f32 %v1867, -1.4531521
        %v1944 = vadd.f32 %v1868, -1.4531521
        %v1945 = vadd.f32 %v1869, -1.4531521
        %v1946 = vadd.f32 %v1870, -1.4531521
        %v1947 = vadd.f32 %v1871, -1.4531521
        %v1948 = vadd.f32 %v1872, -1.4531521
        %v1949 = vadd.f32 %v1873, -1.4531521
        %v1950 = vadd.f32 %v1874, -1.4531521
        %v1951 = vadd.f32 %v1875, -1.4531521
        %v1952 = vadd.f32 %v1876, -1.4531521
        %v1953 = vadd.f32 %v1877, -1.4531521
        %v1954 = vadd.f32 %v1878, -1.4531521
        %v1955 = vadd.f32 %v1879, -1.4531521
        %v1956 = vadd.f32 %v1880, -1.4531521
        %v1957 = vadd.f32 %v1881, -1.4531521
        %v1958 = vadd.f32 %v1882, -1.4531521
        %v1959 = vadd.f32 %v1883, -1.4531521
        %v1960 = vadd.f32 %v1884, -1.4531521
        %v1961 = vadd.f32 %v1885, -1.4531521
        %v1962 = vadd.f32 %v1886, -1.4531521
        %v1963 = vadd.f32 %v1887, -1.4531521
        %v1964 = vmul.f32 %v1736, %v1888
        %v1965 = vmul.f32 %v1737, %v1889
        %v1966 = vmul.f32 %v1738, %v1890
        %v1967 = vmul.f32 %v1739, %v1891
        %v1968 = vmul.f32 %v1740, %v1892
        %v1969 = vmul.f32 %v1741, %v1893
        %v1970 = vmul.f32 %v1742, %v1894
        %v1971 = vmul.f32 %v1743, %v1895
        %v1972 = vmul.f32 %v1744, %v1896
        %v1973 = vmul.f32 %v1745, %v1897
        %v1974 = vmul.f32 %v1746, %v1898
        %v1975 = vmul.f32 %v1747, %v1899
        %v1976 = vmul.f32 %v1748, %v1900
        %v1977 = vmul.f32 %v1749, %v1901
        %v1978 = vmul.f32 %v1750, %v1902
        %v1979 = vmul.f32 %v1751, %v1903
        %v1980 = vmul.f32 %v1752, %v1904
        %v1981 = vmul.f32 %v1753, %v1905
        %v1982 = vmul.f32 %v1754, %v1906
        %v1983 = vmul.f32 %v1755, %v1907
        %v1984 = vmul.f32 %v1756, %v1908
        %v1985 = vmul.f32 %v1757, %v1909
        %v1986 = vmul.f32 %v1758, %v1910
        %v1987 = vmul.f32 %v1759, %v1911
        %v1988 = vmul.f32 %v1760, %v1912
        %v1989 = vmul.f32 %v1761, %v1913
        %v1990 = vmul.f32 %v1762, %v1914
        %v1991 = vmul.f32 %v1763, %v1915
        %v1992 = vmul.f32 %v1764, %v1916
        %v1993 = vmul.f32 %v1765, %v1917
        %v1994 = vmul.f32 %v1766, %v1918
        %v1995 = vmul.f32 %v1767, %v1919
        %v1996 = vmul.f32 %v1768, %v1920
        %v1997 = vmul.f32 %v1769, %v1921
        %v1998 = vmul.f32 %v1770, %v1922
        %v1999 = vmul.f32 %v1771, %v1923
        %v2000 = vmul.f32 %v1772, %v1924
        %v2001 = vmul.f32 %v1773, %v1925
        %v2002 = vmul.f32 %v1774, %v1926
        %v2003 = vmul.f32 %v1775, %v1927
        %v2004 = vmul.f32 %v1776, %v1928
        %v2005 = vmul.f32 %v1777, %v1929
        %v2006 = vmul.f32 %v1778, %v1930
        %v2007 = vmul.f32 %v1779, %v1931
        %v2008 = vmul.f32 %v1780, %v1932
        %v2009 = vmul.f32 %v1781, %v1933
        %v2010 = vmul.f32 %v1782, %v1934
        %v2011 = vmul.f32 %v1783, %v1935
        %v2012 = vmul.f32 %v1784, %v1936
        %v2013 = vmul.f32 %v1785, %v1937
        %v2014 = vmul.f32 %v1786, %v1938
        %v2015 = vmul.f32 %v1787, %v1939
        %v2016 = vmul.f32 %v1788, %v1940
        %v2017 = vmul.f32 %v1789, %v1941
        %v2018 = vmul.f32 %v1790, %v1942
        %v2019 = vmul.f32 %v1791, %v1943
        %v2020 = vmul.f32 %v1792, %v1944
        %v2021 = vmul.f32 %v1793, %v1945
        %v2022 = vmul.f32 %v1794, %v1946
        %v2023 = vmul.f32 %v1795, %v1947
        %v2024 = vmul.f32 %v1796, %v1948
        %v2025 = vmul.f32 %v1797, %v1949
        %v2026 = vmul.f32 %v1798, %v1950
        %v2027 = vmul.f32 %v1799, %v1951
        %v2028 = vmul.f32 %v1800, %v1952
        %v2029 = vmul.f32 %v1801, %v1953
        %v2030 = vmul.f32 %v1802, %v1954
        %v2031 = vmul.f32 %v1803, %v1955
        %v2032 = vmul.f32 %v1804, %v1956
        %v2033 = vmul.f32 %v1805, %v1957
        %v2034 = vmul.f32 %v1806, %v1958
        %v2035 = vmul.f32 %v1807, %v1959
        %v2036 = vmul.f32 %v1808, %v1960
        %v2037 = vmul.f32 %v1809, %v1961
        %v2038 = vmul.f32 %v1810, %v1962
        %v2039 = vmul.f32 %v1811, %v1963
        %v2040 = vadd.f32 %v1964, 1.4214138
        %v2041 = vadd.f32 %v1965, 1.4214138
        %v2042 = vadd.f32 %v1966, 1.4214138
        %v2043 = vadd.f32 %v1967, 1.4214138
        %v2044 = vadd.f32 %v1968, 1.4214138
        %v2045 = vadd.f32 %v1969, 1.4214138
        %v2046 = vadd.f32 %v1970, 1.4214138
        %v2047 = vadd.f32 %v1971, 1.4214138
        %v2048 = vadd.f32 %v1972, 1.4214138
        %v2049 = vadd.f32 %v1973, 1.4214138
        %v2050 = vadd.f32 %v1974, 1.4214138
        %v2051 = vadd.f32 %v1975, 1.4214138
        %v2052 = vadd.f32 %v1976, 1.4214138
        %v2053 = vadd.f32 %v1977, 1.4214138
        %v2054 = vadd.f32 %v1978, 1.4214138
        %v2055 = vadd.f32 %v1979, 1.4214138
        %v2056 = vadd.f32 %v1980, 1.4214138
        %v2057 = vadd.f32 %v1981, 1.4214138
        %v2058 = vadd.f32 %v1982, 1.4214138
        %v2059 = vadd.f32 %v1983, 1.4214138
        %v2060 = vadd.f32 %v1984, 1.4214138
        %v2061 = vadd.f32 %v1985, 1.4214138
        %v2062 = vadd.f32 %v1986, 1.4214138
        %v2063 = vadd.f32 %v1987, 1.4214138
        %v2064 = vadd.f32 %v1988, 1.4214138
        %v2065 = vadd.f32 %v1989, 1.4214138
        %v2066 = vadd.f32 %v1990, 1.4214138
        %v2067 = vadd.f32 %v1991, 1.4214138
        %v2068 = vadd.f32 %v1992, 1.4214138
        %v2069 = vadd.f32 %v1993, 1.4214138
        %v2070 = vadd.f32 %v1994, 1.4214138
        %v2071 = vadd.f32 %v1995, 1.4214138
        %v2072 = vadd.f32 %v1996, 1.4214138
        %v2073 = vadd.f32 %v1997, 1.4214138
        %v2074 = vadd.f32 %v1998, 1.4214138
        %v2075 = vadd.f32 %v1999, 1.4214138
        %v2076 = vadd.f32 %v2000, 1.4214138
        %v2077 = vadd.f32 %v2001, 1.4214138
        %v2078 = vadd.f32 %v2002, 1.4214138
        %v2079 = vadd.f32 %v2003, 1.4214138
        %v2080 = vadd.f32 %v2004, 1.4214138
        %v2081 = vadd.f32 %v2005, 1.4214138
        %v2082 = vadd.f32 %v2006, 1.4214138
        %v2083 = vadd.f32 %v2007, 1.4214138
        %v2084 = vadd.f32 %v2008, 1.4214138
        %v2085 = vadd.f32 %v2009, 1.4214138
        %v2086 = vadd.f32 %v2010, 1.4214138
        %v2087 = vadd.f32 %v2011, 1.4214138
        %v2088 = vadd.f32 %v2012, 1.4214138
        %v2089 = vadd.f32 %v2013, 1.4214138
        %v2090 = vadd.f32 %v2014, 1.4214138
        %v2091 = vadd.f32 %v2015, 1.4214138
        %v2092 = vadd.f32 %v2016, 1.4214138
        %v2093 = vadd.f32 %v2017, 1.4214138
        %v2094 = vadd.f32 %v2018, 1.4214138
        %v2095 = vadd.f32 %v2019, 1.4214138
        %v2096 = vadd.f32 %v2020, 1.4214138
        %v2097 = vadd.f32 %v2021, 1.4214138
        %v2098 = vadd.f32 %v2022, 1.4214138
        %v2099 = vadd.f32 %v2023, 1.4214138
        %v2100 = vadd.f32 %v2024, 1.4214138
        %v2101 = vadd.f32 %v2025, 1.4214138
        %v2102 = vadd.f32 %v2026, 1.4214138
        %v2103 = vadd.f32 %v2027, 1.4214138
        %v2104 = vadd.f32 %v2028, 1.4214138
        %v2105 = vadd.f32 %v2029, 1.4214138
        %v2106 = vadd.f32 %v2030, 1.4214138
        %v2107 = vadd.f32 %v2031, 1.4214138
        %v2108 = vadd.f32 %v2032, 1.4214138
        %v2109 = vadd.f32 %v2033, 1.4214138
        %v2110 = vadd.f32 %v2034, 1.4214138
        %v2111 = vadd.f32 %v2035, 1.4214138
        %v2112 = vadd.f32 %v2036, 1.4214138
        %v2113 = vadd.f32 %v2037, 1.4214138
        %v2114 = vadd.f32 %v2038, 1.4214138
        %v2115 = vadd.f32 %v2039, 1.4214138
        %v2116 = vmul.f32 %v1736, %v2040
        %v2117 = vmul.f32 %v1737, %v2041
        %v2118 = vmul.f32 %v1738, %v2042
        %v2119 = vmul.f32 %v1739, %v2043
        %v2120 = vmul.f32 %v1740, %v2044
        %v2121 = vmul.f32 %v1741, %v2045
        %v2122 = vmul.f32 %v1742, %v2046
        %v2123 = vmul.f32 %v1743, %v2047
        %v2124 = vmul.f32 %v1744, %v2048
        %v2125 = vmul.f32 %v1745, %v2049
        %v2126 = vmul.f32 %v1746, %v2050
        %v2127 = vmul.f32 %v1747, %v2051
        %v2128 = vmul.f32 %v1748, %v2052
        %v2129 = vmul.f32 %v1749, %v2053
        %v2130 = vmul.f32 %v1750, %v2054
        %v2131 = vmul.f32 %v1751, %v2055
        %v2132 = vmul.f32 %v1752, %v2056
        %v2133 = vmul.f32 %v1753, %v2057
        %v2134 = vmul.f32 %v1754, %v2058
        %v2135 = vmul.f32 %v1755, %v2059
        %v2136 = vmul.f32 %v1756, %v2060
        %v2137 = vmul.f32 %v1757, %v2061
        %v2138 = vmul.f32 %v1758, %v2062
        %v2139 = vmul.f32 %v1759, %v2063
        %v2140 = vmul.f32 %v1760, %v2064
        %v2141 = vmul.f32 %v1761, %v2065
        %v2142 = vmul.f32 %v1762, %v2066
        %v2143 = vmul.f32 %v1763, %v2067
        %v2144 = vmul.f32 %v1764, %v2068
        %v2145 = vmul.f32 %v1765, %v2069
        %v2146 = vmul.f32 %v1766, %v2070
        %v2147 = vmul.f32 %v1767, %v2071
        %v2148 = vmul.f32 %v1768, %v2072
        %v2149 = vmul.f32 %v1769, %v2073
        %v2150 = vmul.f32 %v1770, %v2074
        %v2151 = vmul.f32 %v1771, %v2075
        %v2152 = vmul.f32 %v1772, %v2076
        %v2153 = vmul.f32 %v1773, %v2077
        %v2154 = vmul.f32 %v1774, %v2078
        %v2155 = vmul.f32 %v1775, %v2079
        %v2156 = vmul.f32 %v1776, %v2080
        %v2157 = vmul.f32 %v1777, %v2081
        %v2158 = vmul.f32 %v1778, %v2082
        %v2159 = vmul.f32 %v1779, %v2083
        %v2160 = vmul.f32 %v1780, %v2084
        %v2161 = vmul.f32 %v1781, %v2085
        %v2162 = vmul.f32 %v1782, %v2086
        %v2163 = vmul.f32 %v1783, %v2087
        %v2164 = vmul.f32 %v1784, %v2088
        %v2165 = vmul.f32 %v1785, %v2089
        %v2166 = vmul.f32 %v1786, %v2090
        %v2167 = vmul.f32 %v1787, %v2091
        %v2168 = vmul.f32 %v1788, %v2092
        %v2169 = vmul.f32 %v1789, %v2093
        %v2170 = vmul.f32 %v1790, %v2094
        %v2171 = vmul.f32 %v1791, %v2095
        %v2172 = vmul.f32 %v1792, %v2096
        %v2173 = vmul.f32 %v1793, %v2097
        %v2174 = vmul.f32 %v1794, %v2098
        %v2175 = vmul.f32 %v1795, %v2099
        %v2176 = vmul.f32 %v1796, %v2100
        %v2177 = vmul.f32 %v1797, %v2101
        %v2178 = vmul.f32 %v1798, %v2102
        %v2179 = vmul.f32 %v1799, %v2103
        %v2180 = vmul.f32 %v1800, %v2104
        %v2181 = vmul.f32 %v1801, %v2105
        %v2182 = vmul.f32 %v1802, %v2106
        %v2183 = vmul.f32 %v1803, %v2107
        %v2184 = vmul.f32 %v1804, %v2108
        %v2185 = vmul.f32 %v1805, %v2109
        %v2186 = vmul.f32 %v1806, %v2110
        %v2187 = vmul.f32 %v1807, %v2111
        %v2188 = vmul.f32 %v1808, %v2112
        %v2189 = vmul.f32 %v1809, %v2113
        %v2190 = vmul.f32 %v1810, %v2114
        %v2191 = vmul.f32 %v1811, %v2115
        %v2192 = vadd.f32 %v2116, -0.28449672
        %v2193 = vadd.f32 %v2117, -0.28449672
        %v2194 = vadd.f32 %v2118, -0.28449672
        %v2195 = vadd.f32 %v2119, -0.28449672
        %v2196 = vadd.f32 %v2120, -0.28449672
        %v2197 = vadd.f32 %v2121, -0.28449672
        %v2198 = vadd.f32 %v2122, -0.28449672
        %v2199 = vadd.f32 %v2123, -0.28449672
        %v2200 = vadd.f32 %v2124, -0.28449672
        %v2201 = vadd.f32 %v2125, -0.28449672
        %v2202 = vadd.f32 %v2126, -0.28449672
        %v2203 = vadd.f32 %v2127, -0.28449672
        %v2204 = vadd.f32 %v2128, -0.28449672
        %v2205 = vadd.f32 %v2129, -0.28449672
        %v2206 = vadd.f32 %v2130, -0.28449672
        %v2207 = vadd.f32 %v2131, -0.28449672
        %v2208 = vadd.f32 %v2132, -0.28449672
        %v2209 = vadd.f32 %v2133, -0.28449672
        %v2210 = vadd.f32 %v2134, -0.28449672
        %v2211 = vadd.f32 %v2135, -0.28449672
        %v2212 = vadd.f32 %v2136, -0.28449672
        %v2213 = vadd.f32 %v2137, -0.28449672
        %v2214 = vadd.f32 %v2138, -0.28449672
        %v2215 = vadd.f32 %v2139, -0.28449672
        %v2216 = vadd.f32 %v2140, -0.28449672
        %v2217 = vadd.f32 %v2141, -0.28449672
        %v2218 = vadd.f32 %v2142, -0.28449672
        %v2219 = vadd.f32 %v2143, -0.28449672
        %v2220 = vadd.f32 %v2144, -0.28449672
        %v2221 = vadd.f32 %v2145, -0.28449672
        %v2222 = vadd.f32 %v2146, -0.28449672
        %v2223 = vadd.f32 %v2147, -0.28449672
        %v2224 = vadd.f32 %v2148, -0.28449672
        %v2225 = vadd.f32 %v2149, -0.28449672
        %v2226 = vadd.f32 %v2150, -0.28449672
        %v2227 = vadd.f32 %v2151, -0.28449672
        %v2228 = vadd.f32 %v2152, -0.28449672
        %v2229 = vadd.f32 %v2153, -0.28449672
        %v2230 = vadd.f32 %v2154, -0.28449672
        %v2231 = vadd.f32 %v2155, -0.28449672
        %v2232 = vadd.f32 %v2156, -0.28449672
        %v2233 = vadd.f32 %v2157, -0.28449672
        %v2234 = vadd.f32 %v2158, -0.28449672
        %v2235 = vadd.f32 %v2159, -0.28449672
        %v2236 = vadd.f32 %v2160, -0.28449672
        %v2237 = vadd.f32 %v2161, -0.28449672
        %v2238 = vadd.f32 %v2162, -0.28449672
        %v2239 = vadd.f32 %v2163, -0.28449672
        %v2240 = vadd.f32 %v2164, -0.28449672
        %v2241 = vadd.f32 %v2165, -0.28449672
        %v2242 = vadd.f32 %v2166, -0.28449672
        %v2243 = vadd.f32 %v2167, -0.28449672
        %v2244 = vadd.f32 %v2168, -0.28449672
        %v2245 = vadd.f32 %v2169, -0.28449672
        %v2246 = vadd.f32 %v2170, -0.28449672
        %v2247 = vadd.f32 %v2171, -0.28449672
        %v2248 = vadd.f32 %v2172, -0.28449672
        %v2249 = vadd.f32 %v2173, -0.28449672
        %v2250 = vadd.f32 %v2174, -0.28449672
        %v2251 = vadd.f32 %v2175, -0.28449672
        %v2252 = vadd.f32 %v2176, -0.28449672
        %v2253 = vadd.f32 %v2177, -0.28449672
        %v2254 = vadd.f32 %v2178, -0.28449672
        %v2255 = vadd.f32 %v2179, -0.28449672
        %v2256 = vadd.f32 %v2180, -0.28449672
        %v2257 = vadd.f32 %v2181, -0.28449672
        %v2258 = vadd.f32 %v2182, -0.28449672
        %v2259 = vadd.f32 %v2183, -0.28449672
        %v2260 = vadd.f32 %v2184, -0.28449672
        %v2261 = vadd.f32 %v2185, -0.28449672
        %v2262 = vadd.f32 %v2186, -0.28449672
        %v2263 = vadd.f32 %v2187, -0.28449672
        %v2264 = vadd.f32 %v2188, -0.28449672
        %v2265 = vadd.f32 %v2189, -0.28449672
        %v2266 = vadd.f32 %v2190, -0.28449672
        %v2267 = vadd.f32 %v2191, -0.28449672
        %v2268 = vmul.f32 %v1736, %v2192
        %v2269 = vmul.f32 %v1737, %v2193
        %v2270 = vmul.f32 %v1738, %v2194
        %v2271 = vmul.f32 %v1739, %v2195
        %v2272 = vmul.f32 %v1740, %v2196
        %v2273 = vmul.f32 %v1741, %v2197
        %v2274 = vmul.f32 %v1742, %v2198
        %v2275 = vmul.f32 %v1743, %v2199
        %v2276 = vmul.f32 %v1744, %v2200
        %v2277 = vmul.f32 %v1745, %v2201
        %v2278 = vmul.f32 %v1746, %v2202
        %v2279 = vmul.f32 %v1747, %v2203
        %v2280 = vmul.f32 %v1748, %v2204
        %v2281 = vmul.f32 %v1749, %v2205
        %v2282 = vmul.f32 %v1750, %v2206
        %v2283 = vmul.f32 %v1751, %v2207
        %v2284 = vmul.f32 %v1752, %v2208
        %v2285 = vmul.f32 %v1753, %v2209
        %v2286 = vmul.f32 %v1754, %v2210
        %v2287 = vmul.f32 %v1755, %v2211
        %v2288 = vmul.f32 %v1756, %v2212
        %v2289 = vmul.f32 %v1757, %v2213
        %v2290 = vmul.f32 %v1758, %v2214
        %v2291 = vmul.f32 %v1759, %v2215
        %v2292 = vmul.f32 %v1760, %v2216
        %v2293 = vmul.f32 %v1761, %v2217
        %v2294 = vmul.f32 %v1762, %v2218
        %v2295 = vmul.f32 %v1763, %v2219
        %v2296 = vmul.f32 %v1764, %v2220
        %v2297 = vmul.f32 %v1765, %v2221
        %v2298 = vmul.f32 %v1766, %v2222
        %v2299 = vmul.f32 %v1767, %v2223
        %v2300 = vmul.f32 %v1768, %v2224
        %v2301 = vmul.f32 %v1769, %v2225
        %v2302 = vmul.f32 %v1770, %v2226
        %v2303 = vmul.f32 %v1771, %v2227
        %v2304 = vmul.f32 %v1772, %v2228
        %v2305 = vmul.f32 %v1773, %v2229
        %v2306 = vmul.f32 %v1774, %v2230
        %v2307 = vmul.f32 %v1775, %v2231
        %v2308 = vmul.f32 %v1776, %v2232
        %v2309 = vmul.f32 %v1777, %v2233
        %v2310 = vmul.f32 %v1778, %v2234
        %v2311 = vmul.f32 %v1779, %v2235
        %v2312 = vmul.f32 %v1780, %v2236
        %v2313 = vmul.f32 %v1781, %v2237
        %v2314 = vmul.f32 %v1782, %v2238
        %v2315 = vmul.f32 %v1783, %v2239
        %v2316 = vmul.f32 %v1784, %v2240
        %v2317 = vmul.f32 %v1785, %v2241
        %v2318 = vmul.f32 %v1786, %v2242
        %v2319 = vmul.f32 %v1787, %v2243
        %v2320 = vmul.f32 %v1788, %v2244
        %v2321 = vmul.f32 %v1789, %v2245
        %v2322 = vmul.f32 %v1790, %v2246
        %v2323 = vmul.f32 %v1791, %v2247
        %v2324 = vmul.f32 %v1792, %v2248
        %v2325 = vmul.f32 %v1793, %v2249
        %v2326 = vmul.f32 %v1794, %v2250
        %v2327 = vmul.f32 %v1795, %v2251
        %v2328 = vmul.f32 %v1796, %v2252
        %v2329 = vmul.f32 %v1797, %v2253
        %v2330 = vmul.f32 %v1798, %v2254
        %v2331 = vmul.f32 %v1799, %v2255
        %v2332 = vmul.f32 %v1800, %v2256
        %v2333 = vmul.f32 %v1801, %v2257
        %v2334 = vmul.f32 %v1802, %v2258
        %v2335 = vmul.f32 %v1803, %v2259
        %v2336 = vmul.f32 %v1804, %v2260
        %v2337 = vmul.f32 %v1805, %v2261
        %v2338 = vmul.f32 %v1806, %v2262
        %v2339 = vmul.f32 %v1807, %v2263
        %v2340 = vmul.f32 %v1808, %v2264
        %v2341 = vmul.f32 %v1809, %v2265
        %v2342 = vmul.f32 %v1810, %v2266
        %v2343 = vmul.f32 %v1811, %v2267
        %v2344 = vadd.f32 %v2268, 0.2548296
        %v2345 = vadd.f32 %v2269, 0.2548296
        %v2346 = vadd.f32 %v2270, 0.2548296
        %v2347 = vadd.f32 %v2271, 0.2548296
        %v2348 = vadd.f32 %v2272, 0.2548296
        %v2349 = vadd.f32 %v2273, 0.2548296
        %v2350 = vadd.f32 %v2274, 0.2548296
        %v2351 = vadd.f32 %v2275, 0.2548296
        %v2352 = vadd.f32 %v2276, 0.2548296
        %v2353 = vadd.f32 %v2277, 0.2548296
        %v2354 = vadd.f32 %v2278, 0.2548296
        %v2355 = vadd.f32 %v2279, 0.2548296
        %v2356 = vadd.f32 %v2280, 0.2548296
        %v2357 = vadd.f32 %v2281, 0.2548296
        %v2358 = vadd.f32 %v2282, 0.2548296
        %v2359 = vadd.f32 %v2283, 0.2548296
        %v2360 = vadd.f32 %v2284, 0.2548296
        %v2361 = vadd.f32 %v2285, 0.2548296
        %v2362 = vadd.f32 %v2286, 0.2548296
        %v2363 = vadd.f32 %v2287, 0.2548296
        %v2364 = vadd.f32 %v2288, 0.2548296
        %v2365 = vadd.f32 %v2289, 0.2548296
        %v2366 = vadd.f32 %v2290, 0.2548296
        %v2367 = vadd.f32 %v2291, 0.2548296
        %v2368 = vadd.f32 %v2292, 0.2548296
        %v2369 = vadd.f32 %v2293, 0.2548296
        %v2370 = vadd.f32 %v2294, 0.2548296
        %v2371 = vadd.f32 %v2295, 0.2548296
        %v2372 = vadd.f32 %v2296, 0.2548296
        %v2373 = vadd.f32 %v2297, 0.2548296
        %v2374 = vadd.f32 %v2298, 0.2548296
        %v2375 = vadd.f32 %v2299, 0.2548296
        %v2376 = vadd.f32 %v2300, 0.2548296
        %v2377 = vadd.f32 %v2301, 0.2548296
        %v2378 = vadd.f32 %v2302, 0.2548296
        %v2379 = vadd.f32 %v2303, 0.2548296
        %v2380 = vadd.f32 %v2304, 0.2548296
        %v2381 = vadd.f32 %v2305, 0.2548296
        %v2382 = vadd.f32 %v2306, 0.2548296
        %v2383 = vadd.f32 %v2307, 0.2548296
        %v2384 = vadd.f32 %v2308, 0.2548296
        %v2385 = vadd.f32 %v2309, 0.2548296
        %v2386 = vadd.f32 %v2310, 0.2548296
        %v2387 = vadd.f32 %v2311, 0.2548296
        %v2388 = vadd.f32 %v2312, 0.2548296
        %v2389 = vadd.f32 %v2313, 0.2548296
        %v2390 = vadd.f32 %v2314, 0.2548296
        %v2391 = vadd.f32 %v2315, 0.2548296
        %v2392 = vadd.f32 %v2316, 0.2548296
        %v2393 = vadd.f32 %v2317, 0.2548296
        %v2394 = vadd.f32 %v2318, 0.2548296
        %v2395 = vadd.f32 %v2319, 0.2548296
        %v2396 = vadd.f32 %v2320, 0.2548296
        %v2397 = vadd.f32 %v2321, 0.2548296
        %v2398 = vadd.f32 %v2322, 0.2548296
        %v2399 = vadd.f32 %v2323, 0.2548296
        %v2400 = vadd.f32 %v2324, 0.2548296
        %v2401 = vadd.f32 %v2325, 0.2548296
        %v2402 = vadd.f32 %v2326, 0.2548296
        %v2403 = vadd.f32 %v2327, 0.2548296
        %v2404 = vadd.f32 %v2328, 0.2548296
        %v2405 = vadd.f32 %v2329, 0.2548296
        %v2406 = vadd.f32 %v2330, 0.2548296
        %v2407 = vadd.f32 %v2331, 0.2548296
        %v2408 = vadd.f32 %v2332, 0.2548296
        %v2409 = vadd.f32 %v2333, 0.2548296
        %v2410 = vadd.f32 %v2334, 0.2548296
        %v2411 = vadd.f32 %v2335, 0.2548296
        %v2412 = vadd.f32 %v2336, 0.2548296
        %v2413 = vadd.f32 %v2337, 0.2548296
        %v2414 = vadd.f32 %v2338, 0.2548296
        %v2415 = vadd.f32 %v2339, 0.2548296
        %v2416 = vadd.f32 %v2340, 0.2548296
        %v2417 = vadd.f32 %v2341, 0.2548296
        %v2418 = vadd.f32 %v2342, 0.2548296
        %v2419 = vadd.f32 %v2343, 0.2548296
        %v2420 = vmul.f32 %v1736, %v2344
        %v2421 = vmul.f32 %v1737, %v2345
        %v2422 = vmul.f32 %v1738, %v2346
        %v2423 = vmul.f32 %v1739, %v2347
        %v2424 = vmul.f32 %v1740, %v2348
        %v2425 = vmul.f32 %v1741, %v2349
        %v2426 = vmul.f32 %v1742, %v2350
        %v2427 = vmul.f32 %v1743, %v2351
        %v2428 = vmul.f32 %v1744, %v2352
        %v2429 = vmul.f32 %v1745, %v2353
        %v2430 = vmul.f32 %v1746, %v2354
        %v2431 = vmul.f32 %v1747, %v2355
        %v2432 = vmul.f32 %v1748, %v2356
        %v2433 = vmul.f32 %v1749, %v2357
        %v2434 = vmul.f32 %v1750, %v2358
        %v2435 = vmul.f32 %v1751, %v2359
        %v2436 = vmul.f32 %v1752, %v2360
        %v2437 = vmul.f32 %v1753, %v2361
        %v2438 = vmul.f32 %v1754, %v2362
        %v2439 = vmul.f32 %v1755, %v2363
        %v2440 = vmul.f32 %v1756, %v2364
        %v2441 = vmul.f32 %v1757, %v2365
        %v2442 = vmul.f32 %v1758, %v2366
        %v2443 = vmul.f32 %v1759, %v2367
        %v2444 = vmul.f32 %v1760, %v2368
        %v2445 = vmul.f32 %v1761, %v2369
        %v2446 = vmul.f32 %v1762, %v2370
        %v2447 = vmul.f32 %v1763, %v2371
        %v2448 = vmul.f32 %v1764, %v2372
        %v2449 = vmul.f32 %v1765, %v2373
        %v2450 = vmul.f32 %v1766, %v2374
        %v2451 = vmul.f32 %v1767, %v2375
        %v2452 = vmul.f32 %v1768, %v2376
        %v2453 = vmul.f32 %v1769, %v2377
        %v2454 = vmul.f32 %v1770, %v2378
        %v2455 = vmul.f32 %v1771, %v2379
        %v2456 = vmul.f32 %v1772, %v2380
        %v2457 = vmul.f32 %v1773, %v2381
        %v2458 = vmul.f32 %v1774, %v2382
        %v2459 = vmul.f32 %v1775, %v2383
        %v2460 = vmul.f32 %v1776, %v2384
        %v2461 = vmul.f32 %v1777, %v2385
        %v2462 = vmul.f32 %v1778, %v2386
        %v2463 = vmul.f32 %v1779, %v2387
        %v2464 = vmul.f32 %v1780, %v2388
        %v2465 = vmul.f32 %v1781, %v2389
        %v2466 = vmul.f32 %v1782, %v2390
        %v2467 = vmul.f32 %v1783, %v2391
        %v2468 = vmul.f32 %v1784, %v2392
        %v2469 = vmul.f32 %v1785, %v2393
        %v2470 = vmul.f32 %v1786, %v2394
        %v2471 = vmul.f32 %v1787, %v2395
        %v2472 = vmul.f32 %v1788, %v2396
        %v2473 = vmul.f32 %v1789, %v2397
        %v2474 = vmul.f32 %v1790, %v2398
        %v2475 = vmul.f32 %v1791, %v2399
        %v2476 = vmul.f32 %v1792, %v2400
        %v2477 = vmul.f32 %v1793, %v2401
        %v2478 = vmul.f32 %v1794, %v2402
        %v2479 = vmul.f32 %v1795, %v2403
        %v2480 = vmul.f32 %v1796, %v2404
        %v2481 = vmul.f32 %v1797, %v2405
        %v2482 = vmul.f32 %v1798, %v2406
        %v2483 = vmul.f32 %v1799, %v2407
        %v2484 = vmul.f32 %v1800, %v2408
        %v2485 = vmul.f32 %v1801, %v2409
        %v2486 = vmul.f32 %v1802, %v2410
        %v2487 = vmul.f32 %v1803, %v2411
        %v2488 = vmul.f32 %v1804, %v2412
        %v2489 = vmul.f32 %v1805, %v2413
        %v2490 = vmul.f32 %v1806, %v2414
        %v2491 = vmul.f32 %v1807, %v2415
        %v2492 = vmul.f32 %v1808, %v2416
        %v2493 = vmul.f32 %v1809, %v2417
        %v2494 = vmul.f32 %v1810, %v2418
        %v2495 = vmul.f32 %v1811, %v2419
        %v2496 = vsub.f32 0.0, %v1508
        %v2497 = vsub.f32 0.0, %v1509
        %v2498 = vsub.f32 0.0, %v1510
        %v2499 = vsub.f32 0.0, %v1511
        %v2500 = vsub.f32 0.0, %v1512
        %v2501 = vsub.f32 0.0, %v1513
        %v2502 = vsub.f32 0.0, %v1514
        %v2503 = vsub.f32 0.0, %v1515
        %v2504 = vsub.f32 0.0, %v1516
        %v2505 = vsub.f32 0.0, %v1517
        %v2506 = vsub.f32 0.0, %v1518
        %v2507 = vsub.f32 0.0, %v1519
        %v2508 = vsub.f32 0.0, %v1520
        %v2509 = vsub.f32 0.0, %v1521
        %v2510 = vsub.f32 0.0, %v1522
        %v2511 = vsub.f32 0.0, %v1523
        %v2512 = vsub.f32 0.0, %v1524
        %v2513 = vsub.f32 0.0, %v1525
        %v2514 = vsub.f32 0.0, %v1526
        %v2515 = vsub.f32 0.0, %v1527
        %v2516 = vsub.f32 0.0, %v1528
        %v2517 = vsub.f32 0.0, %v1529
        %v2518 = vsub.f32 0.0, %v1530
        %v2519 = vsub.f32 0.0, %v1531
        %v2520 = vsub.f32 0.0, %v1532
        %v2521 = vsub.f32 0.0, %v1533
        %v2522 = vsub.f32 0.0, %v1534
        %v2523 = vsub.f32 0.0, %v1535
        %v2524 = vsub.f32 0.0, %v1536
        %v2525 = vsub.f32 0.0, %v1537
        %v2526 = vsub.f32 0.0, %v1538
        %v2527 = vsub.f32 0.0, %v1539
        %v2528 = vsub.f32 0.0, %v1540
        %v2529 = vsub.f32 0.0, %v1541
        %v2530 = vsub.f32 0.0, %v1542
        %v2531 = vsub.f32 0.0, %v1543
        %v2532 = vsub.f32 0.0, %v1544
        %v2533 = vsub.f32 0.0, %v1545
        %v2534 = vsub.f32 0.0, %v1546
        %v2535 = vsub.f32 0.0, %v1547
        %v2536 = vsub.f32 0.0, %v1548
        %v2537 = vsub.f32 0.0, %v1549
        %v2538 = vsub.f32 0.0, %v1550
        %v2539 = vsub.f32 0.0, %v1551
        %v2540 = vsub.f32 0.0, %v1552
        %v2541 = vsub.f32 0.0, %v1553
        %v2542 = vsub.f32 0.0, %v1554
        %v2543 = vsub.f32 0.0, %v1555
        %v2544 = vsub.f32 0.0, %v1556
        %v2545 = vsub.f32 0.0, %v1557
        %v2546 = vsub.f32 0.0, %v1558
        %v2547 = vsub.f32 0.0, %v1559
        %v2548 = vsub.f32 0.0, %v1560
        %v2549 = vsub.f32 0.0, %v1561
        %v2550 = vsub.f32 0.0, %v1562
        %v2551 = vsub.f32 0.0, %v1563
        %v2552 = vsub.f32 0.0, %v1564
        %v2553 = vsub.f32 0.0, %v1565
        %v2554 = vsub.f32 0.0, %v1566
        %v2555 = vsub.f32 0.0, %v1567
        %v2556 = vsub.f32 0.0, %v1568
        %v2557 = vsub.f32 0.0, %v1569
        %v2558 = vsub.f32 0.0, %v1570
        %v2559 = vsub.f32 0.0, %v1571
        %v2560 = vsub.f32 0.0, %v1572
        %v2561 = vsub.f32 0.0, %v1573
        %v2562 = vsub.f32 0.0, %v1574
        %v2563 = vsub.f32 0.0, %v1575
        %v2564 = vsub.f32 0.0, %v1576
        %v2565 = vsub.f32 0.0, %v1577
        %v2566 = vsub.f32 0.0, %v1578
        %v2567 = vsub.f32 0.0, %v1579
        %v2568 = vsub.f32 0.0, %v1580
        %v2569 = vsub.f32 0.0, %v1581
        %v2570 = vsub.f32 0.0, %v1582
        %v2571 = vsub.f32 0.0, %v1583
        %v2572 = vmul.f32 %v2496, %v1508
        %v2573 = vmul.f32 %v2497, %v1509
        %v2574 = vmul.f32 %v2498, %v1510
        %v2575 = vmul.f32 %v2499, %v1511
        %v2576 = vmul.f32 %v2500, %v1512
        %v2577 = vmul.f32 %v2501, %v1513
        %v2578 = vmul.f32 %v2502, %v1514
        %v2579 = vmul.f32 %v2503, %v1515
        %v2580 = vmul.f32 %v2504, %v1516
        %v2581 = vmul.f32 %v2505, %v1517
        %v2582 = vmul.f32 %v2506, %v1518
        %v2583 = vmul.f32 %v2507, %v1519
        %v2584 = vmul.f32 %v2508, %v1520
        %v2585 = vmul.f32 %v2509, %v1521
        %v2586 = vmul.f32 %v2510, %v1522
        %v2587 = vmul.f32 %v2511, %v1523
        %v2588 = vmul.f32 %v2512, %v1524
        %v2589 = vmul.f32 %v2513, %v1525
        %v2590 = vmul.f32 %v2514, %v1526
        %v2591 = vmul.f32 %v2515, %v1527
        %v2592 = vmul.f32 %v2516, %v1528
        %v2593 = vmul.f32 %v2517, %v1529
        %v2594 = vmul.f32 %v2518, %v1530
        %v2595 = vmul.f32 %v2519, %v1531
        %v2596 = vmul.f32 %v2520, %v1532
        %v2597 = vmul.f32 %v2521, %v1533
        %v2598 = vmul.f32 %v2522, %v1534
        %v2599 = vmul.f32 %v2523, %v1535
        %v2600 = vmul.f32 %v2524, %v1536
        %v2601 = vmul.f32 %v2525, %v1537
        %v2602 = vmul.f32 %v2526, %v1538
        %v2603 = vmul.f32 %v2527, %v1539
        %v2604 = vmul.f32 %v2528, %v1540
        %v2605 = vmul.f32 %v2529, %v1541
        %v2606 = vmul.f32 %v2530, %v1542
        %v2607 = vmul.f32 %v2531, %v1543
        %v2608 = vmul.f32 %v2532, %v1544
        %v2609 = vmul.f32 %v2533, %v1545
        %v2610 = vmul.f32 %v2534, %v1546
        %v2611 = vmul.f32 %v2535, %v1547
        %v2612 = vmul.f32 %v2536, %v1548
        %v2613 = vmul.f32 %v2537, %v1549
        %v2614 = vmul.f32 %v2538, %v1550
        %v2615 = vmul.f32 %v2539, %v1551
        %v2616 = vmul.f32 %v2540, %v1552
        %v2617 = vmul.f32 %v2541, %v1553
        %v2618 = vmul.f32 %v2542, %v1554
        %v2619 = vmul.f32 %v2543, %v1555
        %v2620 = vmul.f32 %v2544, %v1556
        %v2621 = vmul.f32 %v2545, %v1557
        %v2622 = vmul.f32 %v2546, %v1558
        %v2623 = vmul.f32 %v2547, %v1559
        %v2624 = vmul.f32 %v2548, %v1560
        %v2625 = vmul.f32 %v2549, %v1561
        %v2626 = vmul.f32 %v2550, %v1562
        %v2627 = vmul.f32 %v2551, %v1563
        %v2628 = vmul.f32 %v2552, %v1564
        %v2629 = vmul.f32 %v2553, %v1565
        %v2630 = vmul.f32 %v2554, %v1566
        %v2631 = vmul.f32 %v2555, %v1567
        %v2632 = vmul.f32 %v2556, %v1568
        %v2633 = vmul.f32 %v2557, %v1569
        %v2634 = vmul.f32 %v2558, %v1570
        %v2635 = vmul.f32 %v2559, %v1571
        %v2636 = vmul.f32 %v2560, %v1572
        %v2637 = vmul.f32 %v2561, %v1573
        %v2638 = vmul.f32 %v2562, %v1574
        %v2639 = vmul.f32 %v2563, %v1575
        %v2640 = vmul.f32 %v2564, %v1576
        %v2641 = vmul.f32 %v2565, %v1577
        %v2642 = vmul.f32 %v2566, %v1578
        %v2643 = vmul.f32 %v2567, %v1579
        %v2644 = vmul.f32 %v2568, %v1580
        %v2645 = vmul.f32 %v2569, %v1581
        %v2646 = vmul.f32 %v2570, %v1582
        %v2647 = vmul.f32 %v2571, %v1583
        %v2648 = vmul.f32 %v2572, 1.442695
        %v2649 = vpow.pop %v2648
        %v2650 = vmul.f32 %v2573, 1.442695
        %v2651 = vpow.pop %v2650
        %v2652 = vmul.f32 %v2574, 1.442695
        %v2653 = vpow.pop %v2652
        %v2654 = vmul.f32 %v2575, 1.442695
        %v2655 = vpow.pop %v2654
        %v2656 = vmul.f32 %v2576, 1.442695
        %v2657 = vpow.pop %v2656
        %v2658 = vmul.f32 %v2577, 1.442695
        %v2659 = vpow.pop %v2658
        %v2660 = vmul.f32 %v2578, 1.442695
        %v2661 = vpow.pop %v2660
        %v2662 = vmul.f32 %v2579, 1.442695
        %v2663 = vpow.pop %v2662
        %v2664 = vmul.f32 %v2580, 1.442695
        %v2665 = vpow.pop %v2664
        %v2666 = vmul.f32 %v2581, 1.442695
        %v2667 = vpow.pop %v2666
        %v2668 = vmul.f32 %v2582, 1.442695
        %v2669 = vpow.pop %v2668
        %v2670 = vmul.f32 %v2583, 1.442695
        %v2671 = vpow.pop %v2670
        %v2672 = vmul.f32 %v2584, 1.442695
        %v2673 = vpow.pop %v2672
        %v2674 = vmul.f32 %v2585, 1.442695
        %v2675 = vpow.pop %v2674
        %v2676 = vmul.f32 %v2586, 1.442695
        %v2677 = vpow.pop %v2676
        %v2678 = vmul.f32 %v2587, 1.442695
        %v2679 = vpow.pop %v2678
        %v2680 = vmul.f32 %v2588, 1.442695
        %v2681 = vpow.pop %v2680
        %v2682 = vmul.f32 %v2589, 1.442695
        %v2683 = vpow.pop %v2682
        %v2684 = vmul.f32 %v2590, 1.442695
        %v2685 = vpow.pop %v2684
        %v2686 = vmul.f32 %v2591, 1.442695
        %v2687 = vpow.pop %v2686
        %v2688 = vmul.f32 %v2592, 1.442695
        %v2689 = vpow.pop %v2688
        %v2690 = vmul.f32 %v2593, 1.442695
        %v2691 = vpow.pop %v2690
        %v2692 = vmul.f32 %v2594, 1.442695
        %v2693 = vpow.pop %v2692
        %v2694 = vmul.f32 %v2595, 1.442695
        %v2695 = vpow.pop %v2694
        %v2696 = vmul.f32 %v2596, 1.442695
        %v2697 = vpow.pop %v2696
        %v2698 = vmul.f32 %v2597, 1.442695
        %v2699 = vpow.pop %v2698
        %v2700 = vmul.f32 %v2598, 1.442695
        %v2701 = vpow.pop %v2700
        %v2702 = vmul.f32 %v2599, 1.442695
        %v2703 = vpow.pop %v2702
        %v2704 = vmul.f32 %v2600, 1.442695
        %v2705 = vpow.pop %v2704
        %v2706 = vmul.f32 %v2601, 1.442695
        %v2707 = vpow.pop %v2706
        %v2708 = vmul.f32 %v2602, 1.442695
        %v2709 = vpow.pop %v2708
        %v2710 = vmul.f32 %v2603, 1.442695
        %v2711 = vpow.pop %v2710
        %v2712 = vmul.f32 %v2604, 1.442695
        %v2713 = vpow.pop %v2712
        %v2714 = vmul.f32 %v2605, 1.442695
        %v2715 = vpow.pop %v2714
        %v2716 = vmul.f32 %v2606, 1.442695
        %v2717 = vpow.pop %v2716
        %v2718 = vmul.f32 %v2607, 1.442695
        %v2719 = vpow.pop %v2718
        %v2720 = vmul.f32 %v2608, 1.442695
        %v2721 = vpow.pop %v2720
        %v2722 = vmul.f32 %v2609, 1.442695
        %v2723 = vpow.pop %v2722
        %v2724 = vmul.f32 %v2610, 1.442695
        %v2725 = vpow.pop %v2724
        %v2726 = vmul.f32 %v2611, 1.442695
        %v2727 = vpow.pop %v2726
        %v2728 = vmul.f32 %v2612, 1.442695
        %v2729 = vpow.pop %v2728
        %v2730 = vmul.f32 %v2613, 1.442695
        %v2731 = vpow.pop %v2730
        %v2732 = vmul.f32 %v2614, 1.442695
        %v2733 = vpow.pop %v2732
        %v2734 = vmul.f32 %v2615, 1.442695
        %v2735 = vpow.pop %v2734
        %v2736 = vmul.f32 %v2616, 1.442695
        %v2737 = vpow.pop %v2736
        %v2738 = vmul.f32 %v2617, 1.442695
        %v2739 = vpow.pop %v2738
        %v2740 = vmul.f32 %v2618, 1.442695
        %v2741 = vpow.pop %v2740
        %v2742 = vmul.f32 %v2619, 1.442695
        %v2743 = vpow.pop %v2742
        %v2744 = vmul.f32 %v2620, 1.442695
        %v2745 = vpow.pop %v2744
        %v2746 = vmul.f32 %v2621, 1.442695
        %v2747 = vpow.pop %v2746
        %v2748 = vmul.f32 %v2622, 1.442695
        %v2749 = vpow.pop %v2748
        %v2750 = vmul.f32 %v2623, 1.442695
        %v2751 = vpow.pop %v2750
        %v2752 = vmul.f32 %v2624, 1.442695
        %v2753 = vpow.pop %v2752
        %v2754 = vmul.f32 %v2625, 1.442695
        %v2755 = vpow.pop %v2754
        %v2756 = vmul.f32 %v2626, 1.442695
        %v2757 = vpow.pop %v2756
        %v2758 = vmul.f32 %v2627, 1.442695
        %v2759 = vpow.pop %v2758
        %v2760 = vmul.f32 %v2628, 1.442695
        %v2761 = vpow.pop %v2760
        %v2762 = vmul.f32 %v2629, 1.442695
        %v2763 = vpow.pop %v2762
        %v2764 = vmul.f32 %v2630, 1.442695
        %v2765 = vpow.pop %v2764
        %v2766 = vmul.f32 %v2631, 1.442695
        %v2767 = vpow.pop %v2766
        %v2768 = vmul.f32 %v2632, 1.442695
        %v2769 = vpow.pop %v2768
        %v2770 = vmul.f32 %v2633, 1.442695
        %v2771 = vpow.pop %v2770
        %v2772 = vmul.f32 %v2634, 1.442695
        %v2773 = vpow.pop %v2772
        %v2774 = vmul.f32 %v2635, 1.442695
        %v2775 = vpow.pop %v2774
        %v2776 = vmul.f32 %v2636, 1.442695
        %v2777 = vpow.pop %v2776
        %v2778 = vmul.f32 %v2637, 1.442695
        %v2779 = vpow.pop %v2778
        %v2780 = vmul.f32 %v2638, 1.442695
        %v2781 = vpow.pop %v2780
        %v2782 = vmul.f32 %v2639, 1.442695
        %v2783 = vpow.pop %v2782
        %v2784 = vmul.f32 %v2640, 1.442695
        %v2785 = vpow.pop %v2784
        %v2786 = vmul.f32 %v2641, 1.442695
        %v2787 = vpow.pop %v2786
        %v2788 = vmul.f32 %v2642, 1.442695
        %v2789 = vpow.pop %v2788
        %v2790 = vmul.f32 %v2643, 1.442695
        %v2791 = vpow.pop %v2790
        %v2792 = vmul.f32 %v2644, 1.442695
        %v2793 = vpow.pop %v2792
        %v2794 = vmul.f32 %v2645, 1.442695
        %v2795 = vpow.pop %v2794
        %v2796 = vmul.f32 %v2646, 1.442695
        %v2797 = vpow.pop %v2796
        %v2798 = vmul.f32 %v2647, 1.442695
        %v2799 = vpow.pop %v2798
        %v2800 = vmul.f32 %v2420, %v2649
        %v2801 = vmul.f32 %v2421, %v2651
        %v2802 = vmul.f32 %v2422, %v2653
        %v2803 = vmul.f32 %v2423, %v2655
        %v2804 = vmul.f32 %v2424, %v2657
        %v2805 = vmul.f32 %v2425, %v2659
        %v2806 = vmul.f32 %v2426, %v2661
        %v2807 = vmul.f32 %v2427, %v2663
        %v2808 = vmul.f32 %v2428, %v2665
        %v2809 = vmul.f32 %v2429, %v2667
        %v2810 = vmul.f32 %v2430, %v2669
        %v2811 = vmul.f32 %v2431, %v2671
        %v2812 = vmul.f32 %v2432, %v2673
        %v2813 = vmul.f32 %v2433, %v2675
        %v2814 = vmul.f32 %v2434, %v2677
        %v2815 = vmul.f32 %v2435, %v2679
        %v2816 = vmul.f32 %v2436, %v2681
        %v2817 = vmul.f32 %v2437, %v2683
        %v2818 = vmul.f32 %v2438, %v2685
        %v2819 = vmul.f32 %v2439, %v2687
        %v2820 = vmul.f32 %v2440, %v2689
        %v2821 = vmul.f32 %v2441, %v2691
        %v2822 = vmul.f32 %v2442, %v2693
        %v2823 = vmul.f32 %v2443, %v2695
        %v2824 = vmul.f32 %v2444, %v2697
        %v2825 = vmul.f32 %v2445, %v2699
        %v2826 = vmul.f32 %v2446, %v2701
        %v2827 = vmul.f32 %v2447, %v2703
        %v2828 = vmul.f32 %v2448, %v2705
        %v2829 = vmul.f32 %v2449, %v2707
        %v2830 = vmul.f32 %v2450, %v2709
        %v2831 = vmul.f32 %v2451, %v2711
        %v2832 = vmul.f32 %v2452, %v2713
        %v2833 = vmul.f32 %v2453, %v2715
        %v2834 = vmul.f32 %v2454, %v2717
        %v2835 = vmul.f32 %v2455, %v2719
        %v2836 = vmul.f32 %v2456, %v2721
        %v2837 = vmul.f32 %v2457, %v2723
        %v2838 = vmul.f32 %v2458, %v2725
        %v2839 = vmul.f32 %v2459, %v2727
        %v2840 = vmul.f32 %v2460, %v2729
        %v2841 = vmul.f32 %v2461, %v2731
        %v2842 = vmul.f32 %v2462, %v2733
        %v2843 = vmul.f32 %v2463, %v2735
        %v2844 = vmul.f32 %v2464, %v2737
        %v2845 = vmul.f32 %v2465, %v2739
        %v2846 = vmul.f32 %v2466, %v2741
        %v2847 = vmul.f32 %v2467, %v2743
        %v2848 = vmul.f32 %v2468, %v2745
        %v2849 = vmul.f32 %v2469, %v2747
        %v2850 = vmul.f32 %v2470, %v2749
        %v2851 = vmul.f32 %v2471, %v2751
        %v2852 = vmul.f32 %v2472, %v2753
        %v2853 = vmul.f32 %v2473, %v2755
        %v2854 = vmul.f32 %v2474, %v2757
        %v2855 = vmul.f32 %v2475, %v2759
        %v2856 = vmul.f32 %v2476, %v2761
        %v2857 = vmul.f32 %v2477, %v2763
        %v2858 = vmul.f32 %v2478, %v2765
        %v2859 = vmul.f32 %v2479, %v2767
        %v2860 = vmul.f32 %v2480, %v2769
        %v2861 = vmul.f32 %v2481, %v2771
        %v2862 = vmul.f32 %v2482, %v2773
        %v2863 = vmul.f32 %v2483, %v2775
        %v2864 = vmul.f32 %v2484, %v2777
        %v2865 = vmul.f32 %v2485, %v2779
        %v2866 = vmul.f32 %v2486, %v2781
        %v2867 = vmul.f32 %v2487, %v2783
        %v2868 = vmul.f32 %v2488, %v2785
        %v2869 = vmul.f32 %v2489, %v2787
        %v2870 = vmul.f32 %v2490, %v2789
        %v2871 = vmul.f32 %v2491, %v2791
        %v2872 = vmul.f32 %v2492, %v2793
        %v2873 = vmul.f32 %v2493, %v2795
        %v2874 = vmul.f32 %v2494, %v2797
        %v2875 = vmul.f32 %v2495, %v2799
        %v2876 = vsub.f32 1.0, %v2800
        %v2877 = vsub.f32 1.0, %v2801
        %v2878 = vsub.f32 1.0, %v2802
        %v2879 = vsub.f32 1.0, %v2803
        %v2880 = vsub.f32 1.0, %v2804
        %v2881 = vsub.f32 1.0, %v2805
        %v2882 = vsub.f32 1.0, %v2806
        %v2883 = vsub.f32 1.0, %v2807
        %v2884 = vsub.f32 1.0, %v2808
        %v2885 = vsub.f32 1.0, %v2809
        %v2886 = vsub.f32 1.0, %v2810
        %v2887 = vsub.f32 1.0, %v2811
        %v2888 = vsub.f32 1.0, %v2812
        %v2889 = vsub.f32 1.0, %v2813
        %v2890 = vsub.f32 1.0, %v2814
        %v2891 = vsub.f32 1.0, %v2815
        %v2892 = vsub.f32 1.0, %v2816
        %v2893 = vsub.f32 1.0, %v2817
        %v2894 = vsub.f32 1.0, %v2818
        %v2895 = vsub.f32 1.0, %v2819
        %v2896 = vsub.f32 1.0, %v2820
        %v2897 = vsub.f32 1.0, %v2821
        %v2898 = vsub.f32 1.0, %v2822
        %v2899 = vsub.f32 1.0, %v2823
        %v2900 = vsub.f32 1.0, %v2824
        %v2901 = vsub.f32 1.0, %v2825
        %v2902 = vsub.f32 1.0, %v2826
        %v2903 = vsub.f32 1.0, %v2827
        %v2904 = vsub.f32 1.0, %v2828
        %v2905 = vsub.f32 1.0, %v2829
        %v2906 = vsub.f32 1.0, %v2830
        %v2907 = vsub.f32 1.0, %v2831
        %v2908 = vsub.f32 1.0, %v2832
        %v2909 = vsub.f32 1.0, %v2833
        %v2910 = vsub.f32 1.0, %v2834
        %v2911 = vsub.f32 1.0, %v2835
        %v2912 = vsub.f32 1.0, %v2836
        %v2913 = vsub.f32 1.0, %v2837
        %v2914 = vsub.f32 1.0, %v2838
        %v2915 = vsub.f32 1.0, %v2839
        %v2916 = vsub.f32 1.0, %v2840
        %v2917 = vsub.f32 1.0, %v2841
        %v2918 = vsub.f32 1.0, %v2842
        %v2919 = vsub.f32 1.0, %v2843
        %v2920 = vsub.f32 1.0, %v2844
        %v2921 = vsub.f32 1.0, %v2845
        %v2922 = vsub.f32 1.0, %v2846
        %v2923 = vsub.f32 1.0, %v2847
        %v2924 = vsub.f32 1.0, %v2848
        %v2925 = vsub.f32 1.0, %v2849
        %v2926 = vsub.f32 1.0, %v2850
        %v2927 = vsub.f32 1.0, %v2851
        %v2928 = vsub.f32 1.0, %v2852
        %v2929 = vsub.f32 1.0, %v2853
        %v2930 = vsub.f32 1.0, %v2854
        %v2931 = vsub.f32 1.0, %v2855
        %v2932 = vsub.f32 1.0, %v2856
        %v2933 = vsub.f32 1.0, %v2857
        %v2934 = vsub.f32 1.0, %v2858
        %v2935 = vsub.f32 1.0, %v2859
        %v2936 = vsub.f32 1.0, %v2860
        %v2937 = vsub.f32 1.0, %v2861
        %v2938 = vsub.f32 1.0, %v2862
        %v2939 = vsub.f32 1.0, %v2863
        %v2940 = vsub.f32 1.0, %v2864
        %v2941 = vsub.f32 1.0, %v2865
        %v2942 = vsub.f32 1.0, %v2866
        %v2943 = vsub.f32 1.0, %v2867
        %v2944 = vsub.f32 1.0, %v2868
        %v2945 = vsub.f32 1.0, %v2869
        %v2946 = vsub.f32 1.0, %v2870
        %v2947 = vsub.f32 1.0, %v2871
        %v2948 = vsub.f32 1.0, %v2872
        %v2949 = vsub.f32 1.0, %v2873
        %v2950 = vsub.f32 1.0, %v2874
        %v2951 = vsub.f32 1.0, %v2875
        %vm2952 = vcmp.lt.f32.partialorder %v1432, 0.0
        %vm2953 = vcmp.lt.f32.partialorder %v1433, 0.0
        %vm2954 = vcmp.lt.f32.partialorder %v1434, 0.0
        %vm2955 = vcmp.lt.f32.partialorder %v1435, 0.0
        %vm2956 = vcmp.lt.f32.partialorder %v1436, 0.0
        %vm2957 = vcmp.lt.f32.partialorder %v1437, 0.0
        %vm2958 = vcmp.lt.f32.partialorder %v1438, 0.0
        %vm2959 = vcmp.lt.f32.partialorder %v1439, 0.0
        %vm2960 = vcmp.lt.f32.partialorder %v1440, 0.0
        %vm2961 = vcmp.lt.f32.partialorder %v1441, 0.0
        %vm2962 = vcmp.lt.f32.partialorder %v1442, 0.0
        %vm2963 = vcmp.lt.f32.partialorder %v1443, 0.0
        %vm2964 = vcmp.lt.f32.partialorder %v1444, 0.0
        %vm2965 = vcmp.lt.f32.partialorder %v1445, 0.0
        %vm2966 = vcmp.lt.f32.partialorder %v1446, 0.0
        %vm2967 = vcmp.lt.f32.partialorder %v1447, 0.0
        %vm2968 = vcmp.lt.f32.partialorder %v1448, 0.0
        %vm2969 = vcmp.lt.f32.partialorder %v1449, 0.0
        %vm2970 = vcmp.lt.f32.partialorder %v1450, 0.0
        %vm2971 = vcmp.lt.f32.partialorder %v1451, 0.0
        %vm2972 = vcmp.lt.f32.partialorder %v1452, 0.0
        %vm2973 = vcmp.lt.f32.partialorder %v1453, 0.0
        %vm2974 = vcmp.lt.f32.partialorder %v1454, 0.0
        %vm2975 = vcmp.lt.f32.partialorder %v1455, 0.0
        %vm2976 = vcmp.lt.f32.partialorder %v1456, 0.0
        %vm2977 = vcmp.lt.f32.partialorder %v1457, 0.0
        %vm2978 = vcmp.lt.f32.partialorder %v1458, 0.0
        %vm2979 = vcmp.lt.f32.partialorder %v1459, 0.0
        %vm2980 = vcmp.lt.f32.partialorder %v1460, 0.0
        %vm2981 = vcmp.lt.f32.partialorder %v1461, 0.0
        %vm2982 = vcmp.lt.f32.partialorder %v1462, 0.0
        %vm2983 = vcmp.lt.f32.partialorder %v1463, 0.0
        %vm2984 = vcmp.lt.f32.partialorder %v1464, 0.0
        %vm2985 = vcmp.lt.f32.partialorder %v1465, 0.0
        %vm2986 = vcmp.lt.f32.partialorder %v1466, 0.0
        %vm2987 = vcmp.lt.f32.partialorder %v1467, 0.0
        %vm2988 = vcmp.lt.f32.partialorder %v1468, 0.0
        %vm2989 = vcmp.lt.f32.partialorder %v1469, 0.0
        %vm2990 = vcmp.lt.f32.partialorder %v1470, 0.0
        %vm2991 = vcmp.lt.f32.partialorder %v1471, 0.0
        %vm2992 = vcmp.lt.f32.partialorder %v1472, 0.0
        %vm2993 = vcmp.lt.f32.partialorder %v1473, 0.0
        %vm2994 = vcmp.lt.f32.partialorder %v1474, 0.0
        %vm2995 = vcmp.lt.f32.partialorder %v1475, 0.0
        %vm2996 = vcmp.lt.f32.partialorder %v1476, 0.0
        %vm2997 = vcmp.lt.f32.partialorder %v1477, 0.0
        %vm2998 = vcmp.lt.f32.partialorder %v1478, 0.0
        %vm2999 = vcmp.lt.f32.partialorder %v1479, 0.0
        %vm3000 = vcmp.lt.f32.partialorder %v1480, 0.0
        %vm3001 = vcmp.lt.f32.partialorder %v1481, 0.0
        %vm3002 = vcmp.lt.f32.partialorder %v1482, 0.0
        %vm3003 = vcmp.lt.f32.partialorder %v1483, 0.0
        %vm3004 = vcmp.lt.f32.partialorder %v1484, 0.0
        %vm3005 = vcmp.lt.f32.partialorder %v1485, 0.0
        %vm3006 = vcmp.lt.f32.partialorder %v1486, 0.0
        %vm3007 = vcmp.lt.f32.partialorder %v1487, 0.0
        %vm3008 = vcmp.lt.f32.partialorder %v1488, 0.0
        %vm3009 = vcmp.lt.f32.partialorder %v1489, 0.0
        %vm3010 = vcmp.lt.f32.partialorder %v1490, 0.0
        %vm3011 = vcmp.lt.f32.partialorder %v1491, 0.0
        %vm3012 = vcmp.lt.f32.partialorder %v1492, 0.0
        %vm3013 = vcmp.lt.f32.partialorder %v1493, 0.0
        %vm3014 = vcmp.lt.f32.partialorder %v1494, 0.0
        %vm3015 = vcmp.lt.f32.partialorder %v1495, 0.0
        %vm3016 = vcmp.lt.f32.partialorder %v1496, 0.0
        %vm3017 = vcmp.lt.f32.partialorder %v1497, 0.0
        %vm3018 = vcmp.lt.f32.partialorder %v1498, 0.0
        %vm3019 = vcmp.lt.f32.partialorder %v1499, 0.0
        %vm3020 = vcmp.lt.f32.partialorder %v1500, 0.0
        %vm3021 = vcmp.lt.f32.partialorder %v1501, 0.0
        %vm3022 = vcmp.lt.f32.partialorder %v1502, 0.0
        %vm3023 = vcmp.lt.f32.partialorder %v1503, 0.0
        %vm3024 = vcmp.lt.f32.partialorder %v1504, 0.0
        %vm3025 = vcmp.lt.f32.partialorder %v1505, 0.0
        %vm3026 = vcmp.lt.f32.partialorder %v1506, 0.0
        %vm3027 = vcmp.lt.f32.partialorder %v1507, 0.0
        %v3028 = vsub.f32 0.0, %v2876
        %v3029 = vsub.f32 0.0, %v2877
        %v3030 = vsub.f32 0.0, %v2878
        %v3031 = vsub.f32 0.0, %v2879
        %v3032 = vsub.f32 0.0, %v2880
        %v3033 = vsub.f32 0.0, %v2881
        %v3034 = vsub.f32 0.0, %v2882
        %v3035 = vsub.f32 0.0, %v2883
        %v3036 = vsub.f32 0.0, %v2884
        %v3037 = vsub.f32 0.0, %v2885
        %v3038 = vsub.f32 0.0, %v2886
        %v3039 = vsub.f32 0.0, %v2887
        %v3040 = vsub.f32 0.0, %v2888
        %v3041 = vsub.f32 0.0, %v2889
        %v3042 = vsub.f32 0.0, %v2890
        %v3043 = vsub.f32 0.0, %v2891
        %v3044 = vsub.f32 0.0, %v2892
        %v3045 = vsub.f32 0.0, %v2893
        %v3046 = vsub.f32 0.0, %v2894
        %v3047 = vsub.f32 0.0, %v2895
        %v3048 = vsub.f32 0.0, %v2896
        %v3049 = vsub.f32 0.0, %v2897
        %v3050 = vsub.f32 0.0, %v2898
        %v3051 = vsub.f32 0.0, %v2899
        %v3052 = vsub.f32 0.0, %v2900
        %v3053 = vsub.f32 0.0, %v2901
        %v3054 = vsub.f32 0.0, %v2902
        %v3055 = vsub.f32 0.0, %v2903
        %v3056 = vsub.f32 0.0, %v2904
        %v3057 = vsub.f32 0.0, %v2905
        %v3058 = vsub.f32 0.0, %v2906
        %v3059 = vsub.f32 0.0, %v2907
        %v3060 = vsub.f32 0.0, %v2908
        %v3061 = vsub.f32 0.0, %v2909
        %v3062 = vsub.f32 0.0, %v2910
        %v3063 = vsub.f32 0.0, %v2911
        %v3064 = vsub.f32 0.0, %v2912
        %v3065 = vsub.f32 0.0, %v2913
        %v3066 = vsub.f32 0.0, %v2914
        %v3067 = vsub.f32 0.0, %v2915
        %v3068 = vsub.f32 0.0, %v2916
        %v3069 = vsub.f32 0.0, %v2917
        %v3070 = vsub.f32 0.0, %v2918
        %v3071 = vsub.f32 0.0, %v2919
        %v3072 = vsub.f32 0.0, %v2920
        %v3073 = vsub.f32 0.0, %v2921
        %v3074 = vsub.f32 0.0, %v2922
        %v3075 = vsub.f32 0.0, %v2923
        %v3076 = vsub.f32 0.0, %v2924
        %v3077 = vsub.f32 0.0, %v2925
        %v3078 = vsub.f32 0.0, %v2926
        %v3079 = vsub.f32 0.0, %v2927
        %v3080 = vsub.f32 0.0, %v2928
        %v3081 = vsub.f32 0.0, %v2929
        %v3082 = vsub.f32 0.0, %v2930
        %v3083 = vsub.f32 0.0, %v2931
        %v3084 = vsub.f32 0.0, %v2932
        %v3085 = vsub.f32 0.0, %v2933
        %v3086 = vsub.f32 0.0, %v2934
        %v3087 = vsub.f32 0.0, %v2935
        %v3088 = vsub.f32 0.0, %v2936
        %v3089 = vsub.f32 0.0, %v2937
        %v3090 = vsub.f32 0.0, %v2938
        %v3091 = vsub.f32 0.0, %v2939
        %v3092 = vsub.f32 0.0, %v2940
        %v3093 = vsub.f32 0.0, %v2941
        %v3094 = vsub.f32 0.0, %v2942
        %v3095 = vsub.f32 0.0, %v2943
        %v3096 = vsub.f32 0.0, %v2944
        %v3097 = vsub.f32 0.0, %v2945
        %v3098 = vsub.f32 0.0, %v2946
        %v3099 = vsub.f32 0.0, %v2947
        %v3100 = vsub.f32 0.0, %v2948
        %v3101 = vsub.f32 0.0, %v2949
        %v3102 = vsub.f32 0.0, %v2950
        %v3103 = vsub.f32 0.0, %v2951
        %v3104 = vsel %vm2952, %v3028, %v2876
        %v3105 = vsel %vm2953, %v3029, %v2877
        %v3106 = vsel %vm2954, %v3030, %v2878
        %v3107 = vsel %vm2955, %v3031, %v2879
        %v3108 = vsel %vm2956, %v3032, %v2880
        %v3109 = vsel %vm2957, %v3033, %v2881
        %v3110 = vsel %vm2958, %v3034, %v2882
        %v3111 = vsel %vm2959, %v3035, %v2883
        %v3112 = vsel %vm2960, %v3036, %v2884
        %v3113 = vsel %vm2961, %v3037, %v2885
        %v3114 = vsel %vm2962, %v3038, %v2886
        %v3115 = vsel %vm2963, %v3039, %v2887
        %v3116 = vsel %vm2964, %v3040, %v2888
        %v3117 = vsel %vm2965, %v3041, %v2889
        %v3118 = vsel %vm2966, %v3042, %v2890
        %v3119 = vsel %vm2967, %v3043, %v2891
        %v3120 = vsel %vm2968, %v3044, %v2892
        %v3121 = vsel %vm2969, %v3045, %v2893
        %v3122 = vsel %vm2970, %v3046, %v2894
        %v3123 = vsel %vm2971, %v3047, %v2895
        %v3124 = vsel %vm2972, %v3048, %v2896
        %v3125 = vsel %vm2973, %v3049, %v2897
        %v3126 = vsel %vm2974, %v3050, %v2898
        %v3127 = vsel %vm2975, %v3051, %v2899
        %v3128 = vsel %vm2976, %v3052, %v2900
        %v3129 = vsel %vm2977, %v3053, %v2901
        %v3130 = vsel %vm2978, %v3054, %v2902
        %v3131 = vsel %vm2979, %v3055, %v2903
        %v3132 = vsel %vm2980, %v3056, %v2904
        %v3133 = vsel %vm2981, %v3057, %v2905
        %v3134 = vsel %vm2982, %v3058, %v2906
        %v3135 = vsel %vm2983, %v3059, %v2907
        %v3136 = vsel %vm2984, %v3060, %v2908
        %v3137 = vsel %vm2985, %v3061, %v2909
        %v3138 = vsel %vm2986, %v3062, %v2910
        %v3139 = vsel %vm2987, %v3063, %v2911
        %v3140 = vsel %vm2988, %v3064, %v2912
        %v3141 = vsel %vm2989, %v3065, %v2913
        %v3142 = vsel %vm2990, %v3066, %v2914
        %v3143 = vsel %vm2991, %v3067, %v2915
        %v3144 = vsel %vm2992, %v3068, %v2916
        %v3145 = vsel %vm2993, %v3069, %v2917
        %v3146 = vsel %vm2994, %v3070, %v2918
        %v3147 = vsel %vm2995, %v3071, %v2919
        %v3148 = vsel %vm2996, %v3072, %v2920
        %v3149 = vsel %vm2997, %v3073, %v2921
        %v3150 = vsel %vm2998, %v3074, %v2922
        %v3151 = vsel %vm2999, %v3075, %v2923
        %v3152 = vsel %vm3000, %v3076, %v2924
        %v3153 = vsel %vm3001, %v3077, %v2925
        %v3154 = vsel %vm3002, %v3078, %v2926
        %v3155 = vsel %vm3003, %v3079, %v2927
        %v3156 = vsel %vm3004, %v3080, %v2928
        %v3157 = vsel %vm3005, %v3081, %v2929
        %v3158 = vsel %vm3006, %v3082, %v2930
        %v3159 = vsel %vm3007, %v3083, %v2931
        %v3160 = vsel %vm3008, %v3084, %v2932
        %v3161 = vsel %vm3009, %v3085, %v2933
        %v3162 = vsel %vm3010, %v3086, %v2934
        %v3163 = vsel %vm3011, %v3087, %v2935
        %v3164 = vsel %vm3012, %v3088, %v2936
        %v3165 = vsel %vm3013, %v3089, %v2937
        %v3166 = vsel %vm3014, %v3090, %v2938
        %v3167 = vsel %vm3015, %v3091, %v2939
        %v3168 = vsel %vm3016, %v3092, %v2940
        %v3169 = vsel %vm3017, %v3093, %v2941
        %v3170 = vsel %vm3018, %v3094, %v2942
        %v3171 = vsel %vm3019, %v3095, %v2943
        %v3172 = vsel %vm3020, %v3096, %v2944
        %v3173 = vsel %vm3021, %v3097, %v2945
        %v3174 = vsel %vm3022, %v3098, %v2946
        %v3175 = vsel %vm3023, %v3099, %v2947
        %v3176 = vsel %vm3024, %v3100, %v2948
        %v3177 = vsel %vm3025, %v3101, %v2949
        %v3178 = vsel %vm3026, %v3102, %v2950
        %v3179 = vsel %vm3027, %v3103, %v2951
        %v3180 = vadd.f32 %v3104, 1.0
        %v3181 = vadd.f32 %v3105, 1.0
        %v3182 = vadd.f32 %v3106, 1.0
        %v3183 = vadd.f32 %v3107, 1.0
        %v3184 = vadd.f32 %v3108, 1.0
        %v3185 = vadd.f32 %v3109, 1.0
        %v3186 = vadd.f32 %v3110, 1.0
        %v3187 = vadd.f32 %v3111, 1.0
        %v3188 = vadd.f32 %v3112, 1.0
        %v3189 = vadd.f32 %v3113, 1.0
        %v3190 = vadd.f32 %v3114, 1.0
        %v3191 = vadd.f32 %v3115, 1.0
        %v3192 = vadd.f32 %v3116, 1.0
        %v3193 = vadd.f32 %v3117, 1.0
        %v3194 = vadd.f32 %v3118, 1.0
        %v3195 = vadd.f32 %v3119, 1.0
        %v3196 = vadd.f32 %v3120, 1.0
        %v3197 = vadd.f32 %v3121, 1.0
        %v3198 = vadd.f32 %v3122, 1.0
        %v3199 = vadd.f32 %v3123, 1.0
        %v3200 = vadd.f32 %v3124, 1.0
        %v3201 = vadd.f32 %v3125, 1.0
        %v3202 = vadd.f32 %v3126, 1.0
        %v3203 = vadd.f32 %v3127, 1.0
        %v3204 = vadd.f32 %v3128, 1.0
        %v3205 = vadd.f32 %v3129, 1.0
        %v3206 = vadd.f32 %v3130, 1.0
        %v3207 = vadd.f32 %v3131, 1.0
        %v3208 = vadd.f32 %v3132, 1.0
        %v3209 = vadd.f32 %v3133, 1.0
        %v3210 = vadd.f32 %v3134, 1.0
        %v3211 = vadd.f32 %v3135, 1.0
        %v3212 = vadd.f32 %v3136, 1.0
        %v3213 = vadd.f32 %v3137, 1.0
        %v3214 = vadd.f32 %v3138, 1.0
        %v3215 = vadd.f32 %v3139, 1.0
        %v3216 = vadd.f32 %v3140, 1.0
        %v3217 = vadd.f32 %v3141, 1.0
        %v3218 = vadd.f32 %v3142, 1.0
        %v3219 = vadd.f32 %v3143, 1.0
        %v3220 = vadd.f32 %v3144, 1.0
        %v3221 = vadd.f32 %v3145, 1.0
        %v3222 = vadd.f32 %v3146, 1.0
        %v3223 = vadd.f32 %v3147, 1.0
        %v3224 = vadd.f32 %v3148, 1.0
        %v3225 = vadd.f32 %v3149, 1.0
        %v3226 = vadd.f32 %v3150, 1.0
        %v3227 = vadd.f32 %v3151, 1.0
        %v3228 = vadd.f32 %v3152, 1.0
        %v3229 = vadd.f32 %v3153, 1.0
        %v3230 = vadd.f32 %v3154, 1.0
        %v3231 = vadd.f32 %v3155, 1.0
        %v3232 = vadd.f32 %v3156, 1.0
        %v3233 = vadd.f32 %v3157, 1.0
        %v3234 = vadd.f32 %v3158, 1.0
        %v3235 = vadd.f32 %v3159, 1.0
        %v3236 = vadd.f32 %v3160, 1.0
        %v3237 = vadd.f32 %v3161, 1.0
        %v3238 = vadd.f32 %v3162, 1.0
        %v3239 = vadd.f32 %v3163, 1.0
        %v3240 = vadd.f32 %v3164, 1.0
        %v3241 = vadd.f32 %v3165, 1.0
        %v3242 = vadd.f32 %v3166, 1.0
        %v3243 = vadd.f32 %v3167, 1.0
        %v3244 = vadd.f32 %v3168, 1.0
        %v3245 = vadd.f32 %v3169, 1.0
        %v3246 = vadd.f32 %v3170, 1.0
        %v3247 = vadd.f32 %v3171, 1.0
        %v3248 = vadd.f32 %v3172, 1.0
        %v3249 = vadd.f32 %v3173, 1.0
        %v3250 = vadd.f32 %v3174, 1.0
        %v3251 = vadd.f32 %v3175, 1.0
        %v3252 = vadd.f32 %v3176, 1.0
        %v3253 = vadd.f32 %v3177, 1.0
        %v3254 = vadd.f32 %v3178, 1.0
        %v3255 = vadd.f32 %v3179, 1.0
        %v3256 = vmul.f32 %v1356, %v3180
        %v3257 = vmul.f32 %v1357, %v3181
        %v3258 = vmul.f32 %v1358, %v3182
        %v3259 = vmul.f32 %v1359, %v3183
        %v3260 = vmul.f32 %v1360, %v3184
        %v3261 = vmul.f32 %v1361, %v3185
        %v3262 = vmul.f32 %v1362, %v3186
        %v3263 = vmul.f32 %v1363, %v3187
        %v3264 = vmul.f32 %v1364, %v3188
        %v3265 = vmul.f32 %v1365, %v3189
        %v3266 = vmul.f32 %v1366, %v3190
        %v3267 = vmul.f32 %v1367, %v3191
        %v3268 = vmul.f32 %v1368, %v3192
        %v3269 = vmul.f32 %v1369, %v3193
        %v3270 = vmul.f32 %v1370, %v3194
        %v3271 = vmul.f32 %v1371, %v3195
        %v3272 = vmul.f32 %v1372, %v3196
        %v3273 = vmul.f32 %v1373, %v3197
        %v3274 = vmul.f32 %v1374, %v3198
        %v3275 = vmul.f32 %v1375, %v3199
        %v3276 = vmul.f32 %v1376, %v3200
        %v3277 = vmul.f32 %v1377, %v3201
        %v3278 = vmul.f32 %v1378, %v3202
        %v3279 = vmul.f32 %v1379, %v3203
        %v3280 = vmul.f32 %v1380, %v3204
        %v3281 = vmul.f32 %v1381, %v3205
        %v3282 = vmul.f32 %v1382, %v3206
        %v3283 = vmul.f32 %v1383, %v3207
        %v3284 = vmul.f32 %v1384, %v3208
        %v3285 = vmul.f32 %v1385, %v3209
        %v3286 = vmul.f32 %v1386, %v3210
        %v3287 = vmul.f32 %v1387, %v3211
        %v3288 = vmul.f32 %v1388, %v3212
        %v3289 = vmul.f32 %v1389, %v3213
        %v3290 = vmul.f32 %v1390, %v3214
        %v3291 = vmul.f32 %v1391, %v3215
        %v3292 = vmul.f32 %v1392, %v3216
        %v3293 = vmul.f32 %v1393, %v3217
        %v3294 = vmul.f32 %v1394, %v3218
        %v3295 = vmul.f32 %v1395, %v3219
        %v3296 = vmul.f32 %v1396, %v3220
        %v3297 = vmul.f32 %v1397, %v3221
        %v3298 = vmul.f32 %v1398, %v3222
        %v3299 = vmul.f32 %v1399, %v3223
        %v3300 = vmul.f32 %v1400, %v3224
        %v3301 = vmul.f32 %v1401, %v3225
        %v3302 = vmul.f32 %v1402, %v3226
        %v3303 = vmul.f32 %v1403, %v3227
        %v3304 = vmul.f32 %v1404, %v3228
        %v3305 = vmul.f32 %v1405, %v3229
        %v3306 = vmul.f32 %v1406, %v3230
        %v3307 = vmul.f32 %v1407, %v3231
        %v3308 = vmul.f32 %v1408, %v3232
        %v3309 = vmul.f32 %v1409, %v3233
        %v3310 = vmul.f32 %v1410, %v3234
        %v3311 = vmul.f32 %v1411, %v3235
        %v3312 = vmul.f32 %v1412, %v3236
        %v3313 = vmul.f32 %v1413, %v3237
        %v3314 = vmul.f32 %v1414, %v3238
        %v3315 = vmul.f32 %v1415, %v3239
        %v3316 = vmul.f32 %v1416, %v3240
        %v3317 = vmul.f32 %v1417, %v3241
        %v3318 = vmul.f32 %v1418, %v3242
        %v3319 = vmul.f32 %v1419, %v3243
        %v3320 = vmul.f32 %v1420, %v3244
        %v3321 = vmul.f32 %v1421, %v3245
        %v3322 = vmul.f32 %v1422, %v3246
        %v3323 = vmul.f32 %v1423, %v3247
        %v3324 = vmul.f32 %v1424, %v3248
        %v3325 = vmul.f32 %v1425, %v3249
        %v3326 = vmul.f32 %v1426, %v3250
        %v3327 = vmul.f32 %v1427, %v3251
        %v3328 = vmul.f32 %v1428, %v3252
        %v3329 = vmul.f32 %v1429, %v3253
        %v3330 = vmul.f32 %v1430, %v3254
        %v3331 = vmul.f32 %v1431, %v3255
        %v3332 = vld [vmem:[#allocation9] sm:$0xff]
        %v3333 = vld [vmem:[#allocation9 + $0x8] sm:$0xff]
        %v3334 = vld [vmem:[#allocation9 + $0x10] sm:$0xff]
        %v3335 = vld [vmem:[#allocation9 + $0x18] sm:$0xff]
        %v3336 = vld [vmem:[#allocation9 + $0x20] sm:$0xff]
        %v3337 = vld [vmem:[#allocation9 + $0x28] sm:$0xff]
        %v3338 = vld [vmem:[#allocation9 + $0x30] sm:$0xff]
        %v3339 = vld [vmem:[#allocation9 + $0x38] sm:$0xff]
        %v3340 = vld [vmem:[#allocation9 + $0x40] sm:$0xff]
        %v3341 = vld [vmem:[#allocation9 + $0x48] sm:$0xff]
        %v3342 = vld [vmem:[#allocation9 + $0x50] sm:$0xff]
        %v3343 = vld [vmem:[#allocation9 + $0x58] sm:$0xff]
        %v3344 = vld [vmem:[#allocation9 + $0x60] sm:$0xff]
        %v3345 = vld [vmem:[#allocation9 + $0x68] sm:$0xff]
        %v3346 = vld [vmem:[#allocation9 + $0x70] sm:$0xff]
        %v3347 = vld [vmem:[#allocation9 + $0x78] sm:$0xff]
        %v3348 = vld [vmem:[#allocation9 + $0x80] sm:$0xff]
        %v3349 = vld [vmem:[#allocation9 + $0x88] sm:$0xff]
        %v3350 = vld [vmem:[#allocation9 + $0x90] sm:$0xff]
        %v3351 = vld [vmem:[#allocation9 + $0x98] sm:$0xff]
        %v3352 = vld [vmem:[#allocation9 + $0xa0] sm:$0xff]
        %v3353 = vld [vmem:[#allocation9 + $0xa8] sm:$0xff]
        %v3354 = vld [vmem:[#allocation9 + $0xb0] sm:$0xff]
        %v3355 = vld [vmem:[#allocation9 + $0xb8] sm:$0xff]
        %v3356 = vld [vmem:[#allocation9 + $0xc0] sm:$0xff]
        %v3357 = vld [vmem:[#allocation9 + $0xc8] sm:$0xff]
        %v3358 = vld [vmem:[#allocation9 + $0xd0] sm:$0xff]
        %v3359 = vld [vmem:[#allocation9 + $0xd8] sm:$0xff]
        %v3360 = vld [vmem:[#allocation9 + $0xe0] sm:$0xff]
        %v3361 = vld [vmem:[#allocation9 + $0xe8] sm:$0xff]
        %v3362 = vld [vmem:[#allocation9 + $0xf0] sm:$0xff]
        %v3363 = vld [vmem:[#allocation9 + $0xf8] sm:$0xff]
        %v3364 = vld [vmem:[#allocation9 + $0x100] sm:$0xff]
        %v3365 = vld [vmem:[#allocation9 + $0x108] sm:$0xff]
        %v3366 = vld [vmem:[#allocation9 + $0x110] sm:$0xff]
        %v3367 = vld [vmem:[#allocation9 + $0x118] sm:$0xff]
        %v3368 = vld [vmem:[#allocation9 + $0x120] sm:$0xff]
        %v3369 = vld [vmem:[#allocation9 + $0x128] sm:$0xff]
        %v3370 = vld [vmem:[#allocation9 + $0x130] sm:$0xff]
        %v3371 = vld [vmem:[#allocation9 + $0x138] sm:$0xff]
        %v3372 = vld [vmem:[#allocation9 + $0x140] sm:$0xff]
        %v3373 = vld [vmem:[#allocation9 + $0x148] sm:$0xff]
        %v3374 = vld [vmem:[#allocation9 + $0x150] sm:$0xff]
        %v3375 = vld [vmem:[#allocation9 + $0x158] sm:$0xff]
        %v3376 = vld [vmem:[#allocation9 + $0x160] sm:$0xff]
        %v3377 = vld [vmem:[#allocation9 + $0x168] sm:$0xff]
        %v3378 = vld [vmem:[#allocation9 + $0x170] sm:$0xff]
        %v3379 = vld [vmem:[#allocation9 + $0x178] sm:$0xff]
        %v3380 = vld [vmem:[#allocation9 + $0x180] sm:$0xff]
        %v3381 = vld [vmem:[#allocation9 + $0x188] sm:$0xff]
        %v3382 = vld [vmem:[#allocation9 + $0x190] sm:$0xff]
        %v3383 = vld [vmem:[#allocation9 + $0x198] sm:$0xff]
        %v3384 = vld [vmem:[#allocation9 + $0x1a0] sm:$0xff]
        %v3385 = vld [vmem:[#allocation9 + $0x1a8] sm:$0xff]
        %v3386 = vld [vmem:[#allocation9 + $0x1b0] sm:$0xff]
        %v3387 = vld [vmem:[#allocation9 + $0x1b8] sm:$0xff]
        %v3388 = vld [vmem:[#allocation9 + $0x1c0] sm:$0xff]
        %v3389 = vld [vmem:[#allocation9 + $0x1c8] sm:$0xff]
        %v3390 = vld [vmem:[#allocation9 + $0x1d0] sm:$0xff]
        %v3391 = vld [vmem:[#allocation9 + $0x1d8] sm:$0xff]
        %v3392 = vld [vmem:[#allocation9 + $0x1e0] sm:$0xff]
        %v3393 = vld [vmem:[#allocation9 + $0x1e8] sm:$0xff]
        %v3394 = vld [vmem:[#allocation9 + $0x1f0] sm:$0xff]
        %v3395 = vld [vmem:[#allocation9 + $0x1f8] sm:$0xff]
        %v3396 = vld [vmem:[#allocation2] sm:$0xff]
        %v3397 = vld [vmem:[#allocation2 + $0x8] sm:$0xff]
        %v3398 = vld [vmem:[#allocation2 + $0x10] sm:$0xff]
        %v3399 = vld [vmem:[#allocation2 + $0x18] sm:$0xff]
        %v3400 = vld [vmem:[#allocation2 + $0x20] sm:$0xff]
        %v3401 = vld [vmem:[#allocation2 + $0x28] sm:$0xff]
        %v3402 = vld [vmem:[#allocation2 + $0x30] sm:$0xff]
        %v3403 = vld [vmem:[#allocation2 + $0x38] sm:$0xff]
        %v3404 = vld [vmem:[#allocation2 + $0x40] sm:$0xff]
        %v3405 = vld [vmem:[#allocation2 + $0x48] sm:$0xff]
        %v3406 = vld [vmem:[#allocation2 + $0x50] sm:$0xff]
        %v3407 = vld [vmem:[#allocation2 + $0x58] sm:$0xff]
        %v3408 = vld [vmem:[#allocation2 + $0x60] sm:$0xff]
        %v3409 = vld [vmem:[#allocation2 + $0x68] sm:$0xff]
        %v3410 = vld [vmem:[#allocation2 + $0x70] sm:$0xff]
        %v3411 = vld [vmem:[#allocation2 + $0x78] sm:$0xff]
        %v3412 = vld [vmem:[#allocation2 + $0x80] sm:$0xff]
        %v3413 = vld [vmem:[#allocation2 + $0x88] sm:$0xff]
        %v3414 = vld [vmem:[#allocation2 + $0x90] sm:$0xff]
        %v3415 = vld [vmem:[#allocation2 + $0x98] sm:$0xff]
        %v3416 = vld [vmem:[#allocation2 + $0xa0] sm:$0xff]
        %v3417 = vld [vmem:[#allocation2 + $0xa8] sm:$0xff]
        %v3418 = vld [vmem:[#allocation2 + $0xb0] sm:$0xff]
        %v3419 = vld [vmem:[#allocation2 + $0xb8] sm:$0xff]
        %v3420 = vld [vmem:[#allocation2 + $0xc0] sm:$0xff]
        %v3421 = vld [vmem:[#allocation2 + $0xc8] sm:$0xff]
        %v3422 = vld [vmem:[#allocation2 + $0xd0] sm:$0xff]
        %v3423 = vld [vmem:[#allocation2 + $0xd8] sm:$0xff]
        %v3424 = vld [vmem:[#allocation2 + $0xe0] sm:$0xff]
        %v3425 = vld [vmem:[#allocation2 + $0xe8] sm:$0xff]
        %v3426 = vld [vmem:[#allocation2 + $0xf0] sm:$0xff]
        %v3427 = vld [vmem:[#allocation2 + $0xf8] sm:$0xff]
        %v3428 = vld [vmem:[#allocation2 + $0x100] sm:$0xff]
        %v3429 = vld [vmem:[#allocation2 + $0x108] sm:$0xff]
        %v3430 = vld [vmem:[#allocation2 + $0x110] sm:$0xff]
        %v3431 = vld [vmem:[#allocation2 + $0x118] sm:$0xff]
        %v3432 = vld [vmem:[#allocation2 + $0x120] sm:$0xff]
        %v3433 = vld [vmem:[#allocation2 + $0x128] sm:$0xff]
        %v3434 = vpack.c.bf16 %v3260, %v3256
        %v3435 = vpack.c.bf16 %v3261, %v3257
        %v3436 = vpack.c.bf16 %v3262, %v3258
        %v3437 = vpack.c.bf16 %v3263, %v3259
        %v3438 = vpack.c.bf16 %v3268, %v3264
        %v3439 = vpack.c.bf16 %v3269, %v3265
        %v3440 = vpack.c.bf16 %v3270, %v3266
        %v3441 = vpack.c.bf16 %v3271, %v3267
        %v3442 = vpack.c.bf16 %v3276, %v3272
        %v3443 = vpack.c.bf16 %v3277, %v3273
        %v3444 = vpack.c.bf16 %v3278, %v3274
        %v3445 = vpack.c.bf16 %v3279, %v3275
        %v3446 = vpack.c.bf16 %v3284, %v3280
        %v3447 = vpack.c.bf16 %v3285, %v3281
        %v3448 = vpack.c.bf16 %v3286, %v3282
        %v3449 = vpack.c.bf16 %v3287, %v3283
        %v3450 = vpack.c.bf16 %v3292, %v3288
        %v3451 = vpack.c.bf16 %v3293, %v3289
        %v3452 = vpack.c.bf16 %v3294, %v3290
        %v3453 = vpack.c.bf16 %v3295, %v3291
        %v3454 = vpack.c.bf16 %v3300, %v3296
        %v3455 = vpack.c.bf16 %v3301, %v3297
        %v3456 = vpack.c.bf16 %v3302, %v3298
        %v3457 = vpack.c.bf16 %v3303, %v3299
        %v3458 = vpack.c.bf16 %v3308, %v3304
        %v3459 = vpack.c.bf16 %v3309, %v3305
        %v3460 = vpack.c.bf16 %v3310, %v3306
        %v3461 = vpack.c.bf16 %v3311, %v3307
        %v3462 = vpack.c.bf16 %v3316, %v3312
        %v3463 = vpack.c.bf16 %v3317, %v3313
        %v3464 = vpack.c.bf16 %v3318, %v3314
        %v3465 = vpack.c.bf16 %v3319, %v3315
        %v3466 = vpack.c.bf16 %v3324, %v3320
        %v3467 = vpack.c.bf16 %v3325, %v3321
        %v3468 = vpack.c.bf16 %v3326, %v3322
        %v3469 = vpack.c.bf16 %v3327, %v3323
        %v3470 = vpack.c.bf16 %v3328, %v3328
        %v3471 = vpack.c.bf16 %v3329, %v3329
        %v3472 = vpack.c.bf16 %v3330, %v3330
        %v3473 = vpack.c.bf16 %v3331, %v3331
        %v3538 = vunpack.c.l.b16 %v3332
        %v3539 = vunpack.c.h.b16 %v3332
        %v3540 = vunpack.c.l.b16 %v3333
        %v3541 = vunpack.c.h.b16 %v3333
        %v3542 = vunpack.c.l.b16 %v3334
        %v3543 = vunpack.c.h.b16 %v3334
        %v3544 = vunpack.c.l.b16 %v3335
        %v3545 = vunpack.c.h.b16 %v3335
        %v3546 = vunpack.c.l.b16 %v3336
        %v3547 = vunpack.c.h.b16 %v3336
        %v3548 = vunpack.c.l.b16 %v3337
        %v3549 = vunpack.c.h.b16 %v3337
        %v3550 = vunpack.c.l.b16 %v3338
        %v3551 = vunpack.c.h.b16 %v3338
        %v3552 = vunpack.c.l.b16 %v3339
        %v3553 = vunpack.c.h.b16 %v3339
        %v3554 = vunpack.c.l.b16 %v3340
        %v3555 = vunpack.c.h.b16 %v3340
        %v3556 = vunpack.c.l.b16 %v3341
        %v3557 = vunpack.c.h.b16 %v3341
        %v3558 = vunpack.c.l.b16 %v3342
        %v3559 = vunpack.c.h.b16 %v3342
        %v3560 = vunpack.c.l.b16 %v3343
        %v3561 = vunpack.c.h.b16 %v3343
        %v3562 = vunpack.c.l.b16 %v3344
        %v3563 = vunpack.c.h.b16 %v3344
        %v3564 = vunpack.c.l.b16 %v3345
        %v3565 = vunpack.c.h.b16 %v3345
        %v3566 = vunpack.c.l.b16 %v3346
        %v3567 = vunpack.c.h.b16 %v3346
        %v3568 = vunpack.c.l.b16 %v3347
        %v3569 = vunpack.c.h.b16 %v3347
        %v3570 = vunpack.c.l.b16 %v3348
        %v3571 = vunpack.c.h.b16 %v3348
        %v3572 = vunpack.c.l.b16 %v3349
        %v3573 = vunpack.c.h.b16 %v3349
        %v3574 = vunpack.c.l.b16 %v3350
        %v3575 = vunpack.c.h.b16 %v3350
        %v3576 = vunpack.c.l.b16 %v3351
        %v3577 = vunpack.c.h.b16 %v3351
        %v3578 = vunpack.c.l.b16 %v3352
        %v3579 = vunpack.c.h.b16 %v3352
        %v3580 = vunpack.c.l.b16 %v3353
        %v3581 = vunpack.c.h.b16 %v3353
        %v3582 = vunpack.c.l.b16 %v3354
        %v3583 = vunpack.c.h.b16 %v3354
        %v3584 = vunpack.c.l.b16 %v3355
        %v3585 = vunpack.c.h.b16 %v3355
        %v3586 = vunpack.c.l.b16 %v3356
        %v3587 = vunpack.c.h.b16 %v3356
        %v3588 = vunpack.c.l.b16 %v3357
        %v3589 = vunpack.c.h.b16 %v3357
        %v3590 = vunpack.c.l.b16 %v3358
        %v3591 = vunpack.c.h.b16 %v3358
        %v3592 = vunpack.c.l.b16 %v3359
        %v3593 = vunpack.c.h.b16 %v3359
        %v3594 = vunpack.c.l.b16 %v3360
        %v3595 = vunpack.c.h.b16 %v3360
        %v3596 = vunpack.c.l.b16 %v3361
        %v3597 = vunpack.c.h.b16 %v3361
        %v3598 = vunpack.c.l.b16 %v3362
        %v3599 = vunpack.c.h.b16 %v3362
        %v3600 = vunpack.c.l.b16 %v3363
        %v3601 = vunpack.c.h.b16 %v3363
        %v3602 = vunpack.c.l.b16 %v3364
        %v3603 = vunpack.c.h.b16 %v3364
        %v3604 = vunpack.c.l.b16 %v3365
        %v3605 = vunpack.c.h.b16 %v3365
        %v3606 = vunpack.c.l.b16 %v3366
        %v3607 = vunpack.c.h.b16 %v3366
        %v3608 = vunpack.c.l.b16 %v3367
        %v3609 = vunpack.c.h.b16 %v3367
        %v3610 = vunpack.c.l.b16 %v3368
        %v3611 = vunpack.c.h.b16 %v3368
        %v3612 = vunpack.c.l.b16 %v3369
        %v3613 = vunpack.c.h.b16 %v3369
        %v3614 = vunpack.c.l.b16 %v3370
        %v3615 = vunpack.c.h.b16 %v3370
        %v3616 = vunpack.c.l.b16 %v3371
        %v3617 = vunpack.c.h.b16 %v3371
        %v3618 = vunpack.c.l.b16 %v3372
        %v3619 = vunpack.c.h.b16 %v3372
        %v3620 = vunpack.c.l.b16 %v3373
        %v3621 = vunpack.c.h.b16 %v3373
        %v3622 = vunpack.c.l.b16 %v3374
        %v3623 = vunpack.c.h.b16 %v3374
        %v3624 = vunpack.c.l.b16 %v3375
        %v3625 = vunpack.c.h.b16 %v3375
        %v3626 = vunpack.c.l.b16 %v3376
        %v3627 = vunpack.c.h.b16 %v3376
        %v3628 = vunpack.c.l.b16 %v3377
        %v3629 = vunpack.c.h.b16 %v3377
        %v3630 = vunpack.c.l.b16 %v3378
        %v3631 = vunpack.c.h.b16 %v3378
        %v3632 = vunpack.c.l.b16 %v3379
        %v3633 = vunpack.c.h.b16 %v3379
        %v3634 = vunpack.c.l.b16 %v3380
        %v3635 = vunpack.c.h.b16 %v3380
        %v3636 = vunpack.c.l.b16 %v3381
        %v3637 = vunpack.c.h.b16 %v3381
        %v3638 = vunpack.c.l.b16 %v3382
        %v3639 = vunpack.c.h.b16 %v3382
        %v3640 = vunpack.c.l.b16 %v3383
        %v3641 = vunpack.c.h.b16 %v3383
        %v3642 = vunpack.c.l.b16 %v3384
        %v3643 = vunpack.c.h.b16 %v3384
        %v3644 = vunpack.c.l.b16 %v3385
        %v3645 = vunpack.c.h.b16 %v3385
        %v3646 = vunpack.c.l.b16 %v3386
        %v3647 = vunpack.c.h.b16 %v3386
        %v3648 = vunpack.c.l.b16 %v3387
        %v3649 = vunpack.c.h.b16 %v3387
        %v3650 = vunpack.c.l.b16 %v3388
        %v3651 = vunpack.c.h.b16 %v3388
        %v3652 = vunpack.c.l.b16 %v3389
        %v3653 = vunpack.c.h.b16 %v3389
        %v3654 = vunpack.c.l.b16 %v3390
        %v3655 = vunpack.c.h.b16 %v3390
        %v3656 = vunpack.c.l.b16 %v3391
        %v3657 = vunpack.c.h.b16 %v3391
        %v3658 = vunpack.c.l.b16 %v3392
        %v3659 = vunpack.c.h.b16 %v3392
        %v3660 = vunpack.c.l.b16 %v3393
        %v3661 = vunpack.c.h.b16 %v3393
        %v3662 = vunpack.c.l.b16 %v3394
        %v3663 = vunpack.c.h.b16 %v3394
        %v3664 = vunpack.c.l.b16 %v3395
        %v3665 = vunpack.c.h.b16 %v3395
        %v3666 = vpack.c.b16 %v3540, %v3538
        %v3667 = vpack.c.b16 %v3541, %v3539
        %v3668 = vpack.c.b16 %v3544, %v3542
        %v3669 = vpack.c.b16 %v3545, %v3543
        %v3670 = vpack.c.b16 %v3548, %v3546
        %v3671 = vpack.c.b16 %v3549, %v3547
        %v3672 = vpack.c.b16 %v3552, %v3550
        %v3673 = vpack.c.b16 %v3553, %v3551
        %v3674 = vpack.c.b16 %v3556, %v3554
        %v3675 = vpack.c.b16 %v3557, %v3555
        %v3676 = vpack.c.b16 %v3560, %v3558
        %v3677 = vpack.c.b16 %v3561, %v3559
        %v3678 = vpack.c.b16 %v3564, %v3562
        %v3679 = vpack.c.b16 %v3565, %v3563
        %v3680 = vpack.c.b16 %v3568, %v3566
        %v3681 = vpack.c.b16 %v3569, %v3567
        %v3682 = vpack.c.b16 %v3572, %v3570
        %v3683 = vpack.c.b16 %v3573, %v3571
        %v3684 = vpack.c.b16 %v3576, %v3574
        %v3685 = vpack.c.b16 %v3577, %v3575
        %v3686 = vpack.c.b16 %v3580, %v3578
        %v3687 = vpack.c.b16 %v3581, %v3579
        %v3688 = vpack.c.b16 %v3584, %v3582
        %v3689 = vpack.c.b16 %v3585, %v3583
        %v3690 = vpack.c.b16 %v3588, %v3586
        %v3691 = vpack.c.b16 %v3589, %v3587
        %v3692 = vpack.c.b16 %v3592, %v3590
        %v3693 = vpack.c.b16 %v3593, %v3591
        %v3694 = vpack.c.b16 %v3596, %v3594
        %v3695 = vpack.c.b16 %v3597, %v3595
        %v3696 = vpack.c.b16 %v3600, %v3598
        %v3697 = vpack.c.b16 %v3601, %v3599
        %v3698 = vpack.c.b16 %v3604, %v3602
        %v3699 = vpack.c.b16 %v3605, %v3603
        %v3700 = vpack.c.b16 %v3608, %v3606
        %v3701 = vpack.c.b16 %v3609, %v3607
        %v3702 = vpack.c.b16 %v3612, %v3610
        %v3703 = vpack.c.b16 %v3613, %v3611
        %v3704 = vpack.c.b16 %v3616, %v3614
        %v3705 = vpack.c.b16 %v3617, %v3615
        %v3706 = vpack.c.b16 %v3620, %v3618
        %v3707 = vpack.c.b16 %v3621, %v3619
        %v3708 = vpack.c.b16 %v3624, %v3622
        %v3709 = vpack.c.b16 %v3625, %v3623
        %v3710 = vpack.c.b16 %v3628, %v3626
        %v3711 = vpack.c.b16 %v3629, %v3627
        %v3712 = vpack.c.b16 %v3632, %v3630
        %v3713 = vpack.c.b16 %v3633, %v3631
        %v3714 = vpack.c.b16 %v3636, %v3634
        %v3715 = vpack.c.b16 %v3637, %v3635
        %v3716 = vpack.c.b16 %v3640, %v3638
        %v3717 = vpack.c.b16 %v3641, %v3639
        %v3718 = vpack.c.b16 %v3644, %v3642
        %v3719 = vpack.c.b16 %v3645, %v3643
        %v3720 = vpack.c.b16 %v3648, %v3646
        %v3721 = vpack.c.b16 %v3649, %v3647
        %v3722 = vpack.c.b16 %v3652, %v3650
        %v3723 = vpack.c.b16 %v3653, %v3651
        %v3724 = vpack.c.b16 %v3656, %v3654
        %v3725 = vpack.c.b16 %v3657, %v3655
        %v3726 = vpack.c.b16 %v3660, %v3658
        %v3727 = vpack.c.b16 %v3661, %v3659
        %v3728 = vpack.c.b16 %v3664, %v3662
        %v3729 = vpack.c.b16 %v3665, %v3663
        %3794 = vmatpush.bf16.msra.mxu0 %v3680
        %3795 = vmatpush.bf16.msra.mxu0 %v3678
        %3796 = vmatpush.bf16.msra.mxu0 %v3676
        %3797 = vmatpush.bf16.msra.mxu0 %v3674
        %3798 = vmatpush.bf16.msra.mxu0 %v3672
        %3799 = vmatpush.bf16.msra.mxu0 %v3670
        %3800 = vmatpush.bf16.msra.mxu0 %v3668
        %3801 = vmatpush.bf16.msra.mxu0 %v3666
        %3802 = vmatmul.bf16.gmra.mxu0 %v3434
        %v3803 = vpop.f32.mrf.mxu0
        %v3804 = vadd.f32 0.0, %v3803
        %v3805 = vpop.f32.mrf.mxu0
        %v3806 = vadd.f32 0.0, %v3805
        %3807 = vmatmul.bf16.gmra.mxu0 %v3438
        %v3808 = vpop.f32.mrf.mxu0
        %v3809 = vadd.f32 0.0, %v3808
        %v3810 = vpop.f32.mrf.mxu0
        %v3811 = vadd.f32 0.0, %v3810
        %3812 = vmatmul.bf16.gmra.mxu0 %v3442
        %v3813 = vpop.f32.mrf.mxu0
        %v3814 = vadd.f32 0.0, %v3813
        %v3815 = vpop.f32.mrf.mxu0
        %v3816 = vadd.f32 0.0, %v3815
        %3817 = vmatmul.bf16.gmra.mxu0 %v3446
        %v3818 = vpop.f32.mrf.mxu0
        %v3819 = vadd.f32 0.0, %v3818
        %v3820 = vpop.f32.mrf.mxu0
        %v3821 = vadd.f32 0.0, %v3820
        %3822 = vmatmul.bf16.gmra.mxu0 %v3450
        %v3823 = vpop.f32.mrf.mxu0
        %v3824 = vadd.f32 0.0, %v3823
        %v3825 = vpop.f32.mrf.mxu0
        %v3826 = vadd.f32 0.0, %v3825
        %3827 = vmatmul.bf16.gmra.mxu0 %v3454
        %v3828 = vpop.f32.mrf.mxu0
        %v3829 = vadd.f32 0.0, %v3828
        %v3830 = vpop.f32.mrf.mxu0
        %v3831 = vadd.f32 0.0, %v3830
        %3832 = vmatmul.bf16.gmra.mxu0 %v3458
        %v3833 = vpop.f32.mrf.mxu0
        %v3834 = vadd.f32 0.0, %v3833
        %v3835 = vpop.f32.mrf.mxu0
        %v3836 = vadd.f32 0.0, %v3835
        %3837 = vmatmul.bf16.gmra.mxu0 %v3462
        %v3838 = vpop.f32.mrf.mxu0
        %v3839 = vadd.f32 0.0, %v3838
        %v3840 = vpop.f32.mrf.mxu0
        %v3841 = vadd.f32 0.0, %v3840
        %3842 = vmatmul.bf16.gmra.mxu0 %v3466
        %v3843 = vpop.f32.mrf.mxu0
        %v3844 = vadd.f32 0.0, %v3843
        %v3845 = vpop.f32.mrf.mxu0
        %v3846 = vadd.f32 0.0, %v3845
        %3847 = vmatmul.bf16.gmra.mxu0 %v3470
        %v3848 = vpop.f32.mrf.mxu0
        %v3849 = vadd.f32 0.0, %v3848
        %v3850 = vpop.f32.mrf.mxu0
        %3851 = vdwg.mxu0
        %3852 = vmatpush.bf16.msra.mxu0 %v3696
        %3853 = vmatpush.bf16.msra.mxu0 %v3694
        %3854 = vmatpush.bf16.msra.mxu0 %v3692
        %3855 = vmatpush.bf16.msra.mxu0 %v3690
        %3856 = vmatpush.bf16.msra.mxu0 %v3688
        %3857 = vmatpush.bf16.msra.mxu0 %v3686
        %3858 = vmatpush.bf16.msra.mxu0 %v3684
        %3859 = vmatpush.bf16.msra.mxu0 %v3682
        %3860 = vmatmul.bf16.gmra.mxu0 %v3435
        %v3861 = vpop.f32.mrf.mxu0
        %v3862 = vadd.f32 %v3804, %v3861
        %v3863 = vpop.f32.mrf.mxu0
        %v3864 = vadd.f32 %v3806, %v3863
        %3865 = vmatmul.bf16.gmra.mxu0 %v3439
        %v3866 = vpop.f32.mrf.mxu0
        %v3867 = vadd.f32 %v3809, %v3866
        %v3868 = vpop.f32.mrf.mxu0
        %v3869 = vadd.f32 %v3811, %v3868
        %3870 = vmatmul.bf16.gmra.mxu0 %v3443
        %v3871 = vpop.f32.mrf.mxu0
        %v3872 = vadd.f32 %v3814, %v3871
        %v3873 = vpop.f32.mrf.mxu0
        %v3874 = vadd.f32 %v3816, %v3873
        %3875 = vmatmul.bf16.gmra.mxu0 %v3447
        %v3876 = vpop.f32.mrf.mxu0
        %v3877 = vadd.f32 %v3819, %v3876
        %v3878 = vpop.f32.mrf.mxu0
        %v3879 = vadd.f32 %v3821, %v3878
        %3880 = vmatmul.bf16.gmra.mxu0 %v3451
        %v3881 = vpop.f32.mrf.mxu0
        %v3882 = vadd.f32 %v3824, %v3881
        %v3883 = vpop.f32.mrf.mxu0
        %v3884 = vadd.f32 %v3826, %v3883
        %3885 = vmatmul.bf16.gmra.mxu0 %v3455
        %v3886 = vpop.f32.mrf.mxu0
        %v3887 = vadd.f32 %v3829, %v3886
        %v3888 = vpop.f32.mrf.mxu0
        %v3889 = vadd.f32 %v3831, %v3888
        %3890 = vmatmul.bf16.gmra.mxu0 %v3459
        %v3891 = vpop.f32.mrf.mxu0
        %v3892 = vadd.f32 %v3834, %v3891
        %v3893 = vpop.f32.mrf.mxu0
        %v3894 = vadd.f32 %v3836, %v3893
        %3895 = vmatmul.bf16.gmra.mxu0 %v3463
        %v3896 = vpop.f32.mrf.mxu0
        %v3897 = vadd.f32 %v3839, %v3896
        %v3898 = vpop.f32.mrf.mxu0
        %v3899 = vadd.f32 %v3841, %v3898
        %3900 = vmatmul.bf16.gmra.mxu0 %v3467
        %v3901 = vpop.f32.mrf.mxu0
        %v3902 = vadd.f32 %v3844, %v3901
        %v3903 = vpop.f32.mrf.mxu0
        %v3904 = vadd.f32 %v3846, %v3903
        %3905 = vmatmul.bf16.gmra.mxu0 %v3471
        %v3906 = vpop.f32.mrf.mxu0
        %v3907 = vadd.f32 %v3849, %v3906
        %v3908 = vpop.f32.mrf.mxu0
        %3909 = vdwg.mxu0
        %3910 = vmatpush.bf16.msra.mxu0 %v3712
        %3911 = vmatpush.bf16.msra.mxu0 %v3710
        %3912 = vmatpush.bf16.msra.mxu0 %v3708
        %3913 = vmatpush.bf16.msra.mxu0 %v3706
        %3914 = vmatpush.bf16.msra.mxu0 %v3704
        %3915 = vmatpush.bf16.msra.mxu0 %v3702
        %3916 = vmatpush.bf16.msra.mxu0 %v3700
        %3917 = vmatpush.bf16.msra.mxu0 %v3698
        %3918 = vmatmul.bf16.gmra.mxu0 %v3436
        %v3919 = vpop.f32.mrf.mxu0
        %v3920 = vadd.f32 %v3862, %v3919
        %v3921 = vpop.f32.mrf.mxu0
        %v3922 = vadd.f32 %v3864, %v3921
        %3923 = vmatmul.bf16.gmra.mxu0 %v3440
        %v3924 = vpop.f32.mrf.mxu0
        %v3925 = vadd.f32 %v3867, %v3924
        %v3926 = vpop.f32.mrf.mxu0
        %v3927 = vadd.f32 %v3869, %v3926
        %3928 = vmatmul.bf16.gmra.mxu0 %v3444
        %v3929 = vpop.f32.mrf.mxu0
        %v3930 = vadd.f32 %v3872, %v3929
        %v3931 = vpop.f32.mrf.mxu0
        %v3932 = vadd.f32 %v3874, %v3931
        %3933 = vmatmul.bf16.gmra.mxu0 %v3448
        %v3934 = vpop.f32.mrf.mxu0
        %v3935 = vadd.f32 %v3877, %v3934
        %v3936 = vpop.f32.mrf.mxu0
        %v3937 = vadd.f32 %v3879, %v3936
        %3938 = vmatmul.bf16.gmra.mxu0 %v3452
        %v3939 = vpop.f32.mrf.mxu0
        %v3940 = vadd.f32 %v3882, %v3939
        %v3941 = vpop.f32.mrf.mxu0
        %v3942 = vadd.f32 %v3884, %v3941
        %3943 = vmatmul.bf16.gmra.mxu0 %v3456
        %v3944 = vpop.f32.mrf.mxu0
        %v3945 = vadd.f32 %v3887, %v3944
        %v3946 = vpop.f32.mrf.mxu0
        %v3947 = vadd.f32 %v3889, %v3946
        %3948 = vmatmul.bf16.gmra.mxu0 %v3460
        %v3949 = vpop.f32.mrf.mxu0
        %v3950 = vadd.f32 %v3892, %v3949
        %v3951 = vpop.f32.mrf.mxu0
        %v3952 = vadd.f32 %v3894, %v3951
        %3953 = vmatmul.bf16.gmra.mxu0 %v3464
        %v3954 = vpop.f32.mrf.mxu0
        %v3955 = vadd.f32 %v3897, %v3954
        %v3956 = vpop.f32.mrf.mxu0
        %v3957 = vadd.f32 %v3899, %v3956
        %3958 = vmatmul.bf16.gmra.mxu0 %v3468
        %v3959 = vpop.f32.mrf.mxu0
        %v3960 = vadd.f32 %v3902, %v3959
        %v3961 = vpop.f32.mrf.mxu0
        %v3962 = vadd.f32 %v3904, %v3961
        %3963 = vmatmul.bf16.gmra.mxu0 %v3472
        %v3964 = vpop.f32.mrf.mxu0
        %v3965 = vadd.f32 %v3907, %v3964
        %v3966 = vpop.f32.mrf.mxu0
        %3967 = vdwg.mxu0
        %3968 = vmatpush.bf16.msra.mxu0 %v3728
        %3969 = vmatpush.bf16.msra.mxu0 %v3726
        %3970 = vmatpush.bf16.msra.mxu0 %v3724
        %3971 = vmatpush.bf16.msra.mxu0 %v3722
        %3972 = vmatpush.bf16.msra.mxu0 %v3720
        %3973 = vmatpush.bf16.msra.mxu0 %v3718
        %3974 = vmatpush.bf16.msra.mxu0 %v3716
        %3975 = vmatpush.bf16.msra.mxu0 %v3714
        %3976 = vmatmul.bf16.gmra.mxu0 %v3437
        %v3977 = vpop.f32.mrf.mxu0
        %v3978 = vadd.f32 %v3920, %v3977
        %v3979 = vpop.f32.mrf.mxu0
        %v3980 = vadd.f32 %v3922, %v3979
        %3981 = vmatmul.bf16.gmra.mxu0 %v3441
        %v3982 = vpop.f32.mrf.mxu0
        %v3983 = vadd.f32 %v3925, %v3982
        %v3984 = vpop.f32.mrf.mxu0
        %v3985 = vadd.f32 %v3927, %v3984
        %3986 = vmatmul.bf16.gmra.mxu0 %v3445
        %v3987 = vpop.f32.mrf.mxu0
        %v3988 = vadd.f32 %v3930, %v3987
        %v3989 = vpop.f32.mrf.mxu0
        %v3990 = vadd.f32 %v3932, %v3989
        %3991 = vmatmul.bf16.gmra.mxu0 %v3449
        %v3992 = vpop.f32.mrf.mxu0
        %v3993 = vadd.f32 %v3935, %v3992
        %v3994 = vpop.f32.mrf.mxu0
        %v3995 = vadd.f32 %v3937, %v3994
        %3996 = vmatmul.bf16.gmra.mxu0 %v3453
        %v3997 = vpop.f32.mrf.mxu0
        %v3998 = vadd.f32 %v3940, %v3997
        %v3999 = vpop.f32.mrf.mxu0
        %v4000 = vadd.f32 %v3942, %v3999
        %4001 = vmatmul.bf16.gmra.mxu0 %v3457
        %v4002 = vpop.f32.mrf.mxu0
        %v4003 = vadd.f32 %v3945, %v4002
        %v4004 = vpop.f32.mrf.mxu0
        %v4005 = vadd.f32 %v3947, %v4004
        %4006 = vmatmul.bf16.gmra.mxu0 %v3461
        %v4007 = vpop.f32.mrf.mxu0
        %v4008 = vadd.f32 %v3950, %v4007
        %v4009 = vpop.f32.mrf.mxu0
        %v4010 = vadd.f32 %v3952, %v4009
        %4011 = vmatmul.bf16.gmra.mxu0 %v3465
        %v4012 = vpop.f32.mrf.mxu0
        %v4013 = vadd.f32 %v3955, %v4012
        %v4014 = vpop.f32.mrf.mxu0
        %v4015 = vadd.f32 %v3957, %v4014
        %4016 = vmatmul.bf16.gmra.mxu0 %v3469
        %v4017 = vpop.f32.mrf.mxu0
        %v4018 = vadd.f32 %v3960, %v4017
        %v4019 = vpop.f32.mrf.mxu0
        %v4020 = vadd.f32 %v3962, %v4019
        %4021 = vmatmul.bf16.gmra.mxu0 %v3473
        %v4022 = vpop.f32.mrf.mxu0
        %v4023 = vadd.f32 %v3965, %v4022
        %v4024 = vpop.f32.mrf.mxu0
        %4025 = vdwg.mxu0
        %4026 = vmatpush.bf16.msra.mxu0 %v3681
        %4027 = vmatpush.bf16.msra.mxu0 %v3679
        %4028 = vmatpush.bf16.msra.mxu0 %v3677
        %4029 = vmatpush.bf16.msra.mxu0 %v3675
        %4030 = vmatpush.bf16.msra.mxu0 %v3673
        %4031 = vmatpush.bf16.msra.mxu0 %v3671
        %4032 = vmatpush.bf16.msra.mxu0 %v3669
        %4033 = vmatpush.bf16.msra.mxu0 %v3667
        %4034 = vmatmul.bf16.gmra.mxu0 %v3434
        %v4035 = vpop.f32.mrf.mxu0
        %v4036 = vadd.f32 0.0, %v4035
        %v4037 = vpop.f32.mrf.mxu0
        %v4038 = vadd.f32 0.0, %v4037
        %4039 = vmatmul.bf16.gmra.mxu0 %v3438
        %v4040 = vpop.f32.mrf.mxu0
        %v4041 = vadd.f32 0.0, %v4040
        %v4042 = vpop.f32.mrf.mxu0
        %v4043 = vadd.f32 0.0, %v4042
        %4044 = vmatmul.bf16.gmra.mxu0 %v3442
        %v4045 = vpop.f32.mrf.mxu0
        %v4046 = vadd.f32 0.0, %v4045
        %v4047 = vpop.f32.mrf.mxu0
        %v4048 = vadd.f32 0.0, %v4047
        %4049 = vmatmul.bf16.gmra.mxu0 %v3446
        %v4050 = vpop.f32.mrf.mxu0
        %v4051 = vadd.f32 0.0, %v4050
        %v4052 = vpop.f32.mrf.mxu0
        %v4053 = vadd.f32 0.0, %v4052
        %4054 = vmatmul.bf16.gmra.mxu0 %v3450
        %v4055 = vpop.f32.mrf.mxu0
        %v4056 = vadd.f32 0.0, %v4055
        %v4057 = vpop.f32.mrf.mxu0
        %v4058 = vadd.f32 0.0, %v4057
        %4059 = vmatmul.bf16.gmra.mxu0 %v3454
        %v4060 = vpop.f32.mrf.mxu0
        %v4061 = vadd.f32 0.0, %v4060
        %v4062 = vpop.f32.mrf.mxu0
        %v4063 = vadd.f32 0.0, %v4062
        %4064 = vmatmul.bf16.gmra.mxu0 %v3458
        %v4065 = vpop.f32.mrf.mxu0
        %v4066 = vadd.f32 0.0, %v4065
        %v4067 = vpop.f32.mrf.mxu0
        %v4068 = vadd.f32 0.0, %v4067
        %4069 = vmatmul.bf16.gmra.mxu0 %v3462
        %v4070 = vpop.f32.mrf.mxu0
        %v4071 = vadd.f32 0.0, %v4070
        %v4072 = vpop.f32.mrf.mxu0
        %v4073 = vadd.f32 0.0, %v4072
        %4074 = vmatmul.bf16.gmra.mxu0 %v3466
        %v4075 = vpop.f32.mrf.mxu0
        %v4076 = vadd.f32 0.0, %v4075
        %v4077 = vpop.f32.mrf.mxu0
        %v4078 = vadd.f32 0.0, %v4077
        %4079 = vmatmul.bf16.gmra.mxu0 %v3470
        %v4080 = vpop.f32.mrf.mxu0
        %v4081 = vadd.f32 0.0, %v4080
        %v4082 = vpop.f32.mrf.mxu0
        %4083 = vdwg.mxu0
        %4084 = vmatpush.bf16.msra.mxu0 %v3697
        %4085 = vmatpush.bf16.msra.mxu0 %v3695
        %4086 = vmatpush.bf16.msra.mxu0 %v3693
        %4087 = vmatpush.bf16.msra.mxu0 %v3691
        %4088 = vmatpush.bf16.msra.mxu0 %v3689
        %4089 = vmatpush.bf16.msra.mxu0 %v3687
        %4090 = vmatpush.bf16.msra.mxu0 %v3685
        %4091 = vmatpush.bf16.msra.mxu0 %v3683
        %4092 = vmatmul.bf16.gmra.mxu0 %v3435
        %v4093 = vpop.f32.mrf.mxu0
        %v4094 = vadd.f32 %v4036, %v4093
        %v4095 = vpop.f32.mrf.mxu0
        %v4096 = vadd.f32 %v4038, %v4095
        %4097 = vmatmul.bf16.gmra.mxu0 %v3439
        %v4098 = vpop.f32.mrf.mxu0
        %v4099 = vadd.f32 %v4041, %v4098
        %v4100 = vpop.f32.mrf.mxu0
        %v4101 = vadd.f32 %v4043, %v4100
        %4102 = vmatmul.bf16.gmra.mxu0 %v3443
        %v4103 = vpop.f32.mrf.mxu0
        %v4104 = vadd.f32 %v4046, %v4103
        %v4105 = vpop.f32.mrf.mxu0
        %v4106 = vadd.f32 %v4048, %v4105
        %4107 = vmatmul.bf16.gmra.mxu0 %v3447
        %v4108 = vpop.f32.mrf.mxu0
        %v4109 = vadd.f32 %v4051, %v4108
        %v4110 = vpop.f32.mrf.mxu0
        %v4111 = vadd.f32 %v4053, %v4110
        %4112 = vmatmul.bf16.gmra.mxu0 %v3451
        %v4113 = vpop.f32.mrf.mxu0
        %v4114 = vadd.f32 %v4056, %v4113
        %v4115 = vpop.f32.mrf.mxu0
        %v4116 = vadd.f32 %v4058, %v4115
        %4117 = vmatmul.bf16.gmra.mxu0 %v3455
        %v4118 = vpop.f32.mrf.mxu0
        %v4119 = vadd.f32 %v4061, %v4118
        %v4120 = vpop.f32.mrf.mxu0
        %v4121 = vadd.f32 %v4063, %v4120
        %4122 = vmatmul.bf16.gmra.mxu0 %v3459
        %v4123 = vpop.f32.mrf.mxu0
        %v4124 = vadd.f32 %v4066, %v4123
        %v4125 = vpop.f32.mrf.mxu0
        %v4126 = vadd.f32 %v4068, %v4125
        %4127 = vmatmul.bf16.gmra.mxu0 %v3463
        %v4128 = vpop.f32.mrf.mxu0
        %v4129 = vadd.f32 %v4071, %v4128
        %v4130 = vpop.f32.mrf.mxu0
        %v4131 = vadd.f32 %v4073, %v4130
        %4132 = vmatmul.bf16.gmra.mxu0 %v3467
        %v4133 = vpop.f32.mrf.mxu0
        %v4134 = vadd.f32 %v4076, %v4133
        %v4135 = vpop.f32.mrf.mxu0
        %v4136 = vadd.f32 %v4078, %v4135
        %4137 = vmatmul.bf16.gmra.mxu0 %v3471
        %v4138 = vpop.f32.mrf.mxu0
        %v4139 = vadd.f32 %v4081, %v4138
        %v4140 = vpop.f32.mrf.mxu0
        %4141 = vdwg.mxu0
        %4142 = vmatpush.bf16.msra.mxu0 %v3713
        %4143 = vmatpush.bf16.msra.mxu0 %v3711
        %4144 = vmatpush.bf16.msra.mxu0 %v3709
        %4145 = vmatpush.bf16.msra.mxu0 %v3707
        %4146 = vmatpush.bf16.msra.mxu0 %v3705
        %4147 = vmatpush.bf16.msra.mxu0 %v3703
        %4148 = vmatpush.bf16.msra.mxu0 %v3701
        %4149 = vmatpush.bf16.msra.mxu0 %v3699
        %4150 = vmatmul.bf16.gmra.mxu0 %v3436
        %v4151 = vpop.f32.mrf.mxu0
        %v4152 = vadd.f32 %v4094, %v4151
        %v4153 = vpop.f32.mrf.mxu0
        %v4154 = vadd.f32 %v4096, %v4153
        %4155 = vmatmul.bf16.gmra.mxu0 %v3440
        %v4156 = vpop.f32.mrf.mxu0
        %v4157 = vadd.f32 %v4099, %v4156
        %v4158 = vpop.f32.mrf.mxu0
        %v4159 = vadd.f32 %v4101, %v4158
        %4160 = vmatmul.bf16.gmra.mxu0 %v3444
        %v4161 = vpop.f32.mrf.mxu0
        %v4162 = vadd.f32 %v4104, %v4161
        %v4163 = vpop.f32.mrf.mxu0
        %v4164 = vadd.f32 %v4106, %v4163
        %4165 = vmatmul.bf16.gmra.mxu0 %v3448
        %v4166 = vpop.f32.mrf.mxu0
        %v4167 = vadd.f32 %v4109, %v4166
        %v4168 = vpop.f32.mrf.mxu0
        %v4169 = vadd.f32 %v4111, %v4168
        %4170 = vmatmul.bf16.gmra.mxu0 %v3452
        %v4171 = vpop.f32.mrf.mxu0
        %v4172 = vadd.f32 %v4114, %v4171
        %v4173 = vpop.f32.mrf.mxu0
        %v4174 = vadd.f32 %v4116, %v4173
        %4175 = vmatmul.bf16.gmra.mxu0 %v3456
        %v4176 = vpop.f32.mrf.mxu0
        %v4177 = vadd.f32 %v4119, %v4176
        %v4178 = vpop.f32.mrf.mxu0
        %v4179 = vadd.f32 %v4121, %v4178
        %4180 = vmatmul.bf16.gmra.mxu0 %v3460
        %v4181 = vpop.f32.mrf.mxu0
        %v4182 = vadd.f32 %v4124, %v4181
        %v4183 = vpop.f32.mrf.mxu0
        %v4184 = vadd.f32 %v4126, %v4183
        %4185 = vmatmul.bf16.gmra.mxu0 %v3464
        %v4186 = vpop.f32.mrf.mxu0
        %v4187 = vadd.f32 %v4129, %v4186
        %v4188 = vpop.f32.mrf.mxu0
        %v4189 = vadd.f32 %v4131, %v4188
        %4190 = vmatmul.bf16.gmra.mxu0 %v3468
        %v4191 = vpop.f32.mrf.mxu0
        %v4192 = vadd.f32 %v4134, %v4191
        %v4193 = vpop.f32.mrf.mxu0
        %v4194 = vadd.f32 %v4136, %v4193
        %4195 = vmatmul.bf16.gmra.mxu0 %v3472
        %v4196 = vpop.f32.mrf.mxu0
        %v4197 = vadd.f32 %v4139, %v4196
        %v4198 = vpop.f32.mrf.mxu0
        %4199 = vdwg.mxu0
        %4200 = vmatpush.bf16.msra.mxu0 %v3729
        %4201 = vmatpush.bf16.msra.mxu0 %v3727
        %4202 = vmatpush.bf16.msra.mxu0 %v3725
        %4203 = vmatpush.bf16.msra.mxu0 %v3723
        %4204 = vmatpush.bf16.msra.mxu0 %v3721
        %4205 = vmatpush.bf16.msra.mxu0 %v3719
        %4206 = vmatpush.bf16.msra.mxu0 %v3717
        %4207 = vmatpush.bf16.msra.mxu0 %v3715
        %4208 = vmatmul.bf16.gmra.mxu0 %v3437
        %v4209 = vpop.f32.mrf.mxu0
        %v4210 = vadd.f32 %v4152, %v4209
        %v4211 = vpop.f32.mrf.mxu0
        %v4212 = vadd.f32 %v4154, %v4211
        %4213 = vmatmul.bf16.gmra.mxu0 %v3441
        %v4214 = vpop.f32.mrf.mxu0
        %v4215 = vadd.f32 %v4157, %v4214
        %v4216 = vpop.f32.mrf.mxu0
        %v4217 = vadd.f32 %v4159, %v4216
        %4218 = vmatmul.bf16.gmra.mxu0 %v3445
        %v4219 = vpop.f32.mrf.mxu0
        %v4220 = vadd.f32 %v4162, %v4219
        %v4221 = vpop.f32.mrf.mxu0
        %v4222 = vadd.f32 %v4164, %v4221
        %4223 = vmatmul.bf16.gmra.mxu0 %v3449
        %v4224 = vpop.f32.mrf.mxu0
        %v4225 = vadd.f32 %v4167, %v4224
        %v4226 = vpop.f32.mrf.mxu0
        %v4227 = vadd.f32 %v4169, %v4226
        %4228 = vmatmul.bf16.gmra.mxu0 %v3453
        %v4229 = vpop.f32.mrf.mxu0
        %v4230 = vadd.f32 %v4172, %v4229
        %v4231 = vpop.f32.mrf.mxu0
        %v4232 = vadd.f32 %v4174, %v4231
        %4233 = vmatmul.bf16.gmra.mxu0 %v3457
        %v4234 = vpop.f32.mrf.mxu0
        %v4235 = vadd.f32 %v4177, %v4234
        %v4236 = vpop.f32.mrf.mxu0
        %v4237 = vadd.f32 %v4179, %v4236
        %4238 = vmatmul.bf16.gmra.mxu0 %v3461
        %v4239 = vpop.f32.mrf.mxu0
        %v4240 = vadd.f32 %v4182, %v4239
        %v4241 = vpop.f32.mrf.mxu0
        %v4242 = vadd.f32 %v4184, %v4241
        %4243 = vmatmul.bf16.gmra.mxu0 %v3465
        %v4244 = vpop.f32.mrf.mxu0
        %v4245 = vadd.f32 %v4187, %v4244
        %v4246 = vpop.f32.mrf.mxu0
        %v4247 = vadd.f32 %v4189, %v4246
        %4248 = vmatmul.bf16.gmra.mxu0 %v3469
        %v4249 = vpop.f32.mrf.mxu0
        %v4250 = vadd.f32 %v4192, %v4249
        %v4251 = vpop.f32.mrf.mxu0
        %v4252 = vadd.f32 %v4194, %v4251
        %4253 = vmatmul.bf16.gmra.mxu0 %v3473
        %v4254 = vpop.f32.mrf.mxu0
        %v4255 = vadd.f32 %v4197, %v4254
        %v4256 = vpop.f32.mrf.mxu0
        %4257 = vdwg.mxu0
        %v4258 = vadd.f32 %v3396, %v3978
        %v4259 = vadd.f32 %v3397, %v4210
        %v4260 = vadd.f32 %v3398, %v3980
        %v4261 = vadd.f32 %v3399, %v4212
        %v4262 = vadd.f32 %v3400, %v3983
        %v4263 = vadd.f32 %v3401, %v4215
        %v4264 = vadd.f32 %v3402, %v3985
        %v4265 = vadd.f32 %v3403, %v4217
        %v4266 = vadd.f32 %v3404, %v3988
        %v4267 = vadd.f32 %v3405, %v4220
        %v4268 = vadd.f32 %v3406, %v3990
        %v4269 = vadd.f32 %v3407, %v4222
        %v4270 = vadd.f32 %v3408, %v3993
        %v4271 = vadd.f32 %v3409, %v4225
        %v4272 = vadd.f32 %v3410, %v3995
        %v4273 = vadd.f32 %v3411, %v4227
        %v4274 = vadd.f32 %v3412, %v3998
        %v4275 = vadd.f32 %v3413, %v4230
        %v4276 = vadd.f32 %v3414, %v4000
        %v4277 = vadd.f32 %v3415, %v4232
        %v4278 = vadd.f32 %v3416, %v4003
        %v4279 = vadd.f32 %v3417, %v4235
        %v4280 = vadd.f32 %v3418, %v4005
        %v4281 = vadd.f32 %v3419, %v4237
        %v4282 = vadd.f32 %v3420, %v4008
        %v4283 = vadd.f32 %v3421, %v4240
        %v4284 = vadd.f32 %v3422, %v4010
        %v4285 = vadd.f32 %v3423, %v4242
        %v4286 = vadd.f32 %v3424, %v4013
        %v4287 = vadd.f32 %v3425, %v4245
        %v4288 = vadd.f32 %v3426, %v4015
        %v4289 = vadd.f32 %v3427, %v4247
        %v4290 = vadd.f32 %v3428, %v4018
        %v4291 = vadd.f32 %v3429, %v4250
        %v4292 = vadd.f32 %v3430, %v4020
        %v4293 = vadd.f32 %v3431, %v4252
        %v4294 = vadd.f32 %v3432, %v4023
        %v4295 = vadd.f32 %v3433, %v4255
        %4296 = vst [vmem:[#allocation2] sm:$0xff] %v4258
        %4297 = vst [vmem:[#allocation2 + $0x8] sm:$0xff] %v4259
        %4298 = vst [vmem:[#allocation2 + $0x10] sm:$0xff] %v4260
        %4299 = vst [vmem:[#allocation2 + $0x18] sm:$0xff] %v4261
        %4300 = vst [vmem:[#allocation2 + $0x20] sm:$0xff] %v4262
        %4301 = vst [vmem:[#allocation2 + $0x28] sm:$0xff] %v4263
        %4302 = vst [vmem:[#allocation2 + $0x30] sm:$0xff] %v4264
        %4303 = vst [vmem:[#allocation2 + $0x38] sm:$0xff] %v4265
        %4304 = vst [vmem:[#allocation2 + $0x40] sm:$0xff] %v4266
        %4305 = vst [vmem:[#allocation2 + $0x48] sm:$0xff] %v4267
        %4306 = vst [vmem:[#allocation2 + $0x50] sm:$0xff] %v4268
        %4307 = vst [vmem:[#allocation2 + $0x58] sm:$0xff] %v4269
        %4308 = vst [vmem:[#allocation2 + $0x60] sm:$0xff] %v4270
        %4309 = vst [vmem:[#allocation2 + $0x68] sm:$0xff] %v4271
        %4310 = vst [vmem:[#allocation2 + $0x70] sm:$0xff] %v4272
        %4311 = vst [vmem:[#allocation2 + $0x78] sm:$0xff] %v4273
        %4312 = vst [vmem:[#allocation2 + $0x80] sm:$0xff] %v4274
        %4313 = vst [vmem:[#allocation2 + $0x88] sm:$0xff] %v4275
        %4314 = vst [vmem:[#allocation2 + $0x90] sm:$0xff] %v4276
        %4315 = vst [vmem:[#allocation2 + $0x98] sm:$0xff] %v4277
        %4316 = vst [vmem:[#allocation2 + $0xa0] sm:$0xff] %v4278
        %4317 = vst [vmem:[#allocation2 + $0xa8] sm:$0xff] %v4279
        %4318 = vst [vmem:[#allocation2 + $0xb0] sm:$0xff] %v4280
        %4319 = vst [vmem:[#allocation2 + $0xb8] sm:$0xff] %v4281
        %4320 = vst [vmem:[#allocation2 + $0xc0] sm:$0xff] %v4282
        %4321 = vst [vmem:[#allocation2 + $0xc8] sm:$0xff] %v4283
        %4322 = vst [vmem:[#allocation2 + $0xd0] sm:$0xff] %v4284
        %4323 = vst [vmem:[#allocation2 + $0xd8] sm:$0xff] %v4285
        %4324 = vst [vmem:[#allocation2 + $0xe0] sm:$0xff] %v4286
        %4325 = vst [vmem:[#allocation2 + $0xe8] sm:$0xff] %v4287
        %4326 = vst [vmem:[#allocation2 + $0xf0] sm:$0xff] %v4288
        %4327 = vst [vmem:[#allocation2 + $0xf8] sm:$0xff] %v4289
        %4328 = vst [vmem:[#allocation2 + $0x100] sm:$0xff] %v4290
        %4329 = vst [vmem:[#allocation2 + $0x108] sm:$0xff] %v4291
        %4330 = vst [vmem:[#allocation2 + $0x110] sm:$0xff] %v4292
        %4331 = vst [vmem:[#allocation2 + $0x118] sm:$0xff] %v4293
        %4332 = vst [vmem:[#allocation2 + $0x120] sm:$0xff] %v4294
        %4333 = vst [vmem:[#allocation2 + $0x128] sm:$0xff] %v4295
        // Predicated region
        $region61: #{tpu_custom_call.1} parent=39 // pred_check
          %p4334 = pneg %p335
        $region62: #{tpu_custom_call.1} parent=39 // pred_check_branch
          %4336 = sbr.rel (%p4334) target = $region64
        $region63: #{tpu_custom_call.1} parent=39 // pred_region
          %v4337 = vld [vmem:[#allocation2] sm:$0xff]
          %v4338 = vld [vmem:[#allocation2 + $0x8] sm:$0xff]
          %v4339 = vld [vmem:[#allocation2 + $0x10] sm:$0xff]
          %v4340 = vld [vmem:[#allocation2 + $0x18] sm:$0xff]
          %v4341 = vld [vmem:[#allocation2 + $0x20] sm:$0xff]
          %v4342 = vld [vmem:[#allocation2 + $0x28] sm:$0xff]
          %v4343 = vld [vmem:[#allocation2 + $0x30] sm:$0xff]
          %v4344 = vld [vmem:[#allocation2 + $0x38] sm:$0xff]
          %v4345 = vld [vmem:[#allocation2 + $0x40] sm:$0xff]
          %v4346 = vld [vmem:[#allocation2 + $0x48] sm:$0xff]
          %v4347 = vld [vmem:[#allocation2 + $0x50] sm:$0xff]
          %v4348 = vld [vmem:[#allocation2 + $0x58] sm:$0xff]
          %v4349 = vld [vmem:[#allocation2 + $0x60] sm:$0xff]
          %v4350 = vld [vmem:[#allocation2 + $0x68] sm:$0xff]
          %v4351 = vld [vmem:[#allocation2 + $0x70] sm:$0xff]
          %v4352 = vld [vmem:[#allocation2 + $0x78] sm:$0xff]
          %v4353 = vld [vmem:[#allocation2 + $0x80] sm:$0xff]
          %v4354 = vld [vmem:[#allocation2 + $0x88] sm:$0xff]
          %v4355 = vld [vmem:[#allocation2 + $0x90] sm:$0xff]
          %v4356 = vld [vmem:[#allocation2 + $0x98] sm:$0xff]
          %v4357 = vld [vmem:[#allocation2 + $0xa0] sm:$0xff]
          %v4358 = vld [vmem:[#allocation2 + $0xa8] sm:$0xff]
          %v4359 = vld [vmem:[#allocation2 + $0xb0] sm:$0xff]
          %v4360 = vld [vmem:[#allocation2 + $0xb8] sm:$0xff]
          %v4361 = vld [vmem:[#allocation2 + $0xc0] sm:$0xff]
          %v4362 = vld [vmem:[#allocation2 + $0xc8] sm:$0xff]
          %v4363 = vld [vmem:[#allocation2 + $0xd0] sm:$0xff]
          %v4364 = vld [vmem:[#allocation2 + $0xd8] sm:$0xff]
          %v4365 = vld [vmem:[#allocation2 + $0xe0] sm:$0xff]
          %v4366 = vld [vmem:[#allocation2 + $0xe8] sm:$0xff]
          %v4367 = vld [vmem:[#allocation2 + $0xf0] sm:$0xff]
          %v4368 = vld [vmem:[#allocation2 + $0xf8] sm:$0xff]
          %v4369 = vld [vmem:[#allocation2 + $0x100] sm:$0xff]
          %v4370 = vld [vmem:[#allocation2 + $0x108] sm:$0xff]
          %v4371 = vld [vmem:[#allocation2 + $0x110] sm:$0xff]
          %v4372 = vld [vmem:[#allocation2 + $0x118] sm:$0xff]
          %v4373 = vld [vmem:[#allocation2 + $0x120] sm:$0xff]
          %v4374 = vld [vmem:[#allocation2 + $0x128] sm:$0xff]
          %v4375 = vld [vmem:[%s4] sm:$0x3]
          %v4376 = vunpack.c.l.bf16 %v4375
          %v4378 = vperm.slane %v4376, 0
          %v4379 = vperm.slane %v4376, 2
          %v4382 = vperm.slane %v4378, 0
          %v4383 = vperm.slane %v4379, 0
          %v4384 = vadd.f32 %v4337, %v4382
          %v4385 = vadd.f32 %v4338, %v4383
          %v4386 = vadd.f32 %v4339, %v4382
          %v4387 = vadd.f32 %v4340, %v4383
          %v4388 = vadd.f32 %v4341, %v4382
          %v4389 = vadd.f32 %v4342, %v4383
          %v4390 = vadd.f32 %v4343, %v4382
          %v4391 = vadd.f32 %v4344, %v4383
          %v4392 = vadd.f32 %v4345, %v4382
          %v4393 = vadd.f32 %v4346, %v4383
          %v4394 = vadd.f32 %v4347, %v4382
          %v4395 = vadd.f32 %v4348, %v4383
          %v4396 = vadd.f32 %v4349, %v4382
          %v4397 = vadd.f32 %v4350, %v4383
          %v4398 = vadd.f32 %v4351, %v4382
          %v4399 = vadd.f32 %v4352, %v4383
          %v4400 = vadd.f32 %v4353, %v4382
          %v4401 = vadd.f32 %v4354, %v4383
          %v4402 = vadd.f32 %v4355, %v4382
          %v4403 = vadd.f32 %v4356, %v4383
          %v4404 = vadd.f32 %v4357, %v4382
          %v4405 = vadd.f32 %v4358, %v4383
          %v4406 = vadd.f32 %v4359, %v4382
          %v4407 = vadd.f32 %v4360, %v4383
          %v4408 = vadd.f32 %v4361, %v4382
          %v4409 = vadd.f32 %v4362, %v4383
          %v4410 = vadd.f32 %v4363, %v4382
          %v4411 = vadd.f32 %v4364, %v4383
          %v4412 = vadd.f32 %v4365, %v4382
          %v4413 = vadd.f32 %v4366, %v4383
          %v4414 = vadd.f32 %v4367, %v4382
          %v4415 = vadd.f32 %v4368, %v4383
          %v4416 = vadd.f32 %v4369, %v4382
          %v4417 = vadd.f32 %v4370, %v4383
          %v4418 = vadd.f32 %v4371, %v4382
          %v4419 = vadd.f32 %v4372, %v4383
          %v4420 = vadd.f32 %v4373, %v4382
          %v4421 = vadd.f32 %v4374, %v4383
          %v4422 = vpack.c.bf16 %v4385, %v4384
          %v4423 = vpack.c.bf16 %v4387, %v4386
          %v4424 = vpack.c.bf16 %v4389, %v4388
          %v4425 = vpack.c.bf16 %v4391, %v4390
          %v4426 = vpack.c.bf16 %v4393, %v4392
          %v4427 = vpack.c.bf16 %v4395, %v4394
          %v4428 = vpack.c.bf16 %v4397, %v4396
          %v4429 = vpack.c.bf16 %v4399, %v4398
          %v4430 = vpack.c.bf16 %v4401, %v4400
          %v4431 = vpack.c.bf16 %v4403, %v4402
          %v4432 = vpack.c.bf16 %v4405, %v4404
          %v4433 = vpack.c.bf16 %v4407, %v4406
          %v4434 = vpack.c.bf16 %v4409, %v4408
          %v4435 = vpack.c.bf16 %v4411, %v4410
          %v4436 = vpack.c.bf16 %v4413, %v4412
          %v4437 = vpack.c.bf16 %v4415, %v4414
          %v4438 = vpack.c.bf16 %v4417, %v4416
          %v4439 = vpack.c.bf16 %v4419, %v4418
          %v4440 = vpack.c.bf16 %v4421, %v4420
          %4441 = vst [vmem:[%s329] sm:$0xff] %v4422
          %4442 = vst [vmem:[%s329 + $0x8] sm:$0xff] %v4423
          %4443 = vst [vmem:[%s329 + $0x10] sm:$0xff] %v4424
          %4444 = vst [vmem:[%s329 + $0x18] sm:$0xff] %v4425
          %4445 = vst [vmem:[%s329 + $0x20] sm:$0xff] %v4426
          %4446 = vst [vmem:[%s329 + $0x28] sm:$0xff] %v4427
          %4447 = vst [vmem:[%s329 + $0x30] sm:$0xff] %v4428
          %4448 = vst [vmem:[%s329 + $0x38] sm:$0xff] %v4429
          %4449 = vst [vmem:[%s329 + $0x40] sm:$0xff] %v4430
          %4450 = vst [vmem:[%s329 + $0x48] sm:$0xff] %v4431
          %4451 = vst [vmem:[%s329 + $0x50] sm:$0xff] %v4432
          %4452 = vst [vmem:[%s329 + $0x58] sm:$0xff] %v4433
          %4453 = vst [vmem:[%s329 + $0x60] sm:$0xff] %v4434
          %4454 = vst [vmem:[%s329 + $0x68] sm:$0xff] %v4435
          %4455 = vst [vmem:[%s329 + $0x70] sm:$0xff] %v4436
          %4456 = vst [vmem:[%s329 + $0x78] sm:$0xff] %v4437
          %4457 = vst [vmem:[%s329 + $0x80] sm:$0xff] %v4438
          %4458 = vst [vmem:[%s329 + $0x88] sm:$0xff] %v4439
          %4459 = vst [vmem:[%s329 + $0x90] sm:$0xff] %v4440
        $region64: #{tpu_custom_call.1} parent=39 // pred_fallthru
          _
        %s4460 = sand.u32 %s169, 1
        %s4461 = scalar_lea.sflag [#allocation5], %s4460
        %s4462 = sand.u32 %s169, 1
        %s4463 = smul.addr %s4462, 152
        %s4464 = scalar_lea.vmem [#allocation11], %s4463
        // Predicated region
        $region65: #{tpu_custom_call.1} parent=39 // pred_check
          %p4465 = pneg %p179
        $region66: #{tpu_custom_call.1} parent=39 // pred_check_branch
          %4467 = sbr.rel (%p4465) target = $region68
        $region67: #{tpu_custom_call.1} parent=39 // pred_region
          %s4468 = smul.u32 19, %s28
          %4470 = vsyncadd %s4461, 0
          %s4471 = smul.addr %s4468, 2
          %s4472 = smul.addr %s4471, 4
          %s4473 = scalar_lea.hbm %s5, %s4472
          %s4474 = sshll.u32 %s4464, 4
          %s4475 = int_to_ptr.vmem [resolvable:$true] %s4474
          %s4476 = sshll.u32 %s4473, 4
          %s4477 = int_to_ptr.hbm [resolvable:$true] %s4476
          %4482 = dma.vmem_to_hbm [thread:$0]  %s4475, 2432, %s4477, %s4461, 128, 128, 8
        $region68: #{tpu_custom_call.1} parent=39 // pred_fallthru
          _
      $region40: #{tpu_custom_call.1} parent=5 // pred_fallthru
        _
      %p4483 = scmp.le.s32.totalorder 2, %s19
      // Predicated region
      $region69: #{tpu_custom_call.1} parent=5 // pred_check
        %p4484 = pneg %p4483
      $region70: #{tpu_custom_call.1} parent=5 // pred_check_branch
        %4486 = sbr.rel (%p4484) target = $region72
      $region71: #{tpu_custom_call.1} parent=5 // pred_region
        %s4487 = ssub.s32 %s19, 2
        // Predicated region
        $region73: #{tpu_custom_call.1} parent=71 // pred_check
          %p4488 = pneg %p185
        $region74: #{tpu_custom_call.1} parent=71 // pred_check_branch
          %4490 = sbr.rel (%p4488) target = $region76
        $region75: #{tpu_custom_call.1} parent=71 // pred_region
          %s4491 = sand.u32 %s170, 1
          %s4492 = scalar_lea.sflag [#allocation5], %s4491
          %s4493 = sand.u32 %s170, 1
          %s4494 = smul.addr %s4493, 152
          %s4495 = scalar_lea.vmem [#allocation11], %s4494
          %4497 = dma.done %s4492, 2432
        $region76: #{tpu_custom_call.1} parent=71 // pred_fallthru
          _
      $region72: #{tpu_custom_call.1} parent=5 // pred_fallthru
        _
    $region6: #{tpu_custom_call.1} parent=1 // loop_footer
      %s23 = sadd.s32 1, %s19
    $region7: #{tpu_custom_call.1} parent=1 // loop_footer_branch
      %18 = sbr.rel target = $region3
    $region8: #{tpu_custom_call.1} parent=1 // loop_exit
      _
    %4498 = vsyncpa [#allocation4], 1
    %s4499 = scalar_lea.sflag [#allocation4], 1
    %4500 = vsyncpa %s4499, 1
    %4501 = vsyncpa [#allocation7], 1
    %4502 = vsyncpa [#allocation10], 1
    %4503 = vsyncpa [#allocation5], 1
    %s4504 = scalar_lea.sflag [#allocation5], 1
    %4505 = vsyncpa %s4504, 1

// kernel: tpu_custom_call.1
$region0: #{tpu_custom_call.1}
  #allocation0 [shape = 'u32[]', space=smem, size = 0x4, offset = 0x4, fixed_abs, tag = 'smem constant byte address 0x4 - core index']
  #allocation1 [shape = 'u32[72,128]{1,0:T(1,128)}', space=vmem, size = 0x9000, scoped, tag = 'internal scratch']
  #allocation2 [shape = 'f32[152,256]{1,0:T(8,128)}', space=vmem, size = 0x26000, scoped, tag = 'scratch operand']
  %s0 = inlined_call_operand.hbm [shape: bf16[300,256], index: 0, kind: input, shape index: {}]
  %s1 = inlined_call_operand.hbm [shape: bf16[256,512], index: 1, kind: input, shape index: {}]
  %s2 = inlined_call_operand.hbm [shape: bf16[1,512], index: 2, kind: input, shape index: {}]
  %s3 = inlined_call_operand.hbm [shape: bf16[512,256], index: 3, kind: input, shape index: {}]
  %s4 = inlined_call_operand.vmem [shape: bf16[1,256], index: 4, kind: input, shape index: {}]
  %s5 = inlined_call_operand.hbm [shape: bf16[300,256], index: 5, kind: output, shape index: {}]
  %s6 = sld [smem:[#allocation0]]
  $region77: #{tpu_custom_call.1} parent=0
    _
  %s8 = ssub.s32 1, %s6
  %s9 = scalar_select 0, %s8, %s6
  $region1: #{tpu_custom_call.1} parent=0
    #allocation3 [shape = 'u8[155648]{0}', space=vmem, size = 0x26000, scoped, tag = 'input window, operand 0']
    #allocation4 [shape = 's32[2]{0}', space=sflag, size = 0x8, scoped, tag = 'scoped memory for tpu_custom_call.1']
    #allocation5 [shape = 's32[2]{0}', space=sflag, size = 0x8, scoped, tag = 'scoped memory for tpu_custom_call.1']
    #allocation6 [shape = 'u8[262144]{0}', space=vmem, size = 0x40000, scoped, tag = 'input window, operand 1, single buffered']
    #allocation7 [shape = 's32[1]{0}', space=sflag, size = 0x4, scoped, tag = 'scoped memory for tpu_custom_call.1']
    #allocation8 [shape = 'u8[2048]{0}', space=vmem, size = 0x800, scoped, tag = 'input window, operand 2, single buffered']
    #allocation9 [shape = 'u8[262144]{0}', space=vmem, size = 0x40000, scoped, tag = 'input window, operand 3, single buffered']
    #allocation10 [shape = 's32[1]{0}', space=sflag, size = 0x4, scoped, tag = 'scoped memory for tpu_custom_call.1']
    #allocation11 [shape = 'u8[155648]{0}', space=vmem, size = 0x26000, scoped, tag = 'output window, operand 0']
    %10 = vsyncpa [#allocation4], 0
    %s11 = scalar_lea.sflag [#allocation4], 1
    %12 = vsyncpa %s11, 0
    %13 = vsyncpa [#allocation7], 0
    %14 = vsyncpa [#allocation10], 0
    %15 = vsyncpa [#allocation5], 0
    %s16 = scalar_lea.sflag [#allocation5], 1
    %17 = vsyncpa %s16, 0
    loop: start=0, step=1, limit=4
    $region2: #{tpu_custom_call.1} parent=1 // loop_pre_header
      _
    $region3: #{tpu_custom_call.1} parent=1 // loop_header
      %s19 = sphi 0, %s23
      %p20 = scmp.ge.s32.totalorder %s19, 4
      %s26 = sphi 0, %s38
      %s27 = sphi 0, %s34
      %s28 = sphi 0, %s26
      %s29 = sphi 0, %s27
      %s30 = sphi 0, %s28
      %s31 = sphi 0, %s29
      %s41 = sphi 0, %s43
      %s44 = sphi 0, %s41
      %s45 = sphi 0, %s44
      %s61 = sphi 0, %s45
      %s67 = sphi 0, %s69
      %s70 = sphi 0, %s67
      %s71 = sphi 0, %s70
      %s87 = sphi 0, %s71
      %s93 = sphi 0, %s95
      %s96 = sphi 0, %s93
      %s97 = sphi 0, %s96
      %s113 = sphi 0, %s97
      %s119 = sphi 0, %s121
      %s122 = sphi 0, %s119
      %s123 = sphi 0, %s122
      %s139 = sphi 0, %s123
      %s143 = sphi 0, %s143
      %s145 = sphi 0, %s143
      %s146 = sphi 0, %s145
      %s160 = sphi 0, %s146
      %s166 = sphi 0, %s168
      %s169 = sphi 0, %s166
      %s170 = sphi 0, %s169
      %s186 = sphi 0, %s170
    $region4: #{tpu_custom_call.1} parent=1 // loop_header_branch
      %22 = sbr.rel (%p20) target = $region8
    $region5: #{tpu_custom_call.1} parent=1 // loop_body
      %s24 = ssub.s32 %s19, 1
      %s25 = ssub.s32 %s19, 2
      %s32 = sadd.s32 1, %s27
      %p33 = scmp.ge.s32.totalorder %s32, 1
      %s34 = scalar_select %p33, 0, %s32
      %s35 = sadd.s32 1, %s26
      %s36 = scalar_select %p33, %s35, %s26
      %p37 = scmp.ge.s32.totalorder %s36, 2
      %s38 = scalar_select %p37, 0, %s36
      %s39 = ssub.s32 %s26, %s38
      %p40 = scmp.eq.s32.totalorder %s39, 0
      %s42 = sadd.s32 %s41, 1
      %s43 = scalar_select %p40, %s41, %s42
      %p46 = pneg %p40
      %p47 = scmp.eq.s32.totalorder %s19, 1
      %p48 = por %p46, %p47
      %p49 = scmp.ne.s32.totalorder %s41, %s44
      %p50 = scmp.eq.s32.totalorder %s19, 0
      %p51 = por %p49, %p50
      %p52 = scmp.ne.s32.totalorder %s41, %s44
      %p53 = scmp.eq.s32.totalorder %s24, 1
      %p54 = por %p52, %p53
      %p55 = scmp.ne.s32.totalorder %s44, %s45
      %p56 = scmp.eq.s32.totalorder %s24, 0
      %p57 = por %p55, %p56
      %p58 = scmp.ne.s32.totalorder %s44, %s45
      %p59 = scmp.eq.s32.totalorder %s25, 1
      %p60 = por %p58, %p59
      %p62 = scmp.ne.s32.totalorder %s45, %s61
      %p63 = scmp.eq.s32.totalorder %s25, 0
      %p64 = por %p62, %p63
      %s65 = ssub.s32 %s27, %s34
      %p66 = scmp.eq.s32.totalorder %s65, 0
      %s68 = sadd.s32 %s67, 1
      %s69 = scalar_select %p66, %s67, %s68
      %p72 = pneg %p66
      %p73 = scmp.eq.s32.totalorder %s19, 1
      %p74 = por %p72, %p73
      %p75 = scmp.ne.s32.totalorder %s67, %s70
      %p76 = scmp.eq.s32.totalorder %s19, 0
      %p77 = por %p75, %p76
      %p78 = scmp.ne.s32.totalorder %s67, %s70
      %p79 = scmp.eq.s32.totalorder %s24, 1
      %p80 = por %p78, %p79
      %p81 = scmp.ne.s32.totalorder %s70, %s71
      %p82 = scmp.eq.s32.totalorder %s24, 0
      %p83 = por %p81, %p82
      %p84 = scmp.ne.s32.totalorder %s70, %s71
      %p85 = scmp.eq.s32.totalorder %s25, 1
      %p86 = por %p84, %p85
      %p88 = scmp.ne.s32.totalorder %s71, %s87
      %p89 = scmp.eq.s32.totalorder %s25, 0
      %p90 = por %p88, %p89
      %s91 = ssub.s32 %s27, %s34
      %p92 = scmp.eq.s32.totalorder %s91, 0
      %s94 = sadd.s32 %s93, 1
      %s95 = scalar_select %p92, %s93, %s94
      %p98 = pneg %p92
      %p99 = scmp.eq.s32.totalorder %s19, 1
      %p100 = por %p98, %p99
      %p101 = scmp.ne.s32.totalorder %s93, %s96
      %p102 = scmp.eq.s32.totalorder %s19, 0
      %p103 = por %p101, %p102
      %p104 = scmp.ne.s32.totalorder %s93, %s96
      %p105 = scmp.eq.s32.totalorder %s24, 1
      %p106 = por %p104, %p105
      %p107 = scmp.ne.s32.totalorder %s96, %s97
      %p108 = scmp.eq.s32.totalorder %s24, 0
      %p109 = por %p107, %p108
      %p110 = scmp.ne.s32.totalorder %s96, %s97
      %p111 = scmp.eq.s32.totalorder %s25, 1
      %p112 = por %p110, %p111
      %p114 = scmp.ne.s32.totalorder %s97, %s113
      %p115 = scmp.eq.s32.totalorder %s25, 0
      %p116 = por %p114, %p115
      %s117 = ssub.s32 %s27, %s34
      %p118 = scmp.eq.s32.totalorder %s117, 0
      %s120 = sadd.s32 %s119, 1
      %s121 = scalar_select %p118, %s119, %s120
      %p124 = pneg %p118
      %p125 = scmp.eq.s32.totalorder %s19, 1
      %p126 = por %p124, %p125
      %p127 = scmp.ne.s32.totalorder %s119, %s122
      %p128 = scmp.eq.s32.totalorder %s19, 0
      %p129 = por %p127, %p128
      %p130 = scmp.ne.s32.totalorder %s119, %s122
      %p131 = scmp.eq.s32.totalorder %s24, 1
      %p132 = por %p130, %p131
      %p133 = scmp.ne.s32.totalorder %s122, %s123
      %p134 = scmp.eq.s32.totalorder %s24, 0
      %p135 = por %p133, %p134
      %p136 = scmp.ne.s32.totalorder %s122, %s123
      %p137 = scmp.eq.s32.totalorder %s25, 1
      %p138 = por %p136, %p137
      %p140 = scmp.ne.s32.totalorder %s123, %s139
      %p141 = scmp.eq.s32.totalorder %s25, 0
      %p142 = por %p140, %p141
      %s144 = sadd.s32 %s143, 1
      %p147 = scmp.eq.s32.totalorder %s19, 1
      %p148 = scmp.ne.s32.totalorder %s143, %s145
      %p149 = scmp.eq.s32.totalorder %s19, 0
      %p150 = por %p148, %p149
      %p151 = scmp.ne.s32.totalorder %s143, %s145
      %p152 = scmp.eq.s32.totalorder %s24, 1
      %p153 = por %p151, %p152
      %p154 = scmp.ne.s32.totalorder %s145, %s146
      %p155 = scmp.eq.s32.totalorder %s24, 0
      %p156 = por %p154, %p155
      %p157 = scmp.ne.s32.totalorder %s145, %s146
      %p158 = scmp.eq.s32.totalorder %s25, 1
      %p159 = por %p157, %p158
      %p161 = scmp.ne.s32.totalorder %s146, %s160
      %p162 = scmp.eq.s32.totalorder %s25, 0
      %p163 = por %p161, %p162
      %s164 = ssub.s32 %s26, %s38
      %p165 = scmp.eq.s32.totalorder %s164, 0
      %s167 = sadd.s32 %s166, 1
      %s168 = scalar_select %p165, %s166, %s167
      %p171 = pneg %p165
      %p172 = scmp.eq.s32.totalorder %s19, 1
      %p173 = por %p171, %p172
      %p174 = scmp.ne.s32.totalorder %s166, %s169
      %p175 = scmp.eq.s32.totalorder %s19, 0
      %p176 = por %p174, %p175
      %p177 = scmp.ne.s32.totalorder %s166, %s169
      %p178 = scmp.eq.s32.totalorder %s24, 1
      %p179 = por %p177, %p178
      %p180 = scmp.ne.s32.totalorder %s169, %s170
      %p181 = scmp.eq.s32.totalorder %s24, 0
      %p182 = por %p180, %p181
      %p183 = scmp.ne.s32.totalorder %s169, %s170
      %p184 = scmp.eq.s32.totalorder %s25, 1
      %p185 = por %p183, %p184
      %p187 = scmp.ne.s32.totalorder %s170, %s186
      %p188 = scmp.eq.s32.totalorder %s25, 0
      %p189 = por %p187, %p188
      %p190 = scmp.le.s32.totalorder 1, %s19
      %p191 = scmp.lt.s32.totalorder %s19, 3
      %p192 = pnand %p190, %p191
      %p193 = pneg %p192
      // Predicated region
      $region9: #{tpu_custom_call.1} parent=5 // pred_check
        _
      $region10: #{tpu_custom_call.1} parent=5 // pred_check_branch
        %195 = sbr.rel (%p192) target = $region12
      $region11: #{tpu_custom_call.1} parent=5 // pred_region
        %s196 = ssub.s32 %s19, 1
        // Predicated region
        $region13: #{tpu_custom_call.1} parent=11 // pred_check
          %p197 = pneg %p83
        $region14: #{tpu_custom_call.1} parent=11 // pred_check_branch
          %199 = sbr.rel (%p197) target = $region16
        $region15: #{tpu_custom_call.1} parent=11 // pred_region
          %s200 = smul.u32 4, %s29
          %202 = vsyncadd [#allocation7], 0
          %s203 = smul.addr %s200, 4
          %s204 = scalar_lea.hbm %s1, %s203
          %s205 = sshll.u32 %s204, 4
          %s206 = int_to_ptr.hbm [resolvable:$true] %s205
          %s207 = sshll.u32 [#allocation6], 4
          %s208 = int_to_ptr.vmem [resolvable:$true] %s207
          %213 = dma.hbm_to_vmem [thread:$0]  %s206, 8192, %s208, [#allocation7], 256, 256, 16
        $region16: #{tpu_custom_call.1} parent=11 // pred_fallthru
          _
        // Predicated region
        $region17: #{tpu_custom_call.1} parent=11 // pred_check
          %p214 = pneg %p109
        $region18: #{tpu_custom_call.1} parent=11 // pred_check_branch
          %216 = sbr.rel (%p214) target = $region20
        $region19: #{tpu_custom_call.1} parent=11 // pred_region
          %s217 = smul.u32 4, %s29
          %219 = vsyncadd [#allocation7], 0
          %s220 = scalar_lea.hbm %s2, %s217
          %s222 = sshll.u32 %s220, 4
          %s223 = int_to_ptr.hbm [resolvable:$true] %s222
          %s224 = sshll.u32 [#allocation8], 4
          %s225 = int_to_ptr.vmem [resolvable:$true] %s224
          %227 = dma.hbm_to_vmem [thread:$0]  %s223, 64, %s225, [#allocation7]
        $region20: #{tpu_custom_call.1} parent=11 // pred_fallthru
          _
        // Predicated region
        $region21: #{tpu_custom_call.1} parent=11 // pred_check
          %p228 = pneg %p135
        $region22: #{tpu_custom_call.1} parent=11 // pred_check_branch
          %230 = sbr.rel (%p228) target = $region24
        $region23: #{tpu_custom_call.1} parent=11 // pred_region
          %s231 = smul.u32 64, %s29
          %233 = vsyncadd [#allocation10], 0
          %s234 = smul.addr %s231, 2
          %s235 = smul.addr %s234, 4
          %s236 = scalar_lea.hbm %s3, %s235
          %s237 = sshll.u32 %s236, 4
          %s238 = int_to_ptr.hbm [resolvable:$true] %s237
          %s239 = sshll.u32 [#allocation9], 4
          %s240 = int_to_ptr.vmem [resolvable:$true] %s239
          %245 = dma.hbm_to_vmem [thread:$0]  %s238, 8192, %s240, [#allocation10], 128, 128, 8
        $region24: #{tpu_custom_call.1} parent=11 // pred_fallthru
          _
        // Predicated region
        $region25: #{tpu_custom_call.1} parent=11 // pred_check
          %p246 = pneg %p156
        $region26: #{tpu_custom_call.1} parent=11 // pred_check_branch
          %248 = sbr.rel (%p246) target = $region28
        $region27: #{tpu_custom_call.1} parent=11 // pred_region
          _
        $region28: #{tpu_custom_call.1} parent=11 // pred_fallthru
          _
      $region12: #{tpu_custom_call.1} parent=5 // pred_fallthru
        _
      %p249 = scmp.lt.s32.totalorder %s19, 2
      // Predicated region
      $region29: #{tpu_custom_call.1} parent=5 // pred_check
        %p250 = pneg %p249
      $region30: #{tpu_custom_call.1} parent=5 // pred_check_branch
        %252 = sbr.rel (%p250) target = $region32
      $region31: #{tpu_custom_call.1} parent=5 // pred_region
        // Predicated region
        $region33: #{tpu_custom_call.1} parent=31 // pred_check
          %p253 = pneg %p51
        $region34: #{tpu_custom_call.1} parent=31 // pred_check_branch
          %255 = sbr.rel (%p253) target = $region36
        $region35: #{tpu_custom_call.1} parent=31 // pred_region
          %s256 = sand.u32 %s41, 1
          %s257 = scalar_lea.sflag [#allocation4], %s256
          %s258 = sand.u32 %s41, 1
          %s259 = smul.addr %s258, 152
          %s260 = scalar_lea.vmem [#allocation3], %s259
          %s261 = smul.u32 19, %s26
          %263 = vsyncadd %s257, 0
          %s264 = smul.addr %s261, 2
          %s265 = smul.addr %s264, 4
          %s266 = scalar_lea.hbm %s0, %s265
          %s267 = sshll.u32 %s266, 4
          %s268 = int_to_ptr.hbm [resolvable:$true] %s267
          %s269 = sshll.u32 %s260, 4
          %s270 = int_to_ptr.vmem [resolvable:$true] %s269
          %275 = dma.hbm_to_vmem [thread:$0]  %s268, 2432, %s270, %s257, 128, 128, 8
        $region36: #{tpu_custom_call.1} parent=31 // pred_fallthru
          _
      $region32: #{tpu_custom_call.1} parent=5 // pred_fallthru
        _
      %p276 = scmp.le.s32.totalorder 1, %s19
      %p277 = scmp.lt.s32.totalorder %s19, 3
      %p278 = pnand %p276, %p277
      %p279 = pneg %p278
      // Predicated region
      $region37: #{tpu_custom_call.1} parent=5 // pred_check
        _
      $region38: #{tpu_custom_call.1} parent=5 // pred_check_branch
        %281 = sbr.rel (%p278) target = $region40
      $region39: #{tpu_custom_call.1} parent=5 // pred_region
        %s282 = ssub.s32 %s19, 1
        %s283 = sand.u32 %s44, 1
        %s284 = scalar_lea.sflag [#allocation4], %s283
        %s285 = sand.u32 %s44, 1
        %s286 = smul.addr %s285, 152
        %s287 = scalar_lea.vmem [#allocation3], %s286
        // Predicated region
        $region41: #{tpu_custom_call.1} parent=39 // pred_check
          %p288 = pneg %p57
        $region42: #{tpu_custom_call.1} parent=39 // pred_check_branch
          %290 = sbr.rel (%p288) target = $region44
        $region43: #{tpu_custom_call.1} parent=39 // pred_region
          %292 = dma.done %s284, 2432
        $region44: #{tpu_custom_call.1} parent=39 // pred_fallthru
          _
        // Predicated region
        $region45: #{tpu_custom_call.1} parent=39 // pred_check
          %p293 = pneg %p83
        $region46: #{tpu_custom_call.1} parent=39 // pred_check_branch
          %295 = sbr.rel (%p293) target = $region48
        $region47: #{tpu_custom_call.1} parent=39 // pred_region
          %297 = dma.done [#allocation7], 8192
        $region48: #{tpu_custom_call.1} parent=39 // pred_fallthru
          _
        // Predicated region
        $region49: #{tpu_custom_call.1} parent=39 // pred_check
          %p298 = pneg %p109
        $region50: #{tpu_custom_call.1} parent=39 // pred_check_branch
          %300 = sbr.rel (%p298) target = $region52
        $region51: #{tpu_custom_call.1} parent=39 // pred_region
          %302 = dma.done [#allocation7], 64
        $region52: #{tpu_custom_call.1} parent=39 // pred_fallthru
          _
        // Predicated region
        $region53: #{tpu_custom_call.1} parent=39 // pred_check
          %p303 = pneg %p135
        $region54: #{tpu_custom_call.1} parent=39 // pred_check_branch
          %305 = sbr.rel (%p303) target = $region56
        $region55: #{tpu_custom_call.1} parent=39 // pred_region
          %307 = dma.done [#allocation10], 8192
        $region56: #{tpu_custom_call.1} parent=39 // pred_fallthru
          _
        %s308 = sand.u32 %s44, 1
        %s309 = scalar_lea.sflag [#allocation4], %s308
        %s310 = sand.u32 %s44, 1
        %s311 = smul.addr %s310, 152
        %s312 = scalar_lea.vmem [#allocation3], %s311
        %p313 = pneg %p57
        %p314 = pneg %p54
        %p315 = pneg %p83
        %p316 = pneg %p80
        %p317 = pneg %p109
        %p318 = pneg %p106
        %p319 = pneg %p135
        %p320 = pneg %p132
        %p321 = pneg %p156
        %p322 = pneg %p153
        %p323 = pneg %p182
        %p324 = pneg %p179
        %s325 = sand.u32 %s169, 1
        %s326 = scalar_lea.sflag [#allocation5], %s325
        %s327 = sand.u32 %s169, 1
        %s328 = smul.addr %s327, 152
        %s329 = scalar_lea.vmem [#allocation11], %s328
        %s330 = smul.u32 19, %s28
        %s331 = smul.u32 4, %s29
        %s332 = smul.u32 4, %s29
        %s333 = smul.u32 64, %s29
        %s334 = smul.u32 19, %s28
        %p335 = scmp.eq.s32.totalorder %s29, 0
        // Predicated region
        $region57: #{tpu_custom_call.1} parent=39 // pred_check
          %p336 = pneg %p335
        $region58: #{tpu_custom_call.1} parent=39 // pred_check_branch
          %338 = sbr.rel (%p336) target = $region60
        $region59: #{tpu_custom_call.1} parent=39 // pred_region
          %339 = vst [vmem:[#allocation2] sm:$0xff] 0.0
          %340 = vst [vmem:[#allocation2 + $0x8] sm:$0xff] 0.0
          %341 = vst [vmem:[#allocation2 + $0x10] sm:$0xff] 0.0
          %342 = vst [vmem:[#allocation2 + $0x18] sm:$0xff] 0.0
          %343 = vst [vmem:[#allocation2 + $0x20] sm:$0xff] 0.0
          %344 = vst [vmem:[#allocation2 + $0x28] sm:$0xff] 0.0
          %345 = vst [vmem:[#allocation2 + $0x30] sm:$0xff] 0.0
          %346 = vst [vmem:[#allocation2 + $0x38] sm:$0xff] 0.0
          %347 = vst [vmem:[#allocation2 + $0x40] sm:$0xff] 0.0
          %348 = vst [vmem:[#allocation2 + $0x48] sm:$0xff] 0.0
          %349 = vst [vmem:[#allocation2 + $0x50] sm:$0xff] 0.0
          %350 = vst [vmem:[#allocation2 + $0x58] sm:$0xff] 0.0
          %351 = vst [vmem:[#allocation2 + $0x60] sm:$0xff] 0.0
          %352 = vst [vmem:[#allocation2 + $0x68] sm:$0xff] 0.0
          %353 = vst [vmem:[#allocation2 + $0x70] sm:$0xff] 0.0
          %354 = vst [vmem:[#allocation2 + $0x78] sm:$0xff] 0.0
          %355 = vst [vmem:[#allocation2 + $0x80] sm:$0xff] 0.0
          %356 = vst [vmem:[#allocation2 + $0x88] sm:$0xff] 0.0
          %357 = vst [vmem:[#allocation2 + $0x90] sm:$0xff] 0.0
          %358 = vst [vmem:[#allocation2 + $0x98] sm:$0xff] 0.0
          %359 = vst [vmem:[#allocation2 + $0xa0] sm:$0xff] 0.0
          %360 = vst [vmem:[#allocation2 + $0xa8] sm:$0xff] 0.0
          %361 = vst [vmem:[#allocation2 + $0xb0] sm:$0xff] 0.0
          %362 = vst [vmem:[#allocation2 + $0xb8] sm:$0xff] 0.0
          %363 = vst [vmem:[#allocation2 + $0xc0] sm:$0xff] 0.0
          %364 = vst [vmem:[#allocation2 + $0xc8] sm:$0xff] 0.0
          %365 = vst [vmem:[#allocation2 + $0xd0] sm:$0xff] 0.0
          %366 = vst [vmem:[#allocation2 + $0xd8] sm:$0xff] 0.0
          %367 = vst [vmem:[#allocation2 + $0xe0] sm:$0xff] 0.0
          %368 = vst [vmem:[#allocation2 + $0xe8] sm:$0xff] 0.0
          %369 = vst [vmem:[#allocation2 + $0xf0] sm:$0xff] 0.0
          %370 = vst [vmem:[#allocation2 + $0xf8] sm:$0xff] 0.0
          %371 = vst [vmem:[#allocation2 + $0x100] sm:$0xff] 0.0
          %372 = vst [vmem:[#allocation2 + $0x108] sm:$0xff] 0.0
          %373 = vst [vmem:[#allocation2 + $0x110] sm:$0xff] 0.0
          %374 = vst [vmem:[#allocation2 + $0x118] sm:$0xff] 0.0
          %375 = vst [vmem:[#allocation2 + $0x120] sm:$0xff] 0.0
          %376 = vst [vmem:[#allocation2 + $0x128] sm:$0xff] 0.0
        $region60: #{tpu_custom_call.1} parent=39 // pred_fallthru
          _
        %v377 = vld [vmem:[%s287] sm:$0xff]
        %v378 = vld [vmem:[%s287 + $0x8] sm:$0xff]
        %v379 = vld [vmem:[%s287 + $0x10] sm:$0xff]
        %v380 = vld [vmem:[%s287 + $0x18] sm:$0xff]
        %v381 = vld [vmem:[%s287 + $0x20] sm:$0xff]
        %v382 = vld [vmem:[%s287 + $0x28] sm:$0xff]
        %v383 = vld [vmem:[%s287 + $0x30] sm:$0xff]
        %v384 = vld [vmem:[%s287 + $0x38] sm:$0xff]
        %v385 = vld [vmem:[%s287 + $0x40] sm:$0xff]
        %v386 = vld [vmem:[%s287 + $0x48] sm:$0xff]
        %v387 = vld [vmem:[%s287 + $0x50] sm:$0xff]
        %v388 = vld [vmem:[%s287 + $0x58] sm:$0xff]
        %v389 = vld [vmem:[%s287 + $0x60] sm:$0xff]
        %v390 = vld [vmem:[%s287 + $0x68] sm:$0xff]
        %v391 = vld [vmem:[%s287 + $0x70] sm:$0xff]
        %v392 = vld [vmem:[%s287 + $0x78] sm:$0xff]
        %v393 = vld [vmem:[%s287 + $0x80] sm:$0xff]
        %v394 = vld [vmem:[%s287 + $0x88] sm:$0xff]
        %v395 = vld [vmem:[%s287 + $0x90] sm:$0xff]
        %v396 = vld [vmem:[#allocation6] sm:$0xff]
        %v397 = vld [vmem:[#allocation6 + $0x8] sm:$0xff]
        %v398 = vld [vmem:[#allocation6 + $0x10] sm:$0xff]
        %v399 = vld [vmem:[#allocation6 + $0x18] sm:$0xff]
        %v400 = vld [vmem:[#allocation6 + $0x20] sm:$0xff]
        %v401 = vld [vmem:[#allocation6 + $0x28] sm:$0xff]
        %v402 = vld [vmem:[#allocation6 + $0x30] sm:$0xff]
        %v403 = vld [vmem:[#allocation6 + $0x38] sm:$0xff]
        %v404 = vld [vmem:[#allocation6 + $0x40] sm:$0xff]
        %v405 = vld [vmem:[#allocation6 + $0x48] sm:$0xff]
        %v406 = vld [vmem:[#allocation6 + $0x50] sm:$0xff]
        %v407 = vld [vmem:[#allocation6 + $0x58] sm:$0xff]
        %v408 = vld [vmem:[#allocation6 + $0x60] sm:$0xff]
        %v409 = vld [vmem:[#allocation6 + $0x68] sm:$0xff]
        %v410 = vld [vmem:[#allocation6 + $0x70] sm:$0xff]
        %v411 = vld [vmem:[#allocation6 + $0x78] sm:$0xff]
        %v412 = vld [vmem:[#allocation6 + $0x80] sm:$0xff]
        %v413 = vld [vmem:[#allocation6 + $0x88] sm:$0xff]
        %v414 = vld [vmem:[#allocation6 + $0x90] sm:$0xff]
        %v415 = vld [vmem:[#allocation6 + $0x98] sm:$0xff]
        %v416 = vld [vmem:[#allocation6 + $0xa0] sm:$0xff]
        %v417 = vld [vmem:[#allocation6 + $0xa8] sm:$0xff]
        %v418 = vld [vmem:[#allocation6 + $0xb0] sm:$0xff]
        %v419 = vld [vmem:[#allocation6 + $0xb8] sm:$0xff]
        %v420 = vld [vmem:[#allocation6 + $0xc0] sm:$0xff]
        %v421 = vld [vmem:[#allocation6 + $0xc8] sm:$0xff]
        %v422 = vld [vmem:[#allocation6 + $0xd0] sm:$0xff]
        %v423 = vld [vmem:[#allocation6 + $0xd8] sm:$0xff]
        %v424 = vld [vmem:[#allocation6 + $0xe0] sm:$0xff]
        %v425 = vld [vmem:[#allocation6 + $0xe8] sm:$0xff]
        %v426 = vld [vmem:[#allocation6 + $0xf0] sm:$0xff]
        %v427 = vld [vmem:[#allocation6 + $0xf8] sm:$0xff]
        %v428 = vld [vmem:[#allocation6 + $0x100] sm:$0xff]
        %v429 = vld [vmem:[#allocation6 + $0x108] sm:$0xff]
        %v430 = vld [vmem:[#allocation6 + $0x110] sm:$0xff]
        %v431 = vld [vmem:[#allocation6 + $0x118] sm:$0xff]
        %v432 = vld [vmem:[#allocation6 + $0x120] sm:$0xff]
        %v433 = vld [vmem:[#allocation6 + $0x128] sm:$0xff]
        %v434 = vld [vmem:[#allocation6 + $0x130] sm:$0xff]
        %v435 = vld [vmem:[#allocation6 + $0x138] sm:$0xff]
        %v436 = vld [vmem:[#allocation6 + $0x140] sm:$0xff]
        %v437 = vld [vmem:[#allocation6 + $0x148] sm:$0xff]
        %v438 = vld [vmem:[#allocation6 + $0x150] sm:$0xff]
        %v439 = vld [vmem:[#allocation6 + $0x158] sm:$0xff]
        %v440 = vld [vmem:[#allocation6 + $0x160] sm:$0xff]
        %v441 = vld [vmem:[#allocation6 + $0x168] sm:$0xff]
        %v442 = vld [vmem:[#allocation6 + $0x170] sm:$0xff]
        %v443 = vld [vmem:[#allocation6 + $0x178] sm:$0xff]
        %v444 = vld [vmem:[#allocation6 + $0x180] sm:$0xff]
        %v445 = vld [vmem:[#allocation6 + $0x188] sm:$0xff]
        %v446 = vld [vmem:[#allocation6 + $0x190] sm:$0xff]
        %v447 = vld [vmem:[#allocation6 + $0x198] sm:$0xff]
        %v448 = vld [vmem:[#allocation6 + $0x1a0] sm:$0xff]
        %v449 = vld [vmem:[#allocation6 + $0x1a8] sm:$0xff]
        %v450 = vld [vmem:[#allocation6 + $0x1b0] sm:$0xff]
        %v451 = vld [vmem:[#allocation6 + $0x1b8] sm:$0xff]
        %v452 = vld [vmem:[#allocation6 + $0x1c0] sm:$0xff]
        %v453 = vld [vmem:[#allocation6 + $0x1c8] sm:$0xff]
        %v454 = vld [vmem:[#allocation6 + $0x1d0] sm:$0xff]
        %v455 = vld [vmem:[#allocation6 + $0x1d8] sm:$0xff]
        %v456 = vld [vmem:[#allocation6 + $0x1e0] sm:$0xff]
        %v457 = vld [vmem:[#allocation6 + $0x1e8] sm:$0xff]
        %v458 = vld [vmem:[#allocation6 + $0x1f0] sm:$0xff]
        %v459 = vld [vmem:[#allocation6 + $0x1f8] sm:$0xff]
        %v460 = vld [vmem:[#allocation8] sm:$0xf]
        %v461 = vunpack.c.l.bf16 %v460
        %v463 = vperm.slane %v461, 0
        %v464 = vperm.slane %v461, 2
        %v465 = vperm.slane %v461, 4
        %v466 = vperm.slane %v461, 6
        %v471 = vperm.slane %v463, 0
        %v472 = vperm.slane %v464, 0
        %v473 = vperm.slane %v465, 0
        %v474 = vperm.slane %v466, 0
        %v494 = vunpack.c.l.b16 %v377
        %v495 = vunpack.c.h.b16 %v377
        %v496 = vunpack.c.l.b16 %v378
        %v497 = vunpack.c.h.b16 %v378
        %v498 = vunpack.c.l.b16 %v379
        %v499 = vunpack.c.h.b16 %v379
        %v500 = vunpack.c.l.b16 %v380
        %v501 = vunpack.c.h.b16 %v380
        %v502 = vunpack.c.l.b16 %v381
        %v503 = vunpack.c.h.b16 %v381
        %v504 = vunpack.c.l.b16 %v382
        %v505 = vunpack.c.h.b16 %v382
        %v506 = vunpack.c.l.b16 %v383
        %v507 = vunpack.c.h.b16 %v383
        %v508 = vunpack.c.l.b16 %v384
        %v509 = vunpack.c.h.b16 %v384
        %v510 = vunpack.c.l.b16 %v385
        %v511 = vunpack.c.h.b16 %v385
        %v512 = vunpack.c.l.b16 %v386
        %v513 = vunpack.c.h.b16 %v386
        %v514 = vunpack.c.l.b16 %v387
        %v515 = vunpack.c.h.b16 %v387
        %v516 = vunpack.c.l.b16 %v388
        %v517 = vunpack.c.h.b16 %v388
        %v518 = vunpack.c.l.b16 %v389
        %v519 = vunpack.c.h.b16 %v389
        %v520 = vunpack.c.l.b16 %v390
        %v521 = vunpack.c.h.b16 %v390
        %v522 = vunpack.c.l.b16 %v391
        %v523 = vunpack.c.h.b16 %v391
        %v524 = vunpack.c.l.b16 %v392
        %v525 = vunpack.c.h.b16 %v392
        %v526 = vunpack.c.l.b16 %v393
        %v527 = vunpack.c.h.b16 %v393
        %v528 = vunpack.c.l.b16 %v394
        %v529 = vunpack.c.h.b16 %v394
        %v530 = vunpack.c.l.b16 %v395
        %v531 = vunpack.c.h.b16 %v395
        %v532 = vpack.c.b16 %v496, %v494
        %v533 = vpack.c.b16 %v497, %v495
        %v534 = vpack.c.b16 %v500, %v498
        %v535 = vpack.c.b16 %v501, %v499
        %v536 = vpack.c.b16 %v504, %v502
        %v537 = vpack.c.b16 %v505, %v503
        %v538 = vpack.c.b16 %v508, %v506
        %v539 = vpack.c.b16 %v509, %v507
        %v540 = vpack.c.b16 %v512, %v510
        %v541 = vpack.c.b16 %v513, %v511
        %v542 = vpack.c.b16 %v516, %v514
        %v543 = vpack.c.b16 %v517, %v515
        %v544 = vpack.c.b16 %v520, %v518
        %v545 = vpack.c.b16 %v521, %v519
        %v546 = vpack.c.b16 %v524, %v522
        %v547 = vpack.c.b16 %v525, %v523
        %v548 = vpack.c.b16 %v528, %v526
        %v549 = vpack.c.b16 %v529, %v527
        %v550 = vpack.c.b16 %v530, %v530
        %v551 = vpack.c.b16 %v531, %v531
        %v636 = vunpack.c.l.b16 %v396
        %v637 = vunpack.c.h.b16 %v396
        %v638 = vunpack.c.l.b16 %v397
        %v639 = vunpack.c.h.b16 %v397
        %v640 = vunpack.c.l.b16 %v398
        %v641 = vunpack.c.h.b16 %v398
        %v642 = vunpack.c.l.b16 %v399
        %v643 = vunpack.c.h.b16 %v399
        %v644 = vunpack.c.l.b16 %v400
        %v645 = vunpack.c.h.b16 %v400
        %v646 = vunpack.c.l.b16 %v401
        %v647 = vunpack.c.h.b16 %v401
        %v648 = vunpack.c.l.b16 %v402
        %v649 = vunpack.c.h.b16 %v402
        %v650 = vunpack.c.l.b16 %v403
        %v651 = vunpack.c.h.b16 %v403
        %v652 = vunpack.c.l.b16 %v404
        %v653 = vunpack.c.h.b16 %v404
        %v654 = vunpack.c.l.b16 %v405
        %v655 = vunpack.c.h.b16 %v405
        %v656 = vunpack.c.l.b16 %v406
        %v657 = vunpack.c.h.b16 %v406
        %v658 = vunpack.c.l.b16 %v407
        %v659 = vunpack.c.h.b16 %v407
        %v660 = vunpack.c.l.b16 %v408
        %v661 = vunpack.c.h.b16 %v408
        %v662 = vunpack.c.l.b16 %v409
        %v663 = vunpack.c.h.b16 %v409
        %v664 = vunpack.c.l.b16 %v410
        %v665 = vunpack.c.h.b16 %v410
        %v666 = vunpack.c.l.b16 %v411
        %v667 = vunpack.c.h.b16 %v411
        %v668 = vunpack.c.l.b16 %v412
        %v669 = vunpack.c.h.b16 %v412
        %v670 = vunpack.c.l.b16 %v413
        %v671 = vunpack.c.h.b16 %v413
        %v672 = vunpack.c.l.b16 %v414
        %v673 = vunpack.c.h.b16 %v414
        %v674 = vunpack.c.l.b16 %v415
        %v675 = vunpack.c.h.b16 %v415
        %v676 = vunpack.c.l.b16 %v416
        %v677 = vunpack.c.h.b16 %v416
        %v678 = vunpack.c.l.b16 %v417
        %v679 = vunpack.c.h.b16 %v417
        %v680 = vunpack.c.l.b16 %v418
        %v681 = vunpack.c.h.b16 %v418
        %v682 = vunpack.c.l.b16 %v419
        %v683 = vunpack.c.h.b16 %v419
        %v684 = vunpack.c.l.b16 %v420
        %v685 = vunpack.c.h.b16 %v420
        %v686 = vunpack.c.l.b16 %v421
        %v687 = vunpack.c.h.b16 %v421
        %v688 = vunpack.c.l.b16 %v422
        %v689 = vunpack.c.h.b16 %v422
        %v690 = vunpack.c.l.b16 %v423
        %v691 = vunpack.c.h.b16 %v423
        %v692 = vunpack.c.l.b16 %v424
        %v693 = vunpack.c.h.b16 %v424
        %v694 = vunpack.c.l.b16 %v425
        %v695 = vunpack.c.h.b16 %v425
        %v696 = vunpack.c.l.b16 %v426
        %v697 = vunpack.c.h.b16 %v426
        %v698 = vunpack.c.l.b16 %v427
        %v699 = vunpack.c.h.b16 %v427
        %v700 = vunpack.c.l.b16 %v428
        %v701 = vunpack.c.h.b16 %v428
        %v702 = vunpack.c.l.b16 %v429
        %v703 = vunpack.c.h.b16 %v429
        %v704 = vunpack.c.l.b16 %v430
        %v705 = vunpack.c.h.b16 %v430
        %v706 = vunpack.c.l.b16 %v431
        %v707 = vunpack.c.h.b16 %v431
        %v708 = vunpack.c.l.b16 %v432
        %v709 = vunpack.c.h.b16 %v432
        %v710 = vunpack.c.l.b16 %v433
        %v711 = vunpack.c.h.b16 %v433
        %v712 = vunpack.c.l.b16 %v434
        %v713 = vunpack.c.h.b16 %v434
        %v714 = vunpack.c.l.b16 %v435
        %v715 = vunpack.c.h.b16 %v435
        %v716 = vunpack.c.l.b16 %v436
        %v717 = vunpack.c.h.b16 %v436
        %v718 = vunpack.c.l.b16 %v437
        %v719 = vunpack.c.h.b16 %v437
        %v720 = vunpack.c.l.b16 %v438
        %v721 = vunpack.c.h.b16 %v438
        %v722 = vunpack.c.l.b16 %v439
        %v723 = vunpack.c.h.b16 %v439
        %v724 = vunpack.c.l.b16 %v440
        %v725 = vunpack.c.h.b16 %v440
        %v726 = vunpack.c.l.b16 %v441
        %v727 = vunpack.c.h.b16 %v441
        %v728 = vunpack.c.l.b16 %v442
        %v729 = vunpack.c.h.b16 %v442
        %v730 = vunpack.c.l.b16 %v443
        %v731 = vunpack.c.h.b16 %v443
        %v732 = vunpack.c.l.b16 %v444
        %v733 = vunpack.c.h.b16 %v444
        %v734 = vunpack.c.l.b16 %v445
        %v735 = vunpack.c.h.b16 %v445
        %v736 = vunpack.c.l.b16 %v446
        %v737 = vunpack.c.h.b16 %v446
        %v738 = vunpack.c.l.b16 %v447
        %v739 = vunpack.c.h.b16 %v447
        %v740 = vunpack.c.l.b16 %v448
        %v741 = vunpack.c.h.b16 %v448
        %v742 = vunpack.c.l.b16 %v449
        %v743 = vunpack.c.h.b16 %v449
        %v744 = vunpack.c.l.b16 %v450
        %v745 = vunpack.c.h.b16 %v450
        %v746 = vunpack.c.l.b16 %v451
        %v747 = vunpack.c.h.b16 %v451
        %v748 = vunpack.c.l.b16 %v452
        %v749 = vunpack.c.h.b16 %v452
        %v750 = vunpack.c.l.b16 %v453
        %v751 = vunpack.c.h.b16 %v453
        %v752 = vunpack.c.l.b16 %v454
        %v753 = vunpack.c.h.b16 %v454
        %v754 = vunpack.c.l.b16 %v455
        %v755 = vunpack.c.h.b16 %v455
        %v756 = vunpack.c.l.b16 %v456
        %v757 = vunpack.c.h.b16 %v456
        %v758 = vunpack.c.l.b16 %v457
        %v759 = vunpack.c.h.b16 %v457
        %v760 = vunpack.c.l.b16 %v458
        %v761 = vunpack.c.h.b16 %v458
        %v762 = vunpack.c.l.b16 %v459
        %v763 = vunpack.c.h.b16 %v459
        %v764 = vpack.c.b16 %v640, %v636
        %v765 = vpack.c.b16 %v641, %v637
        %v766 = vpack.c.b16 %v642, %v638
        %v767 = vpack.c.b16 %v643, %v639
        %v768 = vpack.c.b16 %v648, %v644
        %v769 = vpack.c.b16 %v649, %v645
        %v770 = vpack.c.b16 %v650, %v646
        %v771 = vpack.c.b16 %v651, %v647
        %v772 = vpack.c.b16 %v656, %v652
        %v773 = vpack.c.b16 %v657, %v653
        %v774 = vpack.c.b16 %v658, %v654
        %v775 = vpack.c.b16 %v659, %v655
        %v776 = vpack.c.b16 %v664, %v660
        %v777 = vpack.c.b16 %v665, %v661
        %v778 = vpack.c.b16 %v666, %v662
        %v779 = vpack.c.b16 %v667, %v663
        %v780 = vpack.c.b16 %v672, %v668
        %v781 = vpack.c.b16 %v673, %v669
        %v782 = vpack.c.b16 %v674, %v670
        %v783 = vpack.c.b16 %v675, %v671
        %v784 = vpack.c.b16 %v680, %v676
        %v785 = vpack.c.b16 %v681, %v677
        %v786 = vpack.c.b16 %v682, %v678
        %v787 = vpack.c.b16 %v683, %v679
        %v788 = vpack.c.b16 %v688, %v684
        %v789 = vpack.c.b16 %v689, %v685
        %v790 = vpack.c.b16 %v690, %v686
        %v791 = vpack.c.b16 %v691, %v687
        %v792 = vpack.c.b16 %v696, %v692
        %v793 = vpack.c.b16 %v697, %v693
        %v794 = vpack.c.b16 %v698, %v694
        %v795 = vpack.c.b16 %v699, %v695
        %v796 = vpack.c.b16 %v704, %v700
        %v797 = vpack.c.b16 %v705, %v701
        %v798 = vpack.c.b16 %v706, %v702
        %v799 = vpack.c.b16 %v707, %v703
        %v800 = vpack.c.b16 %v712, %v708
        %v801 = vpack.c.b16 %v713, %v709
        %v802 = vpack.c.b16 %v714, %v710
        %v803 = vpack.c.b16 %v715, %v711
        %v804 = vpack.c.b16 %v720, %v716
        %v805 = vpack.c.b16 %v721, %v717
        %v806 = vpack.c.b16 %v722, %v718
        %v807 = vpack.c.b16 %v723, %v719
        %v808 = vpack.c.b16 %v728, %v724
        %v809 = vpack.c.b16 %v729, %v725
        %v810 = vpack.c.b16 %v730, %v726
        %v811 = vpack.c.b16 %v731, %v727
        %v812 = vpack.c.b16 %v736, %v732
        %v813 = vpack.c.b16 %v737, %v733
        %v814 = vpack.c.b16 %v738, %v734
        %v815 = vpack.c.b16 %v739, %v735
        %v816 = vpack.c.b16 %v744, %v740
        %v817 = vpack.c.b16 %v745, %v741
        %v818 = vpack.c.b16 %v746, %v742
        %v819 = vpack.c.b16 %v747, %v743
        %v820 = vpack.c.b16 %v752, %v748
        %v821 = vpack.c.b16 %v753, %v749
        %v822 = vpack.c.b16 %v754, %v750
        %v823 = vpack.c.b16 %v755, %v751
        %v824 = vpack.c.b16 %v760, %v756
        %v825 = vpack.c.b16 %v761, %v757
        %v826 = vpack.c.b16 %v762, %v758
        %v827 = vpack.c.b16 %v763, %v759
        %892 = vmatpush.bf16.msra.mxu0 %v792
        %893 = vmatpush.bf16.msra.mxu0 %v788
        %894 = vmatpush.bf16.msra.mxu0 %v784
        %895 = vmatpush.bf16.msra.mxu0 %v780
        %896 = vmatpush.bf16.msra.mxu0 %v776
        %897 = vmatpush.bf16.msra.mxu0 %v772
        %898 = vmatpush.bf16.msra.mxu0 %v768
        %899 = vmatpush.bf16.msra.mxu0 %v764
        %900 = vmatmul.bf16.gmra.mxu0 %v532
        %v901 = vpop.f32.mrf.mxu0
        %v902 = vadd.f32 %v471, %v901
        %v903 = vpop.f32.mrf.mxu0
        %v904 = vadd.f32 %v471, %v903
        %905 = vmatmul.bf16.gmra.mxu0 %v534
        %v906 = vpop.f32.mrf.mxu0
        %v907 = vadd.f32 %v471, %v906
        %v908 = vpop.f32.mrf.mxu0
        %v909 = vadd.f32 %v471, %v908
        %910 = vmatmul.bf16.gmra.mxu0 %v536
        %v911 = vpop.f32.mrf.mxu0
        %v912 = vadd.f32 %v471, %v911
        %v913 = vpop.f32.mrf.mxu0
        %v914 = vadd.f32 %v471, %v913
        %915 = vmatmul.bf16.gmra.mxu0 %v538
        %v916 = vpop.f32.mrf.mxu0
        %v917 = vadd.f32 %v471, %v916
        %v918 = vpop.f32.mrf.mxu0
        %v919 = vadd.f32 %v471, %v918
        %920 = vmatmul.bf16.gmra.mxu0 %v540
        %v921 = vpop.f32.mrf.mxu0
        %v922 = vadd.f32 %v471, %v921
        %v923 = vpop.f32.mrf.mxu0
        %v924 = vadd.f32 %v471, %v923
        %925 = vmatmul.bf16.gmra.mxu0 %v542
        %v926 = vpop.f32.mrf.mxu0
        %v927 = vadd.f32 %v471, %v926
        %v928 = vpop.f32.mrf.mxu0
        %v929 = vadd.f32 %v471, %v928
        %930 = vmatmul.bf16.gmra.mxu0 %v544
        %v931 = vpop.f32.mrf.mxu0
        %v932 = vadd.f32 %v471, %v931
        %v933 = vpop.f32.mrf.mxu0
        %v934 = vadd.f32 %v471, %v933
        %935 = vmatmul.bf16.gmra.mxu0 %v546
        %v936 = vpop.f32.mrf.mxu0
        %v937 = vadd.f32 %v471, %v936
        %v938 = vpop.f32.mrf.mxu0
        %v939 = vadd.f32 %v471, %v938
        %940 = vmatmul.bf16.gmra.mxu0 %v548
        %v941 = vpop.f32.mrf.mxu0
        %v942 = vadd.f32 %v471, %v941
        %v943 = vpop.f32.mrf.mxu0
        %v944 = vadd.f32 %v471, %v943
        %945 = vmatmul.bf16.gmra.mxu0 %v550
        %v946 = vpop.f32.mrf.mxu0
        %v947 = vadd.f32 %v471, %v946
        %v948 = vpop.f32.mrf.mxu0
        %949 = vdwg.mxu0
        %950 = vmatpush.bf16.msra.mxu0 %v824
        %951 = vmatpush.bf16.msra.mxu0 %v820
        %952 = vmatpush.bf16.msra.mxu0 %v816
        %953 = vmatpush.bf16.msra.mxu0 %v812
        %954 = vmatpush.bf16.msra.mxu0 %v808
        %955 = vmatpush.bf16.msra.mxu0 %v804
        %956 = vmatpush.bf16.msra.mxu0 %v800
        %957 = vmatpush.bf16.msra.mxu0 %v796
        %958 = vmatmul.bf16.gmra.mxu0 %v533
        %v959 = vpop.f32.mrf.mxu0
        %v960 = vadd.f32 %v902, %v959
        %v961 = vpop.f32.mrf.mxu0
        %v962 = vadd.f32 %v904, %v961
        %963 = vmatmul.bf16.gmra.mxu0 %v535
        %v964 = vpop.f32.mrf.mxu0
        %v965 = vadd.f32 %v907, %v964
        %v966 = vpop.f32.mrf.mxu0
        %v967 = vadd.f32 %v909, %v966
        %968 = vmatmul.bf16.gmra.mxu0 %v537
        %v969 = vpop.f32.mrf.mxu0
        %v970 = vadd.f32 %v912, %v969
        %v971 = vpop.f32.mrf.mxu0
        %v972 = vadd.f32 %v914, %v971
        %973 = vmatmul.bf16.gmra.mxu0 %v539
        %v974 = vpop.f32.mrf.mxu0
        %v975 = vadd.f32 %v917, %v974
        %v976 = vpop.f32.mrf.mxu0
        %v977 = vadd.f32 %v919, %v976
        %978 = vmatmul.bf16.gmra.mxu0 %v541
        %v979 = vpop.f32.mrf.mxu0
        %v980 = vadd.f32 %v922, %v979
        %v981 = vpop.f32.mrf.mxu0
        %v982 = vadd.f32 %v924, %v981
        %983 = vmatmul.bf16.gmra.mxu0 %v543
        %v984 = vpop.f32.mrf.mxu0
        %v985 = vadd.f32 %v927, %v984
        %v986 = vpop.f32.mrf.mxu0
        %v987 = vadd.f32 %v929, %v986
        %988 = vmatmul.bf16.gmra.mxu0 %v545
        %v989 = vpop.f32.mrf.mxu0
        %v990 = vadd.f32 %v932, %v989
        %v991 = vpop.f32.mrf.mxu0
        %v992 = vadd.f32 %v934, %v991
        %993 = vmatmul.bf16.gmra.mxu0 %v547
        %v994 = vpop.f32.mrf.mxu0
        %v995 = vadd.f32 %v937, %v994
        %v996 = vpop.f32.mrf.mxu0
        %v997 = vadd.f32 %v939, %v996
        %998 = vmatmul.bf16.gmra.mxu0 %v549
        %v999 = vpop.f32.mrf.mxu0
        %v1000 = vadd.f32 %v942, %v999
        %v1001 = vpop.f32.mrf.mxu0
        %v1002 = vadd.f32 %v944, %v1001
        %1003 = vmatmul.bf16.gmra.mxu0 %v551
        %v1004 = vpop.f32.mrf.mxu0
        %v1005 = vadd.f32 %v947, %v1004
        %v1006 = vpop.f32.mrf.mxu0
        %1007 = vdwg.mxu0
        %1008 = vmatpush.bf16.msra.mxu0 %v793
        %1009 = vmatpush.bf16.msra.mxu0 %v789
        %1010 = vmatpush.bf16.msra.mxu0 %v785
        %1011 = vmatpush.bf16.msra.mxu0 %v781
        %1012 = vmatpush.bf16.msra.mxu0 %v777
        %1013 = vmatpush.bf16.msra.mxu0 %v773
        %1014 = vmatpush.bf16.msra.mxu0 %v769
        %1015 = vmatpush.bf16.msra.mxu0 %v765
        %1016 = vmatmul.bf16.gmra.mxu0 %v532
        %v1017 = vpop.f32.mrf.mxu0
        %v1018 = vadd.f32 %v472, %v1017
        %v1019 = vpop.f32.mrf.mxu0
        %v1020 = vadd.f32 %v472, %v1019
        %1021 = vmatmul.bf16.gmra.mxu0 %v534
        %v1022 = vpop.f32.mrf.mxu0
        %v1023 = vadd.f32 %v472, %v1022
        %v1024 = vpop.f32.mrf.mxu0
        %v1025 = vadd.f32 %v472, %v1024
        %1026 = vmatmul.bf16.gmra.mxu0 %v536
        %v1027 = vpop.f32.mrf.mxu0
        %v1028 = vadd.f32 %v472, %v1027
        %v1029 = vpop.f32.mrf.mxu0
        %v1030 = vadd.f32 %v472, %v1029
        %1031 = vmatmul.bf16.gmra.mxu0 %v538
        %v1032 = vpop.f32.mrf.mxu0
        %v1033 = vadd.f32 %v472, %v1032
        %v1034 = vpop.f32.mrf.mxu0
        %v1035 = vadd.f32 %v472, %v1034
        %1036 = vmatmul.bf16.gmra.mxu0 %v540
        %v1037 = vpop.f32.mrf.mxu0
        %v1038 = vadd.f32 %v472, %v1037
        %v1039 = vpop.f32.mrf.mxu0
        %v1040 = vadd.f32 %v472, %v1039
        %1041 = vmatmul.bf16.gmra.mxu0 %v542
        %v1042 = vpop.f32.mrf.mxu0
        %v1043 = vadd.f32 %v472, %v1042
        %v1044 = vpop.f32.mrf.mxu0
        %v1045 = vadd.f32 %v472, %v1044
        %1046 = vmatmul.bf16.gmra.mxu0 %v544
        %v1047 = vpop.f32.mrf.mxu0
        %v1048 = vadd.f32 %v472, %v1047
        %v1049 = vpop.f32.mrf.mxu0
        %v1050 = vadd.f32 %v472, %v1049
        %1051 = vmatmul.bf16.gmra.mxu0 %v546
        %v1052 = vpop.f32.mrf.mxu0
        %v1053 = vadd.f32 %v472, %v1052
        %v1054 = vpop.f32.mrf.mxu0
        %v1055 = vadd.f32 %v472, %v1054
        %1056 = vmatmul.bf16.gmra.mxu0 %v548
        %v1057 = vpop.f32.mrf.mxu0
        %v1058 = vadd.f32 %v472, %v1057
        %v1059 = vpop.f32.mrf.mxu0
        %v1060 = vadd.f32 %v472, %v1059
        %1061 = vmatmul.bf16.gmra.mxu0 %v550
        %v1062 = vpop.f32.mrf.mxu0
        %v1063 = vadd.f32 %v472, %v1062
        %v1064 = vpop.f32.mrf.mxu0
        %1065 = vdwg.mxu0
        %1066 = vmatpush.bf16.msra.mxu0 %v825
        %1067 = vmatpush.bf16.msra.mxu0 %v821
        %1068 = vmatpush.bf16.msra.mxu0 %v817
        %1069 = vmatpush.bf16.msra.mxu0 %v813
        %1070 = vmatpush.bf16.msra.mxu0 %v809
        %1071 = vmatpush.bf16.msra.mxu0 %v805
        %1072 = vmatpush.bf16.msra.mxu0 %v801
        %1073 = vmatpush.bf16.msra.mxu0 %v797
        %1074 = vmatmul.bf16.gmra.mxu0 %v533
        %v1075 = vpop.f32.mrf.mxu0
        %v1076 = vadd.f32 %v1018, %v1075
        %v1077 = vpop.f32.mrf.mxu0
        %v1078 = vadd.f32 %v1020, %v1077
        %1079 = vmatmul.bf16.gmra.mxu0 %v535
        %v1080 = vpop.f32.mrf.mxu0
        %v1081 = vadd.f32 %v1023, %v1080
        %v1082 = vpop.f32.mrf.mxu0
        %v1083 = vadd.f32 %v1025, %v1082
        %1084 = vmatmul.bf16.gmra.mxu0 %v537
        %v1085 = vpop.f32.mrf.mxu0
        %v1086 = vadd.f32 %v1028, %v1085
        %v1087 = vpop.f32.mrf.mxu0
        %v1088 = vadd.f32 %v1030, %v1087
        %1089 = vmatmul.bf16.gmra.mxu0 %v539
        %v1090 = vpop.f32.mrf.mxu0
        %v1091 = vadd.f32 %v1033, %v1090
        %v1092 = vpop.f32.mrf.mxu0
        %v1093 = vadd.f32 %v1035, %v1092
        %1094 = vmatmul.bf16.gmra.mxu0 %v541
        %v1095 = vpop.f32.mrf.mxu0
        %v1096 = vadd.f32 %v1038, %v1095
        %v1097 = vpop.f32.mrf.mxu0
        %v1098 = vadd.f32 %v1040, %v1097
        %1099 = vmatmul.bf16.gmra.mxu0 %v543
        %v1100 = vpop.f32.mrf.mxu0
        %v1101 = vadd.f32 %v1043, %v1100
        %v1102 = vpop.f32.mrf.mxu0
        %v1103 = vadd.f32 %v1045, %v1102
        %1104 = vmatmul.bf16.gmra.mxu0 %v545
        %v1105 = vpop.f32.mrf.mxu0
        %v1106 = vadd.f32 %v1048, %v1105
        %v1107 = vpop.f32.mrf.mxu0
        %v1108 = vadd.f32 %v1050, %v1107
        %1109 = vmatmul.bf16.gmra.mxu0 %v547
        %v1110 = vpop.f32.mrf.mxu0
        %v1111 = vadd.f32 %v1053, %v1110
        %v1112 = vpop.f32.mrf.mxu0
        %v1113 = vadd.f32 %v1055, %v1112
        %1114 = vmatmul.bf16.gmra.mxu0 %v549
        %v1115 = vpop.f32.mrf.mxu0
        %v1116 = vadd.f32 %v1058, %v1115
        %v1117 = vpop.f32.mrf.mxu0
        %v1118 = vadd.f32 %v1060, %v1117
        %1119 = vmatmul.bf16.gmra.mxu0 %v551
        %v1120 = vpop.f32.mrf.mxu0
        %v1121 = vadd.f32 %v1063, %v1120
        %v1122 = vpop.f32.mrf.mxu0
        %1123 = vdwg.mxu0
        %1124 = vmatpush.bf16.msra.mxu0 %v794
        %1125 = vmatpush.bf16.msra.mxu0 %v790
        %1126 = vmatpush.bf16.msra.mxu0 %v786
        %1127 = vmatpush.bf16.msra.mxu0 %v782
        %1128 = vmatpush.bf16.msra.mxu0 %v778
        %1129 = vmatpush.bf16.msra.mxu0 %v774
        %1130 = vmatpush.bf16.msra.mxu0 %v770
        %1131 = vmatpush.bf16.msra.mxu0 %v766
        %1132 = vmatmul.bf16.gmra.mxu0 %v532
        %v1133 = vpop.f32.mrf.mxu0
        %v1134 = vadd.f32 %v473, %v1133
        %v1135 = vpop.f32.mrf.mxu0
        %v1136 = vadd.f32 %v473, %v1135
        %1137 = vmatmul.bf16.gmra.mxu0 %v534
        %v1138 = vpop.f32.mrf.mxu0
        %v1139 = vadd.f32 %v473, %v1138
        %v1140 = vpop.f32.mrf.mxu0
        %v1141 = vadd.f32 %v473, %v1140
        %1142 = vmatmul.bf16.gmra.mxu0 %v536
        %v1143 = vpop.f32.mrf.mxu0
        %v1144 = vadd.f32 %v473, %v1143
        %v1145 = vpop.f32.mrf.mxu0
        %v1146 = vadd.f32 %v473, %v1145
        %1147 = vmatmul.bf16.gmra.mxu0 %v538
        %v1148 = vpop.f32.mrf.mxu0
        %v1149 = vadd.f32 %v473, %v1148
        %v1150 = vpop.f32.mrf.mxu0
        %v1151 = vadd.f32 %v473, %v1150
        %1152 = vmatmul.bf16.gmra.mxu0 %v540
        %v1153 = vpop.f32.mrf.mxu0
        %v1154 = vadd.f32 %v473, %v1153
        %v1155 = vpop.f32.mrf.mxu0
        %v1156 = vadd.f32 %v473, %v1155
        %1157 = vmatmul.bf16.gmra.mxu0 %v542
        %v1158 = vpop.f32.mrf.mxu0
        %v1159 = vadd.f32 %v473, %v1158
        %v1160 = vpop.f32.mrf.mxu0
        %v1161 = vadd.f32 %v473, %v1160
        %1162 = vmatmul.bf16.gmra.mxu0 %v544
        %v1163 = vpop.f32.mrf.mxu0
        %v1164 = vadd.f32 %v473, %v1163
        %v1165 = vpop.f32.mrf.mxu0
        %v1166 = vadd.f32 %v473, %v1165
        %1167 = vmatmul.bf16.gmra.mxu0 %v546
        %v1168 = vpop.f32.mrf.mxu0
        %v1169 = vadd.f32 %v473, %v1168
        %v1170 = vpop.f32.mrf.mxu0
        %v1171 = vadd.f32 %v473, %v1170
        %1172 = vmatmul.bf16.gmra.mxu0 %v548
        %v1173 = vpop.f32.mrf.mxu0
        %v1174 = vadd.f32 %v473, %v1173
        %v1175 = vpop.f32.mrf.mxu0
        %v1176 = vadd.f32 %v473, %v1175
        %1177 = vmatmul.bf16.gmra.mxu0 %v550
        %v1178 = vpop.f32.mrf.mxu0
        %v1179 = vadd.f32 %v473, %v1178
        %v1180 = vpop.f32.mrf.mxu0
        %1181 = vdwg.mxu0
        %1182 = vmatpush.bf16.msra.mxu0 %v826
        %1183 = vmatpush.bf16.msra.mxu0 %v822
        %1184 = vmatpush.bf16.msra.mxu0 %v818
        %1185 = vmatpush.bf16.msra.mxu0 %v814
        %1186 = vmatpush.bf16.msra.mxu0 %v810
        %1187 = vmatpush.bf16.msra.mxu0 %v806
        %1188 = vmatpush.bf16.msra.mxu0 %v802
        %1189 = vmatpush.bf16.msra.mxu0 %v798
        %1190 = vmatmul.bf16.gmra.mxu0 %v533
        %v1191 = vpop.f32.mrf.mxu0
        %v1192 = vadd.f32 %v1134, %v1191
        %v1193 = vpop.f32.mrf.mxu0
        %v1194 = vadd.f32 %v1136, %v1193
        %1195 = vmatmul.bf16.gmra.mxu0 %v535
        %v1196 = vpop.f32.mrf.mxu0
        %v1197 = vadd.f32 %v1139, %v1196
        %v1198 = vpop.f32.mrf.mxu0
        %v1199 = vadd.f32 %v1141, %v1198
        %1200 = vmatmul.bf16.gmra.mxu0 %v537
        %v1201 = vpop.f32.mrf.mxu0
        %v1202 = vadd.f32 %v1144, %v1201
        %v1203 = vpop.f32.mrf.mxu0
        %v1204 = vadd.f32 %v1146, %v1203
        %1205 = vmatmul.bf16.gmra.mxu0 %v539
        %v1206 = vpop.f32.mrf.mxu0
        %v1207 = vadd.f32 %v1149, %v1206
        %v1208 = vpop.f32.mrf.mxu0
        %v1209 = vadd.f32 %v1151, %v1208
        %1210 = vmatmul.bf16.gmra.mxu0 %v541
        %v1211 = vpop.f32.mrf.mxu0
        %v1212 = vadd.f32 %v1154, %v1211
        %v1213 = vpop.f32.mrf.mxu0
        %v1214 = vadd.f32 %v1156, %v1213
        %1215 = vmatmul.bf16.gmra.mxu0 %v543
        %v1216 = vpop.f32.mrf.mxu0
        %v1217 = vadd.f32 %v1159, %v1216
        %v1218 = vpop.f32.mrf.mxu0
        %v1219 = vadd.f32 %v1161, %v1218
        %1220 = vmatmul.bf16.gmra.mxu0 %v545
        %v1221 = vpop.f32.mrf.mxu0
        %v1222 = vadd.f32 %v1164, %v1221
        %v1223 = vpop.f32.mrf.mxu0
        %v1224 = vadd.f32 %v1166, %v1223
        %1225 = vmatmul.bf16.gmra.mxu0 %v547
        %v1226 = vpop.f32.mrf.mxu0
        %v1227 = vadd.f32 %v1169, %v1226
        %v1228 = vpop.f32.mrf.mxu0
        %v1229 = vadd.f32 %v1171, %v1228
        %1230 = vmatmul.bf16.gmra.mxu0 %v549
        %v1231 = vpop.f32.mrf.mxu0
        %v1232 = vadd.f32 %v1174, %v1231
        %v1233 = vpop.f32.mrf.mxu0
        %v1234 = vadd.f32 %v1176, %v1233
        %1235 = vmatmul.bf16.gmra.mxu0 %v551
        %v1236 = vpop.f32.mrf.mxu0
        %v1237 = vadd.f32 %v1179, %v1236
        %v1238 = vpop.f32.mrf.mxu0
        %1239 = vdwg.mxu0
        %1240 = vmatpush.bf16.msra.mxu0 %v795
        %1241 = vmatpush.bf16.msra.mxu0 %v791
        %1242 = vmatpush.bf16.msra.mxu0 %v787
        %1243 = vmatpush.bf16.msra.mxu0 %v783
        %1244 = vmatpush.bf16.msra.mxu0 %v779
        %1245 = vmatpush.bf16.msra.mxu0 %v775
        %1246 = vmatpush.bf16.msra.mxu0 %v771
        %1247 = vmatpush.bf16.msra.mxu0 %v767
        %1248 = vmatmul.bf16.gmra.mxu0 %v532
        %v1249 = vpop.f32.mrf.mxu0
        %v1250 = vadd.f32 %v474, %v1249
        %v1251 = vpop.f32.mrf.mxu0
        %v1252 = vadd.f32 %v474, %v1251
        %1253 = vmatmul.bf16.gmra.mxu0 %v534
        %v1254 = vpop.f32.mrf.mxu0
        %v1255 = vadd.f32 %v474, %v1254
        %v1256 = vpop.f32.mrf.mxu0
        %v1257 = vadd.f32 %v474, %v1256
        %1258 = vmatmul.bf16.gmra.mxu0 %v536
        %v1259 = vpop.f32.mrf.mxu0
        %v1260 = vadd.f32 %v474, %v1259
        %v1261 = vpop.f32.mrf.mxu0
        %v1262 = vadd.f32 %v474, %v1261
        %1263 = vmatmul.bf16.gmra.mxu0 %v538
        %v1264 = vpop.f32.mrf.mxu0
        %v1265 = vadd.f32 %v474, %v1264
        %v1266 = vpop.f32.mrf.mxu0
        %v1267 = vadd.f32 %v474, %v1266
        %1268 = vmatmul.bf16.gmra.mxu0 %v540
        %v1269 = vpop.f32.mrf.mxu0
        %v1270 = vadd.f32 %v474, %v1269
        %v1271 = vpop.f32.mrf.mxu0
        %v1272 = vadd.f32 %v474, %v1271
        %1273 = vmatmul.bf16.gmra.mxu0 %v542
        %v1274 = vpop.f32.mrf.mxu0
        %v1275 = vadd.f32 %v474, %v1274
        %v1276 = vpop.f32.mrf.mxu0
        %v1277 = vadd.f32 %v474, %v1276
        %1278 = vmatmul.bf16.gmra.mxu0 %v544
        %v1279 = vpop.f32.mrf.mxu0
        %v1280 = vadd.f32 %v474, %v1279
        %v1281 = vpop.f32.mrf.mxu0
        %v1282 = vadd.f32 %v474, %v1281
        %1283 = vmatmul.bf16.gmra.mxu0 %v546
        %v1284 = vpop.f32.mrf.mxu0
        %v1285 = vadd.f32 %v474, %v1284
        %v1286 = vpop.f32.mrf.mxu0
        %v1287 = vadd.f32 %v474, %v1286
        %1288 = vmatmul.bf16.gmra.mxu0 %v548
        %v1289 = vpop.f32.mrf.mxu0
        %v1290 = vadd.f32 %v474, %v1289
        %v1291 = vpop.f32.mrf.mxu0
        %v1292 = vadd.f32 %v474, %v1291
        %1293 = vmatmul.bf16.gmra.mxu0 %v550
        %v1294 = vpop.f32.mrf.mxu0
        %v1295 = vadd.f32 %v474, %v1294
        %v1296 = vpop.f32.mrf.mxu0
        %1297 = vdwg.mxu0
        %1298 = vmatpush.bf16.msra.mxu0 %v827
        %1299 = vmatpush.bf16.msra.mxu0 %v823
        %1300 = vmatpush.bf16.msra.mxu0 %v819
        %1301 = vmatpush.bf16.msra.mxu0 %v815
        %1302 = vmatpush.bf16.msra.mxu0 %v811
        %1303 = vmatpush.bf16.msra.mxu0 %v807
        %1304 = vmatpush.bf16.msra.mxu0 %v803
        %1305 = vmatpush.bf16.msra.mxu0 %v799
        %1306 = vmatmul.bf16.gmra.mxu0 %v533
        %v1307 = vpop.f32.mrf.mxu0
        %v1308 = vadd.f32 %v1250, %v1307
        %v1309 = vpop.f32.mrf.mxu0
        %v1310 = vadd.f32 %v1252, %v1309
        %1311 = vmatmul.bf16.gmra.mxu0 %v535
        %v1312 = vpop.f32.mrf.mxu0
        %v1313 = vadd.f32 %v1255, %v1312
        %v1314 = vpop.f32.mrf.mxu0
        %v1315 = vadd.f32 %v1257, %v1314
        %1316 = vmatmul.bf16.gmra.mxu0 %v537
        %v1317 = vpop.f32.mrf.mxu0
        %v1318 = vadd.f32 %v1260, %v1317
        %v1319 = vpop.f32.mrf.mxu0
        %v1320 = vadd.f32 %v1262, %v1319
        %1321 = vmatmul.bf16.gmra.mxu0 %v539
        %v1322 = vpop.f32.mrf.mxu0
        %v1323 = vadd.f32 %v1265, %v1322
        %v1324 = vpop.f32.mrf.mxu0
        %v1325 = vadd.f32 %v1267, %v1324
        %1326 = vmatmul.bf16.gmra.mxu0 %v541
        %v1327 = vpop.f32.mrf.mxu0
        %v1328 = vadd.f32 %v1270, %v1327
        %v1329 = vpop.f32.mrf.mxu0
        %v1330 = vadd.f32 %v1272, %v1329
        %1331 = vmatmul.bf16.gmra.mxu0 %v543
        %v1332 = vpop.f32.mrf.mxu0
        %v1333 = vadd.f32 %v1275, %v1332
        %v1334 = vpop.f32.mrf.mxu0
        %v1335 = vadd.f32 %v1277, %v1334
        %1336 = vmatmul.bf16.gmra.mxu0 %v545
        %v1337 = vpop.f32.mrf.mxu0
        %v1338 = vadd.f32 %v1280, %v1337
        %v1339 = vpop.f32.mrf.mxu0
        %v1340 = vadd.f32 %v1282, %v1339
        %1341 = vmatmul.bf16.gmra.mxu0 %v547
        %v1342 = vpop.f32.mrf.mxu0
        %v1343 = vadd.f32 %v1285, %v1342
        %v1344 = vpop.f32.mrf.mxu0
        %v1345 = vadd.f32 %v1287, %v1344
        %1346 = vmatmul.bf16.gmra.mxu0 %v549
        %v1347 = vpop.f32.mrf.mxu0
        %v1348 = vadd.f32 %v1290, %v1347
        %v1349 = vpop.f32.mrf.mxu0
        %v1350 = vadd.f32 %v1292, %v1349
        %1351 = vmatmul.bf16.gmra.mxu0 %v551
        %v1352 = vpop.f32.mrf.mxu0
        %v1353 = vadd.f32 %v1295, %v1352
        %v1354 = vpop.f32.mrf.mxu0
        %1355 = vdwg.mxu0
        %v1356 = vmul.f32 %v960, 0.5
        %v1357 = vmul.f32 %v1076, 0.5
        %v1358 = vmul.f32 %v1192, 0.5
        %v1359 = vmul.f32 %v1308, 0.5
        %v1360 = vmul.f32 %v962, 0.5
        %v1361 = vmul.f32 %v1078, 0.5
        %v1362 = vmul.f32 %v1194, 0.5
        %v1363 = vmul.f32 %v1310, 0.5
        %v1364 = vmul.f32 %v965, 0.5
        %v1365 = vmul.f32 %v1081, 0.5
        %v1366 = vmul.f32 %v1197, 0.5
        %v1367 = vmul.f32 %v1313, 0.5
        %v1368 = vmul.f32 %v967, 0.5
        %v1369 = vmul.f32 %v1083, 0.5
        %v1370 = vmul.f32 %v1199, 0.5
        %v1371 = vmul.f32 %v1315, 0.5
        %v1372 = vmul.f32 %v970, 0.5
        %v1373 = vmul.f32 %v1086, 0.5
        %v1374 = vmul.f32 %v1202, 0.5
        %v1375 = vmul.f32 %v1318, 0.5
        %v1376 = vmul.f32 %v972, 0.5
        %v1377 = vmul.f32 %v1088, 0.5
        %v1378 = vmul.f32 %v1204, 0.5
        %v1379 = vmul.f32 %v1320, 0.5
        %v1380 = vmul.f32 %v975, 0.5
        %v1381 = vmul.f32 %v1091, 0.5
        %v1382 = vmul.f32 %v1207, 0.5
        %v1383 = vmul.f32 %v1323, 0.5
        %v1384 = vmul.f32 %v977, 0.5
        %v1385 = vmul.f32 %v1093, 0.5
        %v1386 = vmul.f32 %v1209, 0.5
        %v1387 = vmul.f32 %v1325, 0.5
        %v1388 = vmul.f32 %v980, 0.5
        %v1389 = vmul.f32 %v1096, 0.5
        %v1390 = vmul.f32 %v1212, 0.5
        %v1391 = vmul.f32 %v1328, 0.5
        %v1392 = vmul.f32 %v982, 0.5
        %v1393 = vmul.f32 %v1098, 0.5
        %v1394 = vmul.f32 %v1214, 0.5
        %v1395 = vmul.f32 %v1330, 0.5
        %v1396 = vmul.f32 %v985, 0.5
        %v1397 = vmul.f32 %v1101, 0.5
        %v1398 = vmul.f32 %v1217, 0.5
        %v1399 = vmul.f32 %v1333, 0.5
        %v1400 = vmul.f32 %v987, 0.5
        %v1401 = vmul.f32 %v1103, 0.5
        %v1402 = vmul.f32 %v1219, 0.5
        %v1403 = vmul.f32 %v1335, 0.5
        %v1404 = vmul.f32 %v990, 0.5
        %v1405 = vmul.f32 %v1106, 0.5
        %v1406 = vmul.f32 %v1222, 0.5
        %v1407 = vmul.f32 %v1338, 0.5
        %v1408 = vmul.f32 %v992, 0.5
        %v1409 = vmul.f32 %v1108, 0.5
        %v1410 = vmul.f32 %v1224, 0.5
        %v1411 = vmul.f32 %v1340, 0.5
        %v1412 = vmul.f32 %v995, 0.5
        %v1413 = vmul.f32 %v1111, 0.5
        %v1414 = vmul.f32 %v1227, 0.5
        %v1415 = vmul.f32 %v1343, 0.5
        %v1416 = vmul.f32 %v997, 0.5
        %v1417 = vmul.f32 %v1113, 0.5
        %v1418 = vmul.f32 %v1229, 0.5
        %v1419 = vmul.f32 %v1345, 0.5
        %v1420 = vmul.f32 %v1000, 0.5
        %v1421 = vmul.f32 %v1116, 0.5
        %v1422 = vmul.f32 %v1232, 0.5
        %v1423 = vmul.f32 %v1348, 0.5
        %v1424 = vmul.f32 %v1002, 0.5
        %v1425 = vmul.f32 %v1118, 0.5
        %v1426 = vmul.f32 %v1234, 0.5
        %v1427 = vmul.f32 %v1350, 0.5
        %v1428 = vmul.f32 %v1005, 0.5
        %v1429 = vmul.f32 %v1121, 0.5
        %v1430 = vmul.f32 %v1237, 0.5
        %v1431 = vmul.f32 %v1353, 0.5
        %v1432 = vmul.f32 %v960, 0.70710677
        %v1433 = vmul.f32 %v1076, 0.70710677
        %v1434 = vmul.f32 %v1192, 0.70710677
        %v1435 = vmul.f32 %v1308, 0.70710677
        %v1436 = vmul.f32 %v962, 0.70710677
        %v1437 = vmul.f32 %v1078, 0.70710677
        %v1438 = vmul.f32 %v1194, 0.70710677
        %v1439 = vmul.f32 %v1310, 0.70710677
        %v1440 = vmul.f32 %v965, 0.70710677
        %v1441 = vmul.f32 %v1081, 0.70710677
        %v1442 = vmul.f32 %v1197, 0.70710677
        %v1443 = vmul.f32 %v1313, 0.70710677
        %v1444 = vmul.f32 %v967, 0.70710677
        %v1445 = vmul.f32 %v1083, 0.70710677
        %v1446 = vmul.f32 %v1199, 0.70710677
        %v1447 = vmul.f32 %v1315, 0.70710677
        %v1448 = vmul.f32 %v970, 0.70710677
        %v1449 = vmul.f32 %v1086, 0.70710677
        %v1450 = vmul.f32 %v1202, 0.70710677
        %v1451 = vmul.f32 %v1318, 0.70710677
        %v1452 = vmul.f32 %v972, 0.70710677
        %v1453 = vmul.f32 %v1088, 0.70710677
        %v1454 = vmul.f32 %v1204, 0.70710677
        %v1455 = vmul.f32 %v1320, 0.70710677
        %v1456 = vmul.f32 %v975, 0.70710677
        %v1457 = vmul.f32 %v1091, 0.70710677
        %v1458 = vmul.f32 %v1207, 0.70710677
        %v1459 = vmul.f32 %v1323, 0.70710677
        %v1460 = vmul.f32 %v977, 0.70710677
        %v1461 = vmul.f32 %v1093, 0.70710677
        %v1462 = vmul.f32 %v1209, 0.70710677
        %v1463 = vmul.f32 %v1325, 0.70710677
        %v1464 = vmul.f32 %v980, 0.70710677
        %v1465 = vmul.f32 %v1096, 0.70710677
        %v1466 = vmul.f32 %v1212, 0.70710677
        %v1467 = vmul.f32 %v1328, 0.70710677
        %v1468 = vmul.f32 %v982, 0.70710677
        %v1469 = vmul.f32 %v1098, 0.70710677
        %v1470 = vmul.f32 %v1214, 0.70710677
        %v1471 = vmul.f32 %v1330, 0.70710677
        %v1472 = vmul.f32 %v985, 0.70710677
        %v1473 = vmul.f32 %v1101, 0.70710677
        %v1474 = vmul.f32 %v1217, 0.70710677
        %v1475 = vmul.f32 %v1333, 0.70710677
        %v1476 = vmul.f32 %v987, 0.70710677
        %v1477 = vmul.f32 %v1103, 0.70710677
        %v1478 = vmul.f32 %v1219, 0.70710677
        %v1479 = vmul.f32 %v1335, 0.70710677
        %v1480 = vmul.f32 %v990, 0.70710677
        %v1481 = vmul.f32 %v1106, 0.70710677
        %v1482 = vmul.f32 %v1222, 0.70710677
        %v1483 = vmul.f32 %v1338, 0.70710677
        %v1484 = vmul.f32 %v992, 0.70710677
        %v1485 = vmul.f32 %v1108, 0.70710677
        %v1486 = vmul.f32 %v1224, 0.70710677
        %v1487 = vmul.f32 %v1340, 0.70710677
        %v1488 = vmul.f32 %v995, 0.70710677
        %v1489 = vmul.f32 %v1111, 0.70710677
        %v1490 = vmul.f32 %v1227, 0.70710677
        %v1491 = vmul.f32 %v1343, 0.70710677
        %v1492 = vmul.f32 %v997, 0.70710677
        %v1493 = vmul.f32 %v1113, 0.70710677
        %v1494 = vmul.f32 %v1229, 0.70710677
        %v1495 = vmul.f32 %v1345, 0.70710677
        %v1496 = vmul.f32 %v1000, 0.70710677
        %v1497 = vmul.f32 %v1116, 0.70710677
        %v1498 = vmul.f32 %v1232, 0.70710677
        %v1499 = vmul.f32 %v1348, 0.70710677
        %v1500 = vmul.f32 %v1002, 0.70710677
        %v1501 = vmul.f32 %v1118, 0.70710677
        %v1502 = vmul.f32 %v1234, 0.70710677
        %v1503 = vmul.f32 %v1350, 0.70710677
        %v1504 = vmul.f32 %v1005, 0.70710677
        %v1505 = vmul.f32 %v1121, 0.70710677
        %v1506 = vmul.f32 %v1237, 0.70710677
        %v1507 = vmul.f32 %v1353, 0.70710677
        %v1508 = vand.u32 2147483647, %v1432
        %v1509 = vand.u32 2147483647, %v1433
        %v1510 = vand.u32 2147483647, %v1434
        %v1511 = vand.u32 2147483647, %v1435
        %v1512 = vand.u32 2147483647, %v1436
        %v1513 = vand.u32 2147483647, %v1437
        %v1514 = vand.u32 2147483647, %v1438
        %v1515 = vand.u32 2147483647, %v1439
        %v1516 = vand.u32 2147483647, %v1440
        %v1517 = vand.u32 2147483647, %v1441
        %v1518 = vand.u32 2147483647, %v1442
        %v1519 = vand.u32 2147483647, %v1443
        %v1520 = vand.u32 2147483647, %v1444
        %v1521 = vand.u32 2147483647, %v1445
        %v1522 = vand.u32 2147483647, %v1446
        %v1523 = vand.u32 2147483647, %v1447
        %v1524 = vand.u32 2147483647, %v1448
        %v1525 = vand.u32 2147483647, %v1449
        %v1526 = vand.u32 2147483647, %v1450
        %v1527 = vand.u32 2147483647, %v1451
        %v1528 = vand.u32 2147483647, %v1452
        %v1529 = vand.u32 2147483647, %v1453
        %v1530 = vand.u32 2147483647, %v1454
        %v1531 = vand.u32 2147483647, %v1455
        %v1532 = vand.u32 2147483647, %v1456
        %v1533 = vand.u32 2147483647, %v1457
        %v1534 = vand.u32 2147483647, %v1458
        %v1535 = vand.u32 2147483647, %v1459
        %v1536 = vand.u32 2147483647, %v1460
        %v1537 = vand.u32 2147483647, %v1461
        %v1538 = vand.u32 2147483647, %v1462
        %v1539 = vand.u32 2147483647, %v1463
        %v1540 = vand.u32 2147483647, %v1464
        %v1541 = vand.u32 2147483647, %v1465
        %v1542 = vand.u32 2147483647, %v1466
        %v1543 = vand.u32 2147483647, %v1467
        %v1544 = vand.u32 2147483647, %v1468
        %v1545 = vand.u32 2147483647, %v1469
        %v1546 = vand.u32 2147483647, %v1470
        %v1547 = vand.u32 2147483647, %v1471
        %v1548 = vand.u32 2147483647, %v1472
        %v1549 = vand.u32 2147483647, %v1473
        %v1550 = vand.u32 2147483647, %v1474
        %v1551 = vand.u32 2147483647, %v1475
        %v1552 = vand.u32 2147483647, %v1476
        %v1553 = vand.u32 2147483647, %v1477
        %v1554 = vand.u32 2147483647, %v1478
        %v1555 = vand.u32 2147483647, %v1479
        %v1556 = vand.u32 2147483647, %v1480
        %v1557 = vand.u32 2147483647, %v1481
        %v1558 = vand.u32 2147483647, %v1482
        %v1559 = vand.u32 2147483647, %v1483
        %v1560 = vand.u32 2147483647, %v1484
        %v1561 = vand.u32 2147483647, %v1485
        %v1562 = vand.u32 2147483647, %v1486
        %v1563 = vand.u32 2147483647, %v1487
        %v1564 = vand.u32 2147483647, %v1488
        %v1565 = vand.u32 2147483647, %v1489
        %v1566 = vand.u32 2147483647, %v1490
        %v1567 = vand.u32 2147483647, %v1491
        %v1568 = vand.u32 2147483647, %v1492
        %v1569 = vand.u32 2147483647, %v1493
        %v1570 = vand.u32 2147483647, %v1494
        %v1571 = vand.u32 2147483647, %v1495
        %v1572 = vand.u32 2147483647, %v1496
        %v1573 = vand.u32 2147483647, %v1497
        %v1574 = vand.u32 2147483647, %v1498
        %v1575 = vand.u32 2147483647, %v1499
        %v1576 = vand.u32 2147483647, %v1500
        %v1577 = vand.u32 2147483647, %v1501
        %v1578 = vand.u32 2147483647, %v1502
        %v1579 = vand.u32 2147483647, %v1503
        %v1580 = vand.u32 2147483647, %v1504
        %v1581 = vand.u32 2147483647, %v1505
        %v1582 = vand.u32 2147483647, %v1506
        %v1583 = vand.u32 2147483647, %v1507
        %v1584 = vmul.f32 %v1508, 0.3275911
        %v1585 = vmul.f32 %v1509, 0.3275911
        %v1586 = vmul.f32 %v1510, 0.3275911
        %v1587 = vmul.f32 %v1511, 0.3275911
        %v1588 = vmul.f32 %v1512, 0.3275911
        %v1589 = vmul.f32 %v1513, 0.3275911
        %v1590 = vmul.f32 %v1514, 0.3275911
        %v1591 = vmul.f32 %v1515, 0.3275911
        %v1592 = vmul.f32 %v1516, 0.3275911
        %v1593 = vmul.f32 %v1517, 0.3275911
        %v1594 = vmul.f32 %v1518, 0.3275911
        %v1595 = vmul.f32 %v1519, 0.3275911
        %v1596 = vmul.f32 %v1520, 0.3275911
        %v1597 = vmul.f32 %v1521, 0.3275911
        %v1598 = vmul.f32 %v1522, 0.3275911
        %v1599 = vmul.f32 %v1523, 0.3275911
        %v1600 = vmul.f32 %v1524, 0.3275911
        %v1601 = vmul.f32 %v1525, 0.3275911
        %v1602 = vmul.f32 %v1526, 0.3275911
        %v1603 = vmul.f32 %v1527, 0.3275911
        %v1604 = vmul.f32 %v1528, 0.3275911
        %v1605 = vmul.f32 %v1529, 0.3275911
        %v1606 = vmul.f32 %v1530, 0.3275911
        %v1607 = vmul.f32 %v1531, 0.3275911
        %v1608 = vmul.f32 %v1532, 0.3275911
        %v1609 = vmul.f32 %v1533, 0.3275911
        %v1610 = vmul.f32 %v1534, 0.3275911
        %v1611 = vmul.f32 %v1535, 0.3275911
        %v1612 = vmul.f32 %v1536, 0.3275911
        %v1613 = vmul.f32 %v1537, 0.3275911
        %v1614 = vmul.f32 %v1538, 0.3275911
        %v1615 = vmul.f32 %v1539, 0.3275911
        %v1616 = vmul.f32 %v1540, 0.3275911
        %v1617 = vmul.f32 %v1541, 0.3275911
        %v1618 = vmul.f32 %v1542, 0.3275911
        %v1619 = vmul.f32 %v1543, 0.3275911
        %v1620 = vmul.f32 %v1544, 0.3275911
        %v1621 = vmul.f32 %v1545, 0.3275911
        %v1622 = vmul.f32 %v1546, 0.3275911
        %v1623 = vmul.f32 %v1547, 0.3275911
        %v1624 = vmul.f32 %v1548, 0.3275911
        %v1625 = vmul.f32 %v1549, 0.3275911
        %v1626 = vmul.f32 %v1550, 0.3275911
        %v1627 = vmul.f32 %v1551, 0.3275911
        %v1628 = vmul.f32 %v1552, 0.3275911
        %v1629 = vmul.f32 %v1553, 0.3275911
        %v1630 = vmul.f32 %v1554, 0.3275911
        %v1631 = vmul.f32 %v1555, 0.3275911
        %v1632 = vmul.f32 %v1556, 0.3275911
        %v1633 = vmul.f32 %v1557, 0.3275911
        %v1634 = vmul.f32 %v1558, 0.3275911
        %v1635 = vmul.f32 %v1559, 0.3275911
        %v1636 = vmul.f32 %v1560, 0.3275911
        %v1637 = vmul.f32 %v1561, 0.3275911
        %v1638 = vmul.f32 %v1562, 0.3275911
        %v1639 = vmul.f32 %v1563, 0.3275911
        %v1640 = vmul.f32 %v1564, 0.3275911
        %v1641 = vmul.f32 %v1565, 0.3275911
        %v1642 = vmul.f32 %v1566, 0.3275911
        %v1643 = vmul.f32 %v1567, 0.3275911
        %v1644 = vmul.f32 %v1568, 0.3275911
        %v1645 = vmul.f32 %v1569, 0.3275911
        %v1646 = vmul.f32 %v1570, 0.3275911
        %v1647 = vmul.f32 %v1571, 0.3275911
        %v1648 = vmul.f32 %v1572, 0.3275911
        %v1649 = vmul.f32 %v1573, 0.3275911
        %v1650 = vmul.f32 %v1574, 0.3275911
        %v1651 = vmul.f32 %v1575, 0.3275911
        %v1652 = vmul.f32 %v1576, 0.3275911
        %v1653 = vmul.f32 %v1577, 0.3275911
        %v1654 = vmul.f32 %v1578, 0.3275911
        %v1655 = vmul.f32 %v1579, 0.3275911
        %v1656 = vmul.f32 %v1580, 0.3275911
        %v1657 = vmul.f32 %v1581, 0.3275911
        %v1658 = vmul.f32 %v1582, 0.3275911
        %v1659 = vmul.f32 %v1583, 0.3275911
        %v1660 = vadd.f32 %v1584, 1.0
        %v1661 = vadd.f32 %v1585, 1.0
        %v1662 = vadd.f32 %v1586, 1.0
        %v1663 = vadd.f32 %v1587, 1.0
        %v1664 = vadd.f32 %v1588, 1.0
        %v1665 = vadd.f32 %v1589, 1.0
        %v1666 = vadd.f32 %v1590, 1.0
        %v1667 = vadd.f32 %v1591, 1.0
        %v1668 = vadd.f32 %v1592, 1.0
        %v1669 = vadd.f32 %v1593, 1.0
        %v1670 = vadd.f32 %v1594, 1.0
        %v1671 = vadd.f32 %v1595, 1.0
        %v1672 = vadd.f32 %v1596, 1.0
        %v1673 = vadd.f32 %v1597, 1.0
        %v1674 = vadd.f32 %v1598, 1.0
        %v1675 = vadd.f32 %v1599, 1.0
        %v1676 = vadd.f32 %v1600, 1.0
        %v1677 = vadd.f32 %v1601, 1.0
        %v1678 = vadd.f32 %v1602, 1.0
        %v1679 = vadd.f32 %v1603, 1.0
        %v1680 = vadd.f32 %v1604, 1.0
        %v1681 = vadd.f32 %v1605, 1.0
        %v1682 = vadd.f32 %v1606, 1.0
        %v1683 = vadd.f32 %v1607, 1.0
        %v1684 = vadd.f32 %v1608, 1.0
        %v1685 = vadd.f32 %v1609, 1.0
        %v1686 = vadd.f32 %v1610, 1.0
        %v1687 = vadd.f32 %v1611, 1.0
        %v1688 = vadd.f32 %v1612, 1.0
        %v1689 = vadd.f32 %v1613, 1.0
        %v1690 = vadd.f32 %v1614, 1.0
        %v1691 = vadd.f32 %v1615, 1.0
        %v1692 = vadd.f32 %v1616, 1.0
        %v1693 = vadd.f32 %v1617, 1.0
        %v1694 = vadd.f32 %v1618, 1.0
        %v1695 = vadd.f32 %v1619, 1.0
        %v1696 = vadd.f32 %v1620, 1.0
        %v1697 = vadd.f32 %v1621, 1.0
        %v1698 = vadd.f32 %v1622, 1.0
        %v1699 = vadd.f32 %v1623, 1.0
        %v1700 = vadd.f32 %v1624, 1.0
        %v1701 = vadd.f32 %v1625, 1.0
        %v1702 = vadd.f32 %v1626, 1.0
        %v1703 = vadd.f32 %v1627, 1.0
        %v1704 = vadd.f32 %v1628, 1.0
        %v1705 = vadd.f32 %v1629, 1.0
        %v1706 = vadd.f32 %v1630, 1.0
        %v1707 = vadd.f32 %v1631, 1.0
        %v1708 = vadd.f32 %v1632, 1.0
        %v1709 = vadd.f32 %v1633, 1.0
        %v1710 = vadd.f32 %v1634, 1.0
        %v1711 = vadd.f32 %v1635, 1.0
        %v1712 = vadd.f32 %v1636, 1.0
        %v1713 = vadd.f32 %v1637, 1.0
        %v1714 = vadd.f32 %v1638, 1.0
        %v1715 = vadd.f32 %v1639, 1.0
        %v1716 = vadd.f32 %v1640, 1.0
        %v1717 = vadd.f32 %v1641, 1.0
        %v1718 = vadd.f32 %v1642, 1.0
        %v1719 = vadd.f32 %v1643, 1.0
        %v1720 = vadd.f32 %v1644, 1.0
        %v1721 = vadd.f32 %v1645, 1.0
        %v1722 = vadd.f32 %v1646, 1.0
        %v1723 = vadd.f32 %v1647, 1.0
        %v1724 = vadd.f32 %v1648, 1.0
        %v1725 = vadd.f32 %v1649, 1.0
        %v1726 = vadd.f32 %v1650, 1.0
        %v1727 = vadd.f32 %v1651, 1.0
        %v1728 = vadd.f32 %v1652, 1.0
        %v1729 = vadd.f32 %v1653, 1.0
        %v1730 = vadd.f32 %v1654, 1.0
        %v1731 = vadd.f32 %v1655, 1.0
        %v1732 = vadd.f32 %v1656, 1.0
        %v1733 = vadd.f32 %v1657, 1.0
        %v1734 = vadd.f32 %v1658, 1.0
        %v1735 = vadd.f32 %v1659, 1.0
        %v1736 = vrcp.pop %v1660
        %v1737 = vrcp.pop %v1661
        %v1738 = vrcp.pop %v1662
        %v1739 = vrcp.pop %v1663
        %v1740 = vrcp.pop %v1664
        %v1741 = vrcp.pop %v1665
        %v1742 = vrcp.pop %v1666
        %v1743 = vrcp.pop %v1667
        %v1744 = vrcp.pop %v1668
        %v1745 = vrcp.pop %v1669
        %v1746 = vrcp.pop %v1670
        %v1747 = vrcp.pop %v1671
        %v1748 = vrcp.pop %v1672
        %v1749 = vrcp.pop %v1673
        %v1750 = vrcp.pop %v1674
        %v1751 = vrcp.pop %v1675
        %v1752 = vrcp.pop %v1676
        %v1753 = vrcp.pop %v1677
        %v1754 = vrcp.pop %v1678
        %v1755 = vrcp.pop %v1679
        %v1756 = vrcp.pop %v1680
        %v1757 = vrcp.pop %v1681
        %v1758 = vrcp.pop %v1682
        %v1759 = vrcp.pop %v1683
        %v1760 = vrcp.pop %v1684
        %v1761 = vrcp.pop %v1685
        %v1762 = vrcp.pop %v1686
        %v1763 = vrcp.pop %v1687
        %v1764 = vrcp.pop %v1688
        %v1765 = vrcp.pop %v1689
        %v1766 = vrcp.pop %v1690
        %v1767 = vrcp.pop %v1691
        %v1768 = vrcp.pop %v1692
        %v1769 = vrcp.pop %v1693
        %v1770 = vrcp.pop %v1694
        %v1771 = vrcp.pop %v1695
        %v1772 = vrcp.pop %v1696
        %v1773 = vrcp.pop %v1697
        %v1774 = vrcp.pop %v1698
        %v1775 = vrcp.pop %v1699
        %v1776 = vrcp.pop %v1700
        %v1777 = vrcp.pop %v1701
        %v1778 = vrcp.pop %v1702
        %v1779 = vrcp.pop %v1703
        %v1780 = vrcp.pop %v1704
        %v1781 = vrcp.pop %v1705
        %v1782 = vrcp.pop %v1706
        %v1783 = vrcp.pop %v1707
        %v1784 = vrcp.pop %v1708
        %v1785 = vrcp.pop %v1709
        %v1786 = vrcp.pop %v1710
        %v1787 = vrcp.pop %v1711
        %v1788 = vrcp.pop %v1712
        %v1789 = vrcp.pop %v1713
        %v1790 = vrcp.pop %v1714
        %v1791 = vrcp.pop %v1715
        %v1792 = vrcp.pop %v1716
        %v1793 = vrcp.pop %v1717
        %v1794 = vrcp.pop %v1718
        %v1795 = vrcp.pop %v1719
        %v1796 = vrcp.pop %v1720
        %v1797 = vrcp.pop %v1721
        %v1798 = vrcp.pop %v1722
        %v1799 = vrcp.pop %v1723
        %v1800 = vrcp.pop %v1724
        %v1801 = vrcp.pop %v1725
        %v1802 = vrcp.pop %v1726
        %v1803 = vrcp.pop %v1727
        %v1804 = vrcp.pop %v1728
        %v1805 = vrcp.pop %v1729
        %v1806 = vrcp.pop %v1730
        %v1807 = vrcp.pop %v1731
        %v1808 = vrcp.pop %v1732
        %v1809 = vrcp.pop %v1733
        %v1810 = vrcp.pop %v1734
        %v1811 = vrcp.pop %v1735
        %v1812 = vmul.f32 %v1736, 1.0614054
        %v1813 = vmul.f32 %v1737, 1.0614054
        %v1814 = vmul.f32 %v1738, 1.0614054
        %v1815 = vmul.f32 %v1739, 1.0614054
        %v1816 = vmul.f32 %v1740, 1.0614054
        %v1817 = vmul.f32 %v1741, 1.0614054
        %v1818 = vmul.f32 %v1742, 1.0614054
        %v1819 = vmul.f32 %v1743, 1.0614054
        %v1820 = vmul.f32 %v1744, 1.0614054
        %v1821 = vmul.f32 %v1745, 1.0614054
        %v1822 = vmul.f32 %v1746, 1.0614054
        %v1823 = vmul.f32 %v1747, 1.0614054
        %v1824 = vmul.f32 %v1748, 1.0614054
        %v1825 = vmul.f32 %v1749, 1.0614054
        %v1826 = vmul.f32 %v1750, 1.0614054
        %v1827 = vmul.f32 %v1751, 1.0614054
        %v1828 = vmul.f32 %v1752, 1.0614054
        %v1829 = vmul.f32 %v1753, 1.0614054
        %v1830 = vmul.f32 %v1754, 1.0614054
        %v1831 = vmul.f32 %v1755, 1.0614054
        %v1832 = vmul.f32 %v1756, 1.0614054
        %v1833 = vmul.f32 %v1757, 1.0614054
        %v1834 = vmul.f32 %v1758, 1.0614054
        %v1835 = vmul.f32 %v1759, 1.0614054
        %v1836 = vmul.f32 %v1760, 1.0614054
        %v1837 = vmul.f32 %v1761, 1.0614054
        %v1838 = vmul.f32 %v1762, 1.0614054
        %v1839 = vmul.f32 %v1763, 1.0614054
        %v1840 = vmul.f32 %v1764, 1.0614054
        %v1841 = vmul.f32 %v1765, 1.0614054
        %v1842 = vmul.f32 %v1766, 1.0614054
        %v1843 = vmul.f32 %v1767, 1.0614054
        %v1844 = vmul.f32 %v1768, 1.0614054
        %v1845 = vmul.f32 %v1769, 1.0614054
        %v1846 = vmul.f32 %v1770, 1.0614054
        %v1847 = vmul.f32 %v1771, 1.0614054
        %v1848 = vmul.f32 %v1772, 1.0614054
        %v1849 = vmul.f32 %v1773, 1.0614054
        %v1850 = vmul.f32 %v1774, 1.0614054
        %v1851 = vmul.f32 %v1775, 1.0614054
        %v1852 = vmul.f32 %v1776, 1.0614054
        %v1853 = vmul.f32 %v1777, 1.0614054
        %v1854 = vmul.f32 %v1778, 1.0614054
        %v1855 = vmul.f32 %v1779, 1.0614054
        %v1856 = vmul.f32 %v1780, 1.0614054
        %v1857 = vmul.f32 %v1781, 1.0614054
        %v1858 = vmul.f32 %v1782, 1.0614054
        %v1859 = vmul.f32 %v1783, 1.0614054
        %v1860 = vmul.f32 %v1784, 1.0614054
        %v1861 = vmul.f32 %v1785, 1.0614054
        %v1862 = vmul.f32 %v1786, 1.0614054
        %v1863 = vmul.f32 %v1787, 1.0614054
        %v1864 = vmul.f32 %v1788, 1.0614054
        %v1865 = vmul.f32 %v1789, 1.0614054
        %v1866 = vmul.f32 %v1790, 1.0614054
        %v1867 = vmul.f32 %v1791, 1.0614054
        %v1868 = vmul.f32 %v1792, 1.0614054
        %v1869 = vmul.f32 %v1793, 1.0614054
        %v1870 = vmul.f32 %v1794, 1.0614054
        %v1871 = vmul.f32 %v1795, 1.0614054
        %v1872 = vmul.f32 %v1796, 1.0614054
        %v1873 = vmul.f32 %v1797, 1.0614054
        %v1874 = vmul.f32 %v1798, 1.0614054
        %v1875 = vmul.f32 %v1799, 1.0614054
        %v1876 = vmul.f32 %v1800, 1.0614054
        %v1877 = vmul.f32 %v1801, 1.0614054
        %v1878 = vmul.f32 %v1802, 1.0614054
        %v1879 = vmul.f32 %v1803, 1.0614054
        %v1880 = vmul.f32 %v1804, 1.0614054
        %v1881 = vmul.f32 %v1805, 1.0614054
        %v1882 = vmul.f32 %v1806, 1.0614054
        %v1883 = vmul.f32 %v1807, 1.0614054
        %v1884 = vmul.f32 %v1808, 1.0614054
        %v1885 = vmul.f32 %v1809, 1.0614054
        %v1886 = vmul.f32 %v1810, 1.0614054
        %v1887 = vmul.f32 %v1811, 1.0614054
        %v1888 = vadd.f32 %v1812, -1.4531521
        %v1889 = vadd.f32 %v1813, -1.4531521
        %v1890 = vadd.f32 %v1814, -1.4531521
        %v1891 = vadd.f32 %v1815, -1.4531521
        %v1892 = vadd.f32 %v1816, -1.4531521
        %v1893 = vadd.f32 %v1817, -1.4531521
        %v1894 = vadd.f32 %v1818, -1.4531521
        %v1895 = vadd.f32 %v1819, -1.4531521
        %v1896 = vadd.f32 %v1820, -1.4531521
        %v1897 = vadd.f32 %v1821, -1.4531521
        %v1898 = vadd.f32 %v1822, -1.4531521
        %v1899 = vadd.f32 %v1823, -1.4531521
        %v1900 = vadd.f32 %v1824, -1.4531521
        %v1901 = vadd.f32 %v1825, -1.4531521
        %v1902 = vadd.f32 %v1826, -1.4531521
        %v1903 = vadd.f32 %v1827, -1.4531521
        %v1904 = vadd.f32 %v1828, -1.4531521
        %v1905 = vadd.f32 %v1829, -1.4531521
        %v1906 = vadd.f32 %v1830, -1.4531521
        %v1907 = vadd.f32 %v1831, -1.4531521
        %v1908 = vadd.f32 %v1832, -1.4531521
        %v1909 = vadd.f32 %v1833, -1.4531521
        %v1910 = vadd.f32 %v1834, -1.4531521
        %v1911 = vadd.f32 %v1835, -1.4531521
        %v1912 = vadd.f32 %v1836, -1.4531521
        %v1913 = vadd.f32 %v1837, -1.4531521
        %v1914 = vadd.f32 %v1838, -1.4531521
        %v1915 = vadd.f32 %v1839, -1.4531521
        %v1916 = vadd.f32 %v1840, -1.4531521
        %v1917 = vadd.f32 %v1841, -1.4531521
        %v1918 = vadd.f32 %v1842, -1.4531521
        %v1919 = vadd.f32 %v1843, -1.4531521
        %v1920 = vadd.f32 %v1844, -1.4531521
        %v1921 = vadd.f32 %v1845, -1.4531521
        %v1922 = vadd.f32 %v1846, -1.4531521
        %v1923 = vadd.f32 %v1847, -1.4531521
        %v1924 = vadd.f32 %v1848, -1.4531521
        %v1925 = vadd.f32 %v1849, -1.4531521
        %v1926 = vadd.f32 %v1850, -1.4531521
        %v1927 = vadd.f32 %v1851, -1.4531521
        %v1928 = vadd.f32 %v1852, -1.4531521
        %v1929 = vadd.f32 %v1853, -1.4531521
        %v1930 = vadd.f32 %v1854, -1.4531521
        %v1931 = vadd.f32 %v1855, -1.4531521
        %v1932 = vadd.f32 %v1856, -1.4531521
        %v1933 = vadd.f32 %v1857, -1.4531521
        %v1934 = vadd.f32 %v1858, -1.4531521
        %v1935 = vadd.f32 %v1859, -1.4531521
        %v1936 = vadd.f32 %v1860, -1.4531521
        %v1937 = vadd.f32 %v1861, -1.4531521
        %v1938 = vadd.f32 %v1862, -1.4531521
        %v1939 = vadd.f32 %v1863, -1.4531521
        %v1940 = vadd.f32 %v1864, -1.4531521
        %v1941 = vadd.f32 %v1865, -1.4531521
        %v1942 = vadd.f32 %v1866, -1.4531521
        %v1943 = vadd.f32 %v1867, -1.4531521
        %v1944 = vadd.f32 %v1868, -1.4531521
        %v1945 = vadd.f32 %v1869, -1.4531521
        %v1946 = vadd.f32 %v1870, -1.4531521
        %v1947 = vadd.f32 %v1871, -1.4531521
        %v1948 = vadd.f32 %v1872, -1.4531521
        %v1949 = vadd.f32 %v1873, -1.4531521
        %v1950 = vadd.f32 %v1874, -1.4531521
        %v1951 = vadd.f32 %v1875, -1.4531521
        %v1952 = vadd.f32 %v1876, -1.4531521
        %v1953 = vadd.f32 %v1877, -1.4531521
        %v1954 = vadd.f32 %v1878, -1.4531521
        %v1955 = vadd.f32 %v1879, -1.4531521
        %v1956 = vadd.f32 %v1880, -1.4531521
        %v1957 = vadd.f32 %v1881, -1.4531521
        %v1958 = vadd.f32 %v1882, -1.4531521
        %v1959 = vadd.f32 %v1883, -1.4531521
        %v1960 = vadd.f32 %v1884, -1.4531521
        %v1961 = vadd.f32 %v1885, -1.4531521
        %v1962 = vadd.f32 %v1886, -1.4531521
        %v1963 = vadd.f32 %v1887, -1.4531521
        %v1964 = vmul.f32 %v1736, %v1888
        %v1965 = vmul.f32 %v1737, %v1889
        %v1966 = vmul.f32 %v1738, %v1890
        %v1967 = vmul.f32 %v1739, %v1891
        %v1968 = vmul.f32 %v1740, %v1892
        %v1969 = vmul.f32 %v1741, %v1893
        %v1970 = vmul.f32 %v1742, %v1894
        %v1971 = vmul.f32 %v1743, %v1895
        %v1972 = vmul.f32 %v1744, %v1896
        %v1973 = vmul.f32 %v1745, %v1897
        %v1974 = vmul.f32 %v1746, %v1898
        %v1975 = vmul.f32 %v1747, %v1899
        %v1976 = vmul.f32 %v1748, %v1900
        %v1977 = vmul.f32 %v1749, %v1901
        %v1978 = vmul.f32 %v1750, %v1902
        %v1979 = vmul.f32 %v1751, %v1903
        %v1980 = vmul.f32 %v1752, %v1904
        %v1981 = vmul.f32 %v1753, %v1905
        %v1982 = vmul.f32 %v1754, %v1906
        %v1983 = vmul.f32 %v1755, %v1907
        %v1984 = vmul.f32 %v1756, %v1908
        %v1985 = vmul.f32 %v1757, %v1909
        %v1986 = vmul.f32 %v1758, %v1910
        %v1987 = vmul.f32 %v1759, %v1911
        %v1988 = vmul.f32 %v1760, %v1912
        %v1989 = vmul.f32 %v1761, %v1913
        %v1990 = vmul.f32 %v1762, %v1914
        %v1991 = vmul.f32 %v1763, %v1915
        %v1992 = vmul.f32 %v1764, %v1916
        %v1993 = vmul.f32 %v1765, %v1917
        %v1994 = vmul.f32 %v1766, %v1918
        %v1995 = vmul.f32 %v1767, %v1919
        %v1996 = vmul.f32 %v1768, %v1920
        %v1997 = vmul.f32 %v1769, %v1921
        %v1998 = vmul.f32 %v1770, %v1922
        %v1999 = vmul.f32 %v1771, %v1923
        %v2000 = vmul.f32 %v1772, %v1924
        %v2001 = vmul.f32 %v1773, %v1925
        %v2002 = vmul.f32 %v1774, %v1926
        %v2003 = vmul.f32 %v1775, %v1927
        %v2004 = vmul.f32 %v1776, %v1928
        %v2005 = vmul.f32 %v1777, %v1929
        %v2006 = vmul.f32 %v1778, %v1930
        %v2007 = vmul.f32 %v1779, %v1931
        %v2008 = vmul.f32 %v1780, %v1932
        %v2009 = vmul.f32 %v1781, %v1933
        %v2010 = vmul.f32 %v1782, %v1934
        %v2011 = vmul.f32 %v1783, %v1935
        %v2012 = vmul.f32 %v1784, %v1936
        %v2013 = vmul.f32 %v1785, %v1937
        %v2014 = vmul.f32 %v1786, %v1938
        %v2015 = vmul.f32 %v1787, %v1939
        %v2016 = vmul.f32 %v1788, %v1940
        %v2017 = vmul.f32 %v1789, %v1941
        %v2018 = vmul.f32 %v1790, %v1942
        %v2019 = vmul.f32 %v1791, %v1943
        %v2020 = vmul.f32 %v1792, %v1944
        %v2021 = vmul.f32 %v1793, %v1945
        %v2022 = vmul.f32 %v1794, %v1946
        %v2023 = vmul.f32 %v1795, %v1947
        %v2024 = vmul.f32 %v1796, %v1948
        %v2025 = vmul.f32 %v1797, %v1949
        %v2026 = vmul.f32 %v1798, %v1950
        %v2027 = vmul.f32 %v1799, %v1951
        %v2028 = vmul.f32 %v1800, %v1952
        %v2029 = vmul.f32 %v1801, %v1953
        %v2030 = vmul.f32 %v1802, %v1954
        %v2031 = vmul.f32 %v1803, %v1955
        %v2032 = vmul.f32 %v1804, %v1956
        %v2033 = vmul.f32 %v1805, %v1957
        %v2034 = vmul.f32 %v1806, %v1958
        %v2035 = vmul.f32 %v1807, %v1959
        %v2036 = vmul.f32 %v1808, %v1960
        %v2037 = vmul.f32 %v1809, %v1961
        %v2038 = vmul.f32 %v1810, %v1962
        %v2039 = vmul.f32 %v1811, %v1963
        %v2040 = vadd.f32 %v1964, 1.4214138
        %v2041 = vadd.f32 %v1965, 1.4214138
        %v2042 = vadd.f32 %v1966, 1.4214138
        %v2043 = vadd.f32 %v1967, 1.4214138
        %v2044 = vadd.f32 %v1968, 1.4214138
        %v2045 = vadd.f32 %v1969, 1.4214138
        %v2046 = vadd.f32 %v1970, 1.4214138
        %v2047 = vadd.f32 %v1971, 1.4214138
        %v2048 = vadd.f32 %v1972, 1.4214138
        %v2049 = vadd.f32 %v1973, 1.4214138
        %v2050 = vadd.f32 %v1974, 1.4214138
        %v2051 = vadd.f32 %v1975, 1.4214138
        %v2052 = vadd.f32 %v1976, 1.4214138
        %v2053 = vadd.f32 %v1977, 1.4214138
        %v2054 = vadd.f32 %v1978, 1.4214138
        %v2055 = vadd.f32 %v1979, 1.4214138
        %v2056 = vadd.f32 %v1980, 1.4214138
        %v2057 = vadd.f32 %v1981, 1.4214138
        %v2058 = vadd.f32 %v1982, 1.4214138
        %v2059 = vadd.f32 %v1983, 1.4214138
        %v2060 = vadd.f32 %v1984, 1.4214138
        %v2061 = vadd.f32 %v1985, 1.4214138
        %v2062 = vadd.f32 %v1986, 1.4214138
        %v2063 = vadd.f32 %v1987, 1.4214138
        %v2064 = vadd.f32 %v1988, 1.4214138
        %v2065 = vadd.f32 %v1989, 1.4214138
        %v2066 = vadd.f32 %v1990, 1.4214138
        %v2067 = vadd.f32 %v1991, 1.4214138
        %v2068 = vadd.f32 %v1992, 1.4214138
        %v2069 = vadd.f32 %v1993, 1.4214138
        %v2070 = vadd.f32 %v1994, 1.4214138
        %v2071 = vadd.f32 %v1995, 1.4214138
        %v2072 = vadd.f32 %v1996, 1.4214138
        %v2073 = vadd.f32 %v1997, 1.4214138
        %v2074 = vadd.f32 %v1998, 1.4214138
        %v2075 = vadd.f32 %v1999, 1.4214138
        %v2076 = vadd.f32 %v2000, 1.4214138
        %v2077 = vadd.f32 %v2001, 1.4214138
        %v2078 = vadd.f32 %v2002, 1.4214138
        %v2079 = vadd.f32 %v2003, 1.4214138
        %v2080 = vadd.f32 %v2004, 1.4214138
        %v2081 = vadd.f32 %v2005, 1.4214138
        %v2082 = vadd.f32 %v2006, 1.4214138
        %v2083 = vadd.f32 %v2007, 1.4214138
        %v2084 = vadd.f32 %v2008, 1.4214138
        %v2085 = vadd.f32 %v2009, 1.4214138
        %v2086 = vadd.f32 %v2010, 1.4214138
        %v2087 = vadd.f32 %v2011, 1.4214138
        %v2088 = vadd.f32 %v2012, 1.4214138
        %v2089 = vadd.f32 %v2013, 1.4214138
        %v2090 = vadd.f32 %v2014, 1.4214138
        %v2091 = vadd.f32 %v2015, 1.4214138
        %v2092 = vadd.f32 %v2016, 1.4214138
        %v2093 = vadd.f32 %v2017, 1.4214138
        %v2094 = vadd.f32 %v2018, 1.4214138
        %v2095 = vadd.f32 %v2019, 1.4214138
        %v2096 = vadd.f32 %v2020, 1.4214138
        %v2097 = vadd.f32 %v2021, 1.4214138
        %v2098 = vadd.f32 %v2022, 1.4214138
        %v2099 = vadd.f32 %v2023, 1.4214138
        %v2100 = vadd.f32 %v2024, 1.4214138
        %v2101 = vadd.f32 %v2025, 1.4214138
        %v2102 = vadd.f32 %v2026, 1.4214138
        %v2103 = vadd.f32 %v2027, 1.4214138
        %v2104 = vadd.f32 %v2028, 1.4214138
        %v2105 = vadd.f32 %v2029, 1.4214138
        %v2106 = vadd.f32 %v2030, 1.4214138
        %v2107 = vadd.f32 %v2031, 1.4214138
        %v2108 = vadd.f32 %v2032, 1.4214138
        %v2109 = vadd.f32 %v2033, 1.4214138
        %v2110 = vadd.f32 %v2034, 1.4214138
        %v2111 = vadd.f32 %v2035, 1.4214138
        %v2112 = vadd.f32 %v2036, 1.4214138
        %v2113 = vadd.f32 %v2037, 1.4214138
        %v2114 = vadd.f32 %v2038, 1.4214138
        %v2115 = vadd.f32 %v2039, 1.4214138
        %v2116 = vmul.f32 %v1736, %v2040
        %v2117 = vmul.f32 %v1737, %v2041
        %v2118 = vmul.f32 %v1738, %v2042
        %v2119 = vmul.f32 %v1739, %v2043
        %v2120 = vmul.f32 %v1740, %v2044
        %v2121 = vmul.f32 %v1741, %v2045
        %v2122 = vmul.f32 %v1742, %v2046
        %v2123 = vmul.f32 %v1743, %v2047
        %v2124 = vmul.f32 %v1744, %v2048
        %v2125 = vmul.f32 %v1745, %v2049
        %v2126 = vmul.f32 %v1746, %v2050
        %v2127 = vmul.f32 %v1747, %v2051
        %v2128 = vmul.f32 %v1748, %v2052
        %v2129 = vmul.f32 %v1749, %v2053
        %v2130 = vmul.f32 %v1750, %v2054
        %v2131 = vmul.f32 %v1751, %v2055
        %v2132 = vmul.f32 %v1752, %v2056
        %v2133 = vmul.f32 %v1753, %v2057
        %v2134 = vmul.f32 %v1754, %v2058
        %v2135 = vmul.f32 %v1755, %v2059
        %v2136 = vmul.f32 %v1756, %v2060
        %v2137 = vmul.f32 %v1757, %v2061
        %v2138 = vmul.f32 %v1758, %v2062
        %v2139 = vmul.f32 %v1759, %v2063
        %v2140 = vmul.f32 %v1760, %v2064
        %v2141 = vmul.f32 %v1761, %v2065
        %v2142 = vmul.f32 %v1762, %v2066
        %v2143 = vmul.f32 %v1763, %v2067
        %v2144 = vmul.f32 %v1764, %v2068
        %v2145 = vmul.f32 %v1765, %v2069
        %v2146 = vmul.f32 %v1766, %v2070
        %v2147 = vmul.f32 %v1767, %v2071
        %v2148 = vmul.f32 %v1768, %v2072
        %v2149 = vmul.f32 %v1769, %v2073
        %v2150 = vmul.f32 %v1770, %v2074
        %v2151 = vmul.f32 %v1771, %v2075
        %v2152 = vmul.f32 %v1772, %v2076
        %v2153 = vmul.f32 %v1773, %v2077
        %v2154 = vmul.f32 %v1774, %v2078
        %v2155 = vmul.f32 %v1775, %v2079
        %v2156 = vmul.f32 %v1776, %v2080
        %v2157 = vmul.f32 %v1777, %v2081
        %v2158 = vmul.f32 %v1778, %v2082
        %v2159 = vmul.f32 %v1779, %v2083
        %v2160 = vmul.f32 %v1780, %v2084
        %v2161 = vmul.f32 %v1781, %v2085
        %v2162 = vmul.f32 %v1782, %v2086
        %v2163 = vmul.f32 %v1783, %v2087
        %v2164 = vmul.f32 %v1784, %v2088
        %v2165 = vmul.f32 %v1785, %v2089
        %v2166 = vmul.f32 %v1786, %v2090
        %v2167 = vmul.f32 %v1787, %v2091
        %v2168 = vmul.f32 %v1788, %v2092
        %v2169 = vmul.f32 %v1789, %v2093
        %v2170 = vmul.f32 %v1790, %v2094
        %v2171 = vmul.f32 %v1791, %v2095
        %v2172 = vmul.f32 %v1792, %v2096
        %v2173 = vmul.f32 %v1793, %v2097
        %v2174 = vmul.f32 %v1794, %v2098
        %v2175 = vmul.f32 %v1795, %v2099
        %v2176 = vmul.f32 %v1796, %v2100
        %v2177 = vmul.f32 %v1797, %v2101
        %v2178 = vmul.f32 %v1798, %v2102
        %v2179 = vmul.f32 %v1799, %v2103
        %v2180 = vmul.f32 %v1800, %v2104
        %v2181 = vmul.f32 %v1801, %v2105
        %v2182 = vmul.f32 %v1802, %v2106
        %v2183 = vmul.f32 %v1803, %v2107
        %v2184 = vmul.f32 %v1804, %v2108
        %v2185 = vmul.f32 %v1805, %v2109
        %v2186 = vmul.f32 %v1806, %v2110
        %v2187 = vmul.f32 %v1807, %v2111
        %v2188 = vmul.f32 %v1808, %v2112
        %v2189 = vmul.f32 %v1809, %v2113
        %v2190 = vmul.f32 %v1810, %v2114
        %v2191 = vmul.f32 %v1811, %v2115
        %v2192 = vadd.f32 %v2116, -0.28449672
        %v2193 = vadd.f32 %v2117, -0.28449672
        %v2194 = vadd.f32 %v2118, -0.28449672
        %v2195 = vadd.f32 %v2119, -0.28449672
        %v2196 = vadd.f32 %v2120, -0.28449672
        %v2197 = vadd.f32 %v2121, -0.28449672
        %v2198 = vadd.f32 %v2122, -0.28449672
        %v2199 = vadd.f32 %v2123, -0.28449672
        %v2200 = vadd.f32 %v2124, -0.28449672
        %v2201 = vadd.f32 %v2125, -0.28449672
        %v2202 = vadd.f32 %v2126, -0.28449672
        %v2203 = vadd.f32 %v2127, -0.28449672
        %v2204 = vadd.f32 %v2128, -0.28449672
        %v2205 = vadd.f32 %v2129, -0.28449672
        %v2206 = vadd.f32 %v2130, -0.28449672
        %v2207 = vadd.f32 %v2131, -0.28449672
        %v2208 = vadd.f32 %v2132, -0.28449672
        %v2209 = vadd.f32 %v2133, -0.28449672
        %v2210 = vadd.f32 %v2134, -0.28449672
        %v2211 = vadd.f32 %v2135, -0.28449672
        %v2212 = vadd.f32 %v2136, -0.28449672
        %v2213 = vadd.f32 %v2137, -0.28449672
        %v2214 = vadd.f32 %v2138, -0.28449672
        %v2215 = vadd.f32 %v2139, -0.28449672
        %v2216 = vadd.f32 %v2140, -0.28449672
        %v2217 = vadd.f32 %v2141, -0.28449672
        %v2218 = vadd.f32 %v2142, -0.28449672
        %v2219 = vadd.f32 %v2143, -0.28449672
        %v2220 = vadd.f32 %v2144, -0.28449672
        %v2221 = vadd.f32 %v2145, -0.28449672
        %v2222 = vadd.f32 %v2146, -0.28449672
        %v2223 = vadd.f32 %v2147, -0.28449672
        %v2224 = vadd.f32 %v2148, -0.28449672
        %v2225 = vadd.f32 %v2149, -0.28449672
        %v2226 = vadd.f32 %v2150, -0.28449672
        %v2227 = vadd.f32 %v2151, -0.28449672
        %v2228 = vadd.f32 %v2152, -0.28449672
        %v2229 = vadd.f32 %v2153, -0.28449672
        %v2230 = vadd.f32 %v2154, -0.28449672
        %v2231 = vadd.f32 %v2155, -0.28449672
        %v2232 = vadd.f32 %v2156, -0.28449672
        %v2233 = vadd.f32 %v2157, -0.28449672
        %v2234 = vadd.f32 %v2158, -0.28449672
        %v2235 = vadd.f32 %v2159, -0.28449672
        %v2236 = vadd.f32 %v2160, -0.28449672
        %v2237 = vadd.f32 %v2161, -0.28449672
        %v2238 = vadd.f32 %v2162, -0.28449672
        %v2239 = vadd.f32 %v2163, -0.28449672
        %v2240 = vadd.f32 %v2164, -0.28449672
        %v2241 = vadd.f32 %v2165, -0.28449672
        %v2242 = vadd.f32 %v2166, -0.28449672
        %v2243 = vadd.f32 %v2167, -0.28449672
        %v2244 = vadd.f32 %v2168, -0.28449672
        %v2245 = vadd.f32 %v2169, -0.28449672
        %v2246 = vadd.f32 %v2170, -0.28449672
        %v2247 = vadd.f32 %v2171, -0.28449672
        %v2248 = vadd.f32 %v2172, -0.28449672
        %v2249 = vadd.f32 %v2173, -0.28449672
        %v2250 = vadd.f32 %v2174, -0.28449672
        %v2251 = vadd.f32 %v2175, -0.28449672
        %v2252 = vadd.f32 %v2176, -0.28449672
        %v2253 = vadd.f32 %v2177, -0.28449672
        %v2254 = vadd.f32 %v2178, -0.28449672
        %v2255 = vadd.f32 %v2179, -0.28449672
        %v2256 = vadd.f32 %v2180, -0.28449672
        %v2257 = vadd.f32 %v2181, -0.28449672
        %v2258 = vadd.f32 %v2182, -0.28449672
        %v2259 = vadd.f32 %v2183, -0.28449672
        %v2260 = vadd.f32 %v2184, -0.28449672
        %v2261 = vadd.f32 %v2185, -0.28449672
        %v2262 = vadd.f32 %v2186, -0.28449672
        %v2263 = vadd.f32 %v2187, -0.28449672
        %v2264 = vadd.f32 %v2188, -0.28449672
        %v2265 = vadd.f32 %v2189, -0.28449672
        %v2266 = vadd.f32 %v2190, -0.28449672
        %v2267 = vadd.f32 %v2191, -0.28449672
        %v2268 = vmul.f32 %v1736, %v2192
        %v2269 = vmul.f32 %v1737, %v2193
        %v2270 = vmul.f32 %v1738, %v2194
        %v2271 = vmul.f32 %v1739, %v2195
        %v2272 = vmul.f32 %v1740, %v2196
        %v2273 = vmul.f32 %v1741, %v2197
        %v2274 = vmul.f32 %v1742, %v2198
        %v2275 = vmul.f32 %v1743, %v2199
        %v2276 = vmul.f32 %v1744, %v2200
        %v2277 = vmul.f32 %v1745, %v2201
        %v2278 = vmul.f32 %v1746, %v2202
        %v2279 = vmul.f32 %v1747, %v2203
        %v2280 = vmul.f32 %v1748, %v2204
        %v2281 = vmul.f32 %v1749, %v2205
        %v2282 = vmul.f32 %v1750, %v2206
        %v2283 = vmul.f32 %v1751, %v2207
        %v2284 = vmul.f32 %v1752, %v2208
        %v2285 = vmul.f32 %v1753, %v2209
        %v2286 = vmul.f32 %v1754, %v2210
        %v2287 = vmul.f32 %v1755, %v2211
        %v2288 = vmul.f32 %v1756, %v2212
        %v2289 = vmul.f32 %v1757, %v2213
        %v2290 = vmul.f32 %v1758, %v2214
        %v2291 = vmul.f32 %v1759, %v2215
        %v2292 = vmul.f32 %v1760, %v2216
        %v2293 = vmul.f32 %v1761, %v2217
        %v2294 = vmul.f32 %v1762, %v2218
        %v2295 = vmul.f32 %v1763, %v2219
        %v2296 = vmul.f32 %v1764, %v2220
        %v2297 = vmul.f32 %v1765, %v2221
        %v2298 = vmul.f32 %v1766, %v2222
        %v2299 = vmul.f32 %v1767, %v2223
        %v2300 = vmul.f32 %v1768, %v2224
        %v2301 = vmul.f32 %v1769, %v2225
        %v2302 = vmul.f32 %v1770, %v2226
        %v2303 = vmul.f32 %v1771, %v2227
        %v2304 = vmul.f32 %v1772, %v2228
        %v2305 = vmul.f32 %v1773, %v2229
        %v2306 = vmul.f32 %v1774, %v2230
        %v2307 = vmul.f32 %v1775, %v2231
        %v2308 = vmul.f32 %v1776, %v2232
        %v2309 = vmul.f32 %v1777, %v2233
        %v2310 = vmul.f32 %v1778, %v2234
        %v2311 = vmul.f32 %v1779, %v2235
        %v2312 = vmul.f32 %v1780, %v2236
        %v2313 = vmul.f32 %v1781, %v2237
        %v2314 = vmul.f32 %v1782, %v2238
        %v2315 = vmul.f32 %v1783, %v2239
        %v2316 = vmul.f32 %v1784, %v2240
        %v2317 = vmul.f32 %v1785, %v2241
        %v2318 = vmul.f32 %v1786, %v2242
        %v2319 = vmul.f32 %v1787, %v2243
        %v2320 = vmul.f32 %v1788, %v2244
        %v2321 = vmul.f32 %v1789, %v2245
        %v2322 = vmul.f32 %v1790, %v2246
        %v2323 = vmul.f32 %v1791, %v2247
        %v2324 = vmul.f32 %v1792, %v2248
        %v2325 = vmul.f32 %v1793, %v2249
        %v2326 = vmul.f32 %v1794, %v2250
        %v2327 = vmul.f32 %v1795, %v2251
        %v2328 = vmul.f32 %v1796, %v2252
        %v2329 = vmul.f32 %v1797, %v2253
        %v2330 = vmul.f32 %v1798, %v2254
        %v2331 = vmul.f32 %v1799, %v2255
        %v2332 = vmul.f32 %v1800, %v2256
        %v2333 = vmul.f32 %v1801, %v2257
        %v2334 = vmul.f32 %v1802, %v2258
        %v2335 = vmul.f32 %v1803, %v2259
        %v2336 = vmul.f32 %v1804, %v2260
        %v2337 = vmul.f32 %v1805, %v2261
        %v2338 = vmul.f32 %v1806, %v2262
        %v2339 = vmul.f32 %v1807, %v2263
        %v2340 = vmul.f32 %v1808, %v2264
        %v2341 = vmul.f32 %v1809, %v2265
        %v2342 = vmul.f32 %v1810, %v2266
        %v2343 = vmul.f32 %v1811, %v2267
        %v2344 = vadd.f32 %v2268, 0.2548296
        %v2345 = vadd.f32 %v2269, 0.2548296
        %v2346 = vadd.f32 %v2270, 0.2548296
        %v2347 = vadd.f32 %v2271, 0.2548296
        %v2348 = vadd.f32 %v2272, 0.2548296
        %v2349 = vadd.f32 %v2273, 0.2548296
        %v2350 = vadd.f32 %v2274, 0.2548296
        %v2351 = vadd.f32 %v2275, 0.2548296
        %v2352 = vadd.f32 %v2276, 0.2548296
        %v2353 = vadd.f32 %v2277, 0.2548296
        %v2354 = vadd.f32 %v2278, 0.2548296
        %v2355 = vadd.f32 %v2279, 0.2548296
        %v2356 = vadd.f32 %v2280, 0.2548296
        %v2357 = vadd.f32 %v2281, 0.2548296
        %v2358 = vadd.f32 %v2282, 0.2548296
        %v2359 = vadd.f32 %v2283, 0.2548296
        %v2360 = vadd.f32 %v2284, 0.2548296
        %v2361 = vadd.f32 %v2285, 0.2548296
        %v2362 = vadd.f32 %v2286, 0.2548296
        %v2363 = vadd.f32 %v2287, 0.2548296
        %v2364 = vadd.f32 %v2288, 0.2548296
        %v2365 = vadd.f32 %v2289, 0.2548296
        %v2366 = vadd.f32 %v2290, 0.2548296
        %v2367 = vadd.f32 %v2291, 0.2548296
        %v2368 = vadd.f32 %v2292, 0.2548296
        %v2369 = vadd.f32 %v2293, 0.2548296
        %v2370 = vadd.f32 %v2294, 0.2548296
        %v2371 = vadd.f32 %v2295, 0.2548296
        %v2372 = vadd.f32 %v2296, 0.2548296
        %v2373 = vadd.f32 %v2297, 0.2548296
        %v2374 = vadd.f32 %v2298, 0.2548296
        %v2375 = vadd.f32 %v2299, 0.2548296
        %v2376 = vadd.f32 %v2300, 0.2548296
        %v2377 = vadd.f32 %v2301, 0.2548296
        %v2378 = vadd.f32 %v2302, 0.2548296
        %v2379 = vadd.f32 %v2303, 0.2548296
        %v2380 = vadd.f32 %v2304, 0.2548296
        %v2381 = vadd.f32 %v2305, 0.2548296
        %v2382 = vadd.f32 %v2306, 0.2548296
        %v2383 = vadd.f32 %v2307, 0.2548296
        %v2384 = vadd.f32 %v2308, 0.2548296
        %v2385 = vadd.f32 %v2309, 0.2548296
        %v2386 = vadd.f32 %v2310, 0.2548296
        %v2387 = vadd.f32 %v2311, 0.2548296
        %v2388 = vadd.f32 %v2312, 0.2548296
        %v2389 = vadd.f32 %v2313, 0.2548296
        %v2390 = vadd.f32 %v2314, 0.2548296
        %v2391 = vadd.f32 %v2315, 0.2548296
        %v2392 = vadd.f32 %v2316, 0.2548296
        %v2393 = vadd.f32 %v2317, 0.2548296
        %v2394 = vadd.f32 %v2318, 0.2548296
        %v2395 = vadd.f32 %v2319, 0.2548296
        %v2396 = vadd.f32 %v2320, 0.2548296
        %v2397 = vadd.f32 %v2321, 0.2548296
        %v2398 = vadd.f32 %v2322, 0.2548296
        %v2399 = vadd.f32 %v2323, 0.2548296
        %v2400 = vadd.f32 %v2324, 0.2548296
        %v2401 = vadd.f32 %v2325, 0.2548296
        %v2402 = vadd.f32 %v2326, 0.2548296
        %v2403 = vadd.f32 %v2327, 0.2548296
        %v2404 = vadd.f32 %v2328, 0.2548296
        %v2405 = vadd.f32 %v2329, 0.2548296
        %v2406 = vadd.f32 %v2330, 0.2548296
        %v2407 = vadd.f32 %v2331, 0.2548296
        %v2408 = vadd.f32 %v2332, 0.2548296
        %v2409 = vadd.f32 %v2333, 0.2548296
        %v2410 = vadd.f32 %v2334, 0.2548296
        %v2411 = vadd.f32 %v2335, 0.2548296
        %v2412 = vadd.f32 %v2336, 0.2548296
        %v2413 = vadd.f32 %v2337, 0.2548296
        %v2414 = vadd.f32 %v2338, 0.2548296
        %v2415 = vadd.f32 %v2339, 0.2548296
        %v2416 = vadd.f32 %v2340, 0.2548296
        %v2417 = vadd.f32 %v2341, 0.2548296
        %v2418 = vadd.f32 %v2342, 0.2548296
        %v2419 = vadd.f32 %v2343, 0.2548296
        %v2420 = vmul.f32 %v1736, %v2344
        %v2421 = vmul.f32 %v1737, %v2345
        %v2422 = vmul.f32 %v1738, %v2346
        %v2423 = vmul.f32 %v1739, %v2347
        %v2424 = vmul.f32 %v1740, %v2348
        %v2425 = vmul.f32 %v1741, %v2349
        %v2426 = vmul.f32 %v1742, %v2350
        %v2427 = vmul.f32 %v1743, %v2351
        %v2428 = vmul.f32 %v1744, %v2352
        %v2429 = vmul.f32 %v1745, %v2353
        %v2430 = vmul.f32 %v1746, %v2354
        %v2431 = vmul.f32 %v1747, %v2355
        %v2432 = vmul.f32 %v1748, %v2356
        %v2433 = vmul.f32 %v1749, %v2357
        %v2434 = vmul.f32 %v1750, %v2358
        %v2435 = vmul.f32 %v1751, %v2359
        %v2436 = vmul.f32 %v1752, %v2360
        %v2437 = vmul.f32 %v1753, %v2361
        %v2438 = vmul.f32 %v1754, %v2362
        %v2439 = vmul.f32 %v1755, %v2363
        %v2440 = vmul.f32 %v1756, %v2364
        %v2441 = vmul.f32 %v1757, %v2365
        %v2442 = vmul.f32 %v1758, %v2366
        %v2443 = vmul.f32 %v1759, %v2367
        %v2444 = vmul.f32 %v1760, %v2368
        %v2445 = vmul.f32 %v1761, %v2369
        %v2446 = vmul.f32 %v1762, %v2370
        %v2447 = vmul.f32 %v1763, %v2371
        %v2448 = vmul.f32 %v1764, %v2372
        %v2449 = vmul.f32 %v1765, %v2373
        %v2450 = vmul.f32 %v1766, %v2374
        %v2451 = vmul.f32 %v1767, %v2375
        %v2452 = vmul.f32 %v1768, %v2376
        %v2453 = vmul.f32 %v1769, %v2377
        %v2454 = vmul.f32 %v1770, %v2378
        %v2455 = vmul.f32 %v1771, %v2379
        %v2456 = vmul.f32 %v1772, %v2380
        %v2457 = vmul.f32 %v1773, %v2381
        %v2458 = vmul.f32 %v1774, %v2382
        %v2459 = vmul.f32 %v1775, %v2383
        %v2460 = vmul.f32 %v1776, %v2384
        %v2461 = vmul.f32 %v1777, %v2385
        %v2462 = vmul.f32 %v1778, %v2386
        %v2463 = vmul.f32 %v1779, %v2387
        %v2464 = vmul.f32 %v1780, %v2388
        %v2465 = vmul.f32 %v1781, %v2389
        %v2466 = vmul.f32 %v1782, %v2390
        %v2467 = vmul.f32 %v1783, %v2391
        %v2468 = vmul.f32 %v1784, %v2392
        %v2469 = vmul.f32 %v1785, %v2393
        %v2470 = vmul.f32 %v1786, %v2394
        %v2471 = vmul.f32 %v1787, %v2395
        %v2472 = vmul.f32 %v1788, %v2396
        %v2473 = vmul.f32 %v1789, %v2397
        %v2474 = vmul.f32 %v1790, %v2398
        %v2475 = vmul.f32 %v1791, %v2399
        %v2476 = vmul.f32 %v1792, %v2400
        %v2477 = vmul.f32 %v1793, %v2401
        %v2478 = vmul.f32 %v1794, %v2402
        %v2479 = vmul.f32 %v1795, %v2403
        %v2480 = vmul.f32 %v1796, %v2404
        %v2481 = vmul.f32 %v1797, %v2405
        %v2482 = vmul.f32 %v1798, %v2406
        %v2483 = vmul.f32 %v1799, %v2407
        %v2484 = vmul.f32 %v1800, %v2408
        %v2485 = vmul.f32 %v1801, %v2409
        %v2486 = vmul.f32 %v1802, %v2410
        %v2487 = vmul.f32 %v1803, %v2411
        %v2488 = vmul.f32 %v1804, %v2412
        %v2489 = vmul.f32 %v1805, %v2413
        %v2490 = vmul.f32 %v1806, %v2414
        %v2491 = vmul.f32 %v1807, %v2415
        %v2492 = vmul.f32 %v1808, %v2416
        %v2493 = vmul.f32 %v1809, %v2417
        %v2494 = vmul.f32 %v1810, %v2418
        %v2495 = vmul.f32 %v1811, %v2419
        %v2496 = vsub.f32 0.0, %v1508
        %v2497 = vsub.f32 0.0, %v1509
        %v2498 = vsub.f32 0.0, %v1510
        %v2499 = vsub.f32 0.0, %v1511
        %v2500 = vsub.f32 0.0, %v1512
        %v2501 = vsub.f32 0.0, %v1513
        %v2502 = vsub.f32 0.0, %v1514
        %v2503 = vsub.f32 0.0, %v1515
        %v2504 = vsub.f32 0.0, %v1516
        %v2505 = vsub.f32 0.0, %v1517
        %v2506 = vsub.f32 0.0, %v1518
        %v2507 = vsub.f32 0.0, %v1519
        %v2508 = vsub.f32 0.0, %v1520
        %v2509 = vsub.f32 0.0, %v1521
        %v2510 = vsub.f32 0.0, %v1522
        %v2511 = vsub.f32 0.0, %v1523
        %v2512 = vsub.f32 0.0, %v1524
        %v2513 = vsub.f32 0.0, %v1525
        %v2514 = vsub.f32 0.0, %v1526
        %v2515 = vsub.f32 0.0, %v1527
        %v2516 = vsub.f32 0.0, %v1528
        %v2517 = vsub.f32 0.0, %v1529
        %v2518 = vsub.f32 0.0, %v1530
        %v2519 = vsub.f32 0.0, %v1531
        %v2520 = vsub.f32 0.0, %v1532
        %v2521 = vsub.f32 0.0, %v1533
        %v2522 = vsub.f32 0.0, %v1534
        %v2523 = vsub.f32 0.0, %v1535
        %v2524 = vsub.f32 0.0, %v1536
        %v2525 = vsub.f32 0.0, %v1537
        %v2526 = vsub.f32 0.0, %v1538
        %v2527 = vsub.f32 0.0, %v1539
        %v2528 = vsub.f32 0.0, %v1540
        %v2529 = vsub.f32 0.0, %v1541
        %v2530 = vsub.f32 0.0, %v1542
        %v2531 = vsub.f32 0.0, %v1543
        %v2532 = vsub.f32 0.0, %v1544
        %v2533 = vsub.f32 0.0, %v1545
        %v2534 = vsub.f32 0.0, %v1546
        %v2535 = vsub.f32 0.0, %v1547
        %v2536 = vsub.f32 0.0, %v1548
        %v2537 = vsub.f32 0.0, %v1549
        %v2538 = vsub.f32 0.0, %v1550
        %v2539 = vsub.f32 0.0, %v1551
        %v2540 = vsub.f32 0.0, %v1552
        %v2541 = vsub.f32 0.0, %v1553
        %v2542 = vsub.f32 0.0, %v1554
        %v2543 = vsub.f32 0.0, %v1555
        %v2544 = vsub.f32 0.0, %v1556
        %v2545 = vsub.f32 0.0, %v1557
        %v2546 = vsub.f32 0.0, %v1558
        %v2547 = vsub.f32 0.0, %v1559
        %v2548 = vsub.f32 0.0, %v1560
        %v2549 = vsub.f32 0.0, %v1561
        %v2550 = vsub.f32 0.0, %v1562
        %v2551 = vsub.f32 0.0, %v1563
        %v2552 = vsub.f32 0.0, %v1564
        %v2553 = vsub.f32 0.0, %v1565
        %v2554 = vsub.f32 0.0, %v1566
        %v2555 = vsub.f32 0.0, %v1567
        %v2556 = vsub.f32 0.0, %v1568
        %v2557 = vsub.f32 0.0, %v1569
        %v2558 = vsub.f32 0.0, %v1570
        %v2559 = vsub.f32 0.0, %v1571
        %v2560 = vsub.f32 0.0, %v1572
        %v2561 = vsub.f32 0.0, %v1573
        %v2562 = vsub.f32 0.0, %v1574
        %v2563 = vsub.f32 0.0, %v1575
        %v2564 = vsub.f32 0.0, %v1576
        %v2565 = vsub.f32 0.0, %v1577
        %v2566 = vsub.f32 0.0, %v1578
        %v2567 = vsub.f32 0.0, %v1579
        %v2568 = vsub.f32 0.0, %v1580
        %v2569 = vsub.f32 0.0, %v1581
        %v2570 = vsub.f32 0.0, %v1582
        %v2571 = vsub.f32 0.0, %v1583
        %v2572 = vmul.f32 %v2496, %v1508
        %v2573 = vmul.f32 %v2497, %v1509
        %v2574 = vmul.f32 %v2498, %v1510
        %v2575 = vmul.f32 %v2499, %v1511
        %v2576 = vmul.f32 %v2500, %v1512
        %v2577 = vmul.f32 %v2501, %v1513
        %v2578 = vmul.f32 %v2502, %v1514
        %v2579 = vmul.f32 %v2503, %v1515
        %v2580 = vmul.f32 %v2504, %v1516
        %v2581 = vmul.f32 %v2505, %v1517
        %v2582 = vmul.f32 %v2506, %v1518
        %v2583 = vmul.f32 %v2507, %v1519
        %v2584 = vmul.f32 %v2508, %v1520
        %v2585 = vmul.f32 %v2509, %v1521
        %v2586 = vmul.f32 %v2510, %v1522
        %v2587 = vmul.f32 %v2511, %v1523
        %v2588 = vmul.f32 %v2512, %v1524
        %v2589 = vmul.f32 %v2513, %v1525
        %v2590 = vmul.f32 %v2514, %v1526
        %v2591 = vmul.f32 %v2515, %v1527
        %v2592 = vmul.f32 %v2516, %v1528
        %v2593 = vmul.f32 %v2517, %v1529
        %v2594 = vmul.f32 %v2518, %v1530
        %v2595 = vmul.f32 %v2519, %v1531
        %v2596 = vmul.f32 %v2520, %v1532
        %v2597 = vmul.f32 %v2521, %v1533
        %v2598 = vmul.f32 %v2522, %v1534
        %v2599 = vmul.f32 %v2523, %v1535
        %v2600 = vmul.f32 %v2524, %v1536
        %v2601 = vmul.f32 %v2525, %v1537
        %v2602 = vmul.f32 %v2526, %v1538
        %v2603 = vmul.f32 %v2527, %v1539
        %v2604 = vmul.f32 %v2528, %v1540
        %v2605 = vmul.f32 %v2529, %v1541
        %v2606 = vmul.f32 %v2530, %v1542
        %v2607 = vmul.f32 %v2531, %v1543
        %v2608 = vmul.f32 %v2532, %v1544
        %v2609 = vmul.f32 %v2533, %v1545
        %v2610 = vmul.f32 %v2534, %v1546
        %v2611 = vmul.f32 %v2535, %v1547
        %v2612 = vmul.f32 %v2536, %v1548
        %v2613 = vmul.f32 %v2537, %v1549
        %v2614 = vmul.f32 %v2538, %v1550
        %v2615 = vmul.f32 %v2539, %v1551
        %v2616 = vmul.f32 %v2540, %v1552
        %v2617 = vmul.f32 %v2541, %v1553
        %v2618 = vmul.f32 %v2542, %v1554
        %v2619 = vmul.f32 %v2543, %v1555
        %v2620 = vmul.f32 %v2544, %v1556
        %v2621 = vmul.f32 %v2545, %v1557
        %v2622 = vmul.f32 %v2546, %v1558
        %v2623 = vmul.f32 %v2547, %v1559
        %v2624 = vmul.f32 %v2548, %v1560
        %v2625 = vmul.f32 %v2549, %v1561
        %v2626 = vmul.f32 %v2550, %v1562
        %v2627 = vmul.f32 %v2551, %v1563
        %v2628 = vmul.f32 %v2552, %v1564
        %v2629 = vmul.f32 %v2553, %v1565
        %v2630 = vmul.f32 %v2554, %v1566
        %v2631 = vmul.f32 %v2555, %v1567
        %v2632 = vmul.f32 %v2556, %v1568
        %v2633 = vmul.f32 %v2557, %v1569
        %v2634 = vmul.f32 %v2558, %v1570
        %v2635 = vmul.f32 %v2559, %v1571
        %v2636 = vmul.f32 %v2560, %v1572
        %v2637 = vmul.f32 %v2561, %v1573
        %v2638 = vmul.f32 %v2562, %v1574
        %v2639 = vmul.f32 %v2563, %v1575
        %v2640 = vmul.f32 %v2564, %v1576
        %v2641 = vmul.f32 %v2565, %v1577
        %v2642 = vmul.f32 %v2566, %v1578
        %v2643 = vmul.f32 %v2567, %v1579
        %v2644 = vmul.f32 %v2568, %v1580
        %v2645 = vmul.f32 %v2569, %v1581
        %v2646 = vmul.f32 %v2570, %v1582
        %v2647 = vmul.f32 %v2571, %v1583
        %v2648 = vmul.f32 %v2572, 1.442695
        %v2649 = vpow.pop %v2648
        %v2650 = vmul.f32 %v2573, 1.442695
        %v2651 = vpow.pop %v2650
        %v2652 = vmul.f32 %v2574, 1.442695
        %v2653 = vpow.pop %v2652
        %v2654 = vmul.f32 %v2575, 1.442695
        %v2655 = vpow.pop %v2654
        %v2656 = vmul.f32 %v2576, 1.442695
        %v2657 = vpow.pop %v2656
        %v2658 = vmul.f32 %v2577, 1.442695
        %v2659 = vpow.pop %v2658
        %v2660 = vmul.f32 %v2578, 1.442695
        %v2661 = vpow.pop %v2660
        %v2662 = vmul.f32 %v2579, 1.442695
        %v2663 = vpow.pop %v2662
        %v2664 = vmul.f32 %v2580, 1.442695
        %v2665 = vpow.pop %v2664
        %v2666 = vmul.f32 %v2581, 1.442695
        %v2667 = vpow.pop %v2666
        %v2668 = vmul.f32 %v2582, 1.442695
        %v2669 = vpow.pop %v2668
        %v2670 = vmul.f32 %v2583, 1.442695
        %v2671 = vpow.pop %v2670
        %v2672 = vmul.f32 %v2584, 1.442695
        %v2673 = vpow.pop %v2672
        %v2674 = vmul.f32 %v2585, 1.442695
        %v2675 = vpow.pop %v2674
        %v2676 = vmul.f32 %v2586, 1.442695
        %v2677 = vpow.pop %v2676
        %v2678 = vmul.f32 %v2587, 1.442695
        %v2679 = vpow.pop %v2678
        %v2680 = vmul.f32 %v2588, 1.442695
        %v2681 = vpow.pop %v2680
        %v2682 = vmul.f32 %v2589, 1.442695
        %v2683 = vpow.pop %v2682
        %v2684 = vmul.f32 %v2590, 1.442695
        %v2685 = vpow.pop %v2684
        %v2686 = vmul.f32 %v2591, 1.442695
        %v2687 = vpow.pop %v2686
        %v2688 = vmul.f32 %v2592, 1.442695
        %v2689 = vpow.pop %v2688
        %v2690 = vmul.f32 %v2593, 1.442695
        %v2691 = vpow.pop %v2690
        %v2692 = vmul.f32 %v2594, 1.442695
        %v2693 = vpow.pop %v2692
        %v2694 = vmul.f32 %v2595, 1.442695
        %v2695 = vpow.pop %v2694
        %v2696 = vmul.f32 %v2596, 1.442695
        %v2697 = vpow.pop %v2696
        %v2698 = vmul.f32 %v2597, 1.442695
        %v2699 = vpow.pop %v2698
        %v2700 = vmul.f32 %v2598, 1.442695
        %v2701 = vpow.pop %v2700
        %v2702 = vmul.f32 %v2599, 1.442695
        %v2703 = vpow.pop %v2702
        %v2704 = vmul.f32 %v2600, 1.442695
        %v2705 = vpow.pop %v2704
        %v2706 = vmul.f32 %v2601, 1.442695
        %v2707 = vpow.pop %v2706
        %v2708 = vmul.f32 %v2602, 1.442695
        %v2709 = vpow.pop %v2708
        %v2710 = vmul.f32 %v2603, 1.442695
        %v2711 = vpow.pop %v2710
        %v2712 = vmul.f32 %v2604, 1.442695
        %v2713 = vpow.pop %v2712
        %v2714 = vmul.f32 %v2605, 1.442695
        %v2715 = vpow.pop %v2714
        %v2716 = vmul.f32 %v2606, 1.442695
        %v2717 = vpow.pop %v2716
        %v2718 = vmul.f32 %v2607, 1.442695
        %v2719 = vpow.pop %v2718
        %v2720 = vmul.f32 %v2608, 1.442695
        %v2721 = vpow.pop %v2720
        %v2722 = vmul.f32 %v2609, 1.442695
        %v2723 = vpow.pop %v2722
        %v2724 = vmul.f32 %v2610, 1.442695
        %v2725 = vpow.pop %v2724
        %v2726 = vmul.f32 %v2611, 1.442695
        %v2727 = vpow.pop %v2726
        %v2728 = vmul.f32 %v2612, 1.442695
        %v2729 = vpow.pop %v2728
        %v2730 = vmul.f32 %v2613, 1.442695
        %v2731 = vpow.pop %v2730
        %v2732 = vmul.f32 %v2614, 1.442695
        %v2733 = vpow.pop %v2732
        %v2734 = vmul.f32 %v2615, 1.442695
        %v2735 = vpow.pop %v2734
        %v2736 = vmul.f32 %v2616, 1.442695
        %v2737 = vpow.pop %v2736
        %v2738 = vmul.f32 %v2617, 1.442695
        %v2739 = vpow.pop %v2738
        %v2740 = vmul.f32 %v2618, 1.442695
        %v2741 = vpow.pop %v2740
        %v2742 = vmul.f32 %v2619, 1.442695
        %v2743 = vpow.pop %v2742
        %v2744 = vmul.f32 %v2620, 1.442695
        %v2745 = vpow.pop %v2744
        %v2746 = vmul.f32 %v2621, 1.442695
        %v2747 = vpow.pop %v2746
        %v2748 = vmul.f32 %v2622, 1.442695
        %v2749 = vpow.pop %v2748
        %v2750 = vmul.f32 %v2623, 1.442695
        %v2751 = vpow.pop %v2750
        %v2752 = vmul.f32 %v2624, 1.442695
        %v2753 = vpow.pop %v2752
        %v2754 = vmul.f32 %v2625, 1.442695
        %v2755 = vpow.pop %v2754
        %v2756 = vmul.f32 %v2626, 1.442695
        %v2757 = vpow.pop %v2756
        %v2758 = vmul.f32 %v2627, 1.442695
        %v2759 = vpow.pop %v2758
        %v2760 = vmul.f32 %v2628, 1.442695
        %v2761 = vpow.pop %v2760
        %v2762 = vmul.f32 %v2629, 1.442695
        %v2763 = vpow.pop %v2762
        %v2764 = vmul.f32 %v2630, 1.442695
        %v2765 = vpow.pop %v2764
        %v2766 = vmul.f32 %v2631, 1.442695
        %v2767 = vpow.pop %v2766
        %v2768 = vmul.f32 %v2632, 1.442695
        %v2769 = vpow.pop %v2768
        %v2770 = vmul.f32 %v2633, 1.442695
        %v2771 = vpow.pop %v2770
        %v2772 = vmul.f32 %v2634, 1.442695
        %v2773 = vpow.pop %v2772
        %v2774 = vmul.f32 %v2635, 1.442695
        %v2775 = vpow.pop %v2774
        %v2776 = vmul.f32 %v2636, 1.442695
        %v2777 = vpow.pop %v2776
        %v2778 = vmul.f32 %v2637, 1.442695
        %v2779 = vpow.pop %v2778
        %v2780 = vmul.f32 %v2638, 1.442695
        %v2781 = vpow.pop %v2780
        %v2782 = vmul.f32 %v2639, 1.442695
        %v2783 = vpow.pop %v2782
        %v2784 = vmul.f32 %v2640, 1.442695
        %v2785 = vpow.pop %v2784
        %v2786 = vmul.f32 %v2641, 1.442695
        %v2787 = vpow.pop %v2786
        %v2788 = vmul.f32 %v2642, 1.442695
        %v2789 = vpow.pop %v2788
        %v2790 = vmul.f32 %v2643, 1.442695
        %v2791 = vpow.pop %v2790
        %v2792 = vmul.f32 %v2644, 1.442695
        %v2793 = vpow.pop %v2792
        %v2794 = vmul.f32 %v2645, 1.442695
        %v2795 = vpow.pop %v2794
        %v2796 = vmul.f32 %v2646, 1.442695
        %v2797 = vpow.pop %v2796
        %v2798 = vmul.f32 %v2647, 1.442695
        %v2799 = vpow.pop %v2798
        %v2800 = vmul.f32 %v2420, %v2649
        %v2801 = vmul.f32 %v2421, %v2651
        %v2802 = vmul.f32 %v2422, %v2653
        %v2803 = vmul.f32 %v2423, %v2655
        %v2804 = vmul.f32 %v2424, %v2657
        %v2805 = vmul.f32 %v2425, %v2659
        %v2806 = vmul.f32 %v2426, %v2661
        %v2807 = vmul.f32 %v2427, %v2663
        %v2808 = vmul.f32 %v2428, %v2665
        %v2809 = vmul.f32 %v2429, %v2667
        %v2810 = vmul.f32 %v2430, %v2669
        %v2811 = vmul.f32 %v2431, %v2671
        %v2812 = vmul.f32 %v2432, %v2673
        %v2813 = vmul.f32 %v2433, %v2675
        %v2814 = vmul.f32 %v2434, %v2677
        %v2815 = vmul.f32 %v2435, %v2679
        %v2816 = vmul.f32 %v2436, %v2681
        %v2817 = vmul.f32 %v2437, %v2683
        %v2818 = vmul.f32 %v2438, %v2685
        %v2819 = vmul.f32 %v2439, %v2687
        %v2820 = vmul.f32 %v2440, %v2689
        %v2821 = vmul.f32 %v2441, %v2691
        %v2822 = vmul.f32 %v2442, %v2693
        %v2823 = vmul.f32 %v2443, %v2695
        %v2824 = vmul.f32 %v2444, %v2697
        %v2825 = vmul.f32 %v2445, %v2699
        %v2826 = vmul.f32 %v2446, %v2701
        %v2827 = vmul.f32 %v2447, %v2703
        %v2828 = vmul.f32 %v2448, %v2705
        %v2829 = vmul.f32 %v2449, %v2707
        %v2830 = vmul.f32 %v2450, %v2709
        %v2831 = vmul.f32 %v2451, %v2711
        %v2832 = vmul.f32 %v2452, %v2713
        %v2833 = vmul.f32 %v2453, %v2715
        %v2834 = vmul.f32 %v2454, %v2717
        %v2835 = vmul.f32 %v2455, %v2719
        %v2836 = vmul.f32 %v2456, %v2721
        %v2837 = vmul.f32 %v2457, %v2723
        %v2838 = vmul.f32 %v2458, %v2725
        %v2839 = vmul.f32 %v2459, %v2727
        %v2840 = vmul.f32 %v2460, %v2729
        %v2841 = vmul.f32 %v2461, %v2731
        %v2842 = vmul.f32 %v2462, %v2733
        %v2843 = vmul.f32 %v2463, %v2735
        %v2844 = vmul.f32 %v2464, %v2737
        %v2845 = vmul.f32 %v2465, %v2739
        %v2846 = vmul.f32 %v2466, %v2741
        %v2847 = vmul.f32 %v2467, %v2743
        %v2848 = vmul.f32 %v2468, %v2745
        %v2849 = vmul.f32 %v2469, %v2747
        %v2850 = vmul.f32 %v2470, %v2749
        %v2851 = vmul.f32 %v2471, %v2751
        %v2852 = vmul.f32 %v2472, %v2753
        %v2853 = vmul.f32 %v2473, %v2755
        %v2854 = vmul.f32 %v2474, %v2757
        %v2855 = vmul.f32 %v2475, %v2759
        %v2856 = vmul.f32 %v2476, %v2761
        %v2857 = vmul.f32 %v2477, %v2763
        %v2858 = vmul.f32 %v2478, %v2765
        %v2859 = vmul.f32 %v2479, %v2767
        %v2860 = vmul.f32 %v2480, %v2769
        %v2861 = vmul.f32 %v2481, %v2771
        %v2862 = vmul.f32 %v2482, %v2773
        %v2863 = vmul.f32 %v2483, %v2775
        %v2864 = vmul.f32 %v2484, %v2777
        %v2865 = vmul.f32 %v2485, %v2779
        %v2866 = vmul.f32 %v2486, %v2781
        %v2867 = vmul.f32 %v2487, %v2783
        %v2868 = vmul.f32 %v2488, %v2785
        %v2869 = vmul.f32 %v2489, %v2787
        %v2870 = vmul.f32 %v2490, %v2789
        %v2871 = vmul.f32 %v2491, %v2791
        %v2872 = vmul.f32 %v2492, %v2793
        %v2873 = vmul.f32 %v2493, %v2795
        %v2874 = vmul.f32 %v2494, %v2797
        %v2875 = vmul.f32 %v2495, %v2799
        %v2876 = vsub.f32 1.0, %v2800
        %v2877 = vsub.f32 1.0, %v2801
        %v2878 = vsub.f32 1.0, %v2802
        %v2879 = vsub.f32 1.0, %v2803
        %v2880 = vsub.f32 1.0, %v2804
        %v2881 = vsub.f32 1.0, %v2805
        %v2882 = vsub.f32 1.0, %v2806
        %v2883 = vsub.f32 1.0, %v2807
        %v2884 = vsub.f32 1.0, %v2808
        %v2885 = vsub.f32 1.0, %v2809
        %v2886 = vsub.f32 1.0, %v2810
        %v2887 = vsub.f32 1.0, %v2811
        %v2888 = vsub.f32 1.0, %v2812
        %v2889 = vsub.f32 1.0, %v2813
        %v2890 = vsub.f32 1.0, %v2814
        %v2891 = vsub.f32 1.0, %v2815
        %v2892 = vsub.f32 1.0, %v2816
        %v2893 = vsub.f32 1.0, %v2817
        %v2894 = vsub.f32 1.0, %v2818
        %v2895 = vsub.f32 1.0, %v2819
        %v2896 = vsub.f32 1.0, %v2820
        %v2897 = vsub.f32 1.0, %v2821
        %v2898 = vsub.f32 1.0, %v2822
        %v2899 = vsub.f32 1.0, %v2823
        %v2900 = vsub.f32 1.0, %v2824
        %v2901 = vsub.f32 1.0, %v2825
        %v2902 = vsub.f32 1.0, %v2826
        %v2903 = vsub.f32 1.0, %v2827
        %v2904 = vsub.f32 1.0, %v2828
        %v2905 = vsub.f32 1.0, %v2829
        %v2906 = vsub.f32 1.0, %v2830
        %v2907 = vsub.f32 1.0, %v2831
        %v2908 = vsub.f32 1.0, %v2832
        %v2909 = vsub.f32 1.0, %v2833
        %v2910 = vsub.f32 1.0, %v2834
        %v2911 = vsub.f32 1.0, %v2835
        %v2912 = vsub.f32 1.0, %v2836
        %v2913 = vsub.f32 1.0, %v2837
        %v2914 = vsub.f32 1.0, %v2838
        %v2915 = vsub.f32 1.0, %v2839
        %v2916 = vsub.f32 1.0, %v2840
        %v2917 = vsub.f32 1.0, %v2841
        %v2918 = vsub.f32 1.0, %v2842
        %v2919 = vsub.f32 1.0, %v2843
        %v2920 = vsub.f32 1.0, %v2844
        %v2921 = vsub.f32 1.0, %v2845
        %v2922 = vsub.f32 1.0, %v2846
        %v2923 = vsub.f32 1.0, %v2847
        %v2924 = vsub.f32 1.0, %v2848
        %v2925 = vsub.f32 1.0, %v2849
        %v2926 = vsub.f32 1.0, %v2850
        %v2927 = vsub.f32 1.0, %v2851
        %v2928 = vsub.f32 1.0, %v2852
        %v2929 = vsub.f32 1.0, %v2853
        %v2930 = vsub.f32 1.0, %v2854
        %v2931 = vsub.f32 1.0, %v2855
        %v2932 = vsub.f32 1.0, %v2856
        %v2933 = vsub.f32 1.0, %v2857
        %v2934 = vsub.f32 1.0, %v2858
        %v2935 = vsub.f32 1.0, %v2859
        %v2936 = vsub.f32 1.0, %v2860
        %v2937 = vsub.f32 1.0, %v2861
        %v2938 = vsub.f32 1.0, %v2862
        %v2939 = vsub.f32 1.0, %v2863
        %v2940 = vsub.f32 1.0, %v2864
        %v2941 = vsub.f32 1.0, %v2865
        %v2942 = vsub.f32 1.0, %v2866
        %v2943 = vsub.f32 1.0, %v2867
        %v2944 = vsub.f32 1.0, %v2868
        %v2945 = vsub.f32 1.0, %v2869
        %v2946 = vsub.f32 1.0, %v2870
        %v2947 = vsub.f32 1.0, %v2871
        %v2948 = vsub.f32 1.0, %v2872
        %v2949 = vsub.f32 1.0, %v2873
        %v2950 = vsub.f32 1.0, %v2874
        %v2951 = vsub.f32 1.0, %v2875
        %vm2952 = vcmp.lt.f32.partialorder %v1432, 0.0
        %vm2953 = vcmp.lt.f32.partialorder %v1433, 0.0
        %vm2954 = vcmp.lt.f32.partialorder %v1434, 0.0
        %vm2955 = vcmp.lt.f32.partialorder %v1435, 0.0
        %vm2956 = vcmp.lt.f32.partialorder %v1436, 0.0
        %vm2957 = vcmp.lt.f32.partialorder %v1437, 0.0
        %vm2958 = vcmp.lt.f32.partialorder %v1438, 0.0
        %vm2959 = vcmp.lt.f32.partialorder %v1439, 0.0
        %vm2960 = vcmp.lt.f32.partialorder %v1440, 0.0
        %vm2961 = vcmp.lt.f32.partialorder %v1441, 0.0
        %vm2962 = vcmp.lt.f32.partialorder %v1442, 0.0
        %vm2963 = vcmp.lt.f32.partialorder %v1443, 0.0
        %vm2964 = vcmp.lt.f32.partialorder %v1444, 0.0
        %vm2965 = vcmp.lt.f32.partialorder %v1445, 0.0
        %vm2966 = vcmp.lt.f32.partialorder %v1446, 0.0
        %vm2967 = vcmp.lt.f32.partialorder %v1447, 0.0
        %vm2968 = vcmp.lt.f32.partialorder %v1448, 0.0
        %vm2969 = vcmp.lt.f32.partialorder %v1449, 0.0
        %vm2970 = vcmp.lt.f32.partialorder %v1450, 0.0
        %vm2971 = vcmp.lt.f32.partialorder %v1451, 0.0
        %vm2972 = vcmp.lt.f32.partialorder %v1452, 0.0
        %vm2973 = vcmp.lt.f32.partialorder %v1453, 0.0
        %vm2974 = vcmp.lt.f32.partialorder %v1454, 0.0
        %vm2975 = vcmp.lt.f32.partialorder %v1455, 0.0
        %vm2976 = vcmp.lt.f32.partialorder %v1456, 0.0
        %vm2977 = vcmp.lt.f32.partialorder %v1457, 0.0
        %vm2978 = vcmp.lt.f32.partialorder %v1458, 0.0
        %vm2979 = vcmp.lt.f32.partialorder %v1459, 0.0
        %vm2980 = vcmp.lt.f32.partialorder %v1460, 0.0
        %vm2981 = vcmp.lt.f32.partialorder %v1461, 0.0
        %vm2982 = vcmp.lt.f32.partialorder %v1462, 0.0
        %vm2983 = vcmp.lt.f32.partialorder %v1463, 0.0
        %vm2984 = vcmp.lt.f32.partialorder %v1464, 0.0
        %vm2985 = vcmp.lt.f32.partialorder %v1465, 0.0
        %vm2986 = vcmp.lt.f32.partialorder %v1466, 0.0
        %vm2987 = vcmp.lt.f32.partialorder %v1467, 0.0
        %vm2988 = vcmp.lt.f32.partialorder %v1468, 0.0
        %vm2989 = vcmp.lt.f32.partialorder %v1469, 0.0
        %vm2990 = vcmp.lt.f32.partialorder %v1470, 0.0
        %vm2991 = vcmp.lt.f32.partialorder %v1471, 0.0
        %vm2992 = vcmp.lt.f32.partialorder %v1472, 0.0
        %vm2993 = vcmp.lt.f32.partialorder %v1473, 0.0
        %vm2994 = vcmp.lt.f32.partialorder %v1474, 0.0
        %vm2995 = vcmp.lt.f32.partialorder %v1475, 0.0
        %vm2996 = vcmp.lt.f32.partialorder %v1476, 0.0
        %vm2997 = vcmp.lt.f32.partialorder %v1477, 0.0
        %vm2998 = vcmp.lt.f32.partialorder %v1478, 0.0
        %vm2999 = vcmp.lt.f32.partialorder %v1479, 0.0
        %vm3000 = vcmp.lt.f32.partialorder %v1480, 0.0
        %vm3001 = vcmp.lt.f32.partialorder %v1481, 0.0
        %vm3002 = vcmp.lt.f32.partialorder %v1482, 0.0
        %vm3003 = vcmp.lt.f32.partialorder %v1483, 0.0
        %vm3004 = vcmp.lt.f32.partialorder %v1484, 0.0
        %vm3005 = vcmp.lt.f32.partialorder %v1485, 0.0
        %vm3006 = vcmp.lt.f32.partialorder %v1486, 0.0
        %vm3007 = vcmp.lt.f32.partialorder %v1487, 0.0
        %vm3008 = vcmp.lt.f32.partialorder %v1488, 0.0
        %vm3009 = vcmp.lt.f32.partialorder %v1489, 0.0
        %vm3010 = vcmp.lt.f32.partialorder %v1490, 0.0
        %vm3011 = vcmp.lt.f32.partialorder %v1491, 0.0
        %vm3012 = vcmp.lt.f32.partialorder %v1492, 0.0
        %vm3013 = vcmp.lt.f32.partialorder %v1493, 0.0
        %vm3014 = vcmp.lt.f32.partialorder %v1494, 0.0
        %vm3015 = vcmp.lt.f32.partialorder %v1495, 0.0
        %vm3016 = vcmp.lt.f32.partialorder %v1496, 0.0
        %vm3017 = vcmp.lt.f32.partialorder %v1497, 0.0
        %vm3018 = vcmp.lt.f32.partialorder %v1498, 0.0
        %vm3019 = vcmp.lt.f32.partialorder %v1499, 0.0
        %vm3020 = vcmp.lt.f32.partialorder %v1500, 0.0
        %vm3021 = vcmp.lt.f32.partialorder %v1501, 0.0
        %vm3022 = vcmp.lt.f32.partialorder %v1502, 0.0
        %vm3023 = vcmp.lt.f32.partialorder %v1503, 0.0
        %vm3024 = vcmp.lt.f32.partialorder %v1504, 0.0
        %vm3025 = vcmp.lt.f32.partialorder %v1505, 0.0
        %vm3026 = vcmp.lt.f32.partialorder %v1506, 0.0
        %vm3027 = vcmp.lt.f32.partialorder %v1507, 0.0
        %v3028 = vsub.f32 0.0, %v2876
        %v3029 = vsub.f32 0.0, %v2877
        %v3030 = vsub.f32 0.0, %v2878
        %v3031 = vsub.f32 0.0, %v2879
        %v3032 = vsub.f32 0.0, %v2880
        %v3033 = vsub.f32 0.0, %v2881
        %v3034 = vsub.f32 0.0, %v2882
        %v3035 = vsub.f32 0.0, %v2883
        %v3036 = vsub.f32 0.0, %v2884
        %v3037 = vsub.f32 0.0, %v2885
        %v3038 = vsub.f32 0.0, %v2886
        %v3039 = vsub.f32 0.0, %v2887
        %v3040 = vsub.f32 0.0, %v2888
        %v3041 = vsub.f32 0.0, %v2889
        %v3042 = vsub.f32 0.0, %v2890
        %v3043 = vsub.f32 0.0, %v2891
        %v3044 = vsub.f32 0.0, %v2892
        %v3045 = vsub.f32 0.0, %v2893
        %v3046 = vsub.f32 0.0, %v2894
        %v3047 = vsub.f32 0.0, %v2895
        %v3048 = vsub.f32 0.0, %v2896
        %v3049 = vsub.f32 0.0, %v2897
        %v3050 = vsub.f32 0.0, %v2898
        %v3051 = vsub.f32 0.0, %v2899
        %v3052 = vsub.f32 0.0, %v2900
        %v3053 = vsub.f32 0.0, %v2901
        %v3054 = vsub.f32 0.0, %v2902
        %v3055 = vsub.f32 0.0, %v2903
        %v3056 = vsub.f32 0.0, %v2904
        %v3057 = vsub.f32 0.0, %v2905
        %v3058 = vsub.f32 0.0, %v2906
        %v3059 = vsub.f32 0.0, %v2907
        %v3060 = vsub.f32 0.0, %v2908
        %v3061 = vsub.f32 0.0, %v2909
        %v3062 = vsub.f32 0.0, %v2910
        %v3063 = vsub.f32 0.0, %v2911
        %v3064 = vsub.f32 0.0, %v2912
        %v3065 = vsub.f32 0.0, %v2913
        %v3066 = vsub.f32 0.0, %v2914
        %v3067 = vsub.f32 0.0, %v2915
        %v3068 = vsub.f32 0.0, %v2916
        %v3069 = vsub.f32 0.0, %v2917
        %v3070 = vsub.f32 0.0, %v2918
        %v3071 = vsub.f32 0.0, %v2919
        %v3072 = vsub.f32 0.0, %v2920
        %v3073 = vsub.f32 0.0, %v2921
        %v3074 = vsub.f32 0.0, %v2922
        %v3075 = vsub.f32 0.0, %v2923
        %v3076 = vsub.f32 0.0, %v2924
        %v3077 = vsub.f32 0.0, %v2925
        %v3078 = vsub.f32 0.0, %v2926
        %v3079 = vsub.f32 0.0, %v2927
        %v3080 = vsub.f32 0.0, %v2928
        %v3081 = vsub.f32 0.0, %v2929
        %v3082 = vsub.f32 0.0, %v2930
        %v3083 = vsub.f32 0.0, %v2931
        %v3084 = vsub.f32 0.0, %v2932
        %v3085 = vsub.f32 0.0, %v2933
        %v3086 = vsub.f32 0.0, %v2934
        %v3087 = vsub.f32 0.0, %v2935
        %v3088 = vsub.f32 0.0, %v2936
        %v3089 = vsub.f32 0.0, %v2937
        %v3090 = vsub.f32 0.0, %v2938
        %v3091 = vsub.f32 0.0, %v2939
        %v3092 = vsub.f32 0.0, %v2940
        %v3093 = vsub.f32 0.0, %v2941
        %v3094 = vsub.f32 0.0, %v2942
        %v3095 = vsub.f32 0.0, %v2943
        %v3096 = vsub.f32 0.0, %v2944
        %v3097 = vsub.f32 0.0, %v2945
        %v3098 = vsub.f32 0.0, %v2946
        %v3099 = vsub.f32 0.0, %v2947
        %v3100 = vsub.f32 0.0, %v2948
        %v3101 = vsub.f32 0.0, %v2949
        %v3102 = vsub.f32 0.0, %v2950
        %v3103 = vsub.f32 0.0, %v2951
        %v3104 = vsel %vm2952, %v3028, %v2876
        %v3105 = vsel %vm2953, %v3029, %v2877
        %v3106 = vsel %vm2954, %v3030, %v2878
        %v3107 = vsel %vm2955, %v3031, %v2879
        %v3108 = vsel %vm2956, %v3032, %v2880
        %v3109 = vsel %vm2957, %v3033, %v2881
        %v3110 = vsel %vm2958, %v3034, %v2882
        %v3111 = vsel %vm2959, %v3035, %v2883
        %v3112 = vsel %vm2960, %v3036, %v2884
        %v3113 = vsel %vm2961, %v3037, %v2885
        %v3114 = vsel %vm2962, %v3038, %v2886
        %v3115 = vsel %vm2963, %v3039, %v2887
        %v3116 = vsel %vm2964, %v3040, %v2888
        %v3117 = vsel %vm2965, %v3041, %v2889
        %v3118 = vsel %vm2966, %v3042, %v2890
        %v3119 = vsel %vm2967, %v3043, %v2891
        %v3120 = vsel %vm2968, %v3044, %v2892
        %v3121 = vsel %vm2969, %v3045, %v2893
        %v3122 = vsel %vm2970, %v3046, %v2894
        %v3123 = vsel %vm2971, %v3047, %v2895
        %v3124 = vsel %vm2972, %v3048, %v2896
        %v3125 = vsel %vm2973, %v3049, %v2897
        %v3126 = vsel %vm2974, %v3050, %v2898
        %v3127 = vsel %vm2975, %v3051, %v2899
        %v3128 = vsel %vm2976, %v3052, %v2900
        %v3129 = vsel %vm2977, %v3053, %v2901
        %v3130 = vsel %vm2978, %v3054, %v2902
        %v3131 = vsel %vm2979, %v3055, %v2903
        %v3132 = vsel %vm2980, %v3056, %v2904
        %v3133 = vsel %vm2981, %v3057, %v2905
        %v3134 = vsel %vm2982, %v3058, %v2906
        %v3135 = vsel %vm2983, %v3059, %v2907
        %v3136 = vsel %vm2984, %v3060, %v2908
        %v3137 = vsel %vm2985, %v3061, %v2909
        %v3138 = vsel %vm2986, %v3062, %v2910
        %v3139 = vsel %vm2987, %v3063, %v2911
        %v3140 = vsel %vm2988, %v3064, %v2912
        %v3141 = vsel %vm2989, %v3065, %v2913
        %v3142 = vsel %vm2990, %v3066, %v2914
        %v3143 = vsel %vm2991, %v3067, %v2915
        %v3144 = vsel %vm2992, %v3068, %v2916
        %v3145 = vsel %vm2993, %v3069, %v2917
        %v3146 = vsel %vm2994, %v3070, %v2918
        %v3147 = vsel %vm2995, %v3071, %v2919
        %v3148 = vsel %vm2996, %v3072, %v2920
        %v3149 = vsel %vm2997, %v3073, %v2921
        %v3150 = vsel %vm2998, %v3074, %v2922
        %v3151 = vsel %vm2999, %v3075, %v2923
        %v3152 = vsel %vm3000, %v3076, %v2924
        %v3153 = vsel %vm3001, %v3077, %v2925
        %v3154 = vsel %vm3002, %v3078, %v2926
        %v3155 = vsel %vm3003, %v3079, %v2927
        %v3156 = vsel %vm3004, %v3080, %v2928
        %v3157 = vsel %vm3005, %v3081, %v2929
        %v3158 = vsel %vm3006, %v3082, %v2930
        %v3159 = vsel %vm3007, %v3083, %v2931
        %v3160 = vsel %vm3008, %v3084, %v2932
        %v3161 = vsel %vm3009, %v3085, %v2933
        %v3162 = vsel %vm3010, %v3086, %v2934
        %v3163 = vsel %vm3011, %v3087, %v2935
        %v3164 = vsel %vm3012, %v3088, %v2936
        %v3165 = vsel %vm3013, %v3089, %v2937
        %v3166 = vsel %vm3014, %v3090, %v2938
        %v3167 = vsel %vm3015, %v3091, %v2939
        %v3168 = vsel %vm3016, %v3092, %v2940
        %v3169 = vsel %vm3017, %v3093, %v2941
        %v3170 = vsel %vm3018, %v3094, %v2942
        %v3171 = vsel %vm3019, %v3095, %v2943
        %v3172 = vsel %vm3020, %v3096, %v2944
        %v3173 = vsel %vm3021, %v3097, %v2945
        %v3174 = vsel %vm3022, %v3098, %v2946
        %v3175 = vsel %vm3023, %v3099, %v2947
        %v3176 = vsel %vm3024, %v3100, %v2948
        %v3177 = vsel %vm3025, %v3101, %v2949
        %v3178 = vsel %vm3026, %v3102, %v2950
        %v3179 = vsel %vm3027, %v3103, %v2951
        %v3180 = vadd.f32 %v3104, 1.0
        %v3181 = vadd.f32 %v3105, 1.0
        %v3182 = vadd.f32 %v3106, 1.0
        %v3183 = vadd.f32 %v3107, 1.0
        %v3184 = vadd.f32 %v3108, 1.0
        %v3185 = vadd.f32 %v3109, 1.0
        %v3186 = vadd.f32 %v3110, 1.0
        %v3187 = vadd.f32 %v3111, 1.0
        %v3188 = vadd.f32 %v3112, 1.0
        %v3189 = vadd.f32 %v3113, 1.0
        %v3190 = vadd.f32 %v3114, 1.0
        %v3191 = vadd.f32 %v3115, 1.0
        %v3192 = vadd.f32 %v3116, 1.0
        %v3193 = vadd.f32 %v3117, 1.0
        %v3194 = vadd.f32 %v3118, 1.0
        %v3195 = vadd.f32 %v3119, 1.0
        %v3196 = vadd.f32 %v3120, 1.0
        %v3197 = vadd.f32 %v3121, 1.0
        %v3198 = vadd.f32 %v3122, 1.0
        %v3199 = vadd.f32 %v3123, 1.0
        %v3200 = vadd.f32 %v3124, 1.0
        %v3201 = vadd.f32 %v3125, 1.0
        %v3202 = vadd.f32 %v3126, 1.0
        %v3203 = vadd.f32 %v3127, 1.0
        %v3204 = vadd.f32 %v3128, 1.0
        %v3205 = vadd.f32 %v3129, 1.0
        %v3206 = vadd.f32 %v3130, 1.0
        %v3207 = vadd.f32 %v3131, 1.0
        %v3208 = vadd.f32 %v3132, 1.0
        %v3209 = vadd.f32 %v3133, 1.0
        %v3210 = vadd.f32 %v3134, 1.0
        %v3211 = vadd.f32 %v3135, 1.0
        %v3212 = vadd.f32 %v3136, 1.0
        %v3213 = vadd.f32 %v3137, 1.0
        %v3214 = vadd.f32 %v3138, 1.0
        %v3215 = vadd.f32 %v3139, 1.0
        %v3216 = vadd.f32 %v3140, 1.0
        %v3217 = vadd.f32 %v3141, 1.0
        %v3218 = vadd.f32 %v3142, 1.0
        %v3219 = vadd.f32 %v3143, 1.0
        %v3220 = vadd.f32 %v3144, 1.0
        %v3221 = vadd.f32 %v3145, 1.0
        %v3222 = vadd.f32 %v3146, 1.0
        %v3223 = vadd.f32 %v3147, 1.0
        %v3224 = vadd.f32 %v3148, 1.0
        %v3225 = vadd.f32 %v3149, 1.0
        %v3226 = vadd.f32 %v3150, 1.0
        %v3227 = vadd.f32 %v3151, 1.0
        %v3228 = vadd.f32 %v3152, 1.0
        %v3229 = vadd.f32 %v3153, 1.0
        %v3230 = vadd.f32 %v3154, 1.0
        %v3231 = vadd.f32 %v3155, 1.0
        %v3232 = vadd.f32 %v3156, 1.0
        %v3233 = vadd.f32 %v3157, 1.0
        %v3234 = vadd.f32 %v3158, 1.0
        %v3235 = vadd.f32 %v3159, 1.0
        %v3236 = vadd.f32 %v3160, 1.0
        %v3237 = vadd.f32 %v3161, 1.0
        %v3238 = vadd.f32 %v3162, 1.0
        %v3239 = vadd.f32 %v3163, 1.0
        %v3240 = vadd.f32 %v3164, 1.0
        %v3241 = vadd.f32 %v3165, 1.0
        %v3242 = vadd.f32 %v3166, 1.0
        %v3243 = vadd.f32 %v3167, 1.0
        %v3244 = vadd.f32 %v3168, 1.0
        %v3245 = vadd.f32 %v3169, 1.0
        %v3246 = vadd.f32 %v3170, 1.0
        %v3247 = vadd.f32 %v3171, 1.0
        %v3248 = vadd.f32 %v3172, 1.0
        %v3249 = vadd.f32 %v3173, 1.0
        %v3250 = vadd.f32 %v3174, 1.0
        %v3251 = vadd.f32 %v3175, 1.0
        %v3252 = vadd.f32 %v3176, 1.0
        %v3253 = vadd.f32 %v3177, 1.0
        %v3254 = vadd.f32 %v3178, 1.0
        %v3255 = vadd.f32 %v3179, 1.0
        %v3256 = vmul.f32 %v1356, %v3180
        %v3257 = vmul.f32 %v1357, %v3181
        %v3258 = vmul.f32 %v1358, %v3182
        %v3259 = vmul.f32 %v1359, %v3183
        %v3260 = vmul.f32 %v1360, %v3184
        %v3261 = vmul.f32 %v1361, %v3185
        %v3262 = vmul.f32 %v1362, %v3186
        %v3263 = vmul.f32 %v1363, %v3187
        %v3264 = vmul.f32 %v1364, %v3188
        %v3265 = vmul.f32 %v1365, %v3189
        %v3266 = vmul.f32 %v1366, %v3190
        %v3267 = vmul.f32 %v1367, %v3191
        %v3268 = vmul.f32 %v1368, %v3192
        %v3269 = vmul.f32 %v1369, %v3193
        %v3270 = vmul.f32 %v1370, %v3194
        %v3271 = vmul.f32 %v1371, %v3195
        %v3272 = vmul.f32 %v1372, %v3196
        %v3273 = vmul.f32 %v1373, %v3197
        %v3274 = vmul.f32 %v1374, %v3198
        %v3275 = vmul.f32 %v1375, %v3199
        %v3276 = vmul.f32 %v1376, %v3200
        %v3277 = vmul.f32 %v1377, %v3201
        %v3278 = vmul.f32 %v1378, %v3202
        %v3279 = vmul.f32 %v1379, %v3203
        %v3280 = vmul.f32 %v1380, %v3204
        %v3281 = vmul.f32 %v1381, %v3205
        %v3282 = vmul.f32 %v1382, %v3206
        %v3283 = vmul.f32 %v1383, %v3207
        %v3284 = vmul.f32 %v1384, %v3208
        %v3285 = vmul.f32 %v1385, %v3209
        %v3286 = vmul.f32 %v1386, %v3210
        %v3287 = vmul.f32 %v1387, %v3211
        %v3288 = vmul.f32 %v1388, %v3212
        %v3289 = vmul.f32 %v1389, %v3213
        %v3290 = vmul.f32 %v1390, %v3214
        %v3291 = vmul.f32 %v1391, %v3215
        %v3292 = vmul.f32 %v1392, %v3216
        %v3293 = vmul.f32 %v1393, %v3217
        %v3294 = vmul.f32 %v1394, %v3218
        %v3295 = vmul.f32 %v1395, %v3219
        %v3296 = vmul.f32 %v1396, %v3220
        %v3297 = vmul.f32 %v1397, %v3221
        %v3298 = vmul.f32 %v1398, %v3222
        %v3299 = vmul.f32 %v1399, %v3223
        %v3300 = vmul.f32 %v1400, %v3224
        %v3301 = vmul.f32 %v1401, %v3225
        %v3302 = vmul.f32 %v1402, %v3226
        %v3303 = vmul.f32 %v1403, %v3227
        %v3304 = vmul.f32 %v1404, %v3228
        %v3305 = vmul.f32 %v1405, %v3229
        %v3306 = vmul.f32 %v1406, %v3230
        %v3307 = vmul.f32 %v1407, %v3231
        %v3308 = vmul.f32 %v1408, %v3232
        %v3309 = vmul.f32 %v1409, %v3233
        %v3310 = vmul.f32 %v1410, %v3234
        %v3311 = vmul.f32 %v1411, %v3235
        %v3312 = vmul.f32 %v1412, %v3236
        %v3313 = vmul.f32 %v1413, %v3237
        %v3314 = vmul.f32 %v1414, %v3238
        %v3315 = vmul.f32 %v1415, %v3239
        %v3316 = vmul.f32 %v1416, %v3240
        %v3317 = vmul.f32 %v1417, %v3241
        %v3318 = vmul.f32 %v1418, %v3242
        %v3319 = vmul.f32 %v1419, %v3243
        %v3320 = vmul.f32 %v1420, %v3244
        %v3321 = vmul.f32 %v1421, %v3245
        %v3322 = vmul.f32 %v1422, %v3246
        %v3323 = vmul.f32 %v1423, %v3247
        %v3324 = vmul.f32 %v1424, %v3248
        %v3325 = vmul.f32 %v1425, %v3249
        %v3326 = vmul.f32 %v1426, %v3250
        %v3327 = vmul.f32 %v1427, %v3251
        %v3328 = vmul.f32 %v1428, %v3252
        %v3329 = vmul.f32 %v1429, %v3253
        %v3330 = vmul.f32 %v1430, %v3254
        %v3331 = vmul.f32 %v1431, %v3255
        %v3332 = vld [vmem:[#allocation9] sm:$0xff]
        %v3333 = vld [vmem:[#allocation9 + $0x8] sm:$0xff]
        %v3334 = vld [vmem:[#allocation9 + $0x10] sm:$0xff]
        %v3335 = vld [vmem:[#allocation9 + $0x18] sm:$0xff]
        %v3336 = vld [vmem:[#allocation9 + $0x20] sm:$0xff]
        %v3337 = vld [vmem:[#allocation9 + $0x28] sm:$0xff]
        %v3338 = vld [vmem:[#allocation9 + $0x30] sm:$0xff]
        %v3339 = vld [vmem:[#allocation9 + $0x38] sm:$0xff]
        %v3340 = vld [vmem:[#allocation9 + $0x40] sm:$0xff]
        %v3341 = vld [vmem:[#allocation9 + $0x48] sm:$0xff]
        %v3342 = vld [vmem:[#allocation9 + $0x50] sm:$0xff]
        %v3343 = vld [vmem:[#allocation9 + $0x58] sm:$0xff]
        %v3344 = vld [vmem:[#allocation9 + $0x60] sm:$0xff]
        %v3345 = vld [vmem:[#allocation9 + $0x68] sm:$0xff]
        %v3346 = vld [vmem:[#allocation9 + $0x70] sm:$0xff]
        %v3347 = vld [vmem:[#allocation9 + $0x78] sm:$0xff]
        %v3348 = vld [vmem:[#allocation9 + $0x80] sm:$0xff]
        %v3349 = vld [vmem:[#allocation9 + $0x88] sm:$0xff]
        %v3350 = vld [vmem:[#allocation9 + $0x90] sm:$0xff]
        %v3351 = vld [vmem:[#allocation9 + $0x98] sm:$0xff]
        %v3352 = vld [vmem:[#allocation9 + $0xa0] sm:$0xff]
        %v3353 = vld [vmem:[#allocation9 + $0xa8] sm:$0xff]
        %v3354 = vld [vmem:[#allocation9 + $0xb0] sm:$0xff]
        %v3355 = vld [vmem:[#allocation9 + $0xb8] sm:$0xff]
        %v3356 = vld [vmem:[#allocation9 + $0xc0] sm:$0xff]
        %v3357 = vld [vmem:[#allocation9 + $0xc8] sm:$0xff]
        %v3358 = vld [vmem:[#allocation9 + $0xd0] sm:$0xff]
        %v3359 = vld [vmem:[#allocation9 + $0xd8] sm:$0xff]
        %v3360 = vld [vmem:[#allocation9 + $0xe0] sm:$0xff]
        %v3361 = vld [vmem:[#allocation9 + $0xe8] sm:$0xff]
        %v3362 = vld [vmem:[#allocation9 + $0xf0] sm:$0xff]
        %v3363 = vld [vmem:[#allocation9 + $0xf8] sm:$0xff]
        %v3364 = vld [vmem:[#allocation9 + $0x100] sm:$0xff]
        %v3365 = vld [vmem:[#allocation9 + $0x108] sm:$0xff]
        %v3366 = vld [vmem:[#allocation9 + $0x110] sm:$0xff]
        %v3367 = vld [vmem:[#allocation9 + $0x118] sm:$0xff]
        %v3368 = vld [vmem:[#allocation9 + $0x120] sm:$0xff]
        %v3369 = vld [vmem:[#allocation9 + $0x128] sm:$0xff]
        %v3370 = vld [vmem:[#allocation9 + $0x130] sm:$0xff]
        %v3371 = vld [vmem:[#allocation9 + $0x138] sm:$0xff]
        %v3372 = vld [vmem:[#allocation9 + $0x140] sm:$0xff]
        %v3373 = vld [vmem:[#allocation9 + $0x148] sm:$0xff]
        %v3374 = vld [vmem:[#allocation9 + $0x150] sm:$0xff]
        %v3375 = vld [vmem:[#allocation9 + $0x158] sm:$0xff]
        %v3376 = vld [vmem:[#allocation9 + $0x160] sm:$0xff]
        %v3377 = vld [vmem:[#allocation9 + $0x168] sm:$0xff]
        %v3378 = vld [vmem:[#allocation9 + $0x170] sm:$0xff]
        %v3379 = vld [vmem:[#allocation9 + $0x178] sm:$0xff]
        %v3380 = vld [vmem:[#allocation9 + $0x180] sm:$0xff]
        %v3381 = vld [vmem:[#allocation9 + $0x188] sm:$0xff]
        %v3382 = vld [vmem:[#allocation9 + $0x190] sm:$0xff]
        %v3383 = vld [vmem:[#allocation9 + $0x198] sm:$0xff]
        %v3384 = vld [vmem:[#allocation9 + $0x1a0] sm:$0xff]
        %v3385 = vld [vmem:[#allocation9 + $0x1a8] sm:$0xff]
        %v3386 = vld [vmem:[#allocation9 + $0x1b0] sm:$0xff]
        %v3387 = vld [vmem:[#allocation9 + $0x1b8] sm:$0xff]
        %v3388 = vld [vmem:[#allocation9 + $0x1c0] sm:$0xff]
        %v3389 = vld [vmem:[#allocation9 + $0x1c8] sm:$0xff]
        %v3390 = vld [vmem:[#allocation9 + $0x1d0] sm:$0xff]
        %v3391 = vld [vmem:[#allocation9 + $0x1d8] sm:$0xff]
        %v3392 = vld [vmem:[#allocation9 + $0x1e0] sm:$0xff]
        %v3393 = vld [vmem:[#allocation9 + $0x1e8] sm:$0xff]
        %v3394 = vld [vmem:[#allocation9 + $0x1f0] sm:$0xff]
        %v3395 = vld [vmem:[#allocation9 + $0x1f8] sm:$0xff]
        %v3396 = vld [vmem:[#allocation2] sm:$0xff]
        %v3397 = vld [vmem:[#allocation2 + $0x8] sm:$0xff]
        %v3398 = vld [vmem:[#allocation2 + $0x10] sm:$0xff]
        %v3399 = vld [vmem:[#allocation2 + $0x18] sm:$0xff]
        %v3400 = vld [vmem:[#allocation2 + $0x20] sm:$0xff]
        %v3401 = vld [vmem:[#allocation2 + $0x28] sm:$0xff]
        %v3402 = vld [vmem:[#allocation2 + $0x30] sm:$0xff]
        %v3403 = vld [vmem:[#allocation2 + $0x38] sm:$0xff]
        %v3404 = vld [vmem:[#allocation2 + $0x40] sm:$0xff]
        %v3405 = vld [vmem:[#allocation2 + $0x48] sm:$0xff]
        %v3406 = vld [vmem:[#allocation2 + $0x50] sm:$0xff]
        %v3407 = vld [vmem:[#allocation2 + $0x58] sm:$0xff]
        %v3408 = vld [vmem:[#allocation2 + $0x60] sm:$0xff]
        %v3409 = vld [vmem:[#allocation2 + $0x68] sm:$0xff]
        %v3410 = vld [vmem:[#allocation2 + $0x70] sm:$0xff]
        %v3411 = vld [vmem:[#allocation2 + $0x78] sm:$0xff]
        %v3412 = vld [vmem:[#allocation2 + $0x80] sm:$0xff]
        %v3413 = vld [vmem:[#allocation2 + $0x88] sm:$0xff]
        %v3414 = vld [vmem:[#allocation2 + $0x90] sm:$0xff]
        %v3415 = vld [vmem:[#allocation2 + $0x98] sm:$0xff]
        %v3416 = vld [vmem:[#allocation2 + $0xa0] sm:$0xff]
        %v3417 = vld [vmem:[#allocation2 + $0xa8] sm:$0xff]
        %v3418 = vld [vmem:[#allocation2 + $0xb0] sm:$0xff]
        %v3419 = vld [vmem:[#allocation2 + $0xb8] sm:$0xff]
        %v3420 = vld [vmem:[#allocation2 + $0xc0] sm:$0xff]
        %v3421 = vld [vmem:[#allocation2 + $0xc8] sm:$0xff]
        %v3422 = vld [vmem:[#allocation2 + $0xd0] sm:$0xff]
        %v3423 = vld [vmem:[#allocation2 + $0xd8] sm:$0xff]
        %v3424 = vld [vmem:[#allocation2 + $0xe0] sm:$0xff]
        %v3425 = vld [vmem:[#allocation2 + $0xe8] sm:$0xff]
        %v3426 = vld [vmem:[#allocation2 + $0xf0] sm:$0xff]
        %v3427 = vld [vmem:[#allocation2 + $0xf8] sm:$0xff]
        %v3428 = vld [vmem:[#allocation2 + $0x100] sm:$0xff]
        %v3429 = vld [vmem:[#allocation2 + $0x108] sm:$0xff]
        %v3430 = vld [vmem:[#allocation2 + $0x110] sm:$0xff]
        %v3431 = vld [vmem:[#allocation2 + $0x118] sm:$0xff]
        %v3432 = vld [vmem:[#allocation2 + $0x120] sm:$0xff]
        %v3433 = vld [vmem:[#allocation2 + $0x128] sm:$0xff]
        %v3434 = vpack.c.bf16 %v3260, %v3256
        %v3435 = vpack.c.bf16 %v3261, %v3257
        %v3436 = vpack.c.bf16 %v3262, %v3258
        %v3437 = vpack.c.bf16 %v3263, %v3259
        %v3438 = vpack.c.bf16 %v3268, %v3264
        %v3439 = vpack.c.bf16 %v3269, %v3265
        %v3440 = vpack.c.bf16 %v3270, %v3266
        %v3441 = vpack.c.bf16 %v3271, %v3267
        %v3442 = vpack.c.bf16 %v3276, %v3272
        %v3443 = vpack.c.bf16 %v3277, %v3273
        %v3444 = vpack.c.bf16 %v3278, %v3274
        %v3445 = vpack.c.bf16 %v3279, %v3275
        %v3446 = vpack.c.bf16 %v3284, %v3280
        %v3447 = vpack.c.bf16 %v3285, %v3281
        %v3448 = vpack.c.bf16 %v3286, %v3282
        %v3449 = vpack.c.bf16 %v3287, %v3283
        %v3450 = vpack.c.bf16 %v3292, %v3288
        %v3451 = vpack.c.bf16 %v3293, %v3289
        %v3452 = vpack.c.bf16 %v3294, %v3290
        %v3453 = vpack.c.bf16 %v3295, %v3291
        %v3454 = vpack.c.bf16 %v3300, %v3296
        %v3455 = vpack.c.bf16 %v3301, %v3297
        %v3456 = vpack.c.bf16 %v3302, %v3298
        %v3457 = vpack.c.bf16 %v3303, %v3299
        %v3458 = vpack.c.bf16 %v3308, %v3304
        %v3459 = vpack.c.bf16 %v3309, %v3305
        %v3460 = vpack.c.bf16 %v3310, %v3306
        %v3461 = vpack.c.bf16 %v3311, %v3307
        %v3462 = vpack.c.bf16 %v3316, %v3312
        %v3463 = vpack.c.bf16 %v3317, %v3313
        %v3464 = vpack.c.bf16 %v3318, %v3314
        %v3465 = vpack.c.bf16 %v3319, %v3315
        %v3466 = vpack.c.bf16 %v3324, %v3320
        %v3467 = vpack.c.bf16 %v3325, %v3321
        %v3468 = vpack.c.bf16 %v3326, %v3322
        %v3469 = vpack.c.bf16 %v3327, %v3323
        %v3470 = vpack.c.bf16 %v3328, %v3328
        %v3471 = vpack.c.bf16 %v3329, %v3329
        %v3472 = vpack.c.bf16 %v3330, %v3330
        %v3473 = vpack.c.bf16 %v3331, %v3331
        %v3538 = vunpack.c.l.b16 %v3332
        %v3539 = vunpack.c.h.b16 %v3332
        %v3540 = vunpack.c.l.b16 %v3333
        %v3541 = vunpack.c.h.b16 %v3333
        %v3542 = vunpack.c.l.b16 %v3334
        %v3543 = vunpack.c.h.b16 %v3334
        %v3544 = vunpack.c.l.b16 %v3335
        %v3545 = vunpack.c.h.b16 %v3335
        %v3546 = vunpack.c.l.b16 %v3336
        %v3547 = vunpack.c.h.b16 %v3336
        %v3548 = vunpack.c.l.b16 %v3337
        %v3549 = vunpack.c.h.b16 %v3337
        %v3550 = vunpack.c.l.b16 %v3338
        %v3551 = vunpack.c.h.b16 %v3338
        %v3552 = vunpack.c.l.b16 %v3339
        %v3553 = vunpack.c.h.b16 %v3339
        %v3554 = vunpack.c.l.b16 %v3340
        %v3555 = vunpack.c.h.b16 %v3340
        %v3556 = vunpack.c.l.b16 %v3341
        %v3557 = vunpack.c.h.b16 %v3341
        %v3558 = vunpack.c.l.b16 %v3342
        %v3559 = vunpack.c.h.b16 %v3342
        %v3560 = vunpack.c.l.b16 %v3343
        %v3561 = vunpack.c.h.b16 %v3343
        %v3562 = vunpack.c.l.b16 %v3344
        %v3563 = vunpack.c.h.b16 %v3344
        %v3564 = vunpack.c.l.b16 %v3345
        %v3565 = vunpack.c.h.b16 %v3345
        %v3566 = vunpack.c.l.b16 %v3346
        %v3567 = vunpack.c.h.b16 %v3346
        %v3568 = vunpack.c.l.b16 %v3347
        %v3569 = vunpack.c.h.b16 %v3347
        %v3570 = vunpack.c.l.b16 %v3348
        %v3571 = vunpack.c.h.b16 %v3348
        %v3572 = vunpack.c.l.b16 %v3349
        %v3573 = vunpack.c.h.b16 %v3349
        %v3574 = vunpack.c.l.b16 %v3350
        %v3575 = vunpack.c.h.b16 %v3350
        %v3576 = vunpack.c.l.b16 %v3351
        %v3577 = vunpack.c.h.b16 %v3351
        %v3578 = vunpack.c.l.b16 %v3352
        %v3579 = vunpack.c.h.b16 %v3352
        %v3580 = vunpack.c.l.b16 %v3353
        %v3581 = vunpack.c.h.b16 %v3353
        %v3582 = vunpack.c.l.b16 %v3354
        %v3583 = vunpack.c.h.b16 %v3354
        %v3584 = vunpack.c.l.b16 %v3355
        %v3585 = vunpack.c.h.b16 %v3355
        %v3586 = vunpack.c.l.b16 %v3356
        %v3587 = vunpack.c.h.b16 %v3356
        %v3588 = vunpack.c.l.b16 %v3357
        %v3589 = vunpack.c.h.b16 %v3357
        %v3590 = vunpack.c.l.b16 %v3358
        %v3591 = vunpack.c.h.b16 %v3358
        %v3592 = vunpack.c.l.b16 %v3359
        %v3593 = vunpack.c.h.b16 %v3359
        %v3594 = vunpack.c.l.b16 %v3360
        %v3595 = vunpack.c.h.b16 %v3360
        %v3596 = vunpack.c.l.b16 %v3361
        %v3597 = vunpack.c.h.b16 %v3361
        %v3598 = vunpack.c.l.b16 %v3362
        %v3599 = vunpack.c.h.b16 %v3362
        %v3600 = vunpack.c.l.b16 %v3363
        %v3601 = vunpack.c.h.b16 %v3363
        %v3602 = vunpack.c.l.b16 %v3364
        %v3603 = vunpack.c.h.b16 %v3364
        %v3604 = vunpack.c.l.b16 %v3365
        %v3605 = vunpack.c.h.b16 %v3365
        %v3606 = vunpack.c.l.b16 %v3366
        %v3607 = vunpack.c.h.b16 %v3366
        %v3608 = vunpack.c.l.b16 %v3367
        %v3609 = vunpack.c.h.b16 %v3367
        %v3610 = vunpack.c.l.b16 %v3368
        %v3611 = vunpack.c.h.b16 %v3368
        %v3612 = vunpack.c.l.b16 %v3369
        %v3613 = vunpack.c.h.b16 %v3369
        %v3614 = vunpack.c.l.b16 %v3370
        %v3615 = vunpack.c.h.b16 %v3370
        %v3616 = vunpack.c.l.b16 %v3371
        %v3617 = vunpack.c.h.b16 %v3371
        %v3618 = vunpack.c.l.b16 %v3372
        %v3619 = vunpack.c.h.b16 %v3372
        %v3620 = vunpack.c.l.b16 %v3373
        %v3621 = vunpack.c.h.b16 %v3373
        %v3622 = vunpack.c.l.b16 %v3374
        %v3623 = vunpack.c.h.b16 %v3374
        %v3624 = vunpack.c.l.b16 %v3375
        %v3625 = vunpack.c.h.b16 %v3375
        %v3626 = vunpack.c.l.b16 %v3376
        %v3627 = vunpack.c.h.b16 %v3376
        %v3628 = vunpack.c.l.b16 %v3377
        %v3629 = vunpack.c.h.b16 %v3377
        %v3630 = vunpack.c.l.b16 %v3378
        %v3631 = vunpack.c.h.b16 %v3378
        %v3632 = vunpack.c.l.b16 %v3379
        %v3633 = vunpack.c.h.b16 %v3379
        %v3634 = vunpack.c.l.b16 %v3380
        %v3635 = vunpack.c.h.b16 %v3380
        %v3636 = vunpack.c.l.b16 %v3381
        %v3637 = vunpack.c.h.b16 %v3381
        %v3638 = vunpack.c.l.b16 %v3382
        %v3639 = vunpack.c.h.b16 %v3382
        %v3640 = vunpack.c.l.b16 %v3383
        %v3641 = vunpack.c.h.b16 %v3383
        %v3642 = vunpack.c.l.b16 %v3384
        %v3643 = vunpack.c.h.b16 %v3384
        %v3644 = vunpack.c.l.b16 %v3385
        %v3645 = vunpack.c.h.b16 %v3385
        %v3646 = vunpack.c.l.b16 %v3386
        %v3647 = vunpack.c.h.b16 %v3386
        %v3648 = vunpack.c.l.b16 %v3387
        %v3649 = vunpack.c.h.b16 %v3387
        %v3650 = vunpack.c.l.b16 %v3388
        %v3651 = vunpack.c.h.b16 %v3388
        %v3652 = vunpack.c.l.b16 %v3389
        %v3653 = vunpack.c.h.b16 %v3389
        %v3654 = vunpack.c.l.b16 %v3390
        %v3655 = vunpack.c.h.b16 %v3390
        %v3656 = vunpack.c.l.b16 %v3391
        %v3657 = vunpack.c.h.b16 %v3391
        %v3658 = vunpack.c.l.b16 %v3392
        %v3659 = vunpack.c.h.b16 %v3392
        %v3660 = vunpack.c.l.b16 %v3393
        %v3661 = vunpack.c.h.b16 %v3393
        %v3662 = vunpack.c.l.b16 %v3394
        %v3663 = vunpack.c.h.b16 %v3394
        %v3664 = vunpack.c.l.b16 %v3395
        %v3665 = vunpack.c.h.b16 %v3395
        %v3666 = vpack.c.b16 %v3540, %v3538
        %v3667 = vpack.c.b16 %v3541, %v3539
        %v3668 = vpack.c.b16 %v3544, %v3542
        %v3669 = vpack.c.b16 %v3545, %v3543
        %v3670 = vpack.c.b16 %v3548, %v3546
        %v3671 = vpack.c.b16 %v3549, %v3547
        %v3672 = vpack.c.b16 %v3552, %v3550
        %v3673 = vpack.c.b16 %v3553, %v3551
        %v3674 = vpack.c.b16 %v3556, %v3554
        %v3675 = vpack.c.b16 %v3557, %v3555
        %v3676 = vpack.c.b16 %v3560, %v3558
        %v3677 = vpack.c.b16 %v3561, %v3559
        %v3678 = vpack.c.b16 %v3564, %v3562
        %v3679 = vpack.c.b16 %v3565, %v3563
        %v3680 = vpack.c.b16 %v3568, %v3566
        %v3681 = vpack.c.b16 %v3569, %v3567
        %v3682 = vpack.c.b16 %v3572, %v3570
        %v3683 = vpack.c.b16 %v3573, %v3571
        %v3684 = vpack.c.b16 %v3576, %v3574
        %v3685 = vpack.c.b16 %v3577, %v3575
        %v3686 = vpack.c.b16 %v3580, %v3578
        %v3687 = vpack.c.b16 %v3581, %v3579
        %v3688 = vpack.c.b16 %v3584, %v3582
        %v3689 = vpack.c.b16 %v3585, %v3583
        %v3690 = vpack.c.b16 %v3588, %v3586
        %v3691 = vpack.c.b16 %v3589, %v3587
        %v3692 = vpack.c.b16 %v3592, %v3590
        %v3693 = vpack.c.b16 %v3593, %v3591
        %v3694 = vpack.c.b16 %v3596, %v3594
        %v3695 = vpack.c.b16 %v3597, %v3595
        %v3696 = vpack.c.b16 %v3600, %v3598
        %v3697 = vpack.c.b16 %v3601, %v3599
        %v3698 = vpack.c.b16 %v3604, %v3602
        %v3699 = vpack.c.b16 %v3605, %v3603
        %v3700 = vpack.c.b16 %v3608, %v3606
        %v3701 = vpack.c.b16 %v3609, %v3607
        %v3702 = vpack.c.b16 %v3612, %v3610
        %v3703 = vpack.c.b16 %v3613, %v3611
        %v3704 = vpack.c.b16 %v3616, %v3614
        %v3705 = vpack.c.b16 %v3617, %v3615
        %v3706 = vpack.c.b16 %v3620, %v3618
        %v3707 = vpack.c.b16 %v3621, %v3619
        %v3708 = vpack.c.b16 %v3624, %v3622
        %v3709 = vpack.c.b16 %v3625, %v3623
        %v3710 = vpack.c.b16 %v3628, %v3626
        %v3711 = vpack.c.b16 %v3629, %v3627
        %v3712 = vpack.c.b16 %v3632, %v3630
        %v3713 = vpack.c.b16 %v3633, %v3631
        %v3714 = vpack.c.b16 %v3636, %v3634
        %v3715 = vpack.c.b16 %v3637, %v3635
        %v3716 = vpack.c.b16 %v3640, %v3638
        %v3717 = vpack.c.b16 %v3641, %v3639
        %v3718 = vpack.c.b16 %v3644, %v3642
        %v3719 = vpack.c.b16 %v3645, %v3643
        %v3720 = vpack.c.b16 %v3648, %v3646
        %v3721 = vpack.c.b16 %v3649, %v3647
        %v3722 = vpack.c.b16 %v3652, %v3650
        %v3723 = vpack.c.b16 %v3653, %v3651
        %v3724 = vpack.c.b16 %v3656, %v3654
        %v3725 = vpack.c.b16 %v3657, %v3655
        %v3726 = vpack.c.b16 %v3660, %v3658
        %v3727 = vpack.c.b16 %v3661, %v3659
        %v3728 = vpack.c.b16 %v3664, %v3662
        %v3729 = vpack.c.b16 %v3665, %v3663
        %3794 = vmatpush.bf16.msra.mxu0 %v3680
        %3795 = vmatpush.bf16.msra.mxu0 %v3678
        %3796 = vmatpush.bf16.msra.mxu0 %v3676
        %3797 = vmatpush.bf16.msra.mxu0 %v3674
        %3798 = vmatpush.bf16.msra.mxu0 %v3672
        %3799 = vmatpush.bf16.msra.mxu0 %v3670
        %3800 = vmatpush.bf16.msra.mxu0 %v3668
        %3801 = vmatpush.bf16.msra.mxu0 %v3666
        %3802 = vmatmul.bf16.gmra.mxu0 %v3434
        %v3803 = vpop.f32.mrf.mxu0
        %v3804 = vadd.f32 0.0, %v3803
        %v3805 = vpop.f32.mrf.mxu0
        %v3806 = vadd.f32 0.0, %v3805
        %3807 = vmatmul.bf16.gmra.mxu0 %v3438
        %v3808 = vpop.f32.mrf.mxu0
        %v3809 = vadd.f32 0.0, %v3808
        %v3810 = vpop.f32.mrf.mxu0
        %v3811 = vadd.f32 0.0, %v3810
        %3812 = vmatmul.bf16.gmra.mxu0 %v3442
        %v3813 = vpop.f32.mrf.mxu0
        %v3814 = vadd.f32 0.0, %v3813
        %v3815 = vpop.f32.mrf.mxu0
        %v3816 = vadd.f32 0.0, %v3815
        %3817 = vmatmul.bf16.gmra.mxu0 %v3446
        %v3818 = vpop.f32.mrf.mxu0
        %v3819 = vadd.f32 0.0, %v3818
        %v3820 = vpop.f32.mrf.mxu0
        %v3821 = vadd.f32 0.0, %v3820
        %3822 = vmatmul.bf16.gmra.mxu0 %v3450
        %v3823 = vpop.f32.mrf.mxu0
        %v3824 = vadd.f32 0.0, %v3823
        %v3825 = vpop.f32.mrf.mxu0
        %v3826 = vadd.f32 0.0, %v3825
        %3827 = vmatmul.bf16.gmra.mxu0 %v3454
        %v3828 = vpop.f32.mrf.mxu0
        %v3829 = vadd.f32 0.0, %v3828
        %v3830 = vpop.f32.mrf.mxu0
        %v3831 = vadd.f32 0.0, %v3830
        %3832 = vmatmul.bf16.gmra.mxu0 %v3458
        %v3833 = vpop.f32.mrf.mxu0
        %v3834 = vadd.f32 0.0, %v3833
        %v3835 = vpop.f32.mrf.mxu0
        %v3836 = vadd.f32 0.0, %v3835
        %3837 = vmatmul.bf16.gmra.mxu0 %v3462
        %v3838 = vpop.f32.mrf.mxu0
        %v3839 = vadd.f32 0.0, %v3838
        %v3840 = vpop.f32.mrf.mxu0
        %v3841 = vadd.f32 0.0, %v3840
        %3842 = vmatmul.bf16.gmra.mxu0 %v3466
        %v3843 = vpop.f32.mrf.mxu0
        %v3844 = vadd.f32 0.0, %v3843
        %v3845 = vpop.f32.mrf.mxu0
        %v3846 = vadd.f32 0.0, %v3845
        %3847 = vmatmul.bf16.gmra.mxu0 %v3470
        %v3848 = vpop.f32.mrf.mxu0
        %v3849 = vadd.f32 0.0, %v3848
        %v3850 = vpop.f32.mrf.mxu0
        %3851 = vdwg.mxu0
        %3852 = vmatpush.bf16.msra.mxu0 %v3696
        %3853 = vmatpush.bf16.msra.mxu0 %v3694
        %3854 = vmatpush.bf16.msra.mxu0 %v3692
        %3855 = vmatpush.bf16.msra.mxu0 %v3690
        %3856 = vmatpush.bf16.msra.mxu0 %v3688
        %3857 = vmatpush.bf16.msra.mxu0 %v3686
        %3858 = vmatpush.bf16.msra.mxu0 %v3684
        %3859 = vmatpush.bf16.msra.mxu0 %v3682
        %3860 = vmatmul.bf16.gmra.mxu0 %v3435
        %v3861 = vpop.f32.mrf.mxu0
        %v3862 = vadd.f32 %v3804, %v3861
        %v3863 = vpop.f32.mrf.mxu0
        %v3864 = vadd.f32 %v3806, %v3863
        %3865 = vmatmul.bf16.gmra.mxu0 %v3439
        %v3866 = vpop.f32.mrf.mxu0
        %v3867 = vadd.f32 %v3809, %v3866
        %v3868 = vpop.f32.mrf.mxu0
        %v3869 = vadd.f32 %v3811, %v3868
        %3870 = vmatmul.bf16.gmra.mxu0 %v3443
        %v3871 = vpop.f32.mrf.mxu0
        %v3872 = vadd.f32 %v3814, %v3871
        %v3873 = vpop.f32.mrf.mxu0
        %v3874 = vadd.f32 %v3816, %v3873
        %3875 = vmatmul.bf16.gmra.mxu0 %v3447
        %v3876 = vpop.f32.mrf.mxu0
        %v3877 = vadd.f32 %v3819, %v3876
        %v3878 = vpop.f32.mrf.mxu0
        %v3879 = vadd.f32 %v3821, %v3878
        %3880 = vmatmul.bf16.gmra.mxu0 %v3451
        %v3881 = vpop.f32.mrf.mxu0
        %v3882 = vadd.f32 %v3824, %v3881
        %v3883 = vpop.f32.mrf.mxu0
        %v3884 = vadd.f32 %v3826, %v3883
        %3885 = vmatmul.bf16.gmra.mxu0 %v3455
        %v3886 = vpop.f32.mrf.mxu0
        %v3887 = vadd.f32 %v3829, %v3886
        %v3888 = vpop.f32.mrf.mxu0
        %v3889 = vadd.f32 %v3831, %v3888
        %3890 = vmatmul.bf16.gmra.mxu0 %v3459
        %v3891 = vpop.f32.mrf.mxu0
        %v3892 = vadd.f32 %v3834, %v3891
        %v3893 = vpop.f32.mrf.mxu0
        %v3894 = vadd.f32 %v3836, %v3893
        %3895 = vmatmul.bf16.gmra.mxu0 %v3463
        %v3896 = vpop.f32.mrf.mxu0
        %v3897 = vadd.f32 %v3839, %v3896
        %v3898 = vpop.f32.mrf.mxu0
        %v3899 = vadd.f32 %v3841, %v3898
        %3900 = vmatmul.bf16.gmra.mxu0 %v3467
        %v3901 = vpop.f32.mrf.mxu0
        %v3902 = vadd.f32 %v3844, %v3901
        %v3903 = vpop.f32.mrf.mxu0
        %v3904 = vadd.f32 %v3846, %v3903
        %3905 = vmatmul.bf16.gmra.mxu0 %v3471
        %v3906 = vpop.f32.mrf.mxu0
        %v3907 = vadd.f32 %v3849, %v3906
        %v3908 = vpop.f32.mrf.mxu0
        %3909 = vdwg.mxu0
        %3910 = vmatpush.bf16.msra.mxu0 %v3712
        %3911 = vmatpush.bf16.msra.mxu0 %v3710
        %3912 = vmatpush.bf16.msra.mxu0 %v3708
        %3913 = vmatpush.bf16.msra.mxu0 %v3706
        %3914 = vmatpush.bf16.msra.mxu0 %v3704
        %3915 = vmatpush.bf16.msra.mxu0 %v3702
        %3916 = vmatpush.bf16.msra.mxu0 %v3700
        %3917 = vmatpush.bf16.msra.mxu0 %v3698
        %3918 = vmatmul.bf16.gmra.mxu0 %v3436
        %v3919 = vpop.f32.mrf.mxu0
        %v3920 = vadd.f32 %v3862, %v3919
        %v3921 = vpop.f32.mrf.mxu0
        %v3922 = vadd.f32 %v3864, %v3921
        %3923 = vmatmul.bf16.gmra.mxu0 %v3440
        %v3924 = vpop.f32.mrf.mxu0
        %v3925 = vadd.f32 %v3867, %v3924
        %v3926 = vpop.f32.mrf.mxu0
        %v3927 = vadd.f32 %v3869, %v3926
        %3928 = vmatmul.bf16.gmra.mxu0 %v3444
        %v3929 = vpop.f32.mrf.mxu0
        %v3930 = vadd.f32 %v3872, %v3929
        %v3931 = vpop.f32.mrf.mxu0
        %v3932 = vadd.f32 %v3874, %v3931
        %3933 = vmatmul.bf16.gmra.mxu0 %v3448
        %v3934 = vpop.f32.mrf.mxu0
        %v3935 = vadd.f32 %v3877, %v3934
        %v3936 = vpop.f32.mrf.mxu0
        %v3937 = vadd.f32 %v3879, %v3936
        %3938 = vmatmul.bf16.gmra.mxu0 %v3452
        %v3939 = vpop.f32.mrf.mxu0
        %v3940 = vadd.f32 %v3882, %v3939
        %v3941 = vpop.f32.mrf.mxu0
        %v3942 = vadd.f32 %v3884, %v3941
        %3943 = vmatmul.bf16.gmra.mxu0 %v3456
        %v3944 = vpop.f32.mrf.mxu0
        %v3945 = vadd.f32 %v3887, %v3944
        %v3946 = vpop.f32.mrf.mxu0
        %v3947 = vadd.f32 %v3889, %v3946
        %3948 = vmatmul.bf16.gmra.mxu0 %v3460
        %v3949 = vpop.f32.mrf.mxu0
        %v3950 = vadd.f32 %v3892, %v3949
        %v3951 = vpop.f32.mrf.mxu0
        %v3952 = vadd.f32 %v3894, %v3951
        %3953 = vmatmul.bf16.gmra.mxu0 %v3464
        %v3954 = vpop.f32.mrf.mxu0
        %v3955 = vadd.f32 %v3897, %v3954
        %v3956 = vpop.f32.mrf.mxu0
        %v3957 = vadd.f32 %v3899, %v3956
        %3958 = vmatmul.bf16.gmra.mxu0 %v3468
        %v3959 = vpop.f32.mrf.mxu0
        %v3960 = vadd.f32 %v3902, %v3959
        %v3961 = vpop.f32.mrf.mxu0
        %v3962 = vadd.f32 %v3904, %v3961
        %3963 = vmatmul.bf16.gmra.mxu0 %v3472
        %v3964 = vpop.f32.mrf.mxu0
        %v3965 = vadd.f32 %v3907, %v3964
        %v3966 = vpop.f32.mrf.mxu0
        %3967 = vdwg.mxu0
        %3968 = vmatpush.bf16.msra.mxu0 %v3728
        %3969 = vmatpush.bf16.msra.mxu0 %v3726
        %3970 = vmatpush.bf16.msra.mxu0 %v3724
        %3971 = vmatpush.bf16.msra.mxu0 %v3722
        %3972 = vmatpush.bf16.msra.mxu0 %v3720
        %3973 = vmatpush.bf16.msra.mxu0 %v3718
        %3974 = vmatpush.bf16.msra.mxu0 %v3716
        %3975 = vmatpush.bf16.msra.mxu0 %v3714
        %3976 = vmatmul.bf16.gmra.mxu0 %v3437
        %v3977 = vpop.f32.mrf.mxu0
        %v3978 = vadd.f32 %v3920, %v3977
        %v3979 = vpop.f32.mrf.mxu0
        %v3980 = vadd.f32 %v3922, %v3979
        %3981 = vmatmul.bf16.gmra.mxu0 %v3441
        %v3982 = vpop.f32.mrf.mxu0
        %v3983 = vadd.f32 %v3925, %v3982
        %v3984 = vpop.f32.mrf.mxu0
        %v3985 = vadd.f32 %v3927, %v3984
        %3986 = vmatmul.bf16.gmra.mxu0 %v3445
        %v3987 = vpop.f32.mrf.mxu0
        %v3988 = vadd.f32 %v3930, %v3987
        %v3989 = vpop.f32.mrf.mxu0
        %v3990 = vadd.f32 %v3932, %v3989
        %3991 = vmatmul.bf16.gmra.mxu0 %v3449
        %v3992 = vpop.f32.mrf.mxu0
        %v3993 = vadd.f32 %v3935, %v3992
        %v3994 = vpop.f32.mrf.mxu0
        %v3995 = vadd.f32 %v3937, %v3994
        %3996 = vmatmul.bf16.gmra.mxu0 %v3453
        %v3997 = vpop.f32.mrf.mxu0
        %v3998 = vadd.f32 %v3940, %v3997
        %v3999 = vpop.f32.mrf.mxu0
        %v4000 = vadd.f32 %v3942, %v3999
        %4001 = vmatmul.bf16.gmra.mxu0 %v3457
        %v4002 = vpop.f32.mrf.mxu0
        %v4003 = vadd.f32 %v3945, %v4002
        %v4004 = vpop.f32.mrf.mxu0
        %v4005 = vadd.f32 %v3947, %v4004
        %4006 = vmatmul.bf16.gmra.mxu0 %v3461
        %v4007 = vpop.f32.mrf.mxu0
        %v4008 = vadd.f32 %v3950, %v4007
        %v4009 = vpop.f32.mrf.mxu0
        %v4010 = vadd.f32 %v3952, %v4009
        %4011 = vmatmul.bf16.gmra.mxu0 %v3465
        %v4012 = vpop.f32.mrf.mxu0
        %v4013 = vadd.f32 %v3955, %v4012
        %v4014 = vpop.f32.mrf.mxu0
        %v4015 = vadd.f32 %v3957, %v4014
        %4016 = vmatmul.bf16.gmra.mxu0 %v3469
        %v4017 = vpop.f32.mrf.mxu0
        %v4018 = vadd.f32 %v3960, %v4017
        %v4019 = vpop.f32.mrf.mxu0
        %v4020 = vadd.f32 %v3962, %v4019
        %4021 = vmatmul.bf16.gmra.mxu0 %v3473
        %v4022 = vpop.f32.mrf.mxu0
        %v4023 = vadd.f32 %v3965, %v4022
        %v4024 = vpop.f32.mrf.mxu0
        %4025 = vdwg.mxu0
        %4026 = vmatpush.bf16.msra.mxu0 %v3681
        %4027 = vmatpush.bf16.msra.mxu0 %v3679
        %4028 = vmatpush.bf16.msra.mxu0 %v3677
        %4029 = vmatpush.bf16.msra.mxu0 %v3675
        %4030 = vmatpush.bf16.msra.mxu0 %v3673
        %4031 = vmatpush.bf16.msra.mxu0 %v3671
        %4032 = vmatpush.bf16.msra.mxu0 %v3669
        %4033 = vmatpush.bf16.msra.mxu0 %v3667
        %4034 = vmatmul.bf16.gmra.mxu0 %v3434
        %v4035 = vpop.f32.mrf.mxu0
        %v4036 = vadd.f32 0.0, %v4035
        %v4037 = vpop.f32.mrf.mxu0
        %v4038 = vadd.f32 0.0, %v4037
        %4039 = vmatmul.bf16.gmra.mxu0 %v3438
        %v4040 = vpop.f32.mrf.mxu0
        %v4041 = vadd.f32 0.0, %v4040
        %v4042 = vpop.f32.mrf.mxu0
        %v4043 = vadd.f32 0.0, %v4042
        %4044 = vmatmul.bf16.gmra.mxu0 %v3442
        %v4045 = vpop.f32.mrf.mxu0
        %v4046 = vadd.f32 0.0, %v4045
        %v4047 = vpop.f32.mrf.mxu0
        %v4048 = vadd.f32 0.0, %v4047
        %4049 = vmatmul.bf16.gmra.mxu0 %v3446
        %v4050 = vpop.f32.mrf.mxu0
        %v4051 = vadd.f32 0.0, %v4050
        %v4052 = vpop.f32.mrf.mxu0
        %v4053 = vadd.f32 0.0, %v4052
        %4054 = vmatmul.bf16.gmra.mxu0 %v3450
        %v4055 = vpop.f32.mrf.mxu0
        %v4056 = vadd.f32 0.0, %v4055
        %v4057 = vpop.f32.mrf.mxu0
        %v4058 = vadd.f32 0.0, %v4057
        %4059 = vmatmul.bf16.gmra.mxu0 %v3454
        %v4060 = vpop.f32.mrf.mxu0
        %v4061 = vadd.f32 0.0, %v4060
        %v4062 = vpop.f32.mrf.mxu0
        %v4063 = vadd.f32 0.0, %v4062
        %4064 = vmatmul.bf16.gmra.mxu0 %v3458
        %v4065 = vpop.f32.mrf.mxu0
        %v4066 = vadd.f32 0.0, %v4065
        %v4067 = vpop.f32.mrf.mxu0
        %v4068 = vadd.f32 0.0, %v4067
        %4069 = vmatmul.bf16.gmra.mxu0 %v3462
        %v4070 = vpop.f32.mrf.mxu0
        %v4071 = vadd.f32 0.0, %v4070
        %v4072 = vpop.f32.mrf.mxu0
        %v4073 = vadd.f32 0.0, %v4072
        %4074 = vmatmul.bf16.gmra.mxu0 %v3466
        %v4075 = vpop.f32.mrf.mxu0
        %v4076 = vadd.f32 0.0, %v4075
        %v4077 = vpop.f32.mrf.mxu0
        %v4078 = vadd.f32 0.0, %v4077
        %4079 = vmatmul.bf16.gmra.mxu0 %v3470
        %v4080 = vpop.f32.mrf.mxu0
        %v4081 = vadd.f32 0.0, %v4080
        %v4082 = vpop.f32.mrf.mxu0
        %4083 = vdwg.mxu0
        %4084 = vmatpush.bf16.msra.mxu0 %v3697
        %4085 = vmatpush.bf16.msra.mxu0 %v3695
        %4086 = vmatpush.bf16.msra.mxu0 %v3693
        %4087 = vmatpush.bf16.msra.mxu0 %v3691
        %4088 = vmatpush.bf16.msra.mxu0 %v3689
        %4089 = vmatpush.bf16.msra.mxu0 %v3687
        %4090 = vmatpush.bf16.msra.mxu0 %v3685
        %4091 = vmatpush.bf16.msra.mxu0 %v3683
        %4092 = vmatmul.bf16.gmra.mxu0 %v3435
        %v4093 = vpop.f32.mrf.mxu0
        %v4094 = vadd.f32 %v4036, %v4093
        %v4095 = vpop.f32.mrf.mxu0
        %v4096 = vadd.f32 %v4038, %v4095
        %4097 = vmatmul.bf16.gmra.mxu0 %v3439
        %v4098 = vpop.f32.mrf.mxu0
        %v4099 = vadd.f32 %v4041, %v4098
        %v4100 = vpop.f32.mrf.mxu0
        %v4101 = vadd.f32 %v4043, %v4100
        %4102 = vmatmul.bf16.gmra.mxu0 %v3443
        %v4103 = vpop.f32.mrf.mxu0
        %v4104 = vadd.f32 %v4046, %v4103
        %v4105 = vpop.f32.mrf.mxu0
        %v4106 = vadd.f32 %v4048, %v4105
        %4107 = vmatmul.bf16.gmra.mxu0 %v3447
        %v4108 = vpop.f32.mrf.mxu0
        %v4109 = vadd.f32 %v4051, %v4108
        %v4110 = vpop.f32.mrf.mxu0
        %v4111 = vadd.f32 %v4053, %v4110
        %4112 = vmatmul.bf16.gmra.mxu0 %v3451
        %v4113 = vpop.f32.mrf.mxu0
        %v4114 = vadd.f32 %v4056, %v4113
        %v4115 = vpop.f32.mrf.mxu0
        %v4116 = vadd.f32 %v4058, %v4115
        %4117 = vmatmul.bf16.gmra.mxu0 %v3455
        %v4118 = vpop.f32.mrf.mxu0
        %v4119 = vadd.f32 %v4061, %v4118
        %v4120 = vpop.f32.mrf.mxu0
        %v4121 = vadd.f32 %v4063, %v4120
        %4122 = vmatmul.bf16.gmra.mxu0 %v3459
        %v4123 = vpop.f32.mrf.mxu0
        %v4124 = vadd.f32 %v4066, %v4123
        %v4125 = vpop.f32.mrf.mxu0
        %v4126 = vadd.f32 %v4068, %v4125
        %4127 = vmatmul.bf16.gmra.mxu0 %v3463
        %v4128 = vpop.f32.mrf.mxu0
        %v4129 = vadd.f32 %v4071, %v4128
        %v4130 = vpop.f32.mrf.mxu0
        %v4131 = vadd.f32 %v4073, %v4130
        %4132 = vmatmul.bf16.gmra.mxu0 %v3467
        %v4133 = vpop.f32.mrf.mxu0
        %v4134 = vadd.f32 %v4076, %v4133
        %v4135 = vpop.f32.mrf.mxu0
        %v4136 = vadd.f32 %v4078, %v4135
        %4137 = vmatmul.bf16.gmra.mxu0 %v3471
        %v4138 = vpop.f32.mrf.mxu0
        %v4139 = vadd.f32 %v4081, %v4138
        %v4140 = vpop.f32.mrf.mxu0
        %4141 = vdwg.mxu0
        %4142 = vmatpush.bf16.msra.mxu0 %v3713
        %4143 = vmatpush.bf16.msra.mxu0 %v3711
        %4144 = vmatpush.bf16.msra.mxu0 %v3709
        %4145 = vmatpush.bf16.msra.mxu0 %v3707
        %4146 = vmatpush.bf16.msra.mxu0 %v3705
        %4147 = vmatpush.bf16.msra.mxu0 %v3703
        %4148 = vmatpush.bf16.msra.mxu0 %v3701
        %4149 = vmatpush.bf16.msra.mxu0 %v3699
        %4150 = vmatmul.bf16.gmra.mxu0 %v3436
        %v4151 = vpop.f32.mrf.mxu0
        %v4152 = vadd.f32 %v4094, %v4151
        %v4153 = vpop.f32.mrf.mxu0
        %v4154 = vadd.f32 %v4096, %v4153
        %4155 = vmatmul.bf16.gmra.mxu0 %v3440
        %v4156 = vpop.f32.mrf.mxu0
        %v4157 = vadd.f32 %v4099, %v4156
        %v4158 = vpop.f32.mrf.mxu0
        %v4159 = vadd.f32 %v4101, %v4158
        %4160 = vmatmul.bf16.gmra.mxu0 %v3444
        %v4161 = vpop.f32.mrf.mxu0
        %v4162 = vadd.f32 %v4104, %v4161
        %v4163 = vpop.f32.mrf.mxu0
        %v4164 = vadd.f32 %v4106, %v4163
        %4165 = vmatmul.bf16.gmra.mxu0 %v3448
        %v4166 = vpop.f32.mrf.mxu0
        %v4167 = vadd.f32 %v4109, %v4166
        %v4168 = vpop.f32.mrf.mxu0
        %v4169 = vadd.f32 %v4111, %v4168
        %4170 = vmatmul.bf16.gmra.mxu0 %v3452
        %v4171 = vpop.f32.mrf.mxu0
        %v4172 = vadd.f32 %v4114, %v4171
        %v4173 = vpop.f32.mrf.mxu0
        %v4174 = vadd.f32 %v4116, %v4173
        %4175 = vmatmul.bf16.gmra.mxu0 %v3456
        %v4176 = vpop.f32.mrf.mxu0
        %v4177 = vadd.f32 %v4119, %v4176
        %v4178 = vpop.f32.mrf.mxu0
        %v4179 = vadd.f32 %v4121, %v4178
        %4180 = vmatmul.bf16.gmra.mxu0 %v3460
        %v4181 = vpop.f32.mrf.mxu0
        %v4182 = vadd.f32 %v4124, %v4181
        %v4183 = vpop.f32.mrf.mxu0
        %v4184 = vadd.f32 %v4126, %v4183
        %4185 = vmatmul.bf16.gmra.mxu0 %v3464
        %v4186 = vpop.f32.mrf.mxu0
        %v4187 = vadd.f32 %v4129, %v4186
        %v4188 = vpop.f32.mrf.mxu0
        %v4189 = vadd.f32 %v4131, %v4188
        %4190 = vmatmul.bf16.gmra.mxu0 %v3468
        %v4191 = vpop.f32.mrf.mxu0
        %v4192 = vadd.f32 %v4134, %v4191
        %v4193 = vpop.f32.mrf.mxu0
        %v4194 = vadd.f32 %v4136, %v4193
        %4195 = vmatmul.bf16.gmra.mxu0 %v3472
        %v4196 = vpop.f32.mrf.mxu0
        %v4197 = vadd.f32 %v4139, %v4196
        %v4198 = vpop.f32.mrf.mxu0
        %4199 = vdwg.mxu0
        %4200 = vmatpush.bf16.msra.mxu0 %v3729
        %4201 = vmatpush.bf16.msra.mxu0 %v3727
        %4202 = vmatpush.bf16.msra.mxu0 %v3725
        %4203 = vmatpush.bf16.msra.mxu0 %v3723
        %4204 = vmatpush.bf16.msra.mxu0 %v3721
        %4205 = vmatpush.bf16.msra.mxu0 %v3719
        %4206 = vmatpush.bf16.msra.mxu0 %v3717
        %4207 = vmatpush.bf16.msra.mxu0 %v3715
        %4208 = vmatmul.bf16.gmra.mxu0 %v3437
        %v4209 = vpop.f32.mrf.mxu0
        %v4210 = vadd.f32 %v4152, %v4209
        %v4211 = vpop.f32.mrf.mxu0
        %v4212 = vadd.f32 %v4154, %v4211
        %4213 = vmatmul.bf16.gmra.mxu0 %v3441
        %v4214 = vpop.f32.mrf.mxu0
        %v4215 = vadd.f32 %v4157, %v4214
        %v4216 = vpop.f32.mrf.mxu0
        %v4217 = vadd.f32 %v4159, %v4216
        %4218 = vmatmul.bf16.gmra.mxu0 %v3445
        %v4219 = vpop.f32.mrf.mxu0
        %v4220 = vadd.f32 %v4162, %v4219
        %v4221 = vpop.f32.mrf.mxu0
        %v4222 = vadd.f32 %v4164, %v4221
        %4223 = vmatmul.bf16.gmra.mxu0 %v3449
        %v4224 = vpop.f32.mrf.mxu0
        %v4225 = vadd.f32 %v4167, %v4224
        %v4226 = vpop.f32.mrf.mxu0
        %v4227 = vadd.f32 %v4169, %v4226
        %4228 = vmatmul.bf16.gmra.mxu0 %v3453
        %v4229 = vpop.f32.mrf.mxu0
        %v4230 = vadd.f32 %v4172, %v4229
        %v4231 = vpop.f32.mrf.mxu0
        %v4232 = vadd.f32 %v4174, %v4231
        %4233 = vmatmul.bf16.gmra.mxu0 %v3457
        %v4234 = vpop.f32.mrf.mxu0
        %v4235 = vadd.f32 %v4177, %v4234
        %v4236 = vpop.f32.mrf.mxu0
        %v4237 = vadd.f32 %v4179, %v4236
        %4238 = vmatmul.bf16.gmra.mxu0 %v3461
        %v4239 = vpop.f32.mrf.mxu0
        %v4240 = vadd.f32 %v4182, %v4239
        %v4241 = vpop.f32.mrf.mxu0
        %v4242 = vadd.f32 %v4184, %v4241
        %4243 = vmatmul.bf16.gmra.mxu0 %v3465
        %v4244 = vpop.f32.mrf.mxu0
        %v4245 = vadd.f32 %v4187, %v4244
        %v4246 = vpop.f32.mrf.mxu0
        %v4247 = vadd.f32 %v4189, %v4246
        %4248 = vmatmul.bf16.gmra.mxu0 %v3469
        %v4249 = vpop.f32.mrf.mxu0
        %v4250 = vadd.f32 %v4192, %v4249
        %v4251 = vpop.f32.mrf.mxu0
        %v4252 = vadd.f32 %v4194, %v4251
        %4253 = vmatmul.bf16.gmra.mxu0 %v3473
        %v4254 = vpop.f32.mrf.mxu0
        %v4255 = vadd.f32 %v4197, %v4254
        %v4256 = vpop.f32.mrf.mxu0
        %4257 = vdwg.mxu0
        %v4258 = vadd.f32 %v3396, %v3978
        %v4259 = vadd.f32 %v3397, %v4210
        %v4260 = vadd.f32 %v3398, %v3980
        %v4261 = vadd.f32 %v3399, %v4212
        %v4262 = vadd.f32 %v3400, %v3983
        %v4263 = vadd.f32 %v3401, %v4215
        %v4264 = vadd.f32 %v3402, %v3985
        %v4265 = vadd.f32 %v3403, %v4217
        %v4266 = vadd.f32 %v3404, %v3988
        %v4267 = vadd.f32 %v3405, %v4220
        %v4268 = vadd.f32 %v3406, %v3990
        %v4269 = vadd.f32 %v3407, %v4222
        %v4270 = vadd.f32 %v3408, %v3993
        %v4271 = vadd.f32 %v3409, %v4225
        %v4272 = vadd.f32 %v3410, %v3995
        %v4273 = vadd.f32 %v3411, %v4227
        %v4274 = vadd.f32 %v3412, %v3998
        %v4275 = vadd.f32 %v3413, %v4230
        %v4276 = vadd.f32 %v3414, %v4000
        %v4277 = vadd.f32 %v3415, %v4232
        %v4278 = vadd.f32 %v3416, %v4003
        %v4279 = vadd.f32 %v3417, %v4235
        %v4280 = vadd.f32 %v3418, %v4005
        %v4281 = vadd.f32 %v3419, %v4237
        %v4282 = vadd.f32 %v3420, %v4008
        %v4283 = vadd.f32 %v3421, %v4240
        %v4284 = vadd.f32 %v3422, %v4010
        %v4285 = vadd.f32 %v3423, %v4242
        %v4286 = vadd.f32 %v3424, %v4013
        %v4287 = vadd.f32 %v3425, %v4245
        %v4288 = vadd.f32 %v3426, %v4015
        %v4289 = vadd.f32 %v3427, %v4247
        %v4290 = vadd.f32 %v3428, %v4018
        %v4291 = vadd.f32 %v3429, %v4250
        %v4292 = vadd.f32 %v3430, %v4020
        %v4293 = vadd.f32 %v3431, %v4252
        %v4294 = vadd.f32 %v3432, %v4023
        %v4295 = vadd.f32 %v3433, %v4255
        %4296 = vst [vmem:[#allocation2] sm:$0xff] %v4258
        %4297 = vst [vmem:[#allocation2 + $0x8] sm:$0xff] %v4259
        %4298 = vst [vmem:[#allocation2 + $0x10] sm:$0xff] %v4260
        %4299 = vst [vmem:[#allocation2 + $0x18] sm:$0xff] %v4261
        %4300 = vst [vmem:[#allocation2 + $0x20] sm:$0xff] %v4262
        %4301 = vst [vmem:[#allocation2 + $0x28] sm:$0xff] %v4263
        %4302 = vst [vmem:[#allocation2 + $0x30] sm:$0xff] %v4264
        %4303 = vst [vmem:[#allocation2 + $0x38] sm:$0xff] %v4265
        %4304 = vst [vmem:[#allocation2 + $0x40] sm:$0xff] %v4266
        %4305 = vst [vmem:[#allocation2 + $0x48] sm:$0xff] %v4267
        %4306 = vst [vmem:[#allocation2 + $0x50] sm:$0xff] %v4268
        %4307 = vst [vmem:[#allocation2 + $0x58] sm:$0xff] %v4269
        %4308 = vst [vmem:[#allocation2 + $0x60] sm:$0xff] %v4270
        %4309 = vst [vmem:[#allocation2 + $0x68] sm:$0xff] %v4271
        %4310 = vst [vmem:[#allocation2 + $0x70] sm:$0xff] %v4272
        %4311 = vst [vmem:[#allocation2 + $0x78] sm:$0xff] %v4273
        %4312 = vst [vmem:[#allocation2 + $0x80] sm:$0xff] %v4274
        %4313 = vst [vmem:[#allocation2 + $0x88] sm:$0xff] %v4275
        %4314 = vst [vmem:[#allocation2 + $0x90] sm:$0xff] %v4276
        %4315 = vst [vmem:[#allocation2 + $0x98] sm:$0xff] %v4277
        %4316 = vst [vmem:[#allocation2 + $0xa0] sm:$0xff] %v4278
        %4317 = vst [vmem:[#allocation2 + $0xa8] sm:$0xff] %v4279
        %4318 = vst [vmem:[#allocation2 + $0xb0] sm:$0xff] %v4280
        %4319 = vst [vmem:[#allocation2 + $0xb8] sm:$0xff] %v4281
        %4320 = vst [vmem:[#allocation2 + $0xc0] sm:$0xff] %v4282
        %4321 = vst [vmem:[#allocation2 + $0xc8] sm:$0xff] %v4283
        %4322 = vst [vmem:[#allocation2 + $0xd0] sm:$0xff] %v4284
        %4323 = vst [vmem:[#allocation2 + $0xd8] sm:$0xff] %v4285
        %4324 = vst [vmem:[#allocation2 + $0xe0] sm:$0xff] %v4286
        %4325 = vst [vmem:[#allocation2 + $0xe8] sm:$0xff] %v4287
        %4326 = vst [vmem:[#allocation2 + $0xf0] sm:$0xff] %v4288
        %4327 = vst [vmem:[#allocation2 + $0xf8] sm:$0xff] %v4289
        %4328 = vst [vmem:[#allocation2 + $0x100] sm:$0xff] %v4290
        %4329 = vst [vmem:[#allocation2 + $0x108] sm:$0xff] %v4291
        %4330 = vst [vmem:[#allocation2 + $0x110] sm:$0xff] %v4292
        %4331 = vst [vmem:[#allocation2 + $0x118] sm:$0xff] %v4293
        %4332 = vst [vmem:[#allocation2 + $0x120] sm:$0xff] %v4294
        %4333 = vst [vmem:[#allocation2 + $0x128] sm:$0xff] %v4295
        // Predicated region
        $region61: #{tpu_custom_call.1} parent=39 // pred_check
          %p4334 = pneg %p335
        $region62: #{tpu_custom_call.1} parent=39 // pred_check_branch
          %4336 = sbr.rel (%p4334) target = $region64
        $region63: #{tpu_custom_call.1} parent=39 // pred_region
          %v4337 = vld [vmem:[#allocation2] sm:$0xff]
          %v4338 = vld [vmem:[#allocation2 + $0x8] sm:$0xff]
          %v4339 = vld [vmem:[#allocation2 + $0x10] sm:$0xff]
          %v4340 = vld [vmem:[#allocation2 + $0x18] sm:$0xff]
          %v4341 = vld [vmem:[#allocation2 + $0x20] sm:$0xff]
          %v4342 = vld [vmem:[#allocation2 + $0x28] sm:$0xff]
          %v4343 = vld [vmem:[#allocation2 + $0x30] sm:$0xff]
          %v4344 = vld [vmem:[#allocation2 + $0x38] sm:$0xff]
          %v4345 = vld [vmem:[#allocation2 + $0x40] sm:$0xff]
          %v4346 = vld [vmem:[#allocation2 + $0x48] sm:$0xff]
          %v4347 = vld [vmem:[#allocation2 + $0x50] sm:$0xff]
          %v4348 = vld [vmem:[#allocation2 + $0x58] sm:$0xff]
          %v4349 = vld [vmem:[#allocation2 + $0x60] sm:$0xff]
          %v4350 = vld [vmem:[#allocation2 + $0x68] sm:$0xff]
          %v4351 = vld [vmem:[#allocation2 + $0x70] sm:$0xff]
          %v4352 = vld [vmem:[#allocation2 + $0x78] sm:$0xff]
          %v4353 = vld [vmem:[#allocation2 + $0x80] sm:$0xff]
          %v4354 = vld [vmem:[#allocation2 + $0x88] sm:$0xff]
          %v4355 = vld [vmem:[#allocation2 + $0x90] sm:$0xff]
          %v4356 = vld [vmem:[#allocation2 + $0x98] sm:$0xff]
          %v4357 = vld [vmem:[#allocation2 + $0xa0] sm:$0xff]
          %v4358 = vld [vmem:[#allocation2 + $0xa8] sm:$0xff]
          %v4359 = vld [vmem:[#allocation2 + $0xb0] sm:$0xff]
          %v4360 = vld [vmem:[#allocation2 + $0xb8] sm:$0xff]
          %v4361 = vld [vmem:[#allocation2 + $0xc0] sm:$0xff]
          %v4362 = vld [vmem:[#allocation2 + $0xc8] sm:$0xff]
          %v4363 = vld [vmem:[#allocation2 + $0xd0] sm:$0xff]
          %v4364 = vld [vmem:[#allocation2 + $0xd8] sm:$0xff]
          %v4365 = vld [vmem:[#allocation2 + $0xe0] sm:$0xff]
          %v4366 = vld [vmem:[#allocation2 + $0xe8] sm:$0xff]
          %v4367 = vld [vmem:[#allocation2 + $0xf0] sm:$0xff]
          %v4368 = vld [vmem:[#allocation2 + $0xf8] sm:$0xff]
          %v4369 = vld [vmem:[#allocation2 + $0x100] sm:$0xff]
          %v4370 = vld [vmem:[#allocation2 + $0x108] sm:$0xff]
          %v4371 = vld [vmem:[#allocation2 + $0x110] sm:$0xff]
          %v4372 = vld [vmem:[#allocation2 + $0x118] sm:$0xff]
          %v4373 = vld [vmem:[#allocation2 + $0x120] sm:$0xff]
          %v4374 = vld [vmem:[#allocation2 + $0x128] sm:$0xff]
          %v4375 = vld [vmem:[%s4] sm:$0x3]
          %v4376 = vunpack.c.l.bf16 %v4375
          %v4378 = vperm.slane %v4376, 0
          %v4379 = vperm.slane %v4376, 2
          %v4382 = vperm.slane %v4378, 0
          %v4383 = vperm.slane %v4379, 0
          %v4384 = vadd.f32 %v4337, %v4382
          %v4385 = vadd.f32 %v4338, %v4383
          %v4386 = vadd.f32 %v4339, %v4382
          %v4387 = vadd.f32 %v4340, %v4383
          %v4388 = vadd.f32 %v4341, %v4382
          %v4389 = vadd.f32 %v4342, %v4383
          %v4390 = vadd.f32 %v4343, %v4382
          %v4391 = vadd.f32 %v4344, %v4383
          %v4392 = vadd.f32 %v4345, %v4382
          %v4393 = vadd.f32 %v4346, %v4383
          %v4394 = vadd.f32 %v4347, %v4382
          %v4395 = vadd.f32 %v4348, %v4383
          %v4396 = vadd.f32 %v4349, %v4382
          %v4397 = vadd.f32 %v4350, %v4383
          %v4398 = vadd.f32 %v4351, %v4382
          %v4399 = vadd.f32 %v4352, %v4383
          %v4400 = vadd.f32 %v4353, %v4382
          %v4401 = vadd.f32 %v4354, %v4383
          %v4402 = vadd.f32 %v4355, %v4382
          %v4403 = vadd.f32 %v4356, %v4383
          %v4404 = vadd.f32 %v4357, %v4382
          %v4405 = vadd.f32 %v4358, %v4383
          %v4406 = vadd.f32 %v4359, %v4382
          %v4407 = vadd.f32 %v4360, %v4383
          %v4408 = vadd.f32 %v4361, %v4382
          %v4409 = vadd.f32 %v4362, %v4383
          %v4410 = vadd.f32 %v4363, %v4382
          %v4411 = vadd.f32 %v4364, %v4383
          %v4412 = vadd.f32 %v4365, %v4382
          %v4413 = vadd.f32 %v4366, %v4383
          %v4414 = vadd.f32 %v4367, %v4382
          %v4415 = vadd.f32 %v4368, %v4383
          %v4416 = vadd.f32 %v4369, %v4382
          %v4417 = vadd.f32 %v4370, %v4383
          %v4418 = vadd.f32 %v4371, %v4382
          %v4419 = vadd.f32 %v4372, %v4383
          %v4420 = vadd.f32 %v4373, %v4382
          %v4421 = vadd.f32 %v4374, %v4383
          %v4422 = vpack.c.bf16 %v4385, %v4384
          %v4423 = vpack.c.bf16 %v4387, %v4386
          %v4424 = vpack.c.bf16 %v4389, %v4388
          %v4425 = vpack.c.bf16 %v4391, %v4390
          %v4426 = vpack.c.bf16 %v4393, %v4392
          %v4427 = vpack.c.bf16 %v4395, %v4394
          %v4428 = vpack.c.bf16 %v4397, %v4396
          %v4429 = vpack.c.bf16 %v4399, %v4398
          %v4430 = vpack.c.bf16 %v4401, %v4400
          %v4431 = vpack.c.bf16 %v4403, %v4402
          %v4432 = vpack.c.bf16 %v4405, %v4404
          %v4433 = vpack.c.bf16 %v4407, %v4406
          %v4434 = vpack.c.bf16 %v4409, %v4408
          %v4435 = vpack.c.bf16 %v4411, %v4410
          %v4436 = vpack.c.bf16 %v4413, %v4412
          %v4437 = vpack.c.bf16 %v4415, %v4414
          %v4438 = vpack.c.bf16 %v4417, %v4416
          %v4439 = vpack.c.bf16 %v4419, %v4418
          %v4440 = vpack.c.bf16 %v4421, %v4420
          %4441 = vst [vmem:[%s329] sm:$0xff] %v4422
          %4442 = vst [vmem:[%s329 + $0x8] sm:$0xff] %v4423
          %4443 = vst [vmem:[%s329 + $0x10] sm:$0xff] %v4424
          %4444 = vst [vmem:[%s329 + $0x18] sm:$0xff] %v4425
          %4445 = vst [vmem:[%s329 + $0x20] sm:$0xff] %v4426
          %4446 = vst [vmem:[%s329 + $0x28] sm:$0xff] %v4427
          %4447 = vst [vmem:[%s329 + $0x30] sm:$0xff] %v4428
          %4448 = vst [vmem:[%s329 + $0x38] sm:$0xff] %v4429
          %4449 = vst [vmem:[%s329 + $0x40] sm:$0xff] %v4430
          %4450 = vst [vmem:[%s329 + $0x48] sm:$0xff] %v4431
          %4451 = vst [vmem:[%s329 + $0x50] sm:$0xff] %v4432
          %4452 = vst [vmem:[%s329 + $0x58] sm:$0xff] %v4433
          %4453 = vst [vmem:[%s329 + $0x60] sm:$0xff] %v4434
          %4454 = vst [vmem:[%s329 + $0x68] sm:$0xff] %v4435
          %4455 = vst [vmem:[%s329 + $0x70] sm:$0xff] %v4436
          %4456 = vst [vmem:[%s329 + $0x78] sm:$0xff] %v4437
          %4457 = vst [vmem:[%s329 + $0x80] sm:$0xff] %v4438
          %4458 = vst [vmem:[%s329 + $0x88] sm:$0xff] %v4439
          %4459 = vst [vmem:[%s329 + $0x90] sm:$0xff] %v4440
        $region64: #{tpu_custom_call.1} parent=39 // pred_fallthru
          _
        %s4460 = sand.u32 %s169, 1
        %s4461 = scalar_lea.sflag [#allocation5], %s4460
        %s4462 = sand.u32 %s169, 1
        %s4463 = smul.addr %s4462, 152
        %s4464 = scalar_lea.vmem [#allocation11], %s4463
        // Predicated region
        $region65: #{tpu_custom_call.1} parent=39 // pred_check
          %p4465 = pneg %p179
        $region66: #{tpu_custom_call.1} parent=39 // pred_check_branch
          %4467 = sbr.rel (%p4465) target = $region68
        $region67: #{tpu_custom_call.1} parent=39 // pred_region
          %s4468 = smul.u32 19, %s28
          %4470 = vsyncadd %s4461, 0
          %s4471 = smul.addr %s4468, 2
          %s4472 = smul.addr %s4471, 4
          %s4473 = scalar_lea.hbm %s5, %s4472
          %s4474 = sshll.u32 %s4464, 4
          %s4475 = int_to_ptr.vmem [resolvable:$true] %s4474
          %s4476 = sshll.u32 %s4473, 4
          %s4477 = int_to_ptr.hbm [resolvable:$true] %s4476
          %4482 = dma.vmem_to_hbm [thread:$0]  %s4475, 2432, %s4477, %s4461, 128, 128, 8
        $region68: #{tpu_custom_call.1} parent=39 // pred_fallthru
          _
      $region40: #{tpu_custom_call.1} parent=5 // pred_fallthru
        _
      %p4483 = scmp.le.s32.totalorder 2, %s19
      // Predicated region
      $region69: #{tpu_custom_call.1} parent=5 // pred_check
        %p4484 = pneg %p4483
      $region70: #{tpu_custom_call.1} parent=5 // pred_check_branch
        %4486 = sbr.rel (%p4484) target = $region72
      $region71: #{tpu_custom_call.1} parent=5 // pred_region
        %s4487 = ssub.s32 %s19, 2
        // Predicated region
        $region73: #{tpu_custom_call.1} parent=71 // pred_check
          %p4488 = pneg %p185
        $region74: #{tpu_custom_call.1} parent=71 // pred_check_branch
          %4490 = sbr.rel (%p4488) target = $region76
        $region75: #{tpu_custom_call.1} parent=71 // pred_region
          %s4491 = sand.u32 %s170, 1
          %s4492 = scalar_lea.sflag [#allocation5], %s4491
          %s4493 = sand.u32 %s170, 1
          %s4494 = smul.addr %s4493, 152
          %s4495 = scalar_lea.vmem [#allocation11], %s4494
          %4497 = dma.done %s4492, 2432
        $region76: #{tpu_custom_call.1} parent=71 // pred_fallthru
          _
      $region72: #{tpu_custom_call.1} parent=5 // pred_fallthru
        _
    $region6: #{tpu_custom_call.1} parent=1 // loop_footer
      %s23 = sadd.s32 1, %s19
    $region7: #{tpu_custom_call.1} parent=1 // loop_footer_branch
      %18 = sbr.rel target = $region3
    $region8: #{tpu_custom_call.1} parent=1 // loop_exit
      _
    %4498 = vsyncpa [#allocation4], 1
    %s4499 = scalar_lea.sflag [#allocation4], 1
    %4500 = vsyncpa %s4499, 1
    %4501 = vsyncpa [#allocation7], 1
    %4502 = vsyncpa [#allocation10], 1
    %4503 = vsyncpa [#allocation5], 1
    %s4504 = scalar_lea.sflag [#allocation5], 1
    %4505 = vsyncpa %s4504, 1

</llo_original>
